<compile_context>
chip_gen: v6e
topology: v6e:2x2x1
jax: 0.10.0
libtpu: 0.0.40
codegen_flags: <defaults>
</compile_context>

<pallas_src>
import functools
import math

import numpy as np
import jax
import jax.numpy as jnp
from jax.experimental import pallas as pl
from jax.experimental.pallas import tpu as pltpu

_EPS = 1e-5
_MXU_DTYPE = jnp.bfloat16        # MXU operand dtype; accumulation is always f32.
_W_DTYPE = jnp.bfloat16          # storage dtype of weight matrices (halves weight HBM/VMEM)
_VMEM_LIMIT = 32 * 1024 * 1024   # explicit scoped-VMEM limit (safe on v5e/v6e/v7x)
_APPROX_SOFTMAX_RECIP = True     # EUP reciprocal; set False for exact-division validation


def _cparams(n_axes=1):
    return pltpu.CompilerParams(
        dimension_semantics=("parallel",) * n_axes,
        vmem_limit_bytes=_VMEM_LIMIT)


def _round_up(x, m):
    return (x + m - 1) // m * m


def _row_tile(m, target=512):
    t = min(target, _round_up(m, 8))
    return max(8, (t // 8) * 8)


@functools.lru_cache(maxsize=None)
def _group_proj_np(ncols, base_c, groups):
    """Block-diagonal group-averaging matrix P (ncols, ncols), built once (numpy).

    Column j belongs to group ((j % base_c) // (base_c // groups)).  x @ P replaces each
    channel with the mean over the channels of its group (the per-group statistic broadcast
    back to full lane width), so group-norm needs only lane-dense matmuls in-kernel.
    """
    gs = base_c // groups
    gid = (np.arange(ncols) % base_c) // gs
    same = (gid[:, None] == gid[None, :]).astype(np.float32)
    return same / same.sum(axis=0, keepdims=True)


# ----------------------------------------------------------------------------
# in-kernel helpers
# ----------------------------------------------------------------------------

def _dot(a, b):
    """MXU matmul with bf16 operands and f32 accumulation."""
    return jnp.dot(a.astype(_MXU_DTYPE), b.astype(_MXU_DTYPE),
                   preferred_element_type=jnp.float32)


def _gn_rows(x, gamma, beta, P, eps=_EPS):
    """Group norm with per-ROW statistics; rows are independent samples (B, C) inputs."""
    mean = jnp.dot(x, P, preferred_element_type=jnp.float32)      # group mean, broadcast
    d = x - mean
    var = jnp.dot(d * d, P, preferred_element_type=jnp.float32)
    return d * jax.lax.rsqrt(var + eps) * gamma + beta


def _gn_sample(x, gamma, beta, P, eps=_EPS):
    """nn.GroupNorm statistics for ONE sample of tokens x (N, C): per-group statistics over
    all N spatial positions and the group's channels (PyTorch GroupNorm on (1, C, N))."""
    mu_c = jnp.mean(x, axis=0, keepdims=True)                      # (1, C)
    mean = jnp.dot(mu_c, P, preferred_element_type=jnp.float32)    # (1, C) group mean
    d = x - mean
    var_c = jnp.mean(d * d, axis=0, keepdims=True)
    var = jnp.dot(var_c, P, preferred_element_type=jnp.float32)
    return d * jax.lax.rsqrt(var + eps) * gamma + beta


def _softmax_rows(s):
    s = s - jnp.max(s, axis=-1, keepdims=True)
    p = jnp.exp(s)
    den = jnp.sum(p, axis=-1, keepdims=True)
    if _APPROX_SOFTMAX_RECIP:
        return p * pl.reciprocal(den, approx=True)
    return p / den


# ----------------------------------------------------------------------------
# Pallas kernels
# ----------------------------------------------------------------------------

def _dense_gn_rows_kernel(x_ref, w_ref, b_ref, p_ref, g_ref, bt_ref, o_ref, *, act):
    """Row tile of: y = GN(x @ w + b)[; SiLU]   (rows are independent samples)."""
    y = _dot(x_ref[...], w_ref[...]) + b_ref[...]
    y = _gn_rows(y, g_ref[...], bt_ref[...], p_ref[...])
    if act == "silu":
        y = y * jax.nn.sigmoid(y)
    o_ref[...] = y.astype(o_ref.dtype)


def _linear_rows_kernel(x_ref, w_ref, b_ref, o_ref):
    o_ref[...] = (_dot(x_ref[...], w_ref[...]) + b_ref[...]).astype(o_ref.dtype)


def _patch_expand_kernel(x_ref, w_ref, b_ref, p_ref, g_ref, bt_ref, o_ref):
    """One sample: expand (HW, C) -> (HW, 4C) then GroupNorm with per-sample statistics
    (equivalent to GN after the pixel-shuffle rearrange, since GN stats/affine are
    channel-wise and the rearrange only moves values between spatial positions)."""
    x = x_ref[0]
    y = _dot(x, w_ref[...]) + b_ref[...]
    y = _gn_sample(y, g_ref[...], bt_ref[...], p_ref[...])
    o_ref[0] = y.astype(o_ref.dtype)


def _vit_block_kernel(*refs, heads, scale, has_cp, act):
    """Whole pre-norm ViT block for one batch element, fully fused:
       h  = t + proj(MHSA(GN1(t)))     [-> channel projection]
       out = h + fc2(act(fc1(GN2(h))))
    """
    if has_cp:
        (t_ref, p1, g1, b1, wqkv, bqkv, wproj, bproj, wcp, bcp,
         p2, g2, b2, w1, bf1, w2, bf2, o_ref) = refs
    else:
        (t_ref, p1, g1, b1, wqkv, bqkv, wproj, bproj,
         p2, g2, b2, w1, bf1, w2, bf2, o_ref) = refs

    t = t_ref[0]                                   # (N, Cin) f32
    Cin = t.shape[-1]
    D = Cin // heads

    # ---- attention half (pre-norm, residual) ----
    tn = _gn_sample(t, g1[...], b1[...], p1[...])
    qkv = _dot(tn, wqkv[...]) + bqkv[...]          # (N, 3Cin), lane-dense
    # TODO(synk): for large N (real resolutions) switch to a KV-tiled online-softmax
    # (flash-style) loop so the (N, N) score slab never exceeds v7x's 64 MiB VMEM.
    head_outs = []
    for h in range(heads):                         # heads is small -> static unroll
        q = qkv[:, h * D:(h + 1) * D]
        k = qkv[:, Cin + h * D:Cin + (h + 1) * D]
        v = qkv[:, 2 * Cin + h * D:2 * Cin + (h + 1) * D]
        s = jax.lax.dot_general(q.astype(_MXU_DTYPE), k.astype(_MXU_DTYPE),
                                (((1,), (1,)), ((), ())),
                                preferred_element_type=jnp.float32) * scale
        head_outs.append(_dot(_softmax_rows(s), v))            # (N, D)
    o_cat = head_outs[0] if heads == 1 else jnp.concatenate(head_outs, axis=-1)  # (N, Cin)
    y = _dot(o_cat, wproj[...]) + bproj[...]       # single full-K output projection
    h1 = t + y
    if has_cp:
        h1 = _dot(h1, wcp[...]) + bcp[...]         # channel projection Cin -> Cout

    # ---- MLP half (pre-norm, residual) ----
    m = _gn_sample(h1, g2[...], b2[...], p2[...])
    m = _dot(m, w1[...]) + bf1[...]
    if act == "silu":
        m = m * jax.nn.sigmoid(m)
    m = _dot(m, w2[...]) + bf2[...]
    o_ref[0] = (h1 + m).astype(o_ref.dtype)


# ----------------------------------------------------------------------------
# wrappers (glue in XLA, compute in Pallas)
# ----------------------------------------------------------------------------

def _call_rows(kernel, x2, operands, out_cols, tile_target=512):
    """Row-tiled pallas_call: grid over M tiles, weights resident (constant index_map),
    lane-dense output tiles, 'parallel' semantics (megacore on v7x)."""
    M, K = x2.shape
    tm = _row_tile(M, tile_target)
    Mp = _round_up(M, tm)
    xp = x2 if Mp == M else jnp.pad(x2, ((0, Mp - M), (0, 0)))
    in_specs = [pl.BlockSpec((tm, K), lambda i: (i, 0))]
    in_specs += [pl.BlockSpec(op.shape, lambda i: (0, 0)) for op in operands]
    out = pl.pallas_call(
        kernel,
        grid=(Mp // tm,),
        in_specs=in_specs,
        out_specs=pl.BlockSpec((tm, out_cols), lambda i: (i, 0)),
        out_shape=jax.ShapeDtypeStruct((Mp, out_cols), jnp.float32),
        compiler_params=_cparams(1),
    )(xp, *operands)
    return out if Mp == M else out[:M]


def dense_block(x2, prm, groups, act):
    """x2: (B, K) -> GN(x2 @ w + b); SiLU   (per-row stats == per-sample GroupNorm)."""
    n_out = prm["w"].shape[-1]
    P = jnp.asarray(_group_proj_np(n_out, n_out, groups))
    return _call_rows(
        functools.partial(_dense_gn_rows_kernel, act=act),
        x2,
        [prm["w"], prm["b"].reshape(1, n_out), P,
         prm["gamma"].reshape(1, n_out), prm["beta"].reshape(1, n_out)],
        n_out)


def patch_expansion_block(x, prm, groups):
    """(B, H, W, C) -> (B, 2H, 2W, C): fused linear + per-sample GroupNorm on the wide
    (HW, 4C) slab (grid over batch); pixel-shuffle rearrange done once in the wrapper."""
    B, H, W, C = x.shape
    HW = H * W
    x3 = x.reshape(B, HW, C)
    P4 = jnp.asarray(_group_proj_np(4 * C, C, groups))
    g4 = jnp.tile(prm["gamma"], 4).reshape(1, 4 * C)
    b4 = jnp.tile(prm["beta"], 4).reshape(1, 4 * C)
    operands = [prm["w"], prm["b"].reshape(1, 4 * C), P4, g4, b4]
    in_specs = [pl.BlockSpec((1, HW, C), lambda b: (b, 0, 0))]
    in_specs += [pl.BlockSpec(op.shape, lambda b: (0, 0)) for op in operands]
    y = pl.pallas_call(
        _patch_expand_kernel,
        grid=(B,),
        in_specs=in_specs,
        out_specs=pl.BlockSpec((1, HW, 4 * C), lambda b: (b, 0, 0)),
        out_shape=jax.ShapeDtypeStruct((B, HW, 4 * C), jnp.float32),
        compiler_params=_cparams(1),
    )(x3, *operands)
    # TODO(synk): fold this pixel-shuffle rearrange into the consumer's BlockSpec index_map
    # to remove one full HBM read+write pass per up level.
    y = y.reshape(B, H, W, 2, 2, C).transpose(0, 1, 3, 2, 4, 5)
    return y.reshape(B, 2 * H, 2 * W, C)


def vit_block(x, prm, groups, act, heads, qk_scale):
    """Fused pre-norm MHSA + residual (+ optional channel proj) + pre-norm MLP + residual;
    one pallas_call per ViT block, grid over batch ('parallel' -> sharded across TCs)."""
    B, H, W, Cin = x.shape
    N = H * W
    t = x.reshape(B, N, Cin)
    D = Cin // heads
    scale = float(qk_scale) if qk_scale is not None else D ** -0.5
    has_cp = "w_cp" in prm
    Cout = prm["w_cp"].shape[-1] if has_cp else Cin
    Hd = prm["w_fc1"].shape[-1]

    P1 = jnp.asarray(_group_proj_np(Cin, Cin, groups))
    P2 = jnp.asarray(_group_proj_np(Cout, Cout, groups))

    operands = [P1, prm["n1_g"].reshape(1, Cin), prm["n1_b"].reshape(1, Cin),
                prm["w_qkv"], prm["b_qkv"].reshape(1, 3 * Cin),
                prm["w_proj"], prm["b_proj"].reshape(1, Cin)]
    if has_cp:
        operands += [prm["w_cp"], prm["b_cp"].reshape(1, Cout)]
    operands += [P2, prm["n2_g"].reshape(1, Cout), prm["n2_b"].reshape(1, Cout),
                 prm["w_fc1"], prm["b_fc1"].reshape(1, Hd),
                 prm["w_fc2"], prm["b_fc2"].reshape(1, Cout)]

    in_specs = [pl.BlockSpec((1, N, Cin), lambda b: (b, 0, 0))]
    in_specs += [pl.BlockSpec(op.shape, lambda b: (0, 0)) for op in operands]

    out = pl.pallas_call(
        functools.partial(_vit_block_kernel, heads=heads, scale=scale,
                          has_cp=has_cp, act=act),
        grid=(B,),
        in_specs=in_specs,
        out_specs=pl.BlockSpec((1, N, Cout), lambda b: (b, 0, 0)),
        out_shape=jax.ShapeDtypeStruct((B, N, Cout), jnp.float32),
        compiler_params=_cparams(1),
    )(t, *operands)
    return out.reshape(B, H, W, Cout)


def patch_recovery_block(x, prm, patch_size, image_channel):
    B, H, W, C = x.shape
    p = patch_size
    out_cols = p * p * image_channel
    y2 = _call_rows(_linear_rows_kernel, x.reshape(B * H * W, C),
                    [prm["w"], prm["b"].reshape(1, out_cols)], out_cols)
    y = y2.reshape(B, H, W, p, p, image_channel).transpose(0, 1, 3, 2, 4, 5)
    y = y.reshape(B, H * p, W * p, image_channel)
    return y.transpose(0, 3, 1, 2)                 # NCHW output


def vit_decoder_forward(x, params, cfg):
    groups, act = cfg["groups"], cfg["act"]
    # vector embedding (dense path), then reshape to coarse tokens
    h = x
    for dprm in params["dense"]:
        h = dense_block(h, dprm, groups, act)
    h = h.reshape(*cfg["view_shape"])
    # up path: patch expansion + vision-transformer blocks
    for i, (up_prm, trans_prms) in enumerate(zip(params["up"], params["u_trans"])):
        h = patch_expansion_block(h, up_prm, groups)
        for bprm in trans_prms:
            h = vit_block(h, bprm, groups, act, cfg["up_num_heads"][i], cfg["qk_scale"])
    # final vision-transformer blocks
    for i, trans_prms in enumerate(params["final"]):
        for bprm in trans_prms:
            h = vit_block(h, bprm, groups, act, cfg["final_num_heads"][i], cfg["qk_scale"])
    # patch recovery -> NCHW image
    return patch_recovery_block(h, params["patch_recov"],
                                cfg["patch_size"], cfg["image_channel"])


# ----------------------------------------------------------------------------
# deterministic parameter construction (arrays only; weight matrices stored bf16)
# ----------------------------------------------------------------------------

def init_params(key, cfg):
    ctr = [0]

    def nxt():
        ctr[0] += 1
        return jax.random.fold_in(key, ctr[0])

    def W(shape, scale=0.02):
        return (scale * jax.random.normal(nxt(), shape, dtype=jnp.float32)).astype(_W_DTYPE)

    def zeros(shape):
        return jnp.zeros(shape, jnp.float32)

    def ones(shape):
        return jnp.ones(shape, jnp.float32)

    def make_vit_block(cin, cout, ratio):
        p = {
            "n1_g": ones((cin,)), "n1_b": zeros((cin,)),
            "w_qkv": W((cin, 3 * cin)), "b_qkv": zeros((3 * cin,)),
            "w_proj": W((cin, cin)), "b_proj": zeros((cin,)),
        }
        if cin != cout:
            p["w_cp"] = W((cin, cout))
            p["b_cp"] = zeros((cout,))
        hidden = int(cout * ratio)
        p["n2_g"] = ones((cout,))
        p["n2_b"] = zeros((cout,))
        p["w_fc1"] = W((cout, hidden))
        p["b_fc1"] = zeros((hidden,))
        p["w_fc2"] = W((hidden, cout))
        p["b_fc2"] = zeros((cout,))
        return p

    dim = len(cfg["image_size"])
    u_depth = len(cfg["up_channels"])
    dense_path = [cfg["in_channel"]] + cfg["dense_channels"]
    down_factor = cfg["patch_size"] * 2 ** u_depth
    token_hw = [s // down_factor for s in cfg["image_size"]]
    cfg["view_shape"] = (-1, *token_hw, dense_path[-1])
    dense_out = int(dense_path[-1] * math.prod(cfg["image_size"])
                    / (2 ** u_depth * cfg["patch_size"]) ** dim)

    dense_params = []
    for i in range(len(dense_path) - 2):
        dense_params.append({"w": W((dense_path[i], dense_path[i + 1])),
                             "b": zeros((dense_path[i + 1],)),
                             "gamma": ones((dense_path[i + 1],)),
                             "beta": zeros((dense_path[i + 1],))})
    dense_params.append({"w": W((dense_path[-2], dense_out)),
                         "b": zeros((dense_out,)),
                         "gamma": ones((dense_out,)),
                         "beta": zeros((dense_out,))})

    up_path = [dense_path[-1]] + cfg["up_channels"]
    up_params, u_trans_params = [], []
    for i in range(u_depth):
        c = up_path[i]
        up_params.append({"w": W((c, c * (2 ** dim))), "b": zeros((c * (2 ** dim),)),
                          "gamma": ones((c,)), "beta": zeros((c,))})
        blocks = []
        for n in range(cfg["num_blocks"]):
            cin = up_path[i] if n == 0 else up_path[i + 1]
            blocks.append(make_vit_block(cin, up_path[i + 1],
                                         cfg["mlp_hidden_ratios"][0]))
        u_trans_params.append(blocks)

    final_path = [up_path[-1]] + cfg["final_channels"]
    final_params = []
    for i in range(len(cfg["final_channels"])):
        blocks = []
        for n in range(cfg["num_blocks"]):
            cin = final_path[i] if n == 0 else final_path[i + 1]
            blocks.append(make_vit_block(cin, final_path[i + 1],
                                         cfg["mlp_hidden_ratios"][0]))
        final_params.append(blocks)

    p_rec = (cfg["patch_size"] ** dim) * cfg["image_channel"]
    patch_recov_params = {"w": W((final_path[-1], p_rec)), "b": zeros((p_rec,))}

    return {"dense": dense_params, "up": up_params, "u_trans": u_trans_params,
            "final": final_params, "patch_recov": patch_recov_params}


# ----------------------------------------------------------------------------
# main
# ----------------------------------------------------------------------------

if __name__ == "__main__":
    cfg = dict(
        image_size=(16, 16), image_channel=3, in_channel=32, patch_size=2,
        dense_channels=[32], up_channels=[16, 16], final_channels=[16, 16],
        up_num_heads=[2, 2], final_num_heads=[2, 2],
        num_blocks=1, mlp_hidden_ratios=[2.0], groups=4, act="silu",
        qkv_bias=True, qk_scale=None,
    )

    key = jax.random.PRNGKey(0)
    params = init_params(jax.random.fold_in(key, 1), cfg)

    # input latent vector (vector_embedding=True): (batch, in_channel)
    x = jax.random.normal(jax.random.fold_in(key, 2),
                          (2, cfg["in_channel"]), dtype=jnp.float32)

    # cfg is closed over (static); only arrays are traced.
    fwd = jax.jit(lambda xx, pp: vit_decoder_forward(xx, pp, cfg))
    out = fwd(x, params)
    jax.block_until_ready(out)

    expected = (2, cfg["image_channel"], *cfg["image_size"])
    assert out.shape == expected, (out.shape, expected)
    assert bool(jnp.all(jnp.isfinite(out)))
    print("KERNEL_OK")
</pallas_src>

<mosaic_0001>
module attributes {stable_mosaic.version = 11 : i64} {
  func.func @_dense_gn_rows_kernel(%arg0: i32, %arg1: memref<8x32xf32, #tpu.memory_space<vmem>>, %arg2: memref<32x128xbf16, #tpu.memory_space<vmem>>, %arg3: memref<1x128xf32, #tpu.memory_space<vmem>>, %arg4: memref<128x128xf32, #tpu.memory_space<vmem>>, %arg5: memref<1x128xf32, #tpu.memory_space<vmem>>, %arg6: memref<1x128xf32, #tpu.memory_space<vmem>>, %arg7: memref<8x128xf32, #tpu.memory_space<vmem>>) attributes {dimension_semantics = [#tpu.dimension_semantics<parallel>], iteration_bounds = array<i64: 1>, scalar_prefetch = 0 : i64, scratch_operands = 0 : i64, tpu.core_type = #tpu.core_type<tc>, window_params = [{transform_indices = @transform_0, window_bounds = array<i64: 8, 32>}, {pipeline_mode = #tpu.pipeline_mode<synchronous>, transform_indices = @transform_1, window_bounds = array<i64: 32, 128>}, {pipeline_mode = #tpu.pipeline_mode<synchronous>, transform_indices = @transform_2, window_bounds = array<i64: 1, 128>}, {pipeline_mode = #tpu.pipeline_mode<synchronous>, transform_indices = @transform_3, window_bounds = array<i64: 128, 128>}, {pipeline_mode = #tpu.pipeline_mode<synchronous>, transform_indices = @transform_4, window_bounds = array<i64: 1, 128>}, {pipeline_mode = #tpu.pipeline_mode<synchronous>, transform_indices = @transform_5, window_bounds = array<i64: 1, 128>}, {transform_indices = @transform_6, window_bounds = array<i64: 8, 128>}]} {
    %c0 = arith.constant 0 : index
    %c0_0 = arith.constant 0 : index
    %0 = vector.load %arg1[%c0, %c0_0] : memref<8x32xf32, #tpu.memory_space<vmem>>, vector<8x32xf32>
    %c0_1 = arith.constant 0 : index
    %c0_2 = arith.constant 0 : index
    %1 = vector.load %arg2[%c0_1, %c0_2] : memref<32x128xbf16, #tpu.memory_space<vmem>>, vector<32x128xbf16>
    %2 = arith.truncf %0 : vector<8x32xf32> to vector<8x32xbf16>
    %cst = arith.constant dense<0.000000e+00> : vector<8x128xf32>
    %3 = tpu.matmul %2, %1, %cst {dimension_numbers = #tpu.dot_dimension_numbers<[1], [0], [0], [1], [0, 0, 1, 1], [], []>} : vector<8x32xbf16>, vector<32x128xbf16>, vector<8x128xf32> -> vector<8x128xf32>
    %c0_3 = arith.constant 0 : index
    %c0_4 = arith.constant 0 : index
    %4 = vector.load %arg3[%c0_3, %c0_4] : memref<1x128xf32, #tpu.memory_space<vmem>>, vector<1x128xf32>
    %5 = vector.broadcast %4 : vector<1x128xf32> to vector<8x128xf32>
    %6 = arith.addf %3, %5 : vector<8x128xf32>
    %c0_5 = arith.constant 0 : index
    %c0_6 = arith.constant 0 : index
    %7 = vector.load %arg5[%c0_5, %c0_6] : memref<1x128xf32, #tpu.memory_space<vmem>>, vector<1x128xf32>
    %c0_7 = arith.constant 0 : index
    %c0_8 = arith.constant 0 : index
    %8 = vector.load %arg6[%c0_7, %c0_8] : memref<1x128xf32, #tpu.memory_space<vmem>>, vector<1x128xf32>
    %c0_9 = arith.constant 0 : index
    %c0_10 = arith.constant 0 : index
    %9 = vector.load %arg4[%c0_9, %c0_10] : memref<128x128xf32, #tpu.memory_space<vmem>>, vector<128x128xf32>
    %cst_11 = arith.constant dense<0.000000e+00> : vector<8x128xf32>
    %10 = tpu.matmul %6, %9, %cst_11 {dimension_numbers = #tpu.dot_dimension_numbers<[1], [0], [0], [1], [0, 0, 1, 1], [], []>} : vector<8x128xf32>, vector<128x128xf32>, vector<8x128xf32> -> vector<8x128xf32>
    %11 = arith.subf %6, %10 : vector<8x128xf32>
    %12 = arith.mulf %11, %11 : vector<8x128xf32>
    %cst_12 = arith.constant dense<0.000000e+00> : vector<8x128xf32>
    %13 = tpu.matmul %12, %9, %cst_12 {dimension_numbers = #tpu.dot_dimension_numbers<[1], [0], [0], [1], [0, 0, 1, 1], [], []>} : vector<8x128xf32>, vector<128x128xf32>, vector<8x128xf32> -> vector<8x128xf32>
    %cst_13 = arith.constant 9.99999974E-6 : f32
    %14 = vector.broadcast %cst_13 : f32 to vector<8x128xf32>
    %15 = arith.addf %13, %14 : vector<8x128xf32>
    %16 = math.rsqrt %15 : vector<8x128xf32>
    %17 = arith.mulf %11, %16 : vector<8x128xf32>
    %18 = vector.broadcast %7 : vector<1x128xf32> to vector<8x128xf32>
    %19 = arith.mulf %17, %18 : vector<8x128xf32>
    %20 = vector.broadcast %8 : vector<1x128xf32> to vector<8x128xf32>
    %21 = arith.addf %19, %20 : vector<8x128xf32>
    %22 = arith.negf %21 : vector<8x128xf32>
    %23 = math.exp %22 : vector<8x128xf32>
    %cst_14 = arith.constant 1.000000e+00 : f32
    %24 = vector.broadcast %cst_14 : f32 to vector<8x128xf32>
    %25 = arith.addf %24, %23 : vector<8x128xf32>
    %26 = arith.divf %24, %25 : vector<8x128xf32>
    %27 = arith.mulf %21, %26 : vector<8x128xf32>
    %c0_15 = arith.constant 0 : index
    %c0_16 = arith.constant 0 : index
    %28 = vector.load %arg7[%c0_15, %c0_16] : memref<8x128xf32, #tpu.memory_space<vmem>>, vector<8x128xf32>
    tpu.vector_store %arg7[%c0_15, %c0_16], %27 {strides = array<i32>} : memref<8x128xf32, #tpu.memory_space<vmem>>, vector<8x128xf32>,
    return
  }
  func.func @transform_0(%arg0: i32) -> (i32, i32) {
    %c0_i32 = arith.constant 0 : i32
    %c0_i32_0 = arith.constant 0 : i32
    return %arg0, %c0_i32 : i32, i32
  }
  func.func @transform_1(%arg0: i32) -> (i32, i32) {
    %c0_i32 = arith.constant 0 : i32
    %c0_i32_0 = arith.constant 0 : i32
    %c0_i32_1 = arith.constant 0 : i32
    return %c0_i32, %c0_i32_0 : i32, i32
  }
  func.func @transform_2(%arg0: i32) -> (i32, i32) {
    %c0_i32 = arith.constant 0 : i32
    %c0_i32_0 = arith.constant 0 : i32
    %c0_i32_1 = arith.constant 0 : i32
    return %c0_i32, %c0_i32_0 : i32, i32
  }
  func.func @transform_3(%arg0: i32) -> (i32, i32) {
    %c0_i32 = arith.constant 0 : i32
    %c0_i32_0 = arith.constant 0 : i32
    %c0_i32_1 = arith.constant 0 : i32
    return %c0_i32, %c0_i32_0 : i32, i32
  }
  func.func @transform_4(%arg0: i32) -> (i32, i32) {
    %c0_i32 = arith.constant 0 : i32
    %c0_i32_0 = arith.constant 0 : i32
    %c0_i32_1 = arith.constant 0 : i32
    return %c0_i32, %c0_i32_0 : i32, i32
  }
  func.func @transform_5(%arg0: i32) -> (i32, i32) {
    %c0_i32 = arith.constant 0 : i32
    %c0_i32_0 = arith.constant 0 : i32
    %c0_i32_1 = arith.constant 0 : i32
    return %c0_i32, %c0_i32_0 : i32, i32
  }
  func.func @transform_6(%arg0: i32) -> (i32, i32) {
    %c0_i32 = arith.constant 0 : i32
    %c0_i32_0 = arith.constant 0 : i32
    return %arg0, %c0_i32 : i32, i32
  }
}

module attributes {stable_mosaic.version = 11 : i64} {
  func.func @_patch_expand_kernel(%arg0: i32, %arg1: memref<1x4x32xf32, #tpu.memory_space<vmem>>, %arg2: memref<32x128xbf16, #tpu.memory_space<vmem>>, %arg3: memref<1x128xf32, #tpu.memory_space<vmem>>, %arg4: memref<128x128xf32, #tpu.memory_space<vmem>>, %arg5: memref<1x128xf32, #tpu.memory_space<vmem>>, %arg6: memref<1x128xf32, #tpu.memory_space<vmem>>, %arg7: memref<1x4x128xf32, #tpu.memory_space<vmem>>) attributes {dimension_semantics = [#tpu.dimension_semantics<parallel>], iteration_bounds = array<i64: 2>, scalar_prefetch = 0 : i64, scratch_operands = 0 : i64, tpu.core_type = #tpu.core_type<tc>, window_params = [{transform_indices = @transform_0, window_bounds = array<i64: 1, 4, 32>}, {pipeline_mode = #tpu.pipeline_mode<synchronous>, transform_indices = @transform_1, window_bounds = array<i64: 32, 128>}, {pipeline_mode = #tpu.pipeline_mode<synchronous>, transform_indices = @transform_2, window_bounds = array<i64: 1, 128>}, {pipeline_mode = #tpu.pipeline_mode<synchronous>, transform_indices = @transform_3, window_bounds = array<i64: 128, 128>}, {pipeline_mode = #tpu.pipeline_mode<synchronous>, transform_indices = @transform_4, window_bounds = array<i64: 1, 128>}, {pipeline_mode = #tpu.pipeline_mode<synchronous>, transform_indices = @transform_5, window_bounds = array<i64: 1, 128>}, {transform_indices = @transform_6, window_bounds = array<i64: 1, 4, 128>}]} {
    %c0 = arith.constant 0 : index
    %c0_0 = arith.constant 0 : index
    %c0_1 = arith.constant 0 : index
    %0 = vector.load %arg1[%c0, %c0_0, %c0_1] : memref<1x4x32xf32, #tpu.memory_space<vmem>>, vector<1x4x32xf32>
    %1 = vector.shape_cast %0 : vector<1x4x32xf32> to vector<4x32xf32>
    %c0_2 = arith.constant 0 : index
    %c0_3 = arith.constant 0 : index
    %2 = vector.load %arg2[%c0_2, %c0_3] : memref<32x128xbf16, #tpu.memory_space<vmem>>, vector<32x128xbf16>
    %3 = arith.truncf %1 : vector<4x32xf32> to vector<4x32xbf16>
    %cst = arith.constant dense<0.000000e+00> : vector<4x128xf32>
    %4 = tpu.matmul %3, %2, %cst {dimension_numbers = #tpu.dot_dimension_numbers<[1], [0], [0], [1], [0, 0, 1, 1], [], []>} : vector<4x32xbf16>, vector<32x128xbf16>, vector<4x128xf32> -> vector<4x128xf32>
    %c0_4 = arith.constant 0 : index
    %c0_5 = arith.constant 0 : index
    %5 = vector.load %arg3[%c0_4, %c0_5] : memref<1x128xf32, #tpu.memory_space<vmem>>, vector<1x128xf32>
    %6 = vector.broadcast %5 : vector<1x128xf32> to vector<4x128xf32>
    %7 = arith.addf %4, %6 : vector<4x128xf32>
    %c0_6 = arith.constant 0 : index
    %c0_7 = arith.constant 0 : index
    %8 = vector.load %arg5[%c0_6, %c0_7] : memref<1x128xf32, #tpu.memory_space<vmem>>, vector<1x128xf32>
    %c0_8 = arith.constant 0 : index
    %c0_9 = arith.constant 0 : index
    %9 = vector.load %arg6[%c0_8, %c0_9] : memref<1x128xf32, #tpu.memory_space<vmem>>, vector<1x128xf32>
    %c0_10 = arith.constant 0 : index
    %c0_11 = arith.constant 0 : index
    %10 = vector.load %arg4[%c0_10, %c0_11] : memref<128x128xf32, #tpu.memory_space<vmem>>, vector<128x128xf32>
    %cst_12 = arith.constant dense<0.000000e+00> : vector<128xf32>
    %11 = vector.multi_reduction <add>, %7, %cst_12 [0] : vector<4x128xf32> to vector<128xf32>
    %12 = vector.shape_cast %11 : vector<128xf32> to vector<1x128xf32>
    %cst_13 = arith.constant 4.000000e+00 : f32
    %13 = vector.broadcast %cst_13 : f32 to vector<1x128xf32>
    %14 = arith.divf %12, %13 : vector<1x128xf32>
    %cst_14 = arith.constant dense<0.000000e+00> : vector<1x128xf32>
    %15 = tpu.matmul %14, %10, %cst_14 {dimension_numbers = #tpu.dot_dimension_numbers<[1], [0], [0], [1], [0, 0, 1, 1], [], []>} : vector<1x128xf32>, vector<128x128xf32>, vector<1x128xf32> -> vector<1x128xf32>
    %16 = vector.broadcast %15 : vector<1x128xf32> to vector<4x128xf32>
    %17 = arith.subf %7, %16 : vector<4x128xf32>
    %18 = arith.mulf %17, %17 : vector<4x128xf32>
    %cst_15 = arith.constant dense<0.000000e+00> : vector<128xf32>
    %19 = vector.multi_reduction <add>, %18, %cst_15 [0] : vector<4x128xf32> to vector<128xf32>
    %20 = vector.shape_cast %19 : vector<128xf32> to vector<1x128xf32>
    %cst_16 = arith.constant 4.000000e+00 : f32
    %21 = vector.broadcast %cst_16 : f32 to vector<1x128xf32>
    %22 = arith.divf %20, %21 : vector<1x128xf32>
    %cst_17 = arith.constant dense<0.000000e+00> : vector<1x128xf32>
    %23 = tpu.matmul %22, %10, %cst_17 {dimension_numbers = #tpu.dot_dimension_numbers<[1], [0], [0], [1], [0, 0, 1, 1], [], []>} : vector<1x128xf32>, vector<128x128xf32>, vector<1x128xf32> -> vector<1x128xf32>
    %cst_18 = arith.constant 9.99999974E-6 : f32
    %24 = vector.broadcast %cst_18 : f32 to vector<1x128xf32>
    %25 = arith.addf %23, %24 : vector<1x128xf32>
    %26 = math.rsqrt %25 : vector<1x128xf32>
    %27 = vector.broadcast %26 : vector<1x128xf32> to vector<4x128xf32>
    %28 = arith.mulf %17, %27 : vector<4x128xf32>
    %29 = vector.broadcast %8 : vector<1x128xf32> to vector<4x128xf32>
    %30 = arith.mulf %28, %29 : vector<4x128xf32>
    %31 = vector.broadcast %9 : vector<1x128xf32> to vector<4x128xf32>
    %32 = arith.addf %30, %31 : vector<4x128xf32>
    %c0_19 = arith.constant 0 : index
    %c0_20 = arith.constant 0 : index
    %c0_21 = arith.constant 0 : index
    %33 = vector.load %arg7[%c0_19, %c0_20, %c0_21] : memref<1x4x128xf32, #tpu.memory_space<vmem>>, vector<1x4x128xf32>
    %34 = vector.shape_cast %33 : vector<1x4x128xf32> to vector<4x128xf32>
    %35 = vector.shape_cast %32 : vector<4x128xf32> to vector<1x4x128xf32>
    tpu.vector_store %arg7[%c0_19, %c0_20, %c0_21], %35 {strides = array<i32>} : memref<1x4x128xf32, #tpu.memory_space<vmem>>, vector<1x4x128xf32>,
    return
  }
  func.func @transform_0(%arg0: i32) -> (i32, i32, i32) {
    %c0_i32 = arith.constant 0 : i32
    %c0_i32_0 = arith.constant 0 : i32
    %c0_i32_1 = arith.constant 0 : i32
    return %arg0, %c0_i32, %c0_i32_0 : i32, i32, i32
  }
  func.func @transform_1(%arg0: i32) -> (i32, i32) {
    %c0_i32 = arith.constant 0 : i32
    %c0_i32_0 = arith.constant 0 : i32
    %c0_i32_1 = arith.constant 0 : i32
    return %c0_i32, %c0_i32_0 : i32, i32
  }
  func.func @transform_2(%arg0: i32) -> (i32, i32) {
    %c0_i32 = arith.constant 0 : i32
    %c0_i32_0 = arith.constant 0 : i32
    %c0_i32_1 = arith.constant 0 : i32
    return %c0_i32, %c0_i32_0 : i32, i32
  }
  func.func @transform_3(%arg0: i32) -> (i32, i32) {
    %c0_i32 = arith.constant 0 : i32
    %c0_i32_0 = arith.constant 0 : i32
    %c0_i32_1 = arith.constant 0 : i32
    return %c0_i32, %c0_i32_0 : i32, i32
  }
  func.func @transform_4(%arg0: i32) -> (i32, i32) {
    %c0_i32 = arith.constant 0 : i32
    %c0_i32_0 = arith.constant 0 : i32
    %c0_i32_1 = arith.constant 0 : i32
    return %c0_i32, %c0_i32_0 : i32, i32
  }
  func.func @transform_5(%arg0: i32) -> (i32, i32) {
    %c0_i32 = arith.constant 0 : i32
    %c0_i32_0 = arith.constant 0 : i32
    %c0_i32_1 = arith.constant 0 : i32
    return %c0_i32, %c0_i32_0 : i32, i32
  }
  func.func @transform_6(%arg0: i32) -> (i32, i32, i32) {
    %c0_i32 = arith.constant 0 : i32
    %c0_i32_0 = arith.constant 0 : i32
    %c0_i32_1 = arith.constant 0 : i32
    return %arg0, %c0_i32, %c0_i32_0 : i32, i32, i32
  }
}

module attributes {stable_mosaic.version = 11 : i64} {
  func.func @_patch_expand_kernel(%arg0: i32, %arg1: memref<1x16x16xf32, #tpu.memory_space<vmem>>, %arg2: memref<16x64xbf16, #tpu.memory_space<vmem>>, %arg3: memref<1x64xf32, #tpu.memory_space<vmem>>, %arg4: memref<64x64xf32, #tpu.memory_space<vmem>>, %arg5: memref<1x64xf32, #tpu.memory_space<vmem>>, %arg6: memref<1x64xf32, #tpu.memory_space<vmem>>, %arg7: memref<1x16x64xf32, #tpu.memory_space<vmem>>) attributes {dimension_semantics = [#tpu.dimension_semantics<parallel>], iteration_bounds = array<i64: 2>, scalar_prefetch = 0 : i64, scratch_operands = 0 : i64, tpu.core_type = #tpu.core_type<tc>, window_params = [{transform_indices = @transform_0, window_bounds = array<i64: 1, 16, 16>}, {pipeline_mode = #tpu.pipeline_mode<synchronous>, transform_indices = @transform_1, window_bounds = array<i64: 16, 64>}, {pipeline_mode = #tpu.pipeline_mode<synchronous>, transform_indices = @transform_2, window_bounds = array<i64: 1, 64>}, {pipeline_mode = #tpu.pipeline_mode<synchronous>, transform_indices = @transform_3, window_bounds = array<i64: 64, 64>}, {pipeline_mode = #tpu.pipeline_mode<synchronous>, transform_indices = @transform_4, window_bounds = array<i64: 1, 64>}, {pipeline_mode = #tpu.pipeline_mode<synchronous>, transform_indices = @transform_5, window_bounds = array<i64: 1, 64>}, {transform_indices = @transform_6, window_bounds = array<i64: 1, 16, 64>}]} {
    %c0 = arith.constant 0 : index
    %c0_0 = arith.constant 0 : index
    %c0_1 = arith.constant 0 : index
    %0 = vector.load %arg1[%c0, %c0_0, %c0_1] : memref<1x16x16xf32, #tpu.memory_space<vmem>>, vector<1x16x16xf32>
    %1 = vector.shape_cast %0 : vector<1x16x16xf32> to vector<16x16xf32>
    %c0_2 = arith.constant 0 : index
    %c0_3 = arith.constant 0 : index
    %2 = vector.load %arg2[%c0_2, %c0_3] : memref<16x64xbf16, #tpu.memory_space<vmem>>, vector<16x64xbf16>
    %3 = arith.truncf %1 : vector<16x16xf32> to vector<16x16xbf16>
    %cst = arith.constant dense<0.000000e+00> : vector<16x64xf32>
    %4 = tpu.matmul %3, %2, %cst {dimension_numbers = #tpu.dot_dimension_numbers<[1], [0], [0], [1], [0, 0, 1, 1], [], []>} : vector<16x16xbf16>, vector<16x64xbf16>, vector<16x64xf32> -> vector<16x64xf32>
    %c0_4 = arith.constant 0 : index
    %c0_5 = arith.constant 0 : index
    %5 = vector.load %arg3[%c0_4, %c0_5] : memref<1x64xf32, #tpu.memory_space<vmem>>, vector<1x64xf32>
    %6 = vector.broadcast %5 : vector<1x64xf32> to vector<16x64xf32>
    %7 = arith.addf %4, %6 : vector<16x64xf32>
    %c0_6 = arith.constant 0 : index
    %c0_7 = arith.constant 0 : index
    %8 = vector.load %arg5[%c0_6, %c0_7] : memref<1x64xf32, #tpu.memory_space<vmem>>, vector<1x64xf32>
    %c0_8 = arith.constant 0 : index
    %c0_9 = arith.constant 0 : index
    %9 = vector.load %arg6[%c0_8, %c0_9] : memref<1x64xf32, #tpu.memory_space<vmem>>, vector<1x64xf32>
    %c0_10 = arith.constant 0 : index
    %c0_11 = arith.constant 0 : index
    %10 = vector.load %arg4[%c0_10, %c0_11] : memref<64x64xf32, #tpu.memory_space<vmem>>, vector<64x64xf32>
    %cst_12 = arith.constant dense<0.000000e+00> : vector<64xf32>
    %11 = vector.multi_reduction <add>, %7, %cst_12 [0] : vector<16x64xf32> to vector<64xf32>
    %12 = vector.shape_cast %11 : vector<64xf32> to vector<1x64xf32>
    %cst_13 = arith.constant 1.600000e+01 : f32
    %13 = vector.broadcast %cst_13 : f32 to vector<1x64xf32>
    %14 = arith.divf %12, %13 : vector<1x64xf32>
    %cst_14 = arith.constant dense<0.000000e+00> : vector<1x64xf32>
    %15 = tpu.matmul %14, %10, %cst_14 {dimension_numbers = #tpu.dot_dimension_numbers<[1], [0], [0], [1], [0, 0, 1, 1], [], []>} : vector<1x64xf32>, vector<64x64xf32>, vector<1x64xf32> -> vector<1x64xf32>
    %16 = vector.broadcast %15 : vector<1x64xf32> to vector<16x64xf32>
    %17 = arith.subf %7, %16 : vector<16x64xf32>
    %18 = arith.mulf %17, %17 : vector<16x64xf32>
    %cst_15 = arith.constant dense<0.000000e+00> : vector<64xf32>
    %19 = vector.multi_reduction <add>, %18, %cst_15 [0] : vector<16x64xf32> to vector<64xf32>
    %20 = vector.shape_cast %19 : vector<64xf32> to vector<1x64xf32>
    %cst_16 = arith.constant 1.600000e+01 : f32
    %21 = vector.broadcast %cst_16 : f32 to vector<1x64xf32>
    %22 = arith.divf %20, %21 : vector<1x64xf32>
    %cst_17 = arith.constant dense<0.000000e+00> : vector<1x64xf32>
    %23 = tpu.matmul %22, %10, %cst_17 {dimension_numbers = #tpu.dot_dimension_numbers<[1], [0], [0], [1], [0, 0, 1, 1], [], []>} : vector<1x64xf32>, vector<64x64xf32>, vector<1x64xf32> -> vector<1x64xf32>
    %cst_18 = arith.constant 9.99999974E-6 : f32
    %24 = vector.broadcast %cst_18 : f32 to vector<1x64xf32>
    %25 = arith.addf %23, %24 : vector<1x64xf32>
    %26 = math.rsqrt %25 : vector<1x64xf32>
    %27 = vector.broadcast %26 : vector<1x64xf32> to vector<16x64xf32>
    %28 = arith.mulf %17, %27 : vector<16x64xf32>
    %29 = vector.broadcast %8 : vector<1x64xf32> to vector<16x64xf32>
    %30 = arith.mulf %28, %29 : vector<16x64xf32>
    %31 = vector.broadcast %9 : vector<1x64xf32> to vector<16x64xf32>
    %32 = arith.addf %30, %31 : vector<16x64xf32>
    %c0_19 = arith.constant 0 : index
    %c0_20 = arith.constant 0 : index
    %c0_21 = arith.constant 0 : index
    %33 = vector.load %arg7[%c0_19, %c0_20, %c0_21] : memref<1x16x64xf32, #tpu.memory_space<vmem>>, vector<1x16x64xf32>
    %34 = vector.shape_cast %33 : vector<1x16x64xf32> to vector<16x64xf32>
    %35 = vector.shape_cast %32 : vector<16x64xf32> to vector<1x16x64xf32>
    tpu.vector_store %arg7[%c0_19, %c0_20, %c0_21], %35 {strides = array<i32>} : memref<1x16x64xf32, #tpu.memory_space<vmem>>, vector<1x16x64xf32>,
    return
  }
  func.func @transform_0(%arg0: i32) -> (i32, i32, i32) {
    %c0_i32 = arith.constant 0 : i32
    %c0_i32_0 = arith.constant 0 : i32
    %c0_i32_1 = arith.constant 0 : i32
    return %arg0, %c0_i32, %c0_i32_0 : i32, i32, i32
  }
  func.func @transform_1(%arg0: i32) -> (i32, i32) {
    %c0_i32 = arith.constant 0 : i32
    %c0_i32_0 = arith.constant 0 : i32
    %c0_i32_1 = arith.constant 0 : i32
    return %c0_i32, %c0_i32_0 : i32, i32
  }
  func.func @transform_2(%arg0: i32) -> (i32, i32) {
    %c0_i32 = arith.constant 0 : i32
    %c0_i32_0 = arith.constant 0 : i32
    %c0_i32_1 = arith.constant 0 : i32
    return %c0_i32, %c0_i32_0 : i32, i32
  }
  func.func @transform_3(%arg0: i32) -> (i32, i32) {
    %c0_i32 = arith.constant 0 : i32
    %c0_i32_0 = arith.constant 0 : i32
    %c0_i32_1 = arith.constant 0 : i32
    return %c0_i32, %c0_i32_0 : i32, i32
  }
  func.func @transform_4(%arg0: i32) -> (i32, i32) {
    %c0_i32 = arith.constant 0 : i32
    %c0_i32_0 = arith.constant 0 : i32
    %c0_i32_1 = arith.constant 0 : i32
    return %c0_i32, %c0_i32_0 : i32, i32
  }
  func.func @transform_5(%arg0: i32) -> (i32, i32) {
    %c0_i32 = arith.constant 0 : i32
    %c0_i32_0 = arith.constant 0 : i32
    %c0_i32_1 = arith.constant 0 : i32
    return %c0_i32, %c0_i32_0 : i32, i32
  }
  func.func @transform_6(%arg0: i32) -> (i32, i32, i32) {
    %c0_i32 = arith.constant 0 : i32
    %c0_i32_0 = arith.constant 0 : i32
    %c0_i32_1 = arith.constant 0 : i32
    return %arg0, %c0_i32, %c0_i32_0 : i32, i32, i32
  }
}

module attributes {stable_mosaic.version = 11 : i64} {
  func.func @_vit_block_kernel(%arg0: i32, %arg1: memref<1x16x32xf32, #tpu.memory_space<vmem>>, %arg2: memref<32x32xf32, #tpu.memory_space<vmem>>, %arg3: memref<1x32xf32, #tpu.memory_space<vmem>>, %arg4: memref<1x32xf32, #tpu.memory_space<vmem>>, %arg5: memref<32x96xbf16, #tpu.memory_space<vmem>>, %arg6: memref<1x96xf32, #tpu.memory_space<vmem>>, %arg7: memref<32x32xbf16, #tpu.memory_space<vmem>>, %arg8: memref<1x32xf32, #tpu.memory_space<vmem>>, %arg9: memref<32x16xbf16, #tpu.memory_space<vmem>>, %arg10: memref<1x16xf32, #tpu.memory_space<vmem>>, %arg11: memref<16x16xf32, #tpu.memory_space<vmem>>, %arg12: memref<1x16xf32, #tpu.memory_space<vmem>>, %arg13: memref<1x16xf32, #tpu.memory_space<vmem>>, %arg14: memref<16x32xbf16, #tpu.memory_space<vmem>>, %arg15: memref<1x32xf32, #tpu.memory_space<vmem>>, %arg16: memref<32x16xbf16, #tpu.memory_space<vmem>>, %arg17: memref<1x16xf32, #tpu.memory_space<vmem>>, %arg18: memref<1x16x16xf32, #tpu.memory_space<vmem>>) attributes {dimension_semantics = [#tpu.dimension_semantics<parallel>], iteration_bounds = array<i64: 2>, scalar_prefetch = 0 : i64, scratch_operands = 0 : i64, tpu.core_type = #tpu.core_type<tc>, window_params = [{transform_indices = @transform_0, window_bounds = array<i64: 1, 16, 32>}, {pipeline_mode = #tpu.pipeline_mode<synchronous>, transform_indices = @transform_1, window_bounds = array<i64: 32, 32>}, {pipeline_mode = #tpu.pipeline_mode<synchronous>, transform_indices = @transform_2, window_bounds = array<i64: 1, 32>}, {pipeline_mode = #tpu.pipeline_mode<synchronous>, transform_indices = @transform_3, window_bounds = array<i64: 1, 32>}, {pipeline_mode = #tpu.pipeline_mode<synchronous>, transform_indices = @transform_4, window_bounds = array<i64: 32, 96>}, {pipeline_mode = #tpu.pipeline_mode<synchronous>, transform_indices = @transform_5, window_bounds = array<i64: 1, 96>}, {pipeline_mode = #tpu.pipeline_mode<synchronous>, transform_indices = @transform_6, window_bounds = array<i64: 32, 32>}, {pipeline_mode = #tpu.pipeline_mode<synchronous>, transform_indices = @transform_7, window_bounds = array<i64: 1, 32>}, {pipeline_mode = #tpu.pipeline_mode<synchronous>, transform_indices = @transform_8, window_bounds = array<i64: 32, 16>}, {pipeline_mode = #tpu.pipeline_mode<synchronous>, transform_indices = @transform_9, window_bounds = array<i64: 1, 16>}, {pipeline_mode = #tpu.pipeline_mode<synchronous>, transform_indices = @transform_10, window_bounds = array<i64: 16, 16>}, {pipeline_mode = #tpu.pipeline_mode<synchronous>, transform_indices = @transform_11, window_bounds = array<i64: 1, 16>}, {pipeline_mode = #tpu.pipeline_mode<synchronous>, transform_indices = @transform_12, window_bounds = array<i64: 1, 16>}, {pipeline_mode = #tpu.pipeline_mode<synchronous>, transform_indices = @transform_13, window_bounds = array<i64: 16, 32>}, {pipeline_mode = #tpu.pipeline_mode<synchronous>, transform_indices = @transform_14, window_bounds = array<i64: 1, 32>}, {pipeline_mode = #tpu.pipeline_mode<synchronous>, transform_indices = @transform_15, window_bounds = array<i64: 32, 16>}, {pipeline_mode = #tpu.pipeline_mode<synchronous>, transform_indices = @transform_16, window_bounds = array<i64: 1, 16>}, {transform_indices = @transform_17, window_bounds = array<i64: 1, 16, 16>}]} {
    %c0 = arith.constant 0 : index
    %c0_0 = arith.constant 0 : index
    %c0_1 = arith.constant 0 : index
    %0 = vector.load %arg1[%c0, %c0_0, %c0_1] : memref<1x16x32xf32, #tpu.memory_space<vmem>>, vector<1x16x32xf32>
    %1 = vector.shape_cast %0 : vector<1x16x32xf32> to vector<16x32xf32>
    %c0_2 = arith.constant 0 : index
    %c0_3 = arith.constant 0 : index
    %2 = vector.load %arg3[%c0_2, %c0_3] : memref<1x32xf32, #tpu.memory_space<vmem>>, vector<1x32xf32>
    %c0_4 = arith.constant 0 : index
    %c0_5 = arith.constant 0 : index
    %3 = vector.load %arg4[%c0_4, %c0_5] : memref<1x32xf32, #tpu.memory_space<vmem>>, vector<1x32xf32>
    %c0_6 = arith.constant 0 : index
    %c0_7 = arith.constant 0 : index
    %4 = vector.load %arg2[%c0_6, %c0_7] : memref<32x32xf32, #tpu.memory_space<vmem>>, vector<32x32xf32>
    %cst = arith.constant dense<0.000000e+00> : vector<32xf32>
    %5 = vector.multi_reduction <add>, %1, %cst [0] : vector<16x32xf32> to vector<32xf32>
    %6 = vector.shape_cast %5 : vector<32xf32> to vector<1x32xf32>
    %cst_8 = arith.constant 1.600000e+01 : f32
    %7 = vector.broadcast %cst_8 : f32 to vector<1x32xf32>
    %8 = arith.divf %6, %7 : vector<1x32xf32>
    %cst_9 = arith.constant dense<0.000000e+00> : vector<1x32xf32>
    %9 = tpu.matmul %8, %4, %cst_9 {dimension_numbers = #tpu.dot_dimension_numbers<[1], [0], [0], [1], [0, 0, 1, 1], [], []>} : vector<1x32xf32>, vector<32x32xf32>, vector<1x32xf32> -> vector<1x32xf32>
    %10 = vector.broadcast %9 : vector<1x32xf32> to vector<16x32xf32>
    %11 = arith.subf %1, %10 : vector<16x32xf32>
    %12 = arith.mulf %11, %11 : vector<16x32xf32>
    %cst_10 = arith.constant dense<0.000000e+00> : vector<32xf32>
    %13 = vector.multi_reduction <add>, %12, %cst_10 [0] : vector<16x32xf32> to vector<32xf32>
    %14 = vector.shape_cast %13 : vector<32xf32> to vector<1x32xf32>
    %cst_11 = arith.constant 1.600000e+01 : f32
    %15 = vector.broadcast %cst_11 : f32 to vector<1x32xf32>
    %16 = arith.divf %14, %15 : vector<1x32xf32>
    %cst_12 = arith.constant dense<0.000000e+00> : vector<1x32xf32>
    %17 = tpu.matmul %16, %4, %cst_12 {dimension_numbers = #tpu.dot_dimension_numbers<[1], [0], [0], [1], [0, 0, 1, 1], [], []>} : vector<1x32xf32>, vector<32x32xf32>, vector<1x32xf32> -> vector<1x32xf32>
    %cst_13 = arith.constant 9.99999974E-6 : f32
    %18 = vector.broadcast %cst_13 : f32 to vector<1x32xf32>
    %19 = arith.addf %17, %18 : vector<1x32xf32>
    %20 = math.rsqrt %19 : vector<1x32xf32>
    %21 = vector.broadcast %20 : vector<1x32xf32> to vector<16x32xf32>
    %22 = arith.mulf %11, %21 : vector<16x32xf32>
    %23 = vector.broadcast %2 : vector<1x32xf32> to vector<16x32xf32>
    %24 = arith.mulf %22, %23 : vector<16x32xf32>
    %25 = vector.broadcast %3 : vector<1x32xf32> to vector<16x32xf32>
    %26 = arith.addf %24, %25 : vector<16x32xf32>
    %c0_14 = arith.constant 0 : index
    %c0_15 = arith.constant 0 : index
    %27 = vector.load %arg5[%c0_14, %c0_15] : memref<32x96xbf16, #tpu.memory_space<vmem>>, vector<32x96xbf16>
    %28 = arith.truncf %26 : vector<16x32xf32> to vector<16x32xbf16>
    %cst_16 = arith.constant dense<0.000000e+00> : vector<16x96xf32>
    %29 = tpu.matmul %28, %27, %cst_16 {dimension_numbers = #tpu.dot_dimension_numbers<[1], [0], [0], [1], [0, 0, 1, 1], [], []>} : vector<16x32xbf16>, vector<32x96xbf16>, vector<16x96xf32> -> vector<16x96xf32>
    %c0_17 = arith.constant 0 : index
    %c0_18 = arith.constant 0 : index
    %30 = vector.load %arg6[%c0_17, %c0_18] : memref<1x96xf32, #tpu.memory_space<vmem>>, vector<1x96xf32>
    %31 = vector.broadcast %30 : vector<1x96xf32> to vector<16x96xf32>
    %32 = arith.addf %29, %31 : vector<16x96xf32>
    %33 = vector.extract_strided_slice %32 {offsets = [0, 0], sizes = [16, 16], strides = [1, 1]} : vector<16x96xf32> to vector<16x16xf32>
    %34 = vector.extract_strided_slice %32 {offsets = [0, 32], sizes = [16, 16], strides = [1, 1]} : vector<16x96xf32> to vector<16x16xf32>
    %35 = vector.extract_strided_slice %32 {offsets = [0, 64], sizes = [16, 16], strides = [1, 1]} : vector<16x96xf32> to vector<16x16xf32>
    %36 = arith.truncf %33 : vector<16x16xf32> to vector<16x16xbf16>
    %37 = arith.truncf %34 : vector<16x16xf32> to vector<16x16xbf16>
    %cst_19 = arith.constant dense<0.000000e+00> : vector<16x16xf32>
    %38 = tpu.matmul %36, %37, %cst_19 {dimension_numbers = #tpu.dot_dimension_numbers<[1], [1], [0], [0], [0, 0, 1, 0], [], []>} : vector<16x16xbf16>, vector<16x16xbf16>, vector<16x16xf32> -> vector<16x16xf32>
    %cst_20 = arith.constant 2.500000e-01 : f32
    %39 = vector.broadcast %cst_20 : f32 to vector<16x16xf32>
    %40 = arith.mulf %38, %39 : vector<16x16xf32>
    %cst_21 = arith.constant dense<0xFF800000> : vector<16xf32>
    %41 = vector.multi_reduction <maximumf>, %40, %cst_21 [1] : vector<16x16xf32> to vector<16xf32>
    %42 = vector.shape_cast %41 : vector<16xf32> to vector<16x1xf32>
    %43 = vector.broadcast %42 : vector<16x1xf32> to vector<16x16xf32>
    %44 = arith.subf %40, %43 : vector<16x16xf32>
    %45 = math.exp %44 : vector<16x16xf32>
    %cst_22 = arith.constant dense<0.000000e+00> : vector<16xf32>
    %46 = vector.multi_reduction <add>, %45, %cst_22 [1] : vector<16x16xf32> to vector<16xf32>
    %47 = vector.shape_cast %46 : vector<16xf32> to vector<16x1xf32>
    %48 = tpu.reciprocal %47 {approx = true} : vector<16x1xf32> -> vector<16x1xf32>
    %49 = vector.broadcast %48 : vector<16x1xf32> to vector<16x16xf32>
    %50 = arith.mulf %45, %49 : vector<16x16xf32>
    %51 = arith.truncf %50 : vector<16x16xf32> to vector<16x16xbf16>
    %52 = arith.truncf %35 : vector<16x16xf32> to vector<16x16xbf16>
    %cst_23 = arith.constant dense<0.000000e+00> : vector<16x16xf32>
    %53 = tpu.matmul %51, %52, %cst_23 {dimension_numbers = #tpu.dot_dimension_numbers<[1], [0], [0], [1], [0, 0, 1, 1], [], []>} : vector<16x16xbf16>, vector<16x16xbf16>, vector<16x16xf32> -> vector<16x16xf32>
    %54 = vector.extract_strided_slice %32 {offsets = [0, 16], sizes = [16, 16], strides = [1, 1]} : vector<16x96xf32> to vector<16x16xf32>
    %55 = vector.extract_strided_slice %32 {offsets = [0, 48], sizes = [16, 16], strides = [1, 1]} : vector<16x96xf32> to vector<16x16xf32>
    %56 = vector.extract_strided_slice %32 {offsets = [0, 80], sizes = [16, 16], strides = [1, 1]} : vector<16x96xf32> to vector<16x16xf32>
    %57 = arith.truncf %54 : vector<16x16xf32> to vector<16x16xbf16>
    %58 = arith.truncf %55 : vector<16x16xf32> to vector<16x16xbf16>
    %cst_24 = arith.constant dense<0.000000e+00> : vector<16x16xf32>
    %59 = tpu.matmul %57, %58, %cst_24 {dimension_numbers = #tpu.dot_dimension_numbers<[1], [1], [0], [0], [0, 0, 1, 0], [], []>} : vector<16x16xbf16>, vector<16x16xbf16>, vector<16x16xf32> -> vector<16x16xf32>
    %cst_25 = arith.constant 2.500000e-01 : f32
    %60 = vector.broadcast %cst_25 : f32 to vector<16x16xf32>
    %61 = arith.mulf %59, %60 : vector<16x16xf32>
    %cst_26 = arith.constant dense<0xFF800000> : vector<16xf32>
    %62 = vector.multi_reduction <maximumf>, %61, %cst_26 [1] : vector<16x16xf32> to vector<16xf32>
    %63 = vector.shape_cast %62 : vector<16xf32> to vector<16x1xf32>
    %64 = vector.broadcast %63 : vector<16x1xf32> to vector<16x16xf32>
    %65 = arith.subf %61, %64 : vector<16x16xf32>
    %66 = math.exp %65 : vector<16x16xf32>
    %cst_27 = arith.constant dense<0.000000e+00> : vector<16xf32>
    %67 = vector.multi_reduction <add>, %66, %cst_27 [1] : vector<16x16xf32> to vector<16xf32>
    %68 = vector.shape_cast %67 : vector<16xf32> to vector<16x1xf32>
    %69 = tpu.reciprocal %68 {approx = true} : vector<16x1xf32> -> vector<16x1xf32>
    %70 = vector.broadcast %69 : vector<16x1xf32> to vector<16x16xf32>
    %71 = arith.mulf %66, %70 : vector<16x16xf32>
    %72 = arith.truncf %71 : vector<16x16xf32> to vector<16x16xbf16>
    %73 = arith.truncf %56 : vector<16x16xf32> to vector<16x16xbf16>
    %cst_28 = arith.constant dense<0.000000e+00> : vector<16x16xf32>
    %74 = tpu.matmul %72, %73, %cst_28 {dimension_numbers = #tpu.dot_dimension_numbers<[1], [0], [0], [1], [0, 0, 1, 1], [], []>} : vector<16x16xbf16>, vector<16x16xbf16>, vector<16x16xf32> -> vector<16x16xf32>
    %75 = tpu.concatenate %53, %74 in 1 : vector<16x16xf32>, vector<16x16xf32> -> vector<16x32xf32>
    %c0_29 = arith.constant 0 : index
    %c0_30 = arith.constant 0 : index
    %76 = vector.load %arg7[%c0_29, %c0_30] : memref<32x32xbf16, #tpu.memory_space<vmem>>, vector<32x32xbf16>
    %77 = arith.truncf %75 : vector<16x32xf32> to vector<16x32xbf16>
    %cst_31 = arith.constant dense<0.000000e+00> : vector<16x32xf32>
    %78 = tpu.matmul %77, %76, %cst_31 {dimension_numbers = #tpu.dot_dimension_numbers<[1], [0], [0], [1], [0, 0, 1, 1], [], []>} : vector<16x32xbf16>, vector<32x32xbf16>, vector<16x32xf32> -> vector<16x32xf32>
    %c0_32 = arith.constant 0 : index
    %c0_33 = arith.constant 0 : index
    %79 = vector.load %arg8[%c0_32, %c0_33] : memref<1x32xf32, #tpu.memory_space<vmem>>, vector<1x32xf32>
    %80 = vector.broadcast %79 : vector<1x32xf32> to vector<16x32xf32>
    %81 = arith.addf %78, %80 : vector<16x32xf32>
    %82 = arith.addf %1, %81 : vector<16x32xf32>
    %c0_34 = arith.constant 0 : index
    %c0_35 = arith.constant 0 : index
    %83 = vector.load %arg9[%c0_34, %c0_35] : memref<32x16xbf16, #tpu.memory_space<vmem>>, vector<32x16xbf16>
    %84 = arith.truncf %82 : vector<16x32xf32> to vector<16x32xbf16>
    %cst_36 = arith.constant dense<0.000000e+00> : vector<16x16xf32>
    %85 = tpu.matmul %84, %83, %cst_36 {dimension_numbers = #tpu.dot_dimension_numbers<[1], [0], [0], [1], [0, 0, 1, 1], [], []>} : vector<16x32xbf16>, vector<32x16xbf16>, vector<16x16xf32> -> vector<16x16xf32>
    %c0_37 = arith.constant 0 : index
    %c0_38 = arith.constant 0 : index
    %86 = vector.load %arg10[%c0_37, %c0_38] : memref<1x16xf32, #tpu.memory_space<vmem>>, vector<1x16xf32>
    %87 = vector.broadcast %86 : vector<1x16xf32> to vector<16x16xf32>
    %88 = arith.addf %85, %87 : vector<16x16xf32>
    %c0_39 = arith.constant 0 : index
    %c0_40 = arith.constant 0 : index
    %89 = vector.load %arg12[%c0_39, %c0_40] : memref<1x16xf32, #tpu.memory_space<vmem>>, vector<1x16xf32>
    %c0_41 = arith.constant 0 : index
    %c0_42 = arith.constant 0 : index
    %90 = vector.load %arg13[%c0_41, %c0_42] : memref<1x16xf32, #tpu.memory_space<vmem>>, vector<1x16xf32>
    %c0_43 = arith.constant 0 : index
    %c0_44 = arith.constant 0 : index
    %91 = vector.load %arg11[%c0_43, %c0_44] : memref<16x16xf32, #tpu.memory_space<vmem>>, vector<16x16xf32>
    %cst_45 = arith.constant dense<0.000000e+00> : vector<16xf32>
    %92 = vector.multi_reduction <add>, %88, %cst_45 [0] : vector<16x16xf32> to vector<16xf32>
    %93 = vector.shape_cast %92 : vector<16xf32> to vector<1x16xf32>
    %cst_46 = arith.constant 1.600000e+01 : f32
    %94 = vector.broadcast %cst_46 : f32 to vector<1x16xf32>
    %95 = arith.divf %93, %94 : vector<1x16xf32>
    %cst_47 = arith.constant dense<0.000000e+00> : vector<1x16xf32>
    %96 = tpu.matmul %95, %91, %cst_47 {dimension_numbers = #tpu.dot_dimension_numbers<[1], [0], [0], [1], [0, 0, 1, 1], [], []>} : vector<1x16xf32>, vector<16x16xf32>, vector<1x16xf32> -> vector<1x16xf32>
    %97 = vector.broadcast %96 : vector<1x16xf32> to vector<16x16xf32>
    %98 = arith.subf %88, %97 : vector<16x16xf32>
    %99 = arith.mulf %98, %98 : vector<16x16xf32>
    %cst_48 = arith.constant dense<0.000000e+00> : vector<16xf32>
    %100 = vector.multi_reduction <add>, %99, %cst_48 [0] : vector<16x16xf32> to vector<16xf32>
    %101 = vector.shape_cast %100 : vector<16xf32> to vector<1x16xf32>
    %cst_49 = arith.constant 1.600000e+01 : f32
    %102 = vector.broadcast %cst_49 : f32 to vector<1x16xf32>
    %103 = arith.divf %101, %102 : vector<1x16xf32>
    %cst_50 = arith.constant dense<0.000000e+00> : vector<1x16xf32>
    %104 = tpu.matmul %103, %91, %cst_50 {dimension_numbers = #tpu.dot_dimension_numbers<[1], [0], [0], [1], [0, 0, 1, 1], [], []>} : vector<1x16xf32>, vector<16x16xf32>, vector<1x16xf32> -> vector<1x16xf32>
    %cst_51 = arith.constant 9.99999974E-6 : f32
    %105 = vector.broadcast %cst_51 : f32 to vector<1x16xf32>
    %106 = arith.addf %104, %105 : vector<1x16xf32>
    %107 = math.rsqrt %106 : vector<1x16xf32>
    %108 = vector.broadcast %107 : vector<1x16xf32> to vector<16x16xf32>
    %109 = arith.mulf %98, %108 : vector<16x16xf32>
    %110 = vector.broadcast %89 : vector<1x16xf32> to vector<16x16xf32>
    %111 = arith.mulf %109, %110 : vector<16x16xf32>
    %112 = vector.broadcast %90 : vector<1x16xf32> to vector<16x16xf32>
    %113 = arith.addf %111, %112 : vector<16x16xf32>
    %c0_52 = arith.constant 0 : index
    %c0_53 = arith.constant 0 : index
    %114 = vector.load %arg14[%c0_52, %c0_53] : memref<16x32xbf16, #tpu.memory_space<vmem>>, vector<16x32xbf16>
    %115 = arith.truncf %113 : vector<16x16xf32> to vector<16x16xbf16>
    %cst_54 = arith.constant dense<0.000000e+00> : vector<16x32xf32>
    %116 = tpu.matmul %115, %114, %cst_54 {dimension_numbers = #tpu.dot_dimension_numbers<[1], [0], [0], [1], [0, 0, 1, 1], [], []>} : vector<16x16xbf16>, vector<16x32xbf16>, vector<16x32xf32> -> vector<16x32xf32>
    %c0_55 = arith.constant 0 : index
    %c0_56 = arith.constant 0 : index
    %117 = vector.load %arg15[%c0_55, %c0_56] : memref<1x32xf32, #tpu.memory_space<vmem>>, vector<1x32xf32>
    %118 = vector.broadcast %117 : vector<1x32xf32> to vector<16x32xf32>
    %119 = arith.addf %116, %118 : vector<16x32xf32>
    %120 = arith.negf %119 : vector<16x32xf32>
    %121 = math.exp %120 : vector<16x32xf32>
    %cst_57 = arith.constant 1.000000e+00 : f32
    %122 = vector.broadcast %cst_57 : f32 to vector<16x32xf32>
    %123 = arith.addf %122, %121 : vector<16x32xf32>
    %124 = arith.divf %122, %123 : vector<16x32xf32>
    %125 = arith.mulf %119, %124 : vector<16x32xf32>
    %c0_58 = arith.constant 0 : index
    %c0_59 = arith.constant 0 : index
    %126 = vector.load %arg16[%c0_58, %c0_59] : memref<32x16xbf16, #tpu.memory_space<vmem>>, vector<32x16xbf16>
    %127 = arith.truncf %125 : vector<16x32xf32> to vector<16x32xbf16>
    %cst_60 = arith.constant dense<0.000000e+00> : vector<16x16xf32>
    %128 = tpu.matmul %127, %126, %cst_60 {dimension_numbers = #tpu.dot_dimension_numbers<[1], [0], [0], [1], [0, 0, 1, 1], [], []>} : vector<16x32xbf16>, vector<32x16xbf16>, vector<16x16xf32> -> vector<16x16xf32>
    %c0_61 = arith.constant 0 : index
    %c0_62 = arith.constant 0 : index
    %129 = vector.load %arg17[%c0_61, %c0_62] : memref<1x16xf32, #tpu.memory_space<vmem>>, vector<1x16xf32>
    %130 = vector.broadcast %129 : vector<1x16xf32> to vector<16x16xf32>
    %131 = arith.addf %128, %130 : vector<16x16xf32>
    %132 = arith.addf %88, %131 : vector<16x16xf32>
    %c0_63 = arith.constant 0 : index
    %c0_64 = arith.constant 0 : index
    %c0_65 = arith.constant 0 : index
    %133 = vector.load %arg18[%c0_63, %c0_64, %c0_65] : memref<1x16x16xf32, #tpu.memory_space<vmem>>, vector<1x16x16xf32>
    %134 = vector.shape_cast %133 : vector<1x16x16xf32> to vector<16x16xf32>
    %135 = vector.shape_cast %132 : vector<16x16xf32> to vector<1x16x16xf32>
    tpu.vector_store %arg18[%c0_63, %c0_64, %c0_65], %135 {strides = array<i32>} : memref<1x16x16xf32, #tpu.memory_space<vmem>>, vector<1x16x16xf32>,
    return
  }
  func.func @transform_0(%arg0: i32) -> (i32, i32, i32) {
    %c0_i32 = arith.constant 0 : i32
    %c0_i32_0 = arith.constant 0 : i32
    %c0_i32_1 = arith.constant 0 : i32
    return %arg0, %c0_i32, %c0_i32_0 : i32, i32, i32
  }
  func.func @transform_1(%arg0: i32) -> (i32, i32) {
    %c0_i32 = arith.constant 0 : i32
    %c0_i32_0 = arith.constant 0 : i32
    %c0_i32_1 = arith.constant 0 : i32
    return %c0_i32, %c0_i32_0 : i32, i32
  }
  func.func @transform_2(%arg0: i32) -> (i32, i32) {
    %c0_i32 = arith.constant 0 : i32
    %c0_i32_0 = arith.constant 0 : i32
    %c0_i32_1 = arith.constant 0 : i32
    return %c0_i32, %c0_i32_0 : i32, i32
  }
  func.func @transform_3(%arg0: i32) -> (i32, i32) {
    %c0_i32 = arith.constant 0 : i32
    %c0_i32_0 = arith.constant 0 : i32
    %c0_i32_1 = arith.constant 0 : i32
    return %c0_i32, %c0_i32_0 : i32, i32
  }
  func.func @transform_4(%arg0: i32) -> (i32, i32) {
    %c0_i32 = arith.constant 0 : i32
    %c0_i32_0 = arith.constant 0 : i32
    %c0_i32_1 = arith.constant 0 : i32
    return %c0_i32, %c0_i32_0 : i32, i32
  }
  func.func @transform_5(%arg0: i32) -> (i32, i32) {
    %c0_i32 = arith.constant 0 : i32
    %c0_i32_0 = arith.constant 0 : i32
    %c0_i32_1 = arith.constant 0 : i32
    return %c0_i32, %c0_i32_0 : i32, i32
  }
  func.func @transform_6(%arg0: i32) -> (i32, i32) {
    %c0_i32 = arith.constant 0 : i32
    %c0_i32_0 = arith.constant 0 : i32
    %c0_i32_1 = arith.constant 0 : i32
    return %c0_i32, %c0_i32_0 : i32, i32
  }
  func.func @transform_7(%arg0: i32) -> (i32, i32) {
    %c0_i32 = arith.constant 0 : i32
    %c0_i32_0 = arith.constant 0 : i32
    %c0_i32_1 = arith.constant 0 : i32
    return %c0_i32, %c0_i32_0 : i32, i32
  }
  func.func @transform_8(%arg0: i32) -> (i32, i32) {
    %c0_i32 = arith.constant 0 : i32
    %c0_i32_0 = arith.constant 0 : i32
    %c0_i32_1 = arith.constant 0 : i32
    return %c0_i32, %c0_i32_0 : i32, i32
  }
  func.func @transform_9(%arg0: i32) -> (i32, i32) {
    %c0_i32 = arith.constant 0 : i32
    %c0_i32_0 = arith.constant 0 : i32
    %c0_i32_1 = arith.constant 0 : i32
    return %c0_i32, %c0_i32_0 : i32, i32
  }
  func.func @transform_10(%arg0: i32) -> (i32, i32) {
    %c0_i32 = arith.constant 0 : i32
    %c0_i32_0 = arith.constant 0 : i32
    %c0_i32_1 = arith.constant 0 : i32
    return %c0_i32, %c0_i32_0 : i32, i32
  }
  func.func @transform_11(%arg0: i32) -> (i32, i32) {
    %c0_i32 = arith.constant 0 : i32
    %c0_i32_0 = arith.constant 0 : i32
    %c0_i32_1 = arith.constant 0 : i32
    return %c0_i32, %c0_i32_0 : i32, i32
  }
  func.func @transform_12(%arg0: i32) -> (i32, i32) {
    %c0_i32 = arith.constant 0 : i32
    %c0_i32_0 = arith.constant 0 : i32
    %c0_i32_1 = arith.constant 0 : i32
    return %c0_i32, %c0_i32_0 : i32, i32
  }
  func.func @transform_13(%arg0: i32) -> (i32, i32) {
    %c0_i32 = arith.constant 0 : i32
    %c0_i32_0 = arith.constant 0 : i32
    %c0_i32_1 = arith.constant 0 : i32
    return %c0_i32, %c0_i32_0 : i32, i32
  }
  func.func @transform_14(%arg0: i32) -> (i32, i32) {
    %c0_i32 = arith.constant 0 : i32
    %c0_i32_0 = arith.constant 0 : i32
    %c0_i32_1 = arith.constant 0 : i32
    return %c0_i32, %c0_i32_0 : i32, i32
  }
  func.func @transform_15(%arg0: i32) -> (i32, i32) {
    %c0_i32 = arith.constant 0 : i32
    %c0_i32_0 = arith.constant 0 : i32
    %c0_i32_1 = arith.constant 0 : i32
    return %c0_i32, %c0_i32_0 : i32, i32
  }
  func.func @transform_16(%arg0: i32) -> (i32, i32) {
    %c0_i32 = arith.constant 0 : i32
    %c0_i32_0 = arith.constant 0 : i32
    %c0_i32_1 = arith.constant 0 : i32
    return %c0_i32, %c0_i32_0 : i32, i32
  }
  func.func @transform_17(%arg0: i32) -> (i32, i32, i32) {
    %c0_i32 = arith.constant 0 : i32
    %c0_i32_0 = arith.constant 0 : i32
    %c0_i32_1 = arith.constant 0 : i32
    return %arg0, %c0_i32, %c0_i32_0 : i32, i32, i32
  }
}

module attributes {stable_mosaic.version = 11 : i64} {
  func.func @_vit_block_kernel(%arg0: i32, %arg1: memref<1x64x16xf32, #tpu.memory_space<vmem>>, %arg2: memref<16x16xf32, #tpu.memory_space<vmem>>, %arg3: memref<1x16xf32, #tpu.memory_space<vmem>>, %arg4: memref<1x16xf32, #tpu.memory_space<vmem>>, %arg5: memref<16x48xbf16, #tpu.memory_space<vmem>>, %arg6: memref<1x48xf32, #tpu.memory_space<vmem>>, %arg7: memref<16x16xbf16, #tpu.memory_space<vmem>>, %arg8: memref<1x16xf32, #tpu.memory_space<vmem>>, %arg9: memref<16x16xf32, #tpu.memory_space<vmem>>, %arg10: memref<1x16xf32, #tpu.memory_space<vmem>>, %arg11: memref<1x16xf32, #tpu.memory_space<vmem>>, %arg12: memref<16x32xbf16, #tpu.memory_space<vmem>>, %arg13: memref<1x32xf32, #tpu.memory_space<vmem>>, %arg14: memref<32x16xbf16, #tpu.memory_space<vmem>>, %arg15: memref<1x16xf32, #tpu.memory_space<vmem>>, %arg16: memref<1x64x16xf32, #tpu.memory_space<vmem>>) attributes {dimension_semantics = [#tpu.dimension_semantics<parallel>], iteration_bounds = array<i64: 2>, scalar_prefetch = 0 : i64, scratch_operands = 0 : i64, tpu.core_type = #tpu.core_type<tc>, window_params = [{transform_indices = @transform_0, window_bounds = array<i64: 1, 64, 16>}, {pipeline_mode = #tpu.pipeline_mode<synchronous>, transform_indices = @transform_1, window_bounds = array<i64: 16, 16>}, {pipeline_mode = #tpu.pipeline_mode<synchronous>, transform_indices = @transform_2, window_bounds = array<i64: 1, 16>}, {pipeline_mode = #tpu.pipeline_mode<synchronous>, transform_indices = @transform_3, window_bounds = array<i64: 1, 16>}, {pipeline_mode = #tpu.pipeline_mode<synchronous>, transform_indices = @transform_4, window_bounds = array<i64: 16, 48>}, {pipeline_mode = #tpu.pipeline_mode<synchronous>, transform_indices = @transform_5, window_bounds = array<i64: 1, 48>}, {pipeline_mode = #tpu.pipeline_mode<synchronous>, transform_indices = @transform_6, window_bounds = array<i64: 16, 16>}, {pipeline_mode = #tpu.pipeline_mode<synchronous>, transform_indices = @transform_7, window_bounds = array<i64: 1, 16>}, {pipeline_mode = #tpu.pipeline_mode<synchronous>, transform_indices = @transform_8, window_bounds = array<i64: 16, 16>}, {pipeline_mode = #tpu.pipeline_mode<synchronous>, transform_indices = @transform_9, window_bounds = array<i64: 1, 16>}, {pipeline_mode = #tpu.pipeline_mode<synchronous>, transform_indices = @transform_10, window_bounds = array<i64: 1, 16>}, {pipeline_mode = #tpu.pipeline_mode<synchronous>, transform_indices = @transform_11, window_bounds = array<i64: 16, 32>}, {pipeline_mode = #tpu.pipeline_mode<synchronous>, transform_indices = @transform_12, window_bounds = array<i64: 1, 32>}, {pipeline_mode = #tpu.pipeline_mode<synchronous>, transform_indices = @transform_13, window_bounds = array<i64: 32, 16>}, {pipeline_mode = #tpu.pipeline_mode<synchronous>, transform_indices = @transform_14, window_bounds = array<i64: 1, 16>}, {transform_indices = @transform_15, window_bounds = array<i64: 1, 64, 16>}]} {
    %c0 = arith.constant 0 : index
    %c0_0 = arith.constant 0 : index
    %c0_1 = arith.constant 0 : index
    %0 = vector.load %arg1[%c0, %c0_0, %c0_1] : memref<1x64x16xf32, #tpu.memory_space<vmem>>, vector<1x64x16xf32>
    %1 = vector.shape_cast %0 : vector<1x64x16xf32> to vector<64x16xf32>
    %c0_2 = arith.constant 0 : index
    %c0_3 = arith.constant 0 : index
    %2 = vector.load %arg3[%c0_2, %c0_3] : memref<1x16xf32, #tpu.memory_space<vmem>>, vector<1x16xf32>
    %c0_4 = arith.constant 0 : index
    %c0_5 = arith.constant 0 : index
    %3 = vector.load %arg4[%c0_4, %c0_5] : memref<1x16xf32, #tpu.memory_space<vmem>>, vector<1x16xf32>
    %c0_6 = arith.constant 0 : index
    %c0_7 = arith.constant 0 : index
    %4 = vector.load %arg2[%c0_6, %c0_7] : memref<16x16xf32, #tpu.memory_space<vmem>>, vector<16x16xf32>
    %cst = arith.constant dense<0.000000e+00> : vector<16xf32>
    %5 = vector.multi_reduction <add>, %1, %cst [0] : vector<64x16xf32> to vector<16xf32>
    %6 = vector.shape_cast %5 : vector<16xf32> to vector<1x16xf32>
    %cst_8 = arith.constant 6.400000e+01 : f32
    %7 = vector.broadcast %cst_8 : f32 to vector<1x16xf32>
    %8 = arith.divf %6, %7 : vector<1x16xf32>
    %cst_9 = arith.constant dense<0.000000e+00> : vector<1x16xf32>
    %9 = tpu.matmul %8, %4, %cst_9 {dimension_numbers = #tpu.dot_dimension_numbers<[1], [0], [0], [1], [0, 0, 1, 1], [], []>} : vector<1x16xf32>, vector<16x16xf32>, vector<1x16xf32> -> vector<1x16xf32>
    %10 = vector.broadcast %9 : vector<1x16xf32> to vector<64x16xf32>
    %11 = arith.subf %1, %10 : vector<64x16xf32>
    %12 = arith.mulf %11, %11 : vector<64x16xf32>
    %cst_10 = arith.constant dense<0.000000e+00> : vector<16xf32>
    %13 = vector.multi_reduction <add>, %12, %cst_10 [0] : vector<64x16xf32> to vector<16xf32>
    %14 = vector.shape_cast %13 : vector<16xf32> to vector<1x16xf32>
    %cst_11 = arith.constant 6.400000e+01 : f32
    %15 = vector.broadcast %cst_11 : f32 to vector<1x16xf32>
    %16 = arith.divf %14, %15 : vector<1x16xf32>
    %cst_12 = arith.constant dense<0.000000e+00> : vector<1x16xf32>
    %17 = tpu.matmul %16, %4, %cst_12 {dimension_numbers = #tpu.dot_dimension_numbers<[1], [0], [0], [1], [0, 0, 1, 1], [], []>} : vector<1x16xf32>, vector<16x16xf32>, vector<1x16xf32> -> vector<1x16xf32>
    %cst_13 = arith.constant 9.99999974E-6 : f32
    %18 = vector.broadcast %cst_13 : f32 to vector<1x16xf32>
    %19 = arith.addf %17, %18 : vector<1x16xf32>
    %20 = math.rsqrt %19 : vector<1x16xf32>
    %21 = vector.broadcast %20 : vector<1x16xf32> to vector<64x16xf32>
    %22 = arith.mulf %11, %21 : vector<64x16xf32>
    %23 = vector.broadcast %2 : vector<1x16xf32> to vector<64x16xf32>
    %24 = arith.mulf %22, %23 : vector<64x16xf32>
    %25 = vector.broadcast %3 : vector<1x16xf32> to vector<64x16xf32>
    %26 = arith.addf %24, %25 : vector<64x16xf32>
    %c0_14 = arith.constant 0 : index
    %c0_15 = arith.constant 0 : index
    %27 = vector.load %arg5[%c0_14, %c0_15] : memref<16x48xbf16, #tpu.memory_space<vmem>>, vector<16x48xbf16>
    %28 = arith.truncf %26 : vector<64x16xf32> to vector<64x16xbf16>
    %cst_16 = arith.constant dense<0.000000e+00> : vector<64x48xf32>
    %29 = tpu.matmul %28, %27, %cst_16 {dimension_numbers = #tpu.dot_dimension_numbers<[1], [0], [0], [1], [0, 0, 1, 1], [], []>} : vector<64x16xbf16>, vector<16x48xbf16>, vector<64x48xf32> -> vector<64x48xf32>
    %c0_17 = arith.constant 0 : index
    %c0_18 = arith.constant 0 : index
    %30 = vector.load %arg6[%c0_17, %c0_18] : memref<1x48xf32, #tpu.memory_space<vmem>>, vector<1x48xf32>
    %31 = vector.broadcast %30 : vector<1x48xf32> to vector<64x48xf32>
    %32 = arith.addf %29, %31 : vector<64x48xf32>
    %33 = vector.extract_strided_slice %32 {offsets = [0, 0], sizes = [64, 8], strides = [1, 1]} : vector<64x48xf32> to vector<64x8xf32>
    %34 = vector.extract_strided_slice %32 {offsets = [0, 16], sizes = [64, 8], strides = [1, 1]} : vector<64x48xf32> to vector<64x8xf32>
    %35 = vector.extract_strided_slice %32 {offsets = [0, 32], sizes = [64, 8], strides = [1, 1]} : vector<64x48xf32> to vector<64x8xf32>
    %36 = arith.truncf %33 : vector<64x8xf32> to vector<64x8xbf16>
    %37 = arith.truncf %34 : vector<64x8xf32> to vector<64x8xbf16>
    %cst_19 = arith.constant dense<0.000000e+00> : vector<64x64xf32>
    %38 = tpu.matmul %36, %37, %cst_19 {dimension_numbers = #tpu.dot_dimension_numbers<[1], [1], [0], [0], [0, 0, 1, 0], [], []>} : vector<64x8xbf16>, vector<64x8xbf16>, vector<64x64xf32> -> vector<64x64xf32>
    %cst_20 = arith.constant 0.353553385 : f32
    %39 = vector.broadcast %cst_20 : f32 to vector<64x64xf32>
    %40 = arith.mulf %38, %39 : vector<64x64xf32>
    %cst_21 = arith.constant dense<0xFF800000> : vector<64xf32>
    %41 = vector.multi_reduction <maximumf>, %40, %cst_21 [1] : vector<64x64xf32> to vector<64xf32>
    %42 = vector.shape_cast %41 : vector<64xf32> to vector<64x1xf32>
    %43 = vector.broadcast %42 : vector<64x1xf32> to vector<64x64xf32>
    %44 = arith.subf %40, %43 : vector<64x64xf32>
    %45 = math.exp %44 : vector<64x64xf32>
    %cst_22 = arith.constant dense<0.000000e+00> : vector<64xf32>
    %46 = vector.multi_reduction <add>, %45, %cst_22 [1] : vector<64x64xf32> to vector<64xf32>
    %47 = vector.shape_cast %46 : vector<64xf32> to vector<64x1xf32>
    %48 = tpu.reciprocal %47 {approx = true} : vector<64x1xf32> -> vector<64x1xf32>
    %49 = vector.broadcast %48 : vector<64x1xf32> to vector<64x64xf32>
    %50 = arith.mulf %45, %49 : vector<64x64xf32>
    %51 = arith.truncf %50 : vector<64x64xf32> to vector<64x64xbf16>
    %52 = arith.truncf %35 : vector<64x8xf32> to vector<64x8xbf16>
    %cst_23 = arith.constant dense<0.000000e+00> : vector<64x8xf32>
    %53 = tpu.matmul %51, %52, %cst_23 {dimension_numbers = #tpu.dot_dimension_numbers<[1], [0], [0], [1], [0, 0, 1, 1], [], []>} : vector<64x64xbf16>, vector<64x8xbf16>, vector<64x8xf32> -> vector<64x8xf32>
    %54 = vector.extract_strided_slice %32 {offsets = [0, 8], sizes = [64, 8], strides = [1, 1]} : vector<64x48xf32> to vector<64x8xf32>
    %55 = vector.extract_strided_slice %32 {offsets = [0, 24], sizes = [64, 8], strides = [1, 1]} : vector<64x48xf32> to vector<64x8xf32>
    %56 = vector.extract_strided_slice %32 {offsets = [0, 40], sizes = [64, 8], strides = [1, 1]} : vector<64x48xf32> to vector<64x8xf32>
    %57 = arith.truncf %54 : vector<64x8xf32> to vector<64x8xbf16>
    %58 = arith.truncf %55 : vector<64x8xf32> to vector<64x8xbf16>
    %cst_24 = arith.constant dense<0.000000e+00> : vector<64x64xf32>
    %59 = tpu.matmul %57, %58, %cst_24 {dimension_numbers = #tpu.dot_dimension_numbers<[1], [1], [0], [0], [0, 0, 1, 0], [], []>} : vector<64x8xbf16>, vector<64x8xbf16>, vector<64x64xf32> -> vector<64x64xf32>
    %cst_25 = arith.constant 0.353553385 : f32
    %60 = vector.broadcast %cst_25 : f32 to vector<64x64xf32>
    %61 = arith.mulf %59, %60 : vector<64x64xf32>
    %cst_26 = arith.constant dense<0xFF800000> : vector<64xf32>
    %62 = vector.multi_reduction <maximumf>, %61, %cst_26 [1] : vector<64x64xf32> to vector<64xf32>
    %63 = vector.shape_cast %62 : vector<64xf32> to vector<64x1xf32>
    %64 = vector.broadcast %63 : vector<64x1xf32> to vector<64x64xf32>
    %65 = arith.subf %61, %64 : vector<64x64xf32>
    %66 = math.exp %65 : vector<64x64xf32>
    %cst_27 = arith.constant dense<0.000000e+00> : vector<64xf32>
    %67 = vector.multi_reduction <add>, %66, %cst_27 [1] : vector<64x64xf32> to vector<64xf32>
    %68 = vector.shape_cast %67 : vector<64xf32> to vector<64x1xf32>
    %69 = tpu.reciprocal %68 {approx = true} : vector<64x1xf32> -> vector<64x1xf32>
    %70 = vector.broadcast %69 : vector<64x1xf32> to vector<64x64xf32>
    %71 = arith.mulf %66, %70 : vector<64x64xf32>
    %72 = arith.truncf %71 : vector<64x64xf32> to vector<64x64xbf16>
    %73 = arith.truncf %56 : vector<64x8xf32> to vector<64x8xbf16>
    %cst_28 = arith.constant dense<0.000000e+00> : vector<64x8xf32>
    %74 = tpu.matmul %72, %73, %cst_28 {dimension_numbers = #tpu.dot_dimension_numbers<[1], [0], [0], [1], [0, 0, 1, 1], [], []>} : vector<64x64xbf16>, vector<64x8xbf16>, vector<64x8xf32> -> vector<64x8xf32>
    %75 = tpu.concatenate %53, %74 in 1 : vector<64x8xf32>, vector<64x8xf32> -> vector<64x16xf32>
    %c0_29 = arith.constant 0 : index
    %c0_30 = arith.constant 0 : index
    %76 = vector.load %arg7[%c0_29, %c0_30] : memref<16x16xbf16, #tpu.memory_space<vmem>>, vector<16x16xbf16>
    %77 = arith.truncf %75 : vector<64x16xf32> to vector<64x16xbf16>
    %cst_31 = arith.constant dense<0.000000e+00> : vector<64x16xf32>
    %78 = tpu.matmul %77, %76, %cst_31 {dimension_numbers = #tpu.dot_dimension_numbers<[1], [0], [0], [1], [0, 0, 1, 1], [], []>} : vector<64x16xbf16>, vector<16x16xbf16>, vector<64x16xf32> -> vector<64x16xf32>
    %c0_32 = arith.constant 0 : index
    %c0_33 = arith.constant 0 : index
    %79 = vector.load %arg8[%c0_32, %c0_33] : memref<1x16xf32, #tpu.memory_space<vmem>>, vector<1x16xf32>
    %80 = vector.broadcast %79 : vector<1x16xf32> to vector<64x16xf32>
    %81 = arith.addf %78, %80 : vector<64x16xf32>
    %82 = arith.addf %1, %81 : vector<64x16xf32>
    %c0_34 = arith.constant 0 : index
    %c0_35 = arith.constant 0 : index
    %83 = vector.load %arg10[%c0_34, %c0_35] : memref<1x16xf32, #tpu.memory_space<vmem>>, vector<1x16xf32>
    %c0_36 = arith.constant 0 : index
    %c0_37 = arith.constant 0 : index
    %84 = vector.load %arg11[%c0_36, %c0_37] : memref<1x16xf32, #tpu.memory_space<vmem>>, vector<1x16xf32>
    %c0_38 = arith.constant 0 : index
    %c0_39 = arith.constant 0 : index
    %85 = vector.load %arg9[%c0_38, %c0_39] : memref<16x16xf32, #tpu.memory_space<vmem>>, vector<16x16xf32>
    %cst_40 = arith.constant dense<0.000000e+00> : vector<16xf32>
    %86 = vector.multi_reduction <add>, %82, %cst_40 [0] : vector<64x16xf32> to vector<16xf32>
    %87 = vector.shape_cast %86 : vector<16xf32> to vector<1x16xf32>
    %cst_41 = arith.constant 6.400000e+01 : f32
    %88 = vector.broadcast %cst_41 : f32 to vector<1x16xf32>
    %89 = arith.divf %87, %88 : vector<1x16xf32>
    %cst_42 = arith.constant dense<0.000000e+00> : vector<1x16xf32>
    %90 = tpu.matmul %89, %85, %cst_42 {dimension_numbers = #tpu.dot_dimension_numbers<[1], [0], [0], [1], [0, 0, 1, 1], [], []>} : vector<1x16xf32>, vector<16x16xf32>, vector<1x16xf32> -> vector<1x16xf32>
    %91 = vector.broadcast %90 : vector<1x16xf32> to vector<64x16xf32>
    %92 = arith.subf %82, %91 : vector<64x16xf32>
    %93 = arith.mulf %92, %92 : vector<64x16xf32>
    %cst_43 = arith.constant dense<0.000000e+00> : vector<16xf32>
    %94 = vector.multi_reduction <add>, %93, %cst_43 [0] : vector<64x16xf32> to vector<16xf32>
    %95 = vector.shape_cast %94 : vector<16xf32> to vector<1x16xf32>
    %cst_44 = arith.constant 6.400000e+01 : f32
    %96 = vector.broadcast %cst_44 : f32 to vector<1x16xf32>
    %97 = arith.divf %95, %96 : vector<1x16xf32>
    %cst_45 = arith.constant dense<0.000000e+00> : vector<1x16xf32>
    %98 = tpu.matmul %97, %85, %cst_45 {dimension_numbers = #tpu.dot_dimension_numbers<[1], [0], [0], [1], [0, 0, 1, 1], [], []>} : vector<1x16xf32>, vector<16x16xf32>, vector<1x16xf32> -> vector<1x16xf32>
    %cst_46 = arith.constant 9.99999974E-6 : f32
    %99 = vector.broadcast %cst_46 : f32 to vector<1x16xf32>
    %100 = arith.addf %98, %99 : vector<1x16xf32>
    %101 = math.rsqrt %100 : vector<1x16xf32>
    %102 = vector.broadcast %101 : vector<1x16xf32> to vector<64x16xf32>
    %103 = arith.mulf %92, %102 : vector<64x16xf32>
    %104 = vector.broadcast %83 : vector<1x16xf32> to vector<64x16xf32>
    %105 = arith.mulf %103, %104 : vector<64x16xf32>
    %106 = vector.broadcast %84 : vector<1x16xf32> to vector<64x16xf32>
    %107 = arith.addf %105, %106 : vector<64x16xf32>
    %c0_47 = arith.constant 0 : index
    %c0_48 = arith.constant 0 : index
    %108 = vector.load %arg12[%c0_47, %c0_48] : memref<16x32xbf16, #tpu.memory_space<vmem>>, vector<16x32xbf16>
    %109 = arith.truncf %107 : vector<64x16xf32> to vector<64x16xbf16>
    %cst_49 = arith.constant dense<0.000000e+00> : vector<64x32xf32>
    %110 = tpu.matmul %109, %108, %cst_49 {dimension_numbers = #tpu.dot_dimension_numbers<[1], [0], [0], [1], [0, 0, 1, 1], [], []>} : vector<64x16xbf16>, vector<16x32xbf16>, vector<64x32xf32> -> vector<64x32xf32>
    %c0_50 = arith.constant 0 : index
    %c0_51 = arith.constant 0 : index
    %111 = vector.load %arg13[%c0_50, %c0_51] : memref<1x32xf32, #tpu.memory_space<vmem>>, vector<1x32xf32>
    %112 = vector.broadcast %111 : vector<1x32xf32> to vector<64x32xf32>
    %113 = arith.addf %110, %112 : vector<64x32xf32>
    %114 = arith.negf %113 : vector<64x32xf32>
    %115 = math.exp %114 : vector<64x32xf32>
    %cst_52 = arith.constant 1.000000e+00 : f32
    %116 = vector.broadcast %cst_52 : f32 to vector<64x32xf32>
    %117 = arith.addf %116, %115 : vector<64x32xf32>
    %118 = arith.divf %116, %117 : vector<64x32xf32>
    %119 = arith.mulf %113, %118 : vector<64x32xf32>
    %c0_53 = arith.constant 0 : index
    %c0_54 = arith.constant 0 : index
    %120 = vector.load %arg14[%c0_53, %c0_54] : memref<32x16xbf16, #tpu.memory_space<vmem>>, vector<32x16xbf16>
    %121 = arith.truncf %119 : vector<64x32xf32> to vector<64x32xbf16>
    %cst_55 = arith.constant dense<0.000000e+00> : vector<64x16xf32>
    %122 = tpu.matmul %121, %120, %cst_55 {dimension_numbers = #tpu.dot_dimension_numbers<[1], [0], [0], [1], [0, 0, 1, 1], [], []>} : vector<64x32xbf16>, vector<32x16xbf16>, vector<64x16xf32> -> vector<64x16xf32>
    %c0_56 = arith.constant 0 : index
    %c0_57 = arith.constant 0 : index
    %123 = vector.load %arg15[%c0_56, %c0_57] : memref<1x16xf32, #tpu.memory_space<vmem>>, vector<1x16xf32>
    %124 = vector.broadcast %123 : vector<1x16xf32> to vector<64x16xf32>
    %125 = arith.addf %122, %124 : vector<64x16xf32>
    %126 = arith.addf %82, %125 : vector<64x16xf32>
    %c0_58 = arith.constant 0 : index
    %c0_59 = arith.constant 0 : index
    %c0_60 = arith.constant 0 : index
    %127 = vector.load %arg16[%c0_58, %c0_59, %c0_60] : memref<1x64x16xf32, #tpu.memory_space<vmem>>, vector<1x64x16xf32>
    %128 = vector.shape_cast %127 : vector<1x64x16xf32> to vector<64x16xf32>
    %129 = vector.shape_cast %126 : vector<64x16xf32> to vector<1x64x16xf32>
    tpu.vector_store %arg16[%c0_58, %c0_59, %c0_60], %129 {strides = array<i32>} : memref<1x64x16xf32, #tpu.memory_space<vmem>>, vector<1x64x16xf32>,
    return
  }
  func.func @transform_0(%arg0: i32) -> (i32, i32, i32) {
    %c0_i32 = arith.constant 0 : i32
    %c0_i32_0 = arith.constant 0 : i32
    %c0_i32_1 = arith.constant 0 : i32
    return %arg0, %c0_i32, %c0_i32_0 : i32, i32, i32
  }
  func.func @transform_1(%arg0: i32) -> (i32, i32) {
    %c0_i32 = arith.constant 0 : i32
    %c0_i32_0 = arith.constant 0 : i32
    %c0_i32_1 = arith.constant 0 : i32
    return %c0_i32, %c0_i32_0 : i32, i32
  }
  func.func @transform_2(%arg0: i32) -> (i32, i32) {
    %c0_i32 = arith.constant 0 : i32
    %c0_i32_0 = arith.constant 0 : i32
    %c0_i32_1 = arith.constant 0 : i32
    return %c0_i32, %c0_i32_0 : i32, i32
  }
  func.func @transform_3(%arg0: i32) -> (i32, i32) {
    %c0_i32 = arith.constant 0 : i32
    %c0_i32_0 = arith.constant 0 : i32
    %c0_i32_1 = arith.constant 0 : i32
    return %c0_i32, %c0_i32_0 : i32, i32
  }
  func.func @transform_4(%arg0: i32) -> (i32, i32) {
    %c0_i32 = arith.constant 0 : i32
    %c0_i32_0 = arith.constant 0 : i32
    %c0_i32_1 = arith.constant 0 : i32
    return %c0_i32, %c0_i32_0 : i32, i32
  }
  func.func @transform_5(%arg0: i32) -> (i32, i32) {
    %c0_i32 = arith.constant 0 : i32
    %c0_i32_0 = arith.constant 0 : i32
    %c0_i32_1 = arith.constant 0 : i32
    return %c0_i32, %c0_i32_0 : i32, i32
  }
  func.func @transform_6(%arg0: i32) -> (i32, i32) {
    %c0_i32 = arith.constant 0 : i32
    %c0_i32_0 = arith.constant 0 : i32
    %c0_i32_1 = arith.constant 0 : i32
    return %c0_i32, %c0_i32_0 : i32, i32
  }
  func.func @transform_7(%arg0: i32) -> (i32, i32) {
    %c0_i32 = arith.constant 0 : i32
    %c0_i32_0 = arith.constant 0 : i32
    %c0_i32_1 = arith.constant 0 : i32
    return %c0_i32, %c0_i32_0 : i32, i32
  }
  func.func @transform_8(%arg0: i32) -> (i32, i32) {
    %c0_i32 = arith.constant 0 : i32
    %c0_i32_0 = arith.constant 0 : i32
    %c0_i32_1 = arith.constant 0 : i32
    return %c0_i32, %c0_i32_0 : i32, i32
  }
  func.func @transform_9(%arg0: i32) -> (i32, i32) {
    %c0_i32 = arith.constant 0 : i32
    %c0_i32_0 = arith.constant 0 : i32
    %c0_i32_1 = arith.constant 0 : i32
    return %c0_i32, %c0_i32_0 : i32, i32
  }
  func.func @transform_10(%arg0: i32) -> (i32, i32) {
    %c0_i32 = arith.constant 0 : i32
    %c0_i32_0 = arith.constant 0 : i32
    %c0_i32_1 = arith.constant 0 : i32
    return %c0_i32, %c0_i32_0 : i32, i32
  }
  func.func @transform_11(%arg0: i32) -> (i32, i32) {
    %c0_i32 = arith.constant 0 : i32
    %c0_i32_0 = arith.constant 0 : i32
    %c0_i32_1 = arith.constant 0 : i32
    return %c0_i32, %c0_i32_0 : i32, i32
  }
  func.func @transform_12(%arg0: i32) -> (i32, i32) {
    %c0_i32 = arith.constant 0 : i32
    %c0_i32_0 = arith.constant 0 : i32
    %c0_i32_1 = arith.constant 0 : i32
    return %c0_i32, %c0_i32_0 : i32, i32
  }
  func.func @transform_13(%arg0: i32) -> (i32, i32) {
    %c0_i32 = arith.constant 0 : i32
    %c0_i32_0 = arith.constant 0 : i32
    %c0_i32_1 = arith.constant 0 : i32
    return %c0_i32, %c0_i32_0 : i32, i32
  }
  func.func @transform_14(%arg0: i32) -> (i32, i32) {
    %c0_i32 = arith.constant 0 : i32
    %c0_i32_0 = arith.constant 0 : i32
    %c0_i32_1 = arith.constant 0 : i32
    return %c0_i32, %c0_i32_0 : i32, i32
  }
  func.func @transform_15(%arg0: i32) -> (i32, i32, i32) {
    %c0_i32 = arith.constant 0 : i32
    %c0_i32_0 = arith.constant 0 : i32
    %c0_i32_1 = arith.constant 0 : i32
    return %arg0, %c0_i32, %c0_i32_0 : i32, i32, i32
  }
}

module attributes {stable_mosaic.version = 11 : i64} {
  func.func @_linear_rows_kernel(%arg0: i32, %arg1: memref<128x16xf32, #tpu.memory_space<vmem>>, %arg2: memref<16x12xbf16, #tpu.memory_space<vmem>>, %arg3: memref<1x12xf32, #tpu.memory_space<vmem>>, %arg4: memref<128x12xf32, #tpu.memory_space<vmem>>) attributes {dimension_semantics = [#tpu.dimension_semantics<parallel>], iteration_bounds = array<i64: 1>, scalar_prefetch = 0 : i64, scratch_operands = 0 : i64, tpu.core_type = #tpu.core_type<tc>, window_params = [{transform_indices = @transform_0, window_bounds = array<i64: 128, 16>}, {pipeline_mode = #tpu.pipeline_mode<synchronous>, transform_indices = @transform_1, window_bounds = array<i64: 16, 12>}, {pipeline_mode = #tpu.pipeline_mode<synchronous>, transform_indices = @transform_2, window_bounds = array<i64: 1, 12>}, {transform_indices = @transform_3, window_bounds = array<i64: 128, 12>}]} {
    %c0 = arith.constant 0 : index
    %c0_0 = arith.constant 0 : index
    %0 = vector.load %arg1[%c0, %c0_0] : memref<128x16xf32, #tpu.memory_space<vmem>>, vector<128x16xf32>
    %c0_1 = arith.constant 0 : index
    %c0_2 = arith.constant 0 : index
    %1 = vector.load %arg2[%c0_1, %c0_2] : memref<16x12xbf16, #tpu.memory_space<vmem>>, vector<16x12xbf16>
    %2 = arith.truncf %0 : vector<128x16xf32> to vector<128x16xbf16>
    %cst = arith.constant dense<0.000000e+00> : vector<128x12xf32>
    %3 = tpu.matmul %2, %1, %cst {dimension_numbers = #tpu.dot_dimension_numbers<[1], [0], [0], [1], [0, 0, 1, 1], [], []>} : vector<128x16xbf16>, vector<16x12xbf16>, vector<128x12xf32> -> vector<128x12xf32>
    %c0_3 = arith.constant 0 : index
    %c0_4 = arith.constant 0 : index
    %4 = vector.load %arg3[%c0_3, %c0_4] : memref<1x12xf32, #tpu.memory_space<vmem>>, vector<1x12xf32>
    %5 = vector.broadcast %4 : vector<1x12xf32> to vector<128x12xf32>
    %6 = arith.addf %3, %5 : vector<128x12xf32>
    %c0_5 = arith.constant 0 : index
    %c0_6 = arith.constant 0 : index
    %7 = vector.load %arg4[%c0_5, %c0_6] : memref<128x12xf32, #tpu.memory_space<vmem>>, vector<128x12xf32>
    tpu.vector_store %arg4[%c0_5, %c0_6], %6 {strides = array<i32>} : memref<128x12xf32, #tpu.memory_space<vmem>>, vector<128x12xf32>,
    return
  }
  func.func @transform_0(%arg0: i32) -> (i32, i32) {
    %c0_i32 = arith.constant 0 : i32
    %c0_i32_0 = arith.constant 0 : i32
    return %arg0, %c0_i32 : i32, i32
  }
  func.func @transform_1(%arg0: i32) -> (i32, i32) {
    %c0_i32 = arith.constant 0 : i32
    %c0_i32_0 = arith.constant 0 : i32
    %c0_i32_1 = arith.constant 0 : i32
    return %c0_i32, %c0_i32_0 : i32, i32
  }
  func.func @transform_2(%arg0: i32) -> (i32, i32) {
    %c0_i32 = arith.constant 0 : i32
    %c0_i32_0 = arith.constant 0 : i32
    %c0_i32_1 = arith.constant 0 : i32
    return %c0_i32, %c0_i32_0 : i32, i32
  }
  func.func @transform_3(%arg0: i32) -> (i32, i32) {
    %c0_i32 = arith.constant 0 : i32
    %c0_i32_0 = arith.constant 0 : i32
    return %arg0, %c0_i32 : i32, i32
  }
}

</mosaic_0001>

<llo_original>
// kernel: tile.39
$region0: #{tile.39}
  %s0 = inlined_call_operand.vmem [shape: f32[4,16], index: 0, kind: input, shape index: {}]
  %s1 = inlined_call_operand.vmem [shape: f32[1,64], index: 1, kind: output, shape index: {}]
  $region1: #{tile.39} parent=0
    #allocation0 [shape = 'u8[4096]{0}', space=vmem, size = 0x1000, scoped, tag = 'scoped mem for output reshape']
    #allocation1 [shape = 'u8[4096]{0}', space=vmem, size = 0x1000, scoped, tag = 'scoped mem for input reshape']
    %s3 = sshll.u32 1, 4
    %s4 = ssub.s32 %s3, 1
    %v5 = vld [vmem:[%s0] sm:%s4]
    %6 = vst [vmem:[#allocation1] sm:%s4] %v5
    %v7 = vld [vmem:[#allocation1] sm:$0x1]
    %vm8 = vcmask 130048
    %9 = vst.msk [vmem:[#allocation0] sm:$0x1] %vm8, %v7
    %s10 = scalar_lea.vmem [#allocation1], 3
    %v11 = vld [vmem:[%s10] sm:$0x1]
    %12 = vrot.lane.b32.xlu0 %v11, 48
    %v13 = vpop.permute.xlu0 %12
    %vm14 = vcmask 523648
    %15 = vst.msk [vmem:[#allocation0] sm:$0x1] %vm14, %v13
    %s16 = scalar_lea.vmem [#allocation1], 2
    %v17 = vld [vmem:[%s16] sm:$0x1]
    %18 = vrot.lane.b32.xlu0 %v17, 32
    %v19 = vpop.permute.xlu0 %18
    %vm20 = vcmask 392448
    %21 = vst.msk [vmem:[#allocation0] sm:$0x1] %vm20, %v19
    %s22 = scalar_lea.vmem [#allocation1], 1
    %v23 = vld [vmem:[%s22] sm:$0x1]
    %24 = vrot.lane.b32.xlu0 %v23, 16
    %v25 = vpop.permute.xlu0 %24
    %vm26 = vcmask 261248
    %27 = vst.msk [vmem:[#allocation0] sm:$0x1] %vm26, %v25
    %s29 = sshll.u32 1, 1
    %s30 = ssub.s32 %s29, 1
    %v32 = vld [vmem:[#allocation0] sm:%s30]
    %s33 = sshll.u32 1, 1
    %s34 = ssub.s32 %s33, 1
    %35 = vst [vmem:[%s1] sm:%s34] %v32

// kernel: tile.29
$region0: #{tile.29}
  %s0 = inlined_call_operand.vmem [shape: f32[4,32], index: 0, kind: input, shape index: {}]
  %s1 = inlined_call_operand.vmem [shape: f32[1,128], index: 1, kind: output, shape index: {}]
  $region1: #{tile.29} parent=0
    #allocation0 [shape = 'u8[4096]{0}', space=vmem, size = 0x1000, scoped, tag = 'scoped mem for output reshape']
    #allocation1 [shape = 'u8[4096]{0}', space=vmem, size = 0x1000, scoped, tag = 'scoped mem for input reshape']
    %s3 = sshll.u32 1, 4
    %s4 = ssub.s32 %s3, 1
    %v5 = vld [vmem:[%s0] sm:%s4]
    %6 = vst [vmem:[#allocation1] sm:%s4] %v5
    %v7 = vld [vmem:[#allocation1] sm:$0x1]
    %vm8 = vcmask 261120
    %9 = vst.msk [vmem:[#allocation0] sm:$0x1] %vm8, %v7
    %s10 = scalar_lea.vmem [#allocation1], 3
    %v11 = vld [vmem:[%s10] sm:$0x1]
    %12 = vrot.lane.b32.xlu0 %v11, 96
    %v13 = vpop.permute.xlu0 %12
    %vm14 = vcmask 1048320
    %15 = vst.msk [vmem:[#allocation0] sm:$0x1] %vm14, %v13
    %s16 = scalar_lea.vmem [#allocation1], 2
    %v17 = vld [vmem:[%s16] sm:$0x1]
    %18 = vrot.lane.b32.xlu0 %v17, 64
    %v19 = vpop.permute.xlu0 %18
    %vm20 = vcmask 785920
    %21 = vst.msk [vmem:[#allocation0] sm:$0x1] %vm20, %v19
    %s22 = scalar_lea.vmem [#allocation1], 1
    %v23 = vld [vmem:[%s22] sm:$0x1]
    %24 = vrot.lane.b32.xlu0 %v23, 32
    %v25 = vpop.permute.xlu0 %24
    %vm26 = vcmask 523520
    %27 = vst.msk [vmem:[#allocation0] sm:$0x1] %vm26, %v25
    %s29 = sshll.u32 1, 1
    %s30 = ssub.s32 %s29, 1
    %v32 = vld [vmem:[#allocation0] sm:%s30]
    %s33 = sshll.u32 1, 1
    %s34 = ssub.s32 %s33, 1
    %35 = vst [vmem:[%s1] sm:%s34] %v32

// kernel: tile.28
$region0: #{tile.28}
  #allocation0 [shape = 's32[1]{0}', space=sflag, size = 0x4, scoped, tag = 'scoped memory for tile.28']
  %s0 = inlined_call_operand.vmem [shape: f32[32], index: 0, kind: input, shape index: {}]
  %s1 = inlined_call_operand.vmem [shape: f32[4,32], index: 1, kind: output, shape index: {}]
  // Predicated region
  $region2: #{tile.28} parent=0 // pred_check
    _
  $region3: #{tile.28} parent=0 // pred_check_branch
    %3 = sbr.rel (0) target = $region5
  $region4: #{tile.28} parent=0 // pred_region
    _
  $region5: #{tile.28} parent=0 // pred_fallthru
    _
  %v4 = vld [vmem:[%s0] ss:$0 sm:$0xff]
  %5 = vst [vmem:[%s1] sm:$0xf] %v4

// kernel: tile.38
$region0: #{tile.38}
  #allocation0 [shape = 's32[1]{0}', space=sflag, size = 0x4, scoped, tag = 'scoped memory for tile.38']
  %s0 = inlined_call_operand.vmem [shape: f32[16], index: 0, kind: input, shape index: {}]
  %s1 = inlined_call_operand.vmem [shape: f32[4,16], index: 1, kind: output, shape index: {}]
  // Predicated region
  $region2: #{tile.38} parent=0 // pred_check
    _
  $region3: #{tile.38} parent=0 // pred_check_branch
    %3 = sbr.rel (0) target = $region5
  $region4: #{tile.38} parent=0 // pred_region
    _
  $region5: #{tile.38} parent=0 // pred_fallthru
    _
  %v4 = vld [vmem:[%s0] ss:$0 sm:$0xff]
  %5 = vst [vmem:[%s1] sm:$0xf] %v4

// kernel: _lambda_.8
$region0: #{_lambda_.8}
  #allocation0 [shape = 'u32[]', space=smem, size = 0x4, offset = 0x4, fixed_abs, tag = 'smem constant byte address 0x4 - core index']
  #allocation1 [shape = 'u32[144,128]{1,0:T(1,128)}', space=vmem, size = 0x12000, scoped, tag = 'internal scratch']
  %s0 = inlined_call_operand.vmem [shape: f32[8,32], index: 0, kind: input, shape index: {}]
  %s1 = inlined_call_operand.vmem [shape: bf16[32,128], index: 1, kind: input, shape index: {}]
  %s2 = inlined_call_operand.vmem [shape: f32[1,128], index: 2, kind: input, shape index: {}]
  %s3 = inlined_call_operand.vmem [shape: f32[128,128], index: 3, kind: input, shape index: {}]
  %s4 = inlined_call_operand.vmem [shape: f32[1,128], index: 4, kind: input, shape index: {}]
  %s5 = inlined_call_operand.vmem [shape: f32[1,128], index: 5, kind: input, shape index: {}]
  %s6 = inlined_call_operand.vmem [shape: f32[8,128], index: 6, kind: output, shape index: {}]
  %s7 = sld [smem:[#allocation0]]
  $region34: #{_lambda_.8} parent=0
    _
  %s9 = ssub.s32 1, %s7
  %s10 = scalar_select 0, %s9, %s7
  // Predicated region
  $region2: #{_lambda_.8} parent=0 // pred_check
    _
  $region3: #{_lambda_.8} parent=0 // pred_check_branch
    %12 = sbr.rel (0) target = $region5
  $region4: #{_lambda_.8} parent=0 // pred_region
    _
  $region5: #{_lambda_.8} parent=0 // pred_fallthru
    _
  // Predicated region
  $region6: #{_lambda_.8} parent=0 // pred_check
    _
  $region7: #{_lambda_.8} parent=0 // pred_check_branch
    %14 = sbr.rel (0) target = $region9
  $region8: #{_lambda_.8} parent=0 // pred_region
    _
  $region9: #{_lambda_.8} parent=0 // pred_fallthru
    _
  // Predicated region
  $region10: #{_lambda_.8} parent=0 // pred_check
    _
  $region11: #{_lambda_.8} parent=0 // pred_check_branch
    %16 = sbr.rel (0) target = $region13
  $region12: #{_lambda_.8} parent=0 // pred_region
    _
  $region13: #{_lambda_.8} parent=0 // pred_fallthru
    _
  // Predicated region
  $region14: #{_lambda_.8} parent=0 // pred_check
    _
  $region15: #{_lambda_.8} parent=0 // pred_check_branch
    %18 = sbr.rel (0) target = $region17
  $region16: #{_lambda_.8} parent=0 // pred_region
    _
  $region17: #{_lambda_.8} parent=0 // pred_fallthru
    _
  // Predicated region
  $region18: #{_lambda_.8} parent=0 // pred_check
    _
  $region19: #{_lambda_.8} parent=0 // pred_check_branch
    %20 = sbr.rel (0) target = $region21
  $region20: #{_lambda_.8} parent=0 // pred_region
    _
  $region21: #{_lambda_.8} parent=0 // pred_fallthru
    _
  // Predicated region
  $region22: #{_lambda_.8} parent=0 // pred_check
    _
  $region23: #{_lambda_.8} parent=0 // pred_check_branch
    %22 = sbr.rel (0) target = $region25
  $region24: #{_lambda_.8} parent=0 // pred_region
    _
  $region25: #{_lambda_.8} parent=0 // pred_fallthru
    _
  %v24 = vld [vmem:[%s0] sm:$0xff]
  %v25 = vld [vmem:[%s1] sm:$0xf]
  %v26 = vld [vmem:[%s1 + $0x4] sm:$0xf]
  %v27 = vld [vmem:[%s1 + $0x8] sm:$0xf]
  %v28 = vld [vmem:[%s1 + $0xc] sm:$0xf]
  %v29 = vpack.c.bf16 %v24, %v24
  %v30 = vld [vmem:[%s2] sm:$0x1]
  %v32 = vlaneseq
  %v33 = vshrl.u32 %v32, 7
  %v34 = vsub.s32 0, %v33
  %v35 = vrot.slane %v30, %v34
  %v41 = vunpack.c.l.b16 %v25
  %v42 = vunpack.c.l.b16 %v26
  %v43 = vunpack.c.l.b16 %v27
  %v44 = vunpack.c.l.b16 %v28
  %v45 = vpack.c.b16 %v42, %v41
  %v46 = vpack.c.b16 %v44, %v43
  %vm49 = vcmask 261120
  %v51 = vsel %vm49, %v29, 0
  %53 = vmatprep.subr.bf16.mxu0 0
  %54 = vmatpush1.bf16.msra.mxu0 0
  %55 = vmatprep.subr.bf16.mxu0 0
  %56 = vmatpush1.bf16.msra.mxu0 0
  %57 = vmatprep.subr.bf16.mxu0 0
  %58 = vmatpush1.bf16.msra.mxu0 0
  %59 = vmatprep.subr.bf16.mxu0 0
  %60 = vmatpush1.bf16.msra.mxu0 0
  %61 = vmatprep.subr.bf16.mxu0 0
  %62 = vmatpush1.bf16.msra.mxu0 0
  %63 = vmatprep.subr.bf16.mxu0 0
  %64 = vmatpush1.bf16.msra.mxu0 0
  %65 = vmatprep.subr.bf16.mxu0 0
  %66 = vmatpush1.bf16.msra.mxu0 %v46
  %67 = vmatprep.subr.bf16.mxu0 0
  %68 = vmatpush1.bf16.msra.mxu0 %v45
  %69 = vmatprep.subr.bf16.mxu0 0
  %70 = vmatpush2.bf16.msra.mxu0 0
  %71 = vmatprep.subr.bf16.mxu0 0
  %72 = vmatpush2.bf16.msra.mxu0 0
  %73 = vmatprep.subr.bf16.mxu0 0
  %74 = vmatpush2.bf16.msra.mxu0 0
  %75 = vmatprep.subr.bf16.mxu0 0
  %76 = vmatpush2.bf16.msra.mxu0 0
  %77 = vmatprep.subr.bf16.mxu0 0
  %78 = vmatpush2.bf16.msra.mxu0 0
  %79 = vmatprep.subr.bf16.mxu0 0
  %80 = vmatpush2.bf16.msra.mxu0 0
  %81 = vmatprep.subr.bf16.mxu0 0
  %82 = vmatpush2.bf16.msra.mxu0 0
  %83 = vmatprep.subr.bf16.mxu0 0
  %84 = vmatpush2.bf16.msra.mxu0 0
  %85 = vmatprep.mubr.bf16.mxu0 0
  %86 = vmatmul.mubr.bf16.gmra.mxu0 %v51
  %v87 = vpop.f32.mrf.mxu0
  %v88 = vadd.f32 %v35, %v87
  %v89 = vpop.f32.mrf.mxu0
  %v90 = vpop.f32.mrf.mxu0
  %v91 = vpop.f32.mrf.mxu0
  %92 = vdwg.mxu0
  %v93 = vld [vmem:[%s4] sm:$0x1]
  %v94 = vld [vmem:[%s5] sm:$0x1]
  %v95 = vld [vmem:[%s3] sm:$0xff]
  %v96 = vld [vmem:[%s3 + $0x8] sm:$0xff]
  %v97 = vld [vmem:[%s3 + $0x10] sm:$0xff]
  %v98 = vld [vmem:[%s3 + $0x18] sm:$0xff]
  %v99 = vld [vmem:[%s3 + $0x20] sm:$0xff]
  %v100 = vld [vmem:[%s3 + $0x28] sm:$0xff]
  %v101 = vld [vmem:[%s3 + $0x30] sm:$0xff]
  %v102 = vld [vmem:[%s3 + $0x38] sm:$0xff]
  %v103 = vld [vmem:[%s3 + $0x40] sm:$0xff]
  %v104 = vld [vmem:[%s3 + $0x48] sm:$0xff]
  %v105 = vld [vmem:[%s3 + $0x50] sm:$0xff]
  %v106 = vld [vmem:[%s3 + $0x58] sm:$0xff]
  %v107 = vld [vmem:[%s3 + $0x60] sm:$0xff]
  %v108 = vld [vmem:[%s3 + $0x68] sm:$0xff]
  %v109 = vld [vmem:[%s3 + $0x70] sm:$0xff]
  %v110 = vld [vmem:[%s3 + $0x78] sm:$0xff]
  %111 = vmatprep.subr.mxu0 0.0
  %112 = vmatpush1.msra.mxu0 %v110
  %113 = vmatprep.subr.mxu0 0.0
  %114 = vmatpush1.msra.mxu0 %v109
  %115 = vmatprep.subr.mxu0 0.0
  %116 = vmatpush1.msra.mxu0 %v108
  %117 = vmatprep.subr.mxu0 0.0
  %118 = vmatpush1.msra.mxu0 %v107
  %119 = vmatprep.subr.mxu0 0.0
  %120 = vmatpush1.msra.mxu0 %v106
  %121 = vmatprep.subr.mxu0 0.0
  %122 = vmatpush1.msra.mxu0 %v105
  %123 = vmatprep.subr.mxu0 0.0
  %124 = vmatpush1.msra.mxu0 %v104
  %125 = vmatprep.subr.mxu0 0.0
  %126 = vmatpush1.msra.mxu0 %v103
  %127 = vmatprep.subr.mxu0 0.0
  %128 = vmatpush1.msra.mxu0 %v102
  %129 = vmatprep.subr.mxu0 0.0
  %130 = vmatpush1.msra.mxu0 %v101
  %131 = vmatprep.subr.mxu0 0.0
  %132 = vmatpush1.msra.mxu0 %v100
  %133 = vmatprep.subr.mxu0 0.0
  %134 = vmatpush1.msra.mxu0 %v99
  %135 = vmatprep.subr.mxu0 0.0
  %136 = vmatpush1.msra.mxu0 %v98
  %137 = vmatprep.subr.mxu0 0.0
  %138 = vmatpush1.msra.mxu0 %v97
  %139 = vmatprep.subr.mxu0 0.0
  %140 = vmatpush1.msra.mxu0 %v96
  %141 = vmatprep.subr.mxu0 0.0
  %142 = vmatpush1.msra.mxu0 %v95
  %143 = vmatprep.subr.mxu0 0.0
  %144 = vmatpush2.msra.mxu0 0.0
  %145 = vmatprep.subr.mxu0 0.0
  %146 = vmatpush2.msra.mxu0 0.0
  %147 = vmatprep.subr.mxu0 0.0
  %148 = vmatpush2.msra.mxu0 0.0
  %149 = vmatprep.subr.mxu0 0.0
  %150 = vmatpush2.msra.mxu0 0.0
  %151 = vmatprep.subr.mxu0 0.0
  %152 = vmatpush2.msra.mxu0 0.0
  %153 = vmatprep.subr.mxu0 0.0
  %154 = vmatpush2.msra.mxu0 0.0
  %155 = vmatprep.subr.mxu0 0.0
  %156 = vmatpush2.msra.mxu0 0.0
  %157 = vmatprep.subr.mxu0 0.0
  %158 = vmatpush2.msra.mxu0 0.0
  %159 = vmatprep.subr.mxu0 0.0
  %160 = vmatpush2.msra.mxu0 0.0
  %161 = vmatprep.subr.mxu0 0.0
  %162 = vmatpush2.msra.mxu0 0.0
  %163 = vmatprep.subr.mxu0 0.0
  %164 = vmatpush2.msra.mxu0 0.0
  %165 = vmatprep.subr.mxu0 0.0
  %166 = vmatpush2.msra.mxu0 0.0
  %167 = vmatprep.subr.mxu0 0.0
  %168 = vmatpush2.msra.mxu0 0.0
  %169 = vmatprep.subr.mxu0 0.0
  %170 = vmatpush2.msra.mxu0 0.0
  %171 = vmatprep.subr.mxu0 0.0
  %172 = vmatpush2.msra.mxu0 0.0
  %173 = vmatprep.subr.mxu0 0.0
  %174 = vmatpush2.msra.mxu0 0.0
  %175 = vmatprep.mubr.f32.mxu0 0.0
  %176 = vmatmul.mubr.f32.gmra.mxu0 %v88
  %v177 = vpop.f32.mrf.mxu0
  %v178 = vadd.f32 0.0, %v177
  %v179 = vpop.f32.mrf.mxu0
  %180 = vdwg.mxu0
  %v181 = vsub.f32 %v88, %v178
  %v182 = vmul.f32 %v181, %v181
  %183 = vmatprep.subr.mxu0 0.0
  %184 = vmatpush1.msra.mxu0 %v110
  %185 = vmatprep.subr.mxu0 0.0
  %186 = vmatpush1.msra.mxu0 %v109
  %187 = vmatprep.subr.mxu0 0.0
  %188 = vmatpush1.msra.mxu0 %v108
  %189 = vmatprep.subr.mxu0 0.0
  %190 = vmatpush1.msra.mxu0 %v107
  %191 = vmatprep.subr.mxu0 0.0
  %192 = vmatpush1.msra.mxu0 %v106
  %193 = vmatprep.subr.mxu0 0.0
  %194 = vmatpush1.msra.mxu0 %v105
  %195 = vmatprep.subr.mxu0 0.0
  %196 = vmatpush1.msra.mxu0 %v104
  %197 = vmatprep.subr.mxu0 0.0
  %198 = vmatpush1.msra.mxu0 %v103
  %199 = vmatprep.subr.mxu0 0.0
  %200 = vmatpush1.msra.mxu0 %v102
  %201 = vmatprep.subr.mxu0 0.0
  %202 = vmatpush1.msra.mxu0 %v101
  %203 = vmatprep.subr.mxu0 0.0
  %204 = vmatpush1.msra.mxu0 %v100
  %205 = vmatprep.subr.mxu0 0.0
  %206 = vmatpush1.msra.mxu0 %v99
  %207 = vmatprep.subr.mxu0 0.0
  %208 = vmatpush1.msra.mxu0 %v98
  %209 = vmatprep.subr.mxu0 0.0
  %210 = vmatpush1.msra.mxu0 %v97
  %211 = vmatprep.subr.mxu0 0.0
  %212 = vmatpush1.msra.mxu0 %v96
  %213 = vmatprep.subr.mxu0 0.0
  %214 = vmatpush1.msra.mxu0 %v95
  %215 = vmatprep.subr.mxu0 0.0
  %216 = vmatpush2.msra.mxu0 0.0
  %217 = vmatprep.subr.mxu0 0.0
  %218 = vmatpush2.msra.mxu0 0.0
  %219 = vmatprep.subr.mxu0 0.0
  %220 = vmatpush2.msra.mxu0 0.0
  %221 = vmatprep.subr.mxu0 0.0
  %222 = vmatpush2.msra.mxu0 0.0
  %223 = vmatprep.subr.mxu0 0.0
  %224 = vmatpush2.msra.mxu0 0.0
  %225 = vmatprep.subr.mxu0 0.0
  %226 = vmatpush2.msra.mxu0 0.0
  %227 = vmatprep.subr.mxu0 0.0
  %228 = vmatpush2.msra.mxu0 0.0
  %229 = vmatprep.subr.mxu0 0.0
  %230 = vmatpush2.msra.mxu0 0.0
  %231 = vmatprep.subr.mxu0 0.0
  %232 = vmatpush2.msra.mxu0 0.0
  %233 = vmatprep.subr.mxu0 0.0
  %234 = vmatpush2.msra.mxu0 0.0
  %235 = vmatprep.subr.mxu0 0.0
  %236 = vmatpush2.msra.mxu0 0.0
  %237 = vmatprep.subr.mxu0 0.0
  %238 = vmatpush2.msra.mxu0 0.0
  %239 = vmatprep.subr.mxu0 0.0
  %240 = vmatpush2.msra.mxu0 0.0
  %241 = vmatprep.subr.mxu0 0.0
  %242 = vmatpush2.msra.mxu0 0.0
  %243 = vmatprep.subr.mxu0 0.0
  %244 = vmatpush2.msra.mxu0 0.0
  %245 = vmatprep.subr.mxu0 0.0
  %246 = vmatpush2.msra.mxu0 0.0
  %247 = vmatprep.mubr.f32.mxu0 0.0
  %248 = vmatmul.mubr.f32.gmra.mxu0 %v182
  %v249 = vpop.f32.mrf.mxu0
  %v250 = vadd.f32 1e-05, %v249
  %v251 = vpop.f32.mrf.mxu0
  %252 = vdwg.mxu0
  %v253 = vrsqrt.pop %v250
  %v254 = vmul.f32 %v181, %v253
  %v256 = vlaneseq
  %v257 = vshrl.u32 %v256, 7
  %v258 = vsub.s32 0, %v257
  %v259 = vrot.slane %v93, %v258
  %v261 = vmul.f32 %v254, %v259
  %v263 = vlaneseq
  %v264 = vshrl.u32 %v263, 7
  %v265 = vsub.s32 0, %v264
  %v266 = vrot.slane %v94, %v265
  %v268 = vadd.f32 %v261, %v266
  %v269 = vxor.u32 %v268, 2147483648
  %v270 = vmul.f32 %v269, 1.442695
  %v271 = vpow.pop %v270
  %v272 = vadd.f32 %v271, 1.0
  %v273 = vrcp.pop %v272
  %v274 = vmul.f32 1.0, %v273
  %v275 = vmul.f32 %v268, %v274
  %276 = vst [vmem:[%s6] sm:$0xff] %v275
  // Predicated region
  $region26: #{_lambda_.8} parent=0 // pred_check
    _
  $region27: #{_lambda_.8} parent=0 // pred_check_branch
    %278 = sbr.rel (0) target = $region29
  $region28: #{_lambda_.8} parent=0 // pred_region
    _
  $region29: #{_lambda_.8} parent=0 // pred_fallthru
    _
  // Predicated region
  $region30: #{_lambda_.8} parent=0 // pred_check
    _
  $region31: #{_lambda_.8} parent=0 // pred_check_branch
    %280 = sbr.rel (0) target = $region33
  $region32: #{_lambda_.8} parent=0 // pred_region
    _
  $region33: #{_lambda_.8} parent=0 // pred_fallthru
    _

// kernel: _lambda_.11
$region0: #{_lambda_.11}
  #allocation0 [shape = 'u32[]', space=smem, size = 0x4, offset = 0x4, fixed_abs, tag = 'smem constant byte address 0x4 - core index']
  #allocation1 [shape = 'u32[144,128]{1,0:T(1,128)}', space=vmem, size = 0x12000, scoped, tag = 'internal scratch']
  %s0 = inlined_call_operand.vmem [shape: f32[2,16,16], index: 0, kind: input, shape index: {}]
  %s1 = inlined_call_operand.vmem [shape: bf16[16,64], index: 1, kind: input, shape index: {}]
  %s2 = inlined_call_operand.vmem [shape: f32[1,64], index: 2, kind: input, shape index: {}]
  %s3 = inlined_call_operand.vmem [shape: f32[64,64], index: 3, kind: input, shape index: {}]
  %s4 = inlined_call_operand.vmem [shape: f32[1,64], index: 4, kind: input, shape index: {}]
  %s5 = inlined_call_operand.vmem [shape: f32[1,64], index: 5, kind: input, shape index: {}]
  %s6 = inlined_call_operand.vmem [shape: f32[2,16,64], index: 6, kind: output, shape index: {}]
  %s7 = sld [smem:[#allocation0]]
  $region57: #{_lambda_.11} parent=0
    _
  %s9 = ssub.s32 1, %s7
  %s10 = scalar_select 0, %s9, %s7
  loop: start=0, step=1, limit=4
  $region2: #{_lambda_.11} parent=0 // loop_pre_header
    _
  $region3: #{_lambda_.11} parent=0 // loop_header
    %s12 = sphi 0, %s16
    %p13 = scmp.ge.s32.totalorder %s12, 4
    %s22 = sphi 0, %s24
    %s25 = sphi 0, %s22
    %s26 = sphi 0, %s25
    %s42 = sphi 0, %s26
    %s46 = sphi 0, %s46
    %s48 = sphi 0, %s46
    %s49 = sphi 0, %s48
    %s63 = sphi 0, %s49
    %s67 = sphi 0, %s67
    %s69 = sphi 0, %s67
    %s70 = sphi 0, %s69
    %s84 = sphi 0, %s70
    %s88 = sphi 0, %s88
    %s90 = sphi 0, %s88
    %s91 = sphi 0, %s90
    %s105 = sphi 0, %s91
    %s109 = sphi 0, %s109
    %s111 = sphi 0, %s109
    %s112 = sphi 0, %s111
    %s126 = sphi 0, %s112
    %s130 = sphi 0, %s130
    %s132 = sphi 0, %s130
    %s133 = sphi 0, %s132
    %s147 = sphi 0, %s133
    %s153 = sphi 0, %s155
    %s156 = sphi 0, %s153
    %s157 = sphi 0, %s156
    %s173 = sphi 0, %s157
  $region4: #{_lambda_.11} parent=0 // loop_header_branch
    %15 = sbr.rel (%p13) target = $region8
  $region5: #{_lambda_.11} parent=0 // loop_body
    %s17 = ssub.s32 %s12, 1
    %s18 = ssub.s32 %s12, 2
    %s19 = sadd.s32 %s12, 1
    %s20 = ssub.s32 %s12, %s19
    %p21 = scmp.eq.s32.totalorder %s20, 0
    %s23 = sadd.s32 %s22, 1
    %s24 = scalar_select %p21, %s22, %s23
    %p27 = pneg %p21
    %p28 = scmp.eq.s32.totalorder %s12, 1
    %p29 = por %p27, %p28
    %p30 = scmp.ne.s32.totalorder %s22, %s25
    %p31 = scmp.eq.s32.totalorder %s12, 0
    %p32 = por %p30, %p31
    %p33 = scmp.ne.s32.totalorder %s22, %s25
    %p34 = scmp.eq.s32.totalorder %s17, 1
    %p35 = por %p33, %p34
    %p36 = scmp.ne.s32.totalorder %s25, %s26
    %p37 = scmp.eq.s32.totalorder %s17, 0
    %p38 = por %p36, %p37
    %p39 = scmp.ne.s32.totalorder %s25, %s26
    %p40 = scmp.eq.s32.totalorder %s18, 1
    %p41 = por %p39, %p40
    %p43 = scmp.ne.s32.totalorder %s26, %s42
    %p44 = scmp.eq.s32.totalorder %s18, 0
    %p45 = por %p43, %p44
    %s47 = sadd.s32 %s46, 1
    %p50 = scmp.eq.s32.totalorder %s12, 1
    %p51 = scmp.ne.s32.totalorder %s46, %s48
    %p52 = scmp.eq.s32.totalorder %s12, 0
    %p53 = por %p51, %p52
    %p54 = scmp.ne.s32.totalorder %s46, %s48
    %p55 = scmp.eq.s32.totalorder %s17, 1
    %p56 = por %p54, %p55
    %p57 = scmp.ne.s32.totalorder %s48, %s49
    %p58 = scmp.eq.s32.totalorder %s17, 0
    %p59 = por %p57, %p58
    %p60 = scmp.ne.s32.totalorder %s48, %s49
    %p61 = scmp.eq.s32.totalorder %s18, 1
    %p62 = por %p60, %p61
    %p64 = scmp.ne.s32.totalorder %s49, %s63
    %p65 = scmp.eq.s32.totalorder %s18, 0
    %p66 = por %p64, %p65
    %s68 = sadd.s32 %s67, 1
    %p71 = scmp.eq.s32.totalorder %s12, 1
    %p72 = scmp.ne.s32.totalorder %s67, %s69
    %p73 = scmp.eq.s32.totalorder %s12, 0
    %p74 = por %p72, %p73
    %p75 = scmp.ne.s32.totalorder %s67, %s69
    %p76 = scmp.eq.s32.totalorder %s17, 1
    %p77 = por %p75, %p76
    %p78 = scmp.ne.s32.totalorder %s69, %s70
    %p79 = scmp.eq.s32.totalorder %s17, 0
    %p80 = por %p78, %p79
    %p81 = scmp.ne.s32.totalorder %s69, %s70
    %p82 = scmp.eq.s32.totalorder %s18, 1
    %p83 = por %p81, %p82
    %p85 = scmp.ne.s32.totalorder %s70, %s84
    %p86 = scmp.eq.s32.totalorder %s18, 0
    %p87 = por %p85, %p86
    %s89 = sadd.s32 %s88, 1
    %p92 = scmp.eq.s32.totalorder %s12, 1
    %p93 = scmp.ne.s32.totalorder %s88, %s90
    %p94 = scmp.eq.s32.totalorder %s12, 0
    %p95 = por %p93, %p94
    %p96 = scmp.ne.s32.totalorder %s88, %s90
    %p97 = scmp.eq.s32.totalorder %s17, 1
    %p98 = por %p96, %p97
    %p99 = scmp.ne.s32.totalorder %s90, %s91
    %p100 = scmp.eq.s32.totalorder %s17, 0
    %p101 = por %p99, %p100
    %p102 = scmp.ne.s32.totalorder %s90, %s91
    %p103 = scmp.eq.s32.totalorder %s18, 1
    %p104 = por %p102, %p103
    %p106 = scmp.ne.s32.totalorder %s91, %s105
    %p107 = scmp.eq.s32.totalorder %s18, 0
    %p108 = por %p106, %p107
    %s110 = sadd.s32 %s109, 1
    %p113 = scmp.eq.s32.totalorder %s12, 1
    %p114 = scmp.ne.s32.totalorder %s109, %s111
    %p115 = scmp.eq.s32.totalorder %s12, 0
    %p116 = por %p114, %p115
    %p117 = scmp.ne.s32.totalorder %s109, %s111
    %p118 = scmp.eq.s32.totalorder %s17, 1
    %p119 = por %p117, %p118
    %p120 = scmp.ne.s32.totalorder %s111, %s112
    %p121 = scmp.eq.s32.totalorder %s17, 0
    %p122 = por %p120, %p121
    %p123 = scmp.ne.s32.totalorder %s111, %s112
    %p124 = scmp.eq.s32.totalorder %s18, 1
    %p125 = por %p123, %p124
    %p127 = scmp.ne.s32.totalorder %s112, %s126
    %p128 = scmp.eq.s32.totalorder %s18, 0
    %p129 = por %p127, %p128
    %s131 = sadd.s32 %s130, 1
    %p134 = scmp.eq.s32.totalorder %s12, 1
    %p135 = scmp.ne.s32.totalorder %s130, %s132
    %p136 = scmp.eq.s32.totalorder %s12, 0
    %p137 = por %p135, %p136
    %p138 = scmp.ne.s32.totalorder %s130, %s132
    %p139 = scmp.eq.s32.totalorder %s17, 1
    %p140 = por %p138, %p139
    %p141 = scmp.ne.s32.totalorder %s132, %s133
    %p142 = scmp.eq.s32.totalorder %s17, 0
    %p143 = por %p141, %p142
    %p144 = scmp.ne.s32.totalorder %s132, %s133
    %p145 = scmp.eq.s32.totalorder %s18, 1
    %p146 = por %p144, %p145
    %p148 = scmp.ne.s32.totalorder %s133, %s147
    %p149 = scmp.eq.s32.totalorder %s18, 0
    %p150 = por %p148, %p149
    %s151 = ssub.s32 %s12, %s19
    %p152 = scmp.eq.s32.totalorder %s151, 0
    %s154 = sadd.s32 %s153, 1
    %s155 = scalar_select %p152, %s153, %s154
    %p158 = pneg %p152
    %p159 = scmp.eq.s32.totalorder %s12, 1
    %p160 = por %p158, %p159
    %p161 = scmp.ne.s32.totalorder %s153, %s156
    %p162 = scmp.eq.s32.totalorder %s12, 0
    %p163 = por %p161, %p162
    %p164 = scmp.ne.s32.totalorder %s153, %s156
    %p165 = scmp.eq.s32.totalorder %s17, 1
    %p166 = por %p164, %p165
    %p167 = scmp.ne.s32.totalorder %s156, %s157
    %p168 = scmp.eq.s32.totalorder %s17, 0
    %p169 = por %p167, %p168
    %p170 = scmp.ne.s32.totalorder %s156, %s157
    %p171 = scmp.eq.s32.totalorder %s18, 1
    %p172 = por %p170, %p171
    %p174 = scmp.ne.s32.totalorder %s157, %s173
    %p175 = scmp.eq.s32.totalorder %s18, 0
    %p176 = por %p174, %p175
    %p177 = scmp.le.s32.totalorder 1, %s12
    %p178 = scmp.lt.s32.totalorder %s12, 3
    %p179 = pnand %p177, %p178
    %p180 = pneg %p179
    // Predicated region
    $region9: #{_lambda_.11} parent=5 // pred_check
      _
    $region10: #{_lambda_.11} parent=5 // pred_check_branch
      %182 = sbr.rel (%p179) target = $region12
    $region11: #{_lambda_.11} parent=5 // pred_region
      %s183 = ssub.s32 %s12, 1
      // Predicated region
      $region13: #{_lambda_.11} parent=11 // pred_check
        %p184 = pneg %p59
      $region14: #{_lambda_.11} parent=11 // pred_check_branch
        %186 = sbr.rel (%p184) target = $region16
      $region15: #{_lambda_.11} parent=11 // pred_region
        _
      $region16: #{_lambda_.11} parent=11 // pred_fallthru
        _
      // Predicated region
      $region17: #{_lambda_.11} parent=11 // pred_check
        %p187 = pneg %p80
      $region18: #{_lambda_.11} parent=11 // pred_check_branch
        %189 = sbr.rel (%p187) target = $region20
      $region19: #{_lambda_.11} parent=11 // pred_region
        _
      $region20: #{_lambda_.11} parent=11 // pred_fallthru
        _
      // Predicated region
      $region21: #{_lambda_.11} parent=11 // pred_check
        %p190 = pneg %p101
      $region22: #{_lambda_.11} parent=11 // pred_check_branch
        %192 = sbr.rel (%p190) target = $region24
      $region23: #{_lambda_.11} parent=11 // pred_region
        _
      $region24: #{_lambda_.11} parent=11 // pred_fallthru
        _
      // Predicated region
      $region25: #{_lambda_.11} parent=11 // pred_check
        %p193 = pneg %p122
      $region26: #{_lambda_.11} parent=11 // pred_check_branch
        %195 = sbr.rel (%p193) target = $region28
      $region27: #{_lambda_.11} parent=11 // pred_region
        _
      $region28: #{_lambda_.11} parent=11 // pred_fallthru
        _
      // Predicated region
      $region29: #{_lambda_.11} parent=11 // pred_check
        %p196 = pneg %p143
      $region30: #{_lambda_.11} parent=11 // pred_check_branch
        %198 = sbr.rel (%p196) target = $region32
      $region31: #{_lambda_.11} parent=11 // pred_region
        _
      $region32: #{_lambda_.11} parent=11 // pred_fallthru
        _
    $region12: #{_lambda_.11} parent=5 // pred_fallthru
      _
    %p199 = scmp.lt.s32.totalorder %s12, 2
    // Predicated region
    $region33: #{_lambda_.11} parent=5 // pred_check
      %p200 = pneg %p199
    $region34: #{_lambda_.11} parent=5 // pred_check_branch
      %202 = sbr.rel (%p200) target = $region36
    $region35: #{_lambda_.11} parent=5 // pred_region
      // Predicated region
      $region37: #{_lambda_.11} parent=35 // pred_check
        %p203 = pneg %p32
      $region38: #{_lambda_.11} parent=35 // pred_check_branch
        %205 = sbr.rel (%p203) target = $region40
      $region39: #{_lambda_.11} parent=35 // pred_region
        %p206 = scmp.lt.s32.totalorder %s12, 1
        %s207 = scalar_select %p206, %s12, 1
        %s208 = smul.addr %s207, 2
        %s209 = smul.addr %s208, 8
        %s210 = scalar_lea.vmem %s0, %s209
      $region40: #{_lambda_.11} parent=35 // pred_fallthru
        _
    $region36: #{_lambda_.11} parent=5 // pred_fallthru
      _
    %p211 = scmp.le.s32.totalorder 1, %s12
    %p212 = scmp.lt.s32.totalorder %s12, 3
    %p213 = pnand %p211, %p212
    %p214 = pneg %p213
    // Predicated region
    $region41: #{_lambda_.11} parent=5 // pred_check
      _
    $region42: #{_lambda_.11} parent=5 // pred_check_branch
      %216 = sbr.rel (%p213) target = $region44
    $region43: #{_lambda_.11} parent=5 // pred_region
      %s217 = ssub.s32 %s12, 1
      %p218 = scmp.lt.s32.totalorder %s17, 1
      %s219 = scalar_select %p218, %s17, 1
      %s220 = smul.addr %s219, 2
      %s221 = smul.addr %s220, 8
      %s222 = scalar_lea.vmem %s0, %s221
      %p223 = pneg %p38
      %p224 = pneg %p35
      %p225 = pneg %p59
      %p226 = pneg %p56
      %p227 = pneg %p80
      %p228 = pneg %p77
      %p229 = pneg %p101
      %p230 = pneg %p98
      %p231 = pneg %p122
      %p232 = pneg %p119
      %p233 = pneg %p143
      %p234 = pneg %p140
      %p235 = pneg %p169
      %p236 = pneg %p166
      %p237 = scmp.lt.s32.totalorder %s17, 1
      %s238 = scalar_select %p237, %s17, 1
      %s239 = smul.addr %s238, 2
      %s240 = smul.addr %s239, 8
      %s241 = scalar_lea.vmem %s6, %s240
      %p242 = scmp.lt.s32.totalorder %s17, 1
      %s243 = scalar_select %p242, %s17, 1
      %s244 = smul.addr %s243, 2
      %s245 = smul.addr %s244, 8
      %s246 = scalar_lea.vmem %s0, %s245
      %p247 = scmp.lt.s32.totalorder %s17, 1
      %s248 = scalar_select %p247, %s17, 1
      %s249 = smul.addr %s248, 2
      %s250 = smul.addr %s249, 8
      %s251 = scalar_lea.vmem %s6, %s250
      %v253 = vld [vmem:[%s246] sm:$0xff]
      %v254 = vld [vmem:[%s246 + $0x8] sm:$0xff]
      %v255 = vld [vmem:[%s1] sm:$0xf]
      %v256 = vld [vmem:[%s1 + $0x4] sm:$0xf]
      %v257 = vpack.c.bf16 %v254, %v253
      %v258 = vld [vmem:[%s2] sm:$0x1]
      %v260 = vlaneseq
      %v261 = vshrl.u32 %v260, 7
      %v262 = vsub.s32 0, %v261
      %v263 = vrot.slane %v258, %v262
      %v267 = vunpack.c.l.b16 %v255
      %v268 = vunpack.c.l.b16 %v256
      %v269 = vpack.c.b16 %v268, %v267
      %vm271 = vcmask 130048
      %v273 = vsel %vm271, %v257, 0
      %275 = vmatprep.subr.bf16.mxu0 0
      %276 = vmatpush1.bf16.msra.mxu0 0
      %277 = vmatprep.subr.bf16.mxu0 0
      %278 = vmatpush1.bf16.msra.mxu0 0
      %279 = vmatprep.subr.bf16.mxu0 0
      %280 = vmatpush1.bf16.msra.mxu0 0
      %281 = vmatprep.subr.bf16.mxu0 0
      %282 = vmatpush1.bf16.msra.mxu0 0
      %283 = vmatprep.subr.bf16.mxu0 0
      %284 = vmatpush1.bf16.msra.mxu0 0
      %285 = vmatprep.subr.bf16.mxu0 0
      %286 = vmatpush1.bf16.msra.mxu0 0
      %287 = vmatprep.subr.bf16.mxu0 0
      %288 = vmatpush1.bf16.msra.mxu0 0
      %289 = vmatprep.subr.bf16.mxu0 0
      %290 = vmatpush1.bf16.msra.mxu0 %v269
      %291 = vmatprep.subr.bf16.mxu0 0
      %292 = vmatpush2.bf16.msra.mxu0 0
      %293 = vmatprep.subr.bf16.mxu0 0
      %294 = vmatpush2.bf16.msra.mxu0 0
      %295 = vmatprep.subr.bf16.mxu0 0
      %296 = vmatpush2.bf16.msra.mxu0 0
      %297 = vmatprep.subr.bf16.mxu0 0
      %298 = vmatpush2.bf16.msra.mxu0 0
      %299 = vmatprep.subr.bf16.mxu0 0
      %300 = vmatpush2.bf16.msra.mxu0 0
      %301 = vmatprep.subr.bf16.mxu0 0
      %302 = vmatpush2.bf16.msra.mxu0 0
      %303 = vmatprep.subr.bf16.mxu0 0
      %304 = vmatpush2.bf16.msra.mxu0 0
      %305 = vmatprep.subr.bf16.mxu0 0
      %306 = vmatpush2.bf16.msra.mxu0 0
      %307 = vmatprep.mubr.bf16.mxu0 0
      %308 = vmatmul.mubr.bf16.gmra.mxu0 %v273
      %v309 = vpop.f32.mrf.mxu0
      %v310 = vadd.f32 %v263, %v309
      %v311 = vpop.f32.mrf.mxu0
      %v312 = vpop.f32.mrf.mxu0
      %v313 = vadd.f32 %v263, %v312
      %v314 = vpop.f32.mrf.mxu0
      %315 = vdwg.mxu0
      %v316 = vld [vmem:[%s4] sm:$0x1]
      %v317 = vld [vmem:[%s5] sm:$0x1]
      %v318 = vld [vmem:[%s3] sm:$0xff]
      %v319 = vld [vmem:[%s3 + $0x8] sm:$0xff]
      %v320 = vld [vmem:[%s3 + $0x10] sm:$0xff]
      %v321 = vld [vmem:[%s3 + $0x18] sm:$0xff]
      %v322 = vld [vmem:[%s3 + $0x20] sm:$0xff]
      %v323 = vld [vmem:[%s3 + $0x28] sm:$0xff]
      %v324 = vld [vmem:[%s3 + $0x30] sm:$0xff]
      %v325 = vld [vmem:[%s3 + $0x38] sm:$0xff]
      %vm326 = vcmask 523264
      %v327 = vsel %vm326, %v310, 0.0
      %v328 = vsel %vm326, %v313, 0.0
      %v329 = vadd.f32 %v327, %v328
      %v330 = vrot.slane %v329, 4
      %v331 = vadd.f32 %v329, %v330
      %v332 = vrot.slane %v331, 2
      %v333 = vadd.f32 %v331, %v332
      %v334 = vrot.slane %v333, 1
      %v335 = vadd.f32 %v333, %v334
      %v336 = vrcp.pop 16.0
      %v337 = vmul.f32 %v335, %v336
      %v339 = vsel %vm326, %v337, 0
      %341 = vmatprep.subr.mxu0 0.0
      %342 = vmatpush1.msra.mxu0 0.0
      %343 = vmatprep.subr.mxu0 0.0
      %344 = vmatpush1.msra.mxu0 0.0
      %345 = vmatprep.subr.mxu0 0.0
      %346 = vmatpush1.msra.mxu0 0.0
      %347 = vmatprep.subr.mxu0 0.0
      %348 = vmatpush1.msra.mxu0 0.0
      %349 = vmatprep.subr.mxu0 0.0
      %350 = vmatpush1.msra.mxu0 0.0
      %351 = vmatprep.subr.mxu0 0.0
      %352 = vmatpush1.msra.mxu0 0.0
      %353 = vmatprep.subr.mxu0 0.0
      %354 = vmatpush1.msra.mxu0 0.0
      %355 = vmatprep.subr.mxu0 0.0
      %356 = vmatpush1.msra.mxu0 0.0
      %357 = vmatprep.subr.mxu0 0.0
      %358 = vmatpush1.msra.mxu0 %v325
      %359 = vmatprep.subr.mxu0 0.0
      %360 = vmatpush1.msra.mxu0 %v324
      %361 = vmatprep.subr.mxu0 0.0
      %362 = vmatpush1.msra.mxu0 %v323
      %363 = vmatprep.subr.mxu0 0.0
      %364 = vmatpush1.msra.mxu0 %v322
      %365 = vmatprep.subr.mxu0 0.0
      %366 = vmatpush1.msra.mxu0 %v321
      %367 = vmatprep.subr.mxu0 0.0
      %368 = vmatpush1.msra.mxu0 %v320
      %369 = vmatprep.subr.mxu0 0.0
      %370 = vmatpush1.msra.mxu0 %v319
      %371 = vmatprep.subr.mxu0 0.0
      %372 = vmatpush1.msra.mxu0 %v318
      %373 = vmatprep.subr.mxu0 0.0
      %374 = vmatpush2.msra.mxu0 0.0
      %375 = vmatprep.subr.mxu0 0.0
      %376 = vmatpush2.msra.mxu0 0.0
      %377 = vmatprep.subr.mxu0 0.0
      %378 = vmatpush2.msra.mxu0 0.0
      %379 = vmatprep.subr.mxu0 0.0
      %380 = vmatpush2.msra.mxu0 0.0
      %381 = vmatprep.subr.mxu0 0.0
      %382 = vmatpush2.msra.mxu0 0.0
      %383 = vmatprep.subr.mxu0 0.0
      %384 = vmatpush2.msra.mxu0 0.0
      %385 = vmatprep.subr.mxu0 0.0
      %386 = vmatpush2.msra.mxu0 0.0
      %387 = vmatprep.subr.mxu0 0.0
      %388 = vmatpush2.msra.mxu0 0.0
      %389 = vmatprep.subr.mxu0 0.0
      %390 = vmatpush2.msra.mxu0 0.0
      %391 = vmatprep.subr.mxu0 0.0
      %392 = vmatpush2.msra.mxu0 0.0
      %393 = vmatprep.subr.mxu0 0.0
      %394 = vmatpush2.msra.mxu0 0.0
      %395 = vmatprep.subr.mxu0 0.0
      %396 = vmatpush2.msra.mxu0 0.0
      %397 = vmatprep.subr.mxu0 0.0
      %398 = vmatpush2.msra.mxu0 0.0
      %399 = vmatprep.subr.mxu0 0.0
      %400 = vmatpush2.msra.mxu0 0.0
      %401 = vmatprep.subr.mxu0 0.0
      %402 = vmatpush2.msra.mxu0 0.0
      %403 = vmatprep.subr.mxu0 0.0
      %404 = vmatpush2.msra.mxu0 0.0
      %405 = vmatprep.mubr.f32.mxu0 0.0
      %406 = vmatmul.mubr.f32.gmra.mxu0 %v339
      %v407 = vpop.f32.mrf.mxu0
      %v408 = vadd.f32 0.0, %v407
      %v409 = vpop.f32.mrf.mxu0
      %410 = vdwg.mxu0
      %v411 = vlaneseq
      %v412 = vshrl.u32 %v411, 7
      %v413 = vsub.s32 0, %v412
      %v414 = vrot.slane %v408, %v413
      %v415 = vsub.f32 %v310, %v414
      %v416 = vsub.f32 %v313, %v414
      %v417 = vmul.f32 %v415, %v415
      %v418 = vmul.f32 %v416, %v416
      %v419 = vsel %vm326, %v417, 0.0
      %v420 = vsel %vm326, %v418, 0.0
      %v421 = vadd.f32 %v419, %v420
      %v422 = vrot.slane %v421, 4
      %v423 = vadd.f32 %v421, %v422
      %v424 = vrot.slane %v423, 2
      %v425 = vadd.f32 %v423, %v424
      %v426 = vrot.slane %v425, 1
      %v427 = vadd.f32 %v425, %v426
      %v428 = vmul.f32 %v427, %v336
      %v430 = vsel %vm326, %v428, 0
      %432 = vmatprep.subr.mxu0 0.0
      %433 = vmatpush1.msra.mxu0 0.0
      %434 = vmatprep.subr.mxu0 0.0
      %435 = vmatpush1.msra.mxu0 0.0
      %436 = vmatprep.subr.mxu0 0.0
      %437 = vmatpush1.msra.mxu0 0.0
      %438 = vmatprep.subr.mxu0 0.0
      %439 = vmatpush1.msra.mxu0 0.0
      %440 = vmatprep.subr.mxu0 0.0
      %441 = vmatpush1.msra.mxu0 0.0
      %442 = vmatprep.subr.mxu0 0.0
      %443 = vmatpush1.msra.mxu0 0.0
      %444 = vmatprep.subr.mxu0 0.0
      %445 = vmatpush1.msra.mxu0 0.0
      %446 = vmatprep.subr.mxu0 0.0
      %447 = vmatpush1.msra.mxu0 0.0
      %448 = vmatprep.subr.mxu0 0.0
      %449 = vmatpush1.msra.mxu0 %v325
      %450 = vmatprep.subr.mxu0 0.0
      %451 = vmatpush1.msra.mxu0 %v324
      %452 = vmatprep.subr.mxu0 0.0
      %453 = vmatpush1.msra.mxu0 %v323
      %454 = vmatprep.subr.mxu0 0.0
      %455 = vmatpush1.msra.mxu0 %v322
      %456 = vmatprep.subr.mxu0 0.0
      %457 = vmatpush1.msra.mxu0 %v321
      %458 = vmatprep.subr.mxu0 0.0
      %459 = vmatpush1.msra.mxu0 %v320
      %460 = vmatprep.subr.mxu0 0.0
      %461 = vmatpush1.msra.mxu0 %v319
      %462 = vmatprep.subr.mxu0 0.0
      %463 = vmatpush1.msra.mxu0 %v318
      %464 = vmatprep.subr.mxu0 0.0
      %465 = vmatpush2.msra.mxu0 0.0
      %466 = vmatprep.subr.mxu0 0.0
      %467 = vmatpush2.msra.mxu0 0.0
      %468 = vmatprep.subr.mxu0 0.0
      %469 = vmatpush2.msra.mxu0 0.0
      %470 = vmatprep.subr.mxu0 0.0
      %471 = vmatpush2.msra.mxu0 0.0
      %472 = vmatprep.subr.mxu0 0.0
      %473 = vmatpush2.msra.mxu0 0.0
      %474 = vmatprep.subr.mxu0 0.0
      %475 = vmatpush2.msra.mxu0 0.0
      %476 = vmatprep.subr.mxu0 0.0
      %477 = vmatpush2.msra.mxu0 0.0
      %478 = vmatprep.subr.mxu0 0.0
      %479 = vmatpush2.msra.mxu0 0.0
      %480 = vmatprep.subr.mxu0 0.0
      %481 = vmatpush2.msra.mxu0 0.0
      %482 = vmatprep.subr.mxu0 0.0
      %483 = vmatpush2.msra.mxu0 0.0
      %484 = vmatprep.subr.mxu0 0.0
      %485 = vmatpush2.msra.mxu0 0.0
      %486 = vmatprep.subr.mxu0 0.0
      %487 = vmatpush2.msra.mxu0 0.0
      %488 = vmatprep.subr.mxu0 0.0
      %489 = vmatpush2.msra.mxu0 0.0
      %490 = vmatprep.subr.mxu0 0.0
      %491 = vmatpush2.msra.mxu0 0.0
      %492 = vmatprep.subr.mxu0 0.0
      %493 = vmatpush2.msra.mxu0 0.0
      %494 = vmatprep.subr.mxu0 0.0
      %495 = vmatpush2.msra.mxu0 0.0
      %496 = vmatprep.mubr.f32.mxu0 0.0
      %497 = vmatmul.mubr.f32.gmra.mxu0 %v430
      %v498 = vpop.f32.mrf.mxu0
      %v499 = vadd.f32 1e-05, %v498
      %v500 = vpop.f32.mrf.mxu0
      %501 = vdwg.mxu0
      %v502 = vrsqrt.pop %v499
      %v503 = vlaneseq
      %v504 = vshrl.u32 %v503, 7
      %v505 = vsub.s32 0, %v504
      %v506 = vrot.slane %v502, %v505
      %v507 = vmul.f32 %v415, %v506
      %v508 = vmul.f32 %v416, %v506
      %v510 = vlaneseq
      %v511 = vshrl.u32 %v510, 7
      %v512 = vsub.s32 0, %v511
      %v513 = vrot.slane %v316, %v512
      %v515 = vmul.f32 %v507, %v513
      %v516 = vmul.f32 %v508, %v513
      %v518 = vlaneseq
      %v519 = vshrl.u32 %v518, 7
      %v520 = vsub.s32 0, %v519
      %v521 = vrot.slane %v317, %v520
      %v523 = vadd.f32 %v515, %v521
      %v524 = vadd.f32 %v516, %v521
      %525 = vst.msk [vmem:[%s251] sm:$0xff] %vm326, %v523
      %526 = vst.msk [vmem:[%s251 + $0x8] sm:$0xff] %vm326, %v524
      %p527 = scmp.lt.s32.totalorder %s17, 1
      %s528 = scalar_select %p527, %s17, 1
      %s529 = smul.addr %s528, 2
      %s530 = smul.addr %s529, 8
      %s531 = scalar_lea.vmem %s6, %s530
      // Predicated region
      $region45: #{_lambda_.11} parent=43 // pred_check
        %p532 = pneg %p166
      $region46: #{_lambda_.11} parent=43 // pred_check_branch
        %534 = sbr.rel (%p532) target = $region48
      $region47: #{_lambda_.11} parent=43 // pred_region
        _
      $region48: #{_lambda_.11} parent=43 // pred_fallthru
        _
    $region44: #{_lambda_.11} parent=5 // pred_fallthru
      _
    %p535 = scmp.le.s32.totalorder 2, %s12
    // Predicated region
    $region49: #{_lambda_.11} parent=5 // pred_check
      %p536 = pneg %p535
    $region50: #{_lambda_.11} parent=5 // pred_check_branch
      %538 = sbr.rel (%p536) target = $region52
    $region51: #{_lambda_.11} parent=5 // pred_region
      %s539 = ssub.s32 %s12, 2
      // Predicated region
      $region53: #{_lambda_.11} parent=51 // pred_check
        %p540 = pneg %p172
      $region54: #{_lambda_.11} parent=51 // pred_check_branch
        %542 = sbr.rel (%p540) target = $region56
      $region55: #{_lambda_.11} parent=51 // pred_region
        %p543 = scmp.lt.s32.totalorder %s18, 1
        %s544 = scalar_select %p543, %s18, 1
        %s545 = smul.addr %s544, 2
        %s546 = smul.addr %s545, 8
        %s547 = scalar_lea.vmem %s6, %s546
      $region56: #{_lambda_.11} parent=51 // pred_fallthru
        _
    $region52: #{_lambda_.11} parent=5 // pred_fallthru
      _
  $region6: #{_lambda_.11} parent=0 // loop_footer
    %s16 = sadd.s32 1, %s12
  $region7: #{_lambda_.11} parent=0 // loop_footer_branch
    %11 = sbr.rel target = $region3
  $region8: #{_lambda_.11} parent=0 // loop_exit
    _

// kernel: _lambda_.9
$region0: #{_lambda_.9}
  #allocation0 [shape = 'u32[]', space=smem, size = 0x4, offset = 0x4, fixed_abs, tag = 'smem constant byte address 0x4 - core index']
  #allocation1 [shape = 'u32[144,128]{1,0:T(1,128)}', space=vmem, size = 0x12000, scoped, tag = 'internal scratch']
  %s0 = inlined_call_operand.vmem [shape: f32[2,4,32], index: 0, kind: input, shape index: {}]
  %s1 = inlined_call_operand.vmem [shape: bf16[32,128], index: 1, kind: input, shape index: {}]
  %s2 = inlined_call_operand.vmem [shape: f32[1,128], index: 2, kind: input, shape index: {}]
  %s3 = inlined_call_operand.vmem [shape: f32[128,128], index: 3, kind: input, shape index: {}]
  %s4 = inlined_call_operand.vmem [shape: f32[1,128], index: 4, kind: input, shape index: {}]
  %s5 = inlined_call_operand.vmem [shape: f32[1,128], index: 5, kind: input, shape index: {}]
  %s6 = inlined_call_operand.vmem [shape: f32[2,4,128], index: 6, kind: output, shape index: {}]
  %s7 = sld [smem:[#allocation0]]
  $region57: #{_lambda_.9} parent=0
    _
  %s9 = ssub.s32 1, %s7
  %s10 = scalar_select 0, %s9, %s7
  loop: start=0, step=1, limit=4
  $region2: #{_lambda_.9} parent=0 // loop_pre_header
    _
  $region3: #{_lambda_.9} parent=0 // loop_header
    %s12 = sphi 0, %s16
    %p13 = scmp.ge.s32.totalorder %s12, 4
    %s22 = sphi 0, %s24
    %s25 = sphi 0, %s22
    %s26 = sphi 0, %s25
    %s42 = sphi 0, %s26
    %s46 = sphi 0, %s46
    %s48 = sphi 0, %s46
    %s49 = sphi 0, %s48
    %s63 = sphi 0, %s49
    %s67 = sphi 0, %s67
    %s69 = sphi 0, %s67
    %s70 = sphi 0, %s69
    %s84 = sphi 0, %s70
    %s88 = sphi 0, %s88
    %s90 = sphi 0, %s88
    %s91 = sphi 0, %s90
    %s105 = sphi 0, %s91
    %s109 = sphi 0, %s109
    %s111 = sphi 0, %s109
    %s112 = sphi 0, %s111
    %s126 = sphi 0, %s112
    %s130 = sphi 0, %s130
    %s132 = sphi 0, %s130
    %s133 = sphi 0, %s132
    %s147 = sphi 0, %s133
    %s153 = sphi 0, %s155
    %s156 = sphi 0, %s153
    %s157 = sphi 0, %s156
    %s173 = sphi 0, %s157
  $region4: #{_lambda_.9} parent=0 // loop_header_branch
    %15 = sbr.rel (%p13) target = $region8
  $region5: #{_lambda_.9} parent=0 // loop_body
    %s17 = ssub.s32 %s12, 1
    %s18 = ssub.s32 %s12, 2
    %s19 = sadd.s32 %s12, 1
    %s20 = ssub.s32 %s12, %s19
    %p21 = scmp.eq.s32.totalorder %s20, 0
    %s23 = sadd.s32 %s22, 1
    %s24 = scalar_select %p21, %s22, %s23
    %p27 = pneg %p21
    %p28 = scmp.eq.s32.totalorder %s12, 1
    %p29 = por %p27, %p28
    %p30 = scmp.ne.s32.totalorder %s22, %s25
    %p31 = scmp.eq.s32.totalorder %s12, 0
    %p32 = por %p30, %p31
    %p33 = scmp.ne.s32.totalorder %s22, %s25
    %p34 = scmp.eq.s32.totalorder %s17, 1
    %p35 = por %p33, %p34
    %p36 = scmp.ne.s32.totalorder %s25, %s26
    %p37 = scmp.eq.s32.totalorder %s17, 0
    %p38 = por %p36, %p37
    %p39 = scmp.ne.s32.totalorder %s25, %s26
    %p40 = scmp.eq.s32.totalorder %s18, 1
    %p41 = por %p39, %p40
    %p43 = scmp.ne.s32.totalorder %s26, %s42
    %p44 = scmp.eq.s32.totalorder %s18, 0
    %p45 = por %p43, %p44
    %s47 = sadd.s32 %s46, 1
    %p50 = scmp.eq.s32.totalorder %s12, 1
    %p51 = scmp.ne.s32.totalorder %s46, %s48
    %p52 = scmp.eq.s32.totalorder %s12, 0
    %p53 = por %p51, %p52
    %p54 = scmp.ne.s32.totalorder %s46, %s48
    %p55 = scmp.eq.s32.totalorder %s17, 1
    %p56 = por %p54, %p55
    %p57 = scmp.ne.s32.totalorder %s48, %s49
    %p58 = scmp.eq.s32.totalorder %s17, 0
    %p59 = por %p57, %p58
    %p60 = scmp.ne.s32.totalorder %s48, %s49
    %p61 = scmp.eq.s32.totalorder %s18, 1
    %p62 = por %p60, %p61
    %p64 = scmp.ne.s32.totalorder %s49, %s63
    %p65 = scmp.eq.s32.totalorder %s18, 0
    %p66 = por %p64, %p65
    %s68 = sadd.s32 %s67, 1
    %p71 = scmp.eq.s32.totalorder %s12, 1
    %p72 = scmp.ne.s32.totalorder %s67, %s69
    %p73 = scmp.eq.s32.totalorder %s12, 0
    %p74 = por %p72, %p73
    %p75 = scmp.ne.s32.totalorder %s67, %s69
    %p76 = scmp.eq.s32.totalorder %s17, 1
    %p77 = por %p75, %p76
    %p78 = scmp.ne.s32.totalorder %s69, %s70
    %p79 = scmp.eq.s32.totalorder %s17, 0
    %p80 = por %p78, %p79
    %p81 = scmp.ne.s32.totalorder %s69, %s70
    %p82 = scmp.eq.s32.totalorder %s18, 1
    %p83 = por %p81, %p82
    %p85 = scmp.ne.s32.totalorder %s70, %s84
    %p86 = scmp.eq.s32.totalorder %s18, 0
    %p87 = por %p85, %p86
    %s89 = sadd.s32 %s88, 1
    %p92 = scmp.eq.s32.totalorder %s12, 1
    %p93 = scmp.ne.s32.totalorder %s88, %s90
    %p94 = scmp.eq.s32.totalorder %s12, 0
    %p95 = por %p93, %p94
    %p96 = scmp.ne.s32.totalorder %s88, %s90
    %p97 = scmp.eq.s32.totalorder %s17, 1
    %p98 = por %p96, %p97
    %p99 = scmp.ne.s32.totalorder %s90, %s91
    %p100 = scmp.eq.s32.totalorder %s17, 0
    %p101 = por %p99, %p100
    %p102 = scmp.ne.s32.totalorder %s90, %s91
    %p103 = scmp.eq.s32.totalorder %s18, 1
    %p104 = por %p102, %p103
    %p106 = scmp.ne.s32.totalorder %s91, %s105
    %p107 = scmp.eq.s32.totalorder %s18, 0
    %p108 = por %p106, %p107
    %s110 = sadd.s32 %s109, 1
    %p113 = scmp.eq.s32.totalorder %s12, 1
    %p114 = scmp.ne.s32.totalorder %s109, %s111
    %p115 = scmp.eq.s32.totalorder %s12, 0
    %p116 = por %p114, %p115
    %p117 = scmp.ne.s32.totalorder %s109, %s111
    %p118 = scmp.eq.s32.totalorder %s17, 1
    %p119 = por %p117, %p118
    %p120 = scmp.ne.s32.totalorder %s111, %s112
    %p121 = scmp.eq.s32.totalorder %s17, 0
    %p122 = por %p120, %p121
    %p123 = scmp.ne.s32.totalorder %s111, %s112
    %p124 = scmp.eq.s32.totalorder %s18, 1
    %p125 = por %p123, %p124
    %p127 = scmp.ne.s32.totalorder %s112, %s126
    %p128 = scmp.eq.s32.totalorder %s18, 0
    %p129 = por %p127, %p128
    %s131 = sadd.s32 %s130, 1
    %p134 = scmp.eq.s32.totalorder %s12, 1
    %p135 = scmp.ne.s32.totalorder %s130, %s132
    %p136 = scmp.eq.s32.totalorder %s12, 0
    %p137 = por %p135, %p136
    %p138 = scmp.ne.s32.totalorder %s130, %s132
    %p139 = scmp.eq.s32.totalorder %s17, 1
    %p140 = por %p138, %p139
    %p141 = scmp.ne.s32.totalorder %s132, %s133
    %p142 = scmp.eq.s32.totalorder %s17, 0
    %p143 = por %p141, %p142
    %p144 = scmp.ne.s32.totalorder %s132, %s133
    %p145 = scmp.eq.s32.totalorder %s18, 1
    %p146 = por %p144, %p145
    %p148 = scmp.ne.s32.totalorder %s133, %s147
    %p149 = scmp.eq.s32.totalorder %s18, 0
    %p150 = por %p148, %p149
    %s151 = ssub.s32 %s12, %s19
    %p152 = scmp.eq.s32.totalorder %s151, 0
    %s154 = sadd.s32 %s153, 1
    %s155 = scalar_select %p152, %s153, %s154
    %p158 = pneg %p152
    %p159 = scmp.eq.s32.totalorder %s12, 1
    %p160 = por %p158, %p159
    %p161 = scmp.ne.s32.totalorder %s153, %s156
    %p162 = scmp.eq.s32.totalorder %s12, 0
    %p163 = por %p161, %p162
    %p164 = scmp.ne.s32.totalorder %s153, %s156
    %p165 = scmp.eq.s32.totalorder %s17, 1
    %p166 = por %p164, %p165
    %p167 = scmp.ne.s32.totalorder %s156, %s157
    %p168 = scmp.eq.s32.totalorder %s17, 0
    %p169 = por %p167, %p168
    %p170 = scmp.ne.s32.totalorder %s156, %s157
    %p171 = scmp.eq.s32.totalorder %s18, 1
    %p172 = por %p170, %p171
    %p174 = scmp.ne.s32.totalorder %s157, %s173
    %p175 = scmp.eq.s32.totalorder %s18, 0
    %p176 = por %p174, %p175
    %p177 = scmp.le.s32.totalorder 1, %s12
    %p178 = scmp.lt.s32.totalorder %s12, 3
    %p179 = pnand %p177, %p178
    %p180 = pneg %p179
    // Predicated region
    $region9: #{_lambda_.9} parent=5 // pred_check
      _
    $region10: #{_lambda_.9} parent=5 // pred_check_branch
      %182 = sbr.rel (%p179) target = $region12
    $region11: #{_lambda_.9} parent=5 // pred_region
      %s183 = ssub.s32 %s12, 1
      // Predicated region
      $region13: #{_lambda_.9} parent=11 // pred_check
        %p184 = pneg %p59
      $region14: #{_lambda_.9} parent=11 // pred_check_branch
        %186 = sbr.rel (%p184) target = $region16
      $region15: #{_lambda_.9} parent=11 // pred_region
        _
      $region16: #{_lambda_.9} parent=11 // pred_fallthru
        _
      // Predicated region
      $region17: #{_lambda_.9} parent=11 // pred_check
        %p187 = pneg %p80
      $region18: #{_lambda_.9} parent=11 // pred_check_branch
        %189 = sbr.rel (%p187) target = $region20
      $region19: #{_lambda_.9} parent=11 // pred_region
        _
      $region20: #{_lambda_.9} parent=11 // pred_fallthru
        _
      // Predicated region
      $region21: #{_lambda_.9} parent=11 // pred_check
        %p190 = pneg %p101
      $region22: #{_lambda_.9} parent=11 // pred_check_branch
        %192 = sbr.rel (%p190) target = $region24
      $region23: #{_lambda_.9} parent=11 // pred_region
        _
      $region24: #{_lambda_.9} parent=11 // pred_fallthru
        _
      // Predicated region
      $region25: #{_lambda_.9} parent=11 // pred_check
        %p193 = pneg %p122
      $region26: #{_lambda_.9} parent=11 // pred_check_branch
        %195 = sbr.rel (%p193) target = $region28
      $region27: #{_lambda_.9} parent=11 // pred_region
        _
      $region28: #{_lambda_.9} parent=11 // pred_fallthru
        _
      // Predicated region
      $region29: #{_lambda_.9} parent=11 // pred_check
        %p196 = pneg %p143
      $region30: #{_lambda_.9} parent=11 // pred_check_branch
        %198 = sbr.rel (%p196) target = $region32
      $region31: #{_lambda_.9} parent=11 // pred_region
        _
      $region32: #{_lambda_.9} parent=11 // pred_fallthru
        _
    $region12: #{_lambda_.9} parent=5 // pred_fallthru
      _
    %p199 = scmp.lt.s32.totalorder %s12, 2
    // Predicated region
    $region33: #{_lambda_.9} parent=5 // pred_check
      %p200 = pneg %p199
    $region34: #{_lambda_.9} parent=5 // pred_check_branch
      %202 = sbr.rel (%p200) target = $region36
    $region35: #{_lambda_.9} parent=5 // pred_region
      // Predicated region
      $region37: #{_lambda_.9} parent=35 // pred_check
        %p203 = pneg %p32
      $region38: #{_lambda_.9} parent=35 // pred_check_branch
        %205 = sbr.rel (%p203) target = $region40
      $region39: #{_lambda_.9} parent=35 // pred_region
        %p206 = scmp.lt.s32.totalorder %s12, 1
        %s207 = scalar_select %p206, %s12, 1
        %s208 = smul.addr %s207, 4
        %s209 = scalar_lea.vmem %s0, %s208
      $region40: #{_lambda_.9} parent=35 // pred_fallthru
        _
    $region36: #{_lambda_.9} parent=5 // pred_fallthru
      _
    %p210 = scmp.le.s32.totalorder 1, %s12
    %p211 = scmp.lt.s32.totalorder %s12, 3
    %p212 = pnand %p210, %p211
    %p213 = pneg %p212
    // Predicated region
    $region41: #{_lambda_.9} parent=5 // pred_check
      _
    $region42: #{_lambda_.9} parent=5 // pred_check_branch
      %215 = sbr.rel (%p212) target = $region44
    $region43: #{_lambda_.9} parent=5 // pred_region
      %s216 = ssub.s32 %s12, 1
      %p217 = scmp.lt.s32.totalorder %s17, 1
      %s218 = scalar_select %p217, %s17, 1
      %s219 = smul.addr %s218, 4
      %s220 = scalar_lea.vmem %s0, %s219
      %p221 = pneg %p38
      %p222 = pneg %p35
      %p223 = pneg %p59
      %p224 = pneg %p56
      %p225 = pneg %p80
      %p226 = pneg %p77
      %p227 = pneg %p101
      %p228 = pneg %p98
      %p229 = pneg %p122
      %p230 = pneg %p119
      %p231 = pneg %p143
      %p232 = pneg %p140
      %p233 = pneg %p169
      %p234 = pneg %p166
      %p235 = scmp.lt.s32.totalorder %s17, 1
      %s236 = scalar_select %p235, %s17, 1
      %s237 = smul.addr %s236, 4
      %s238 = scalar_lea.vmem %s6, %s237
      %p239 = scmp.lt.s32.totalorder %s17, 1
      %s240 = scalar_select %p239, %s17, 1
      %s241 = smul.addr %s240, 4
      %s242 = scalar_lea.vmem %s0, %s241
      %p243 = scmp.lt.s32.totalorder %s17, 1
      %s244 = scalar_select %p243, %s17, 1
      %s245 = smul.addr %s244, 4
      %s246 = scalar_lea.vmem %s6, %s245
      %v248 = vld [vmem:[%s242] sm:$0xf]
      %v249 = vld [vmem:[%s1] sm:$0xf]
      %v250 = vld [vmem:[%s1 + $0x4] sm:$0xf]
      %v251 = vld [vmem:[%s1 + $0x8] sm:$0xf]
      %v252 = vld [vmem:[%s1 + $0xc] sm:$0xf]
      %v253 = vpack.c.bf16 %v248, %v248
      %v254 = vld [vmem:[%s2] sm:$0x1]
      %v256 = vlaneseq
      %v257 = vshrl.u32 %v256, 7
      %v258 = vsub.s32 0, %v257
      %v259 = vrot.slane %v254, %v258
      %v265 = vunpack.c.l.b16 %v249
      %v266 = vunpack.c.l.b16 %v250
      %v267 = vunpack.c.l.b16 %v251
      %v268 = vunpack.c.l.b16 %v252
      %v269 = vpack.c.b16 %v266, %v265
      %v270 = vpack.c.b16 %v268, %v267
      %vm273 = vcmask 261120
      %v275 = vsel %vm273, %v253, 0
      %277 = vmatprep.subr.bf16.mxu0 0
      %278 = vmatpush1.bf16.msra.mxu0 0
      %279 = vmatprep.subr.bf16.mxu0 0
      %280 = vmatpush1.bf16.msra.mxu0 0
      %281 = vmatprep.subr.bf16.mxu0 0
      %282 = vmatpush1.bf16.msra.mxu0 0
      %283 = vmatprep.subr.bf16.mxu0 0
      %284 = vmatpush1.bf16.msra.mxu0 0
      %285 = vmatprep.subr.bf16.mxu0 0
      %286 = vmatpush1.bf16.msra.mxu0 0
      %287 = vmatprep.subr.bf16.mxu0 0
      %288 = vmatpush1.bf16.msra.mxu0 0
      %289 = vmatprep.subr.bf16.mxu0 0
      %290 = vmatpush1.bf16.msra.mxu0 %v270
      %291 = vmatprep.subr.bf16.mxu0 0
      %292 = vmatpush1.bf16.msra.mxu0 %v269
      %293 = vmatprep.subr.bf16.mxu0 0
      %294 = vmatpush2.bf16.msra.mxu0 0
      %295 = vmatprep.subr.bf16.mxu0 0
      %296 = vmatpush2.bf16.msra.mxu0 0
      %297 = vmatprep.subr.bf16.mxu0 0
      %298 = vmatpush2.bf16.msra.mxu0 0
      %299 = vmatprep.subr.bf16.mxu0 0
      %300 = vmatpush2.bf16.msra.mxu0 0
      %301 = vmatprep.subr.bf16.mxu0 0
      %302 = vmatpush2.bf16.msra.mxu0 0
      %303 = vmatprep.subr.bf16.mxu0 0
      %304 = vmatpush2.bf16.msra.mxu0 0
      %305 = vmatprep.subr.bf16.mxu0 0
      %306 = vmatpush2.bf16.msra.mxu0 0
      %307 = vmatprep.subr.bf16.mxu0 0
      %308 = vmatpush2.bf16.msra.mxu0 0
      %309 = vmatprep.mubr.bf16.mxu0 0
      %310 = vmatmul.mubr.bf16.gmra.mxu0 %v275
      %v311 = vpop.f32.mrf.mxu0
      %v312 = vadd.f32 %v259, %v311
      %v313 = vpop.f32.mrf.mxu0
      %v314 = vpop.f32.mrf.mxu0
      %v315 = vpop.f32.mrf.mxu0
      %316 = vdwg.mxu0
      %v317 = vld [vmem:[%s4] sm:$0x1]
      %v318 = vld [vmem:[%s5] sm:$0x1]
      %v319 = vld [vmem:[%s3] sm:$0xff]
      %v320 = vld [vmem:[%s3 + $0x8] sm:$0xff]
      %v321 = vld [vmem:[%s3 + $0x10] sm:$0xff]
      %v322 = vld [vmem:[%s3 + $0x18] sm:$0xff]
      %v323 = vld [vmem:[%s3 + $0x20] sm:$0xff]
      %v324 = vld [vmem:[%s3 + $0x28] sm:$0xff]
      %v325 = vld [vmem:[%s3 + $0x30] sm:$0xff]
      %v326 = vld [vmem:[%s3 + $0x38] sm:$0xff]
      %v327 = vld [vmem:[%s3 + $0x40] sm:$0xff]
      %v328 = vld [vmem:[%s3 + $0x48] sm:$0xff]
      %v329 = vld [vmem:[%s3 + $0x50] sm:$0xff]
      %v330 = vld [vmem:[%s3 + $0x58] sm:$0xff]
      %v331 = vld [vmem:[%s3 + $0x60] sm:$0xff]
      %v332 = vld [vmem:[%s3 + $0x68] sm:$0xff]
      %v333 = vld [vmem:[%s3 + $0x70] sm:$0xff]
      %v334 = vld [vmem:[%s3 + $0x78] sm:$0xff]
      %vm335 = vcmask 1043456
      %v336 = vsel %vm335, %v312, 0.0
      %v337 = vrot.slane %v336, 4
      %v338 = vadd.f32 %v336, %v337
      %v339 = vrot.slane %v338, 2
      %v340 = vadd.f32 %v338, %v339
      %v341 = vrot.slane %v340, 1
      %v342 = vadd.f32 %v340, %v341
      %v343 = vrcp.pop 4.0
      %v344 = vmul.f32 %v342, %v343
      %345 = vmatprep.subr.mxu0 0.0
      %346 = vmatpush1.msra.mxu0 %v334
      %347 = vmatprep.subr.mxu0 0.0
      %348 = vmatpush1.msra.mxu0 %v333
      %349 = vmatprep.subr.mxu0 0.0
      %350 = vmatpush1.msra.mxu0 %v332
      %351 = vmatprep.subr.mxu0 0.0
      %352 = vmatpush1.msra.mxu0 %v331
      %353 = vmatprep.subr.mxu0 0.0
      %354 = vmatpush1.msra.mxu0 %v330
      %355 = vmatprep.subr.mxu0 0.0
      %356 = vmatpush1.msra.mxu0 %v329
      %357 = vmatprep.subr.mxu0 0.0
      %358 = vmatpush1.msra.mxu0 %v328
      %359 = vmatprep.subr.mxu0 0.0
      %360 = vmatpush1.msra.mxu0 %v327
      %361 = vmatprep.subr.mxu0 0.0
      %362 = vmatpush1.msra.mxu0 %v326
      %363 = vmatprep.subr.mxu0 0.0
      %364 = vmatpush1.msra.mxu0 %v325
      %365 = vmatprep.subr.mxu0 0.0
      %366 = vmatpush1.msra.mxu0 %v324
      %367 = vmatprep.subr.mxu0 0.0
      %368 = vmatpush1.msra.mxu0 %v323
      %369 = vmatprep.subr.mxu0 0.0
      %370 = vmatpush1.msra.mxu0 %v322
      %371 = vmatprep.subr.mxu0 0.0
      %372 = vmatpush1.msra.mxu0 %v321
      %373 = vmatprep.subr.mxu0 0.0
      %374 = vmatpush1.msra.mxu0 %v320
      %375 = vmatprep.subr.mxu0 0.0
      %376 = vmatpush1.msra.mxu0 %v319
      %377 = vmatprep.subr.mxu0 0.0
      %378 = vmatpush2.msra.mxu0 0.0
      %379 = vmatprep.subr.mxu0 0.0
      %380 = vmatpush2.msra.mxu0 0.0
      %381 = vmatprep.subr.mxu0 0.0
      %382 = vmatpush2.msra.mxu0 0.0
      %383 = vmatprep.subr.mxu0 0.0
      %384 = vmatpush2.msra.mxu0 0.0
      %385 = vmatprep.subr.mxu0 0.0
      %386 = vmatpush2.msra.mxu0 0.0
      %387 = vmatprep.subr.mxu0 0.0
      %388 = vmatpush2.msra.mxu0 0.0
      %389 = vmatprep.subr.mxu0 0.0
      %390 = vmatpush2.msra.mxu0 0.0
      %391 = vmatprep.subr.mxu0 0.0
      %392 = vmatpush2.msra.mxu0 0.0
      %393 = vmatprep.subr.mxu0 0.0
      %394 = vmatpush2.msra.mxu0 0.0
      %395 = vmatprep.subr.mxu0 0.0
      %396 = vmatpush2.msra.mxu0 0.0
      %397 = vmatprep.subr.mxu0 0.0
      %398 = vmatpush2.msra.mxu0 0.0
      %399 = vmatprep.subr.mxu0 0.0
      %400 = vmatpush2.msra.mxu0 0.0
      %401 = vmatprep.subr.mxu0 0.0
      %402 = vmatpush2.msra.mxu0 0.0
      %403 = vmatprep.subr.mxu0 0.0
      %404 = vmatpush2.msra.mxu0 0.0
      %405 = vmatprep.subr.mxu0 0.0
      %406 = vmatpush2.msra.mxu0 0.0
      %407 = vmatprep.subr.mxu0 0.0
      %408 = vmatpush2.msra.mxu0 0.0
      %409 = vmatprep.mubr.f32.mxu0 0.0
      %410 = vmatmul.mubr.f32.gmra.mxu0 %v344
      %v411 = vpop.f32.mrf.mxu0
      %v412 = vadd.f32 0.0, %v411
      %v413 = vpop.f32.mrf.mxu0
      %414 = vdwg.mxu0
      %v415 = vlaneseq
      %v416 = vshrl.u32 %v415, 7
      %v417 = vsub.s32 0, %v416
      %v418 = vrot.slane %v412, %v417
      %v419 = vsub.f32 %v312, %v418
      %v420 = vmul.f32 %v419, %v419
      %v421 = vsel %vm335, %v420, 0.0
      %v422 = vrot.slane %v421, 4
      %v423 = vadd.f32 %v421, %v422
      %v424 = vrot.slane %v423, 2
      %v425 = vadd.f32 %v423, %v424
      %v426 = vrot.slane %v425, 1
      %v427 = vadd.f32 %v425, %v426
      %v428 = vmul.f32 %v427, %v343
      %429 = vmatprep.subr.mxu0 0.0
      %430 = vmatpush1.msra.mxu0 %v334
      %431 = vmatprep.subr.mxu0 0.0
      %432 = vmatpush1.msra.mxu0 %v333
      %433 = vmatprep.subr.mxu0 0.0
      %434 = vmatpush1.msra.mxu0 %v332
      %435 = vmatprep.subr.mxu0 0.0
      %436 = vmatpush1.msra.mxu0 %v331
      %437 = vmatprep.subr.mxu0 0.0
      %438 = vmatpush1.msra.mxu0 %v330
      %439 = vmatprep.subr.mxu0 0.0
      %440 = vmatpush1.msra.mxu0 %v329
      %441 = vmatprep.subr.mxu0 0.0
      %442 = vmatpush1.msra.mxu0 %v328
      %443 = vmatprep.subr.mxu0 0.0
      %444 = vmatpush1.msra.mxu0 %v327
      %445 = vmatprep.subr.mxu0 0.0
      %446 = vmatpush1.msra.mxu0 %v326
      %447 = vmatprep.subr.mxu0 0.0
      %448 = vmatpush1.msra.mxu0 %v325
      %449 = vmatprep.subr.mxu0 0.0
      %450 = vmatpush1.msra.mxu0 %v324
      %451 = vmatprep.subr.mxu0 0.0
      %452 = vmatpush1.msra.mxu0 %v323
      %453 = vmatprep.subr.mxu0 0.0
      %454 = vmatpush1.msra.mxu0 %v322
      %455 = vmatprep.subr.mxu0 0.0
      %456 = vmatpush1.msra.mxu0 %v321
      %457 = vmatprep.subr.mxu0 0.0
      %458 = vmatpush1.msra.mxu0 %v320
      %459 = vmatprep.subr.mxu0 0.0
      %460 = vmatpush1.msra.mxu0 %v319
      %461 = vmatprep.subr.mxu0 0.0
      %462 = vmatpush2.msra.mxu0 0.0
      %463 = vmatprep.subr.mxu0 0.0
      %464 = vmatpush2.msra.mxu0 0.0
      %465 = vmatprep.subr.mxu0 0.0
      %466 = vmatpush2.msra.mxu0 0.0
      %467 = vmatprep.subr.mxu0 0.0
      %468 = vmatpush2.msra.mxu0 0.0
      %469 = vmatprep.subr.mxu0 0.0
      %470 = vmatpush2.msra.mxu0 0.0
      %471 = vmatprep.subr.mxu0 0.0
      %472 = vmatpush2.msra.mxu0 0.0
      %473 = vmatprep.subr.mxu0 0.0
      %474 = vmatpush2.msra.mxu0 0.0
      %475 = vmatprep.subr.mxu0 0.0
      %476 = vmatpush2.msra.mxu0 0.0
      %477 = vmatprep.subr.mxu0 0.0
      %478 = vmatpush2.msra.mxu0 0.0
      %479 = vmatprep.subr.mxu0 0.0
      %480 = vmatpush2.msra.mxu0 0.0
      %481 = vmatprep.subr.mxu0 0.0
      %482 = vmatpush2.msra.mxu0 0.0
      %483 = vmatprep.subr.mxu0 0.0
      %484 = vmatpush2.msra.mxu0 0.0
      %485 = vmatprep.subr.mxu0 0.0
      %486 = vmatpush2.msra.mxu0 0.0
      %487 = vmatprep.subr.mxu0 0.0
      %488 = vmatpush2.msra.mxu0 0.0
      %489 = vmatprep.subr.mxu0 0.0
      %490 = vmatpush2.msra.mxu0 0.0
      %491 = vmatprep.subr.mxu0 0.0
      %492 = vmatpush2.msra.mxu0 0.0
      %493 = vmatprep.mubr.f32.mxu0 0.0
      %494 = vmatmul.mubr.f32.gmra.mxu0 %v428
      %v495 = vpop.f32.mrf.mxu0
      %v496 = vadd.f32 1e-05, %v495
      %v497 = vpop.f32.mrf.mxu0
      %498 = vdwg.mxu0
      %v499 = vrsqrt.pop %v496
      %v500 = vlaneseq
      %v501 = vshrl.u32 %v500, 7
      %v502 = vsub.s32 0, %v501
      %v503 = vrot.slane %v499, %v502
      %v504 = vmul.f32 %v419, %v503
      %v506 = vlaneseq
      %v507 = vshrl.u32 %v506, 7
      %v508 = vsub.s32 0, %v507
      %v509 = vrot.slane %v317, %v508
      %v511 = vmul.f32 %v504, %v509
      %v513 = vlaneseq
      %v514 = vshrl.u32 %v513, 7
      %v515 = vsub.s32 0, %v514
      %v516 = vrot.slane %v318, %v515
      %v518 = vadd.f32 %v511, %v516
      %519 = vst [vmem:[%s246] sm:$0xf] %v518
      %p520 = scmp.lt.s32.totalorder %s17, 1
      %s521 = scalar_select %p520, %s17, 1
      %s522 = smul.addr %s521, 4
      %s523 = scalar_lea.vmem %s6, %s522
      // Predicated region
      $region45: #{_lambda_.9} parent=43 // pred_check
        %p524 = pneg %p166
      $region46: #{_lambda_.9} parent=43 // pred_check_branch
        %526 = sbr.rel (%p524) target = $region48
      $region47: #{_lambda_.9} parent=43 // pred_region
        _
      $region48: #{_lambda_.9} parent=43 // pred_fallthru
        _
    $region44: #{_lambda_.9} parent=5 // pred_fallthru
      _
    %p527 = scmp.le.s32.totalorder 2, %s12
    // Predicated region
    $region49: #{_lambda_.9} parent=5 // pred_check
      %p528 = pneg %p527
    $region50: #{_lambda_.9} parent=5 // pred_check_branch
      %530 = sbr.rel (%p528) target = $region52
    $region51: #{_lambda_.9} parent=5 // pred_region
      %s531 = ssub.s32 %s12, 2
      // Predicated region
      $region53: #{_lambda_.9} parent=51 // pred_check
        %p532 = pneg %p172
      $region54: #{_lambda_.9} parent=51 // pred_check_branch
        %534 = sbr.rel (%p532) target = $region56
      $region55: #{_lambda_.9} parent=51 // pred_region
        %p535 = scmp.lt.s32.totalorder %s18, 1
        %s536 = scalar_select %p535, %s18, 1
        %s537 = smul.addr %s536, 4
        %s538 = scalar_lea.vmem %s6, %s537
      $region56: #{_lambda_.9} parent=51 // pred_fallthru
        _
    $region52: #{_lambda_.9} parent=5 // pred_fallthru
      _
  $region6: #{_lambda_.9} parent=0 // loop_footer
    %s16 = sadd.s32 1, %s12
  $region7: #{_lambda_.9} parent=0 // loop_footer_branch
    %11 = sbr.rel target = $region3
  $region8: #{_lambda_.9} parent=0 // loop_exit
    _

// kernel: _lambda_.10
$region0: #{_lambda_.10}
  #allocation0 [shape = 'u32[]', space=smem, size = 0x4, offset = 0x4, fixed_abs, tag = 'smem constant byte address 0x4 - core index']
  #allocation1 [shape = 'u32[144,128]{1,0:T(1,128)}', space=vmem, size = 0x12000, scoped, tag = 'internal scratch']
  %s0 = inlined_call_operand.vmem [shape: f32[2,16,32], index: 0, kind: input, shape index: {}]
  %s1 = inlined_call_operand.vmem [shape: f32[32,32], index: 1, kind: input, shape index: {}]
  %s2 = inlined_call_operand.vmem [shape: f32[1,32], index: 2, kind: input, shape index: {}]
  %s3 = inlined_call_operand.vmem [shape: f32[1,32], index: 3, kind: input, shape index: {}]
  %s4 = inlined_call_operand.vmem [shape: bf16[32,96], index: 4, kind: input, shape index: {}]
  %s5 = inlined_call_operand.vmem [shape: f32[1,96], index: 5, kind: input, shape index: {}]
  %s6 = inlined_call_operand.vmem [shape: bf16[32,32], index: 6, kind: input, shape index: {}]
  %s7 = inlined_call_operand.vmem [shape: f32[1,32], index: 7, kind: input, shape index: {}]
  %s8 = inlined_call_operand.vmem [shape: bf16[32,16], index: 8, kind: input, shape index: {}]
  %s9 = inlined_call_operand.vmem [shape: f32[1,16], index: 9, kind: input, shape index: {}]
  %s10 = inlined_call_operand.vmem [shape: f32[16,16], index: 10, kind: input, shape index: {}]
  %s11 = inlined_call_operand.vmem [shape: f32[1,16], index: 11, kind: input, shape index: {}]
  %s12 = inlined_call_operand.vmem [shape: f32[1,16], index: 12, kind: input, shape index: {}]
  %s13 = inlined_call_operand.vmem [shape: bf16[16,32], index: 13, kind: input, shape index: {}]
  %s14 = inlined_call_operand.vmem [shape: f32[1,32], index: 14, kind: input, shape index: {}]
  %s15 = inlined_call_operand.vmem [shape: bf16[32,16], index: 15, kind: input, shape index: {}]
  %s16 = inlined_call_operand.vmem [shape: f32[1,16], index: 16, kind: input, shape index: {}]
  %s17 = inlined_call_operand.vmem [shape: f32[2,16,16], index: 17, kind: output, shape index: {}]
  %s18 = sld [smem:[#allocation0]]
  $region101: #{_lambda_.10} parent=0
    _
  %s20 = ssub.s32 1, %s18
  %s21 = scalar_select 0, %s20, %s18
  loop: start=0, step=1, limit=4
  $region2: #{_lambda_.10} parent=0 // loop_pre_header
    _
  $region3: #{_lambda_.10} parent=0 // loop_header
    %s23 = sphi 0, %s27
    %p24 = scmp.ge.s32.totalorder %s23, 4
    %s33 = sphi 0, %s35
    %s36 = sphi 0, %s33
    %s37 = sphi 0, %s36
    %s53 = sphi 0, %s37
    %s57 = sphi 0, %s57
    %s59 = sphi 0, %s57
    %s60 = sphi 0, %s59
    %s74 = sphi 0, %s60
    %s78 = sphi 0, %s78
    %s80 = sphi 0, %s78
    %s81 = sphi 0, %s80
    %s95 = sphi 0, %s81
    %s99 = sphi 0, %s99
    %s101 = sphi 0, %s99
    %s102 = sphi 0, %s101
    %s116 = sphi 0, %s102
    %s120 = sphi 0, %s120
    %s122 = sphi 0, %s120
    %s123 = sphi 0, %s122
    %s137 = sphi 0, %s123
    %s141 = sphi 0, %s141
    %s143 = sphi 0, %s141
    %s144 = sphi 0, %s143
    %s158 = sphi 0, %s144
    %s162 = sphi 0, %s162
    %s164 = sphi 0, %s162
    %s165 = sphi 0, %s164
    %s179 = sphi 0, %s165
    %s183 = sphi 0, %s183
    %s185 = sphi 0, %s183
    %s186 = sphi 0, %s185
    %s200 = sphi 0, %s186
    %s204 = sphi 0, %s204
    %s206 = sphi 0, %s204
    %s207 = sphi 0, %s206
    %s221 = sphi 0, %s207
    %s225 = sphi 0, %s225
    %s227 = sphi 0, %s225
    %s228 = sphi 0, %s227
    %s242 = sphi 0, %s228
    %s246 = sphi 0, %s246
    %s248 = sphi 0, %s246
    %s249 = sphi 0, %s248
    %s263 = sphi 0, %s249
    %s267 = sphi 0, %s267
    %s269 = sphi 0, %s267
    %s270 = sphi 0, %s269
    %s284 = sphi 0, %s270
    %s288 = sphi 0, %s288
    %s290 = sphi 0, %s288
    %s291 = sphi 0, %s290
    %s305 = sphi 0, %s291
    %s309 = sphi 0, %s309
    %s311 = sphi 0, %s309
    %s312 = sphi 0, %s311
    %s326 = sphi 0, %s312
    %s330 = sphi 0, %s330
    %s332 = sphi 0, %s330
    %s333 = sphi 0, %s332
    %s347 = sphi 0, %s333
    %s351 = sphi 0, %s351
    %s353 = sphi 0, %s351
    %s354 = sphi 0, %s353
    %s368 = sphi 0, %s354
    %s372 = sphi 0, %s372
    %s374 = sphi 0, %s372
    %s375 = sphi 0, %s374
    %s389 = sphi 0, %s375
    %s395 = sphi 0, %s397
    %s398 = sphi 0, %s395
    %s399 = sphi 0, %s398
    %s415 = sphi 0, %s399
  $region4: #{_lambda_.10} parent=0 // loop_header_branch
    %26 = sbr.rel (%p24) target = $region8
  $region5: #{_lambda_.10} parent=0 // loop_body
    %s28 = ssub.s32 %s23, 1
    %s29 = ssub.s32 %s23, 2
    %s30 = sadd.s32 %s23, 1
    %s31 = ssub.s32 %s23, %s30
    %p32 = scmp.eq.s32.totalorder %s31, 0
    %s34 = sadd.s32 %s33, 1
    %s35 = scalar_select %p32, %s33, %s34
    %p38 = pneg %p32
    %p39 = scmp.eq.s32.totalorder %s23, 1
    %p40 = por %p38, %p39
    %p41 = scmp.ne.s32.totalorder %s33, %s36
    %p42 = scmp.eq.s32.totalorder %s23, 0
    %p43 = por %p41, %p42
    %p44 = scmp.ne.s32.totalorder %s33, %s36
    %p45 = scmp.eq.s32.totalorder %s28, 1
    %p46 = por %p44, %p45
    %p47 = scmp.ne.s32.totalorder %s36, %s37
    %p48 = scmp.eq.s32.totalorder %s28, 0
    %p49 = por %p47, %p48
    %p50 = scmp.ne.s32.totalorder %s36, %s37
    %p51 = scmp.eq.s32.totalorder %s29, 1
    %p52 = por %p50, %p51
    %p54 = scmp.ne.s32.totalorder %s37, %s53
    %p55 = scmp.eq.s32.totalorder %s29, 0
    %p56 = por %p54, %p55
    %s58 = sadd.s32 %s57, 1
    %p61 = scmp.eq.s32.totalorder %s23, 1
    %p62 = scmp.ne.s32.totalorder %s57, %s59
    %p63 = scmp.eq.s32.totalorder %s23, 0
    %p64 = por %p62, %p63
    %p65 = scmp.ne.s32.totalorder %s57, %s59
    %p66 = scmp.eq.s32.totalorder %s28, 1
    %p67 = por %p65, %p66
    %p68 = scmp.ne.s32.totalorder %s59, %s60
    %p69 = scmp.eq.s32.totalorder %s28, 0
    %p70 = por %p68, %p69
    %p71 = scmp.ne.s32.totalorder %s59, %s60
    %p72 = scmp.eq.s32.totalorder %s29, 1
    %p73 = por %p71, %p72
    %p75 = scmp.ne.s32.totalorder %s60, %s74
    %p76 = scmp.eq.s32.totalorder %s29, 0
    %p77 = por %p75, %p76
    %s79 = sadd.s32 %s78, 1
    %p82 = scmp.eq.s32.totalorder %s23, 1
    %p83 = scmp.ne.s32.totalorder %s78, %s80
    %p84 = scmp.eq.s32.totalorder %s23, 0
    %p85 = por %p83, %p84
    %p86 = scmp.ne.s32.totalorder %s78, %s80
    %p87 = scmp.eq.s32.totalorder %s28, 1
    %p88 = por %p86, %p87
    %p89 = scmp.ne.s32.totalorder %s80, %s81
    %p90 = scmp.eq.s32.totalorder %s28, 0
    %p91 = por %p89, %p90
    %p92 = scmp.ne.s32.totalorder %s80, %s81
    %p93 = scmp.eq.s32.totalorder %s29, 1
    %p94 = por %p92, %p93
    %p96 = scmp.ne.s32.totalorder %s81, %s95
    %p97 = scmp.eq.s32.totalorder %s29, 0
    %p98 = por %p96, %p97
    %s100 = sadd.s32 %s99, 1
    %p103 = scmp.eq.s32.totalorder %s23, 1
    %p104 = scmp.ne.s32.totalorder %s99, %s101
    %p105 = scmp.eq.s32.totalorder %s23, 0
    %p106 = por %p104, %p105
    %p107 = scmp.ne.s32.totalorder %s99, %s101
    %p108 = scmp.eq.s32.totalorder %s28, 1
    %p109 = por %p107, %p108
    %p110 = scmp.ne.s32.totalorder %s101, %s102
    %p111 = scmp.eq.s32.totalorder %s28, 0
    %p112 = por %p110, %p111
    %p113 = scmp.ne.s32.totalorder %s101, %s102
    %p114 = scmp.eq.s32.totalorder %s29, 1
    %p115 = por %p113, %p114
    %p117 = scmp.ne.s32.totalorder %s102, %s116
    %p118 = scmp.eq.s32.totalorder %s29, 0
    %p119 = por %p117, %p118
    %s121 = sadd.s32 %s120, 1
    %p124 = scmp.eq.s32.totalorder %s23, 1
    %p125 = scmp.ne.s32.totalorder %s120, %s122
    %p126 = scmp.eq.s32.totalorder %s23, 0
    %p127 = por %p125, %p126
    %p128 = scmp.ne.s32.totalorder %s120, %s122
    %p129 = scmp.eq.s32.totalorder %s28, 1
    %p130 = por %p128, %p129
    %p131 = scmp.ne.s32.totalorder %s122, %s123
    %p132 = scmp.eq.s32.totalorder %s28, 0
    %p133 = por %p131, %p132
    %p134 = scmp.ne.s32.totalorder %s122, %s123
    %p135 = scmp.eq.s32.totalorder %s29, 1
    %p136 = por %p134, %p135
    %p138 = scmp.ne.s32.totalorder %s123, %s137
    %p139 = scmp.eq.s32.totalorder %s29, 0
    %p140 = por %p138, %p139
    %s142 = sadd.s32 %s141, 1
    %p145 = scmp.eq.s32.totalorder %s23, 1
    %p146 = scmp.ne.s32.totalorder %s141, %s143
    %p147 = scmp.eq.s32.totalorder %s23, 0
    %p148 = por %p146, %p147
    %p149 = scmp.ne.s32.totalorder %s141, %s143
    %p150 = scmp.eq.s32.totalorder %s28, 1
    %p151 = por %p149, %p150
    %p152 = scmp.ne.s32.totalorder %s143, %s144
    %p153 = scmp.eq.s32.totalorder %s28, 0
    %p154 = por %p152, %p153
    %p155 = scmp.ne.s32.totalorder %s143, %s144
    %p156 = scmp.eq.s32.totalorder %s29, 1
    %p157 = por %p155, %p156
    %p159 = scmp.ne.s32.totalorder %s144, %s158
    %p160 = scmp.eq.s32.totalorder %s29, 0
    %p161 = por %p159, %p160
    %s163 = sadd.s32 %s162, 1
    %p166 = scmp.eq.s32.totalorder %s23, 1
    %p167 = scmp.ne.s32.totalorder %s162, %s164
    %p168 = scmp.eq.s32.totalorder %s23, 0
    %p169 = por %p167, %p168
    %p170 = scmp.ne.s32.totalorder %s162, %s164
    %p171 = scmp.eq.s32.totalorder %s28, 1
    %p172 = por %p170, %p171
    %p173 = scmp.ne.s32.totalorder %s164, %s165
    %p174 = scmp.eq.s32.totalorder %s28, 0
    %p175 = por %p173, %p174
    %p176 = scmp.ne.s32.totalorder %s164, %s165
    %p177 = scmp.eq.s32.totalorder %s29, 1
    %p178 = por %p176, %p177
    %p180 = scmp.ne.s32.totalorder %s165, %s179
    %p181 = scmp.eq.s32.totalorder %s29, 0
    %p182 = por %p180, %p181
    %s184 = sadd.s32 %s183, 1
    %p187 = scmp.eq.s32.totalorder %s23, 1
    %p188 = scmp.ne.s32.totalorder %s183, %s185
    %p189 = scmp.eq.s32.totalorder %s23, 0
    %p190 = por %p188, %p189
    %p191 = scmp.ne.s32.totalorder %s183, %s185
    %p192 = scmp.eq.s32.totalorder %s28, 1
    %p193 = por %p191, %p192
    %p194 = scmp.ne.s32.totalorder %s185, %s186
    %p195 = scmp.eq.s32.totalorder %s28, 0
    %p196 = por %p194, %p195
    %p197 = scmp.ne.s32.totalorder %s185, %s186
    %p198 = scmp.eq.s32.totalorder %s29, 1
    %p199 = por %p197, %p198
    %p201 = scmp.ne.s32.totalorder %s186, %s200
    %p202 = scmp.eq.s32.totalorder %s29, 0
    %p203 = por %p201, %p202
    %s205 = sadd.s32 %s204, 1
    %p208 = scmp.eq.s32.totalorder %s23, 1
    %p209 = scmp.ne.s32.totalorder %s204, %s206
    %p210 = scmp.eq.s32.totalorder %s23, 0
    %p211 = por %p209, %p210
    %p212 = scmp.ne.s32.totalorder %s204, %s206
    %p213 = scmp.eq.s32.totalorder %s28, 1
    %p214 = por %p212, %p213
    %p215 = scmp.ne.s32.totalorder %s206, %s207
    %p216 = scmp.eq.s32.totalorder %s28, 0
    %p217 = por %p215, %p216
    %p218 = scmp.ne.s32.totalorder %s206, %s207
    %p219 = scmp.eq.s32.totalorder %s29, 1
    %p220 = por %p218, %p219
    %p222 = scmp.ne.s32.totalorder %s207, %s221
    %p223 = scmp.eq.s32.totalorder %s29, 0
    %p224 = por %p222, %p223
    %s226 = sadd.s32 %s225, 1
    %p229 = scmp.eq.s32.totalorder %s23, 1
    %p230 = scmp.ne.s32.totalorder %s225, %s227
    %p231 = scmp.eq.s32.totalorder %s23, 0
    %p232 = por %p230, %p231
    %p233 = scmp.ne.s32.totalorder %s225, %s227
    %p234 = scmp.eq.s32.totalorder %s28, 1
    %p235 = por %p233, %p234
    %p236 = scmp.ne.s32.totalorder %s227, %s228
    %p237 = scmp.eq.s32.totalorder %s28, 0
    %p238 = por %p236, %p237
    %p239 = scmp.ne.s32.totalorder %s227, %s228
    %p240 = scmp.eq.s32.totalorder %s29, 1
    %p241 = por %p239, %p240
    %p243 = scmp.ne.s32.totalorder %s228, %s242
    %p244 = scmp.eq.s32.totalorder %s29, 0
    %p245 = por %p243, %p244
    %s247 = sadd.s32 %s246, 1
    %p250 = scmp.eq.s32.totalorder %s23, 1
    %p251 = scmp.ne.s32.totalorder %s246, %s248
    %p252 = scmp.eq.s32.totalorder %s23, 0
    %p253 = por %p251, %p252
    %p254 = scmp.ne.s32.totalorder %s246, %s248
    %p255 = scmp.eq.s32.totalorder %s28, 1
    %p256 = por %p254, %p255
    %p257 = scmp.ne.s32.totalorder %s248, %s249
    %p258 = scmp.eq.s32.totalorder %s28, 0
    %p259 = por %p257, %p258
    %p260 = scmp.ne.s32.totalorder %s248, %s249
    %p261 = scmp.eq.s32.totalorder %s29, 1
    %p262 = por %p260, %p261
    %p264 = scmp.ne.s32.totalorder %s249, %s263
    %p265 = scmp.eq.s32.totalorder %s29, 0
    %p266 = por %p264, %p265
    %s268 = sadd.s32 %s267, 1
    %p271 = scmp.eq.s32.totalorder %s23, 1
    %p272 = scmp.ne.s32.totalorder %s267, %s269
    %p273 = scmp.eq.s32.totalorder %s23, 0
    %p274 = por %p272, %p273
    %p275 = scmp.ne.s32.totalorder %s267, %s269
    %p276 = scmp.eq.s32.totalorder %s28, 1
    %p277 = por %p275, %p276
    %p278 = scmp.ne.s32.totalorder %s269, %s270
    %p279 = scmp.eq.s32.totalorder %s28, 0
    %p280 = por %p278, %p279
    %p281 = scmp.ne.s32.totalorder %s269, %s270
    %p282 = scmp.eq.s32.totalorder %s29, 1
    %p283 = por %p281, %p282
    %p285 = scmp.ne.s32.totalorder %s270, %s284
    %p286 = scmp.eq.s32.totalorder %s29, 0
    %p287 = por %p285, %p286
    %s289 = sadd.s32 %s288, 1
    %p292 = scmp.eq.s32.totalorder %s23, 1
    %p293 = scmp.ne.s32.totalorder %s288, %s290
    %p294 = scmp.eq.s32.totalorder %s23, 0
    %p295 = por %p293, %p294
    %p296 = scmp.ne.s32.totalorder %s288, %s290
    %p297 = scmp.eq.s32.totalorder %s28, 1
    %p298 = por %p296, %p297
    %p299 = scmp.ne.s32.totalorder %s290, %s291
    %p300 = scmp.eq.s32.totalorder %s28, 0
    %p301 = por %p299, %p300
    %p302 = scmp.ne.s32.totalorder %s290, %s291
    %p303 = scmp.eq.s32.totalorder %s29, 1
    %p304 = por %p302, %p303
    %p306 = scmp.ne.s32.totalorder %s291, %s305
    %p307 = scmp.eq.s32.totalorder %s29, 0
    %p308 = por %p306, %p307
    %s310 = sadd.s32 %s309, 1
    %p313 = scmp.eq.s32.totalorder %s23, 1
    %p314 = scmp.ne.s32.totalorder %s309, %s311
    %p315 = scmp.eq.s32.totalorder %s23, 0
    %p316 = por %p314, %p315
    %p317 = scmp.ne.s32.totalorder %s309, %s311
    %p318 = scmp.eq.s32.totalorder %s28, 1
    %p319 = por %p317, %p318
    %p320 = scmp.ne.s32.totalorder %s311, %s312
    %p321 = scmp.eq.s32.totalorder %s28, 0
    %p322 = por %p320, %p321
    %p323 = scmp.ne.s32.totalorder %s311, %s312
    %p324 = scmp.eq.s32.totalorder %s29, 1
    %p325 = por %p323, %p324
    %p327 = scmp.ne.s32.totalorder %s312, %s326
    %p328 = scmp.eq.s32.totalorder %s29, 0
    %p329 = por %p327, %p328
    %s331 = sadd.s32 %s330, 1
    %p334 = scmp.eq.s32.totalorder %s23, 1
    %p335 = scmp.ne.s32.totalorder %s330, %s332
    %p336 = scmp.eq.s32.totalorder %s23, 0
    %p337 = por %p335, %p336
    %p338 = scmp.ne.s32.totalorder %s330, %s332
    %p339 = scmp.eq.s32.totalorder %s28, 1
    %p340 = por %p338, %p339
    %p341 = scmp.ne.s32.totalorder %s332, %s333
    %p342 = scmp.eq.s32.totalorder %s28, 0
    %p343 = por %p341, %p342
    %p344 = scmp.ne.s32.totalorder %s332, %s333
    %p345 = scmp.eq.s32.totalorder %s29, 1
    %p346 = por %p344, %p345
    %p348 = scmp.ne.s32.totalorder %s333, %s347
    %p349 = scmp.eq.s32.totalorder %s29, 0
    %p350 = por %p348, %p349
    %s352 = sadd.s32 %s351, 1
    %p355 = scmp.eq.s32.totalorder %s23, 1
    %p356 = scmp.ne.s32.totalorder %s351, %s353
    %p357 = scmp.eq.s32.totalorder %s23, 0
    %p358 = por %p356, %p357
    %p359 = scmp.ne.s32.totalorder %s351, %s353
    %p360 = scmp.eq.s32.totalorder %s28, 1
    %p361 = por %p359, %p360
    %p362 = scmp.ne.s32.totalorder %s353, %s354
    %p363 = scmp.eq.s32.totalorder %s28, 0
    %p364 = por %p362, %p363
    %p365 = scmp.ne.s32.totalorder %s353, %s354
    %p366 = scmp.eq.s32.totalorder %s29, 1
    %p367 = por %p365, %p366
    %p369 = scmp.ne.s32.totalorder %s354, %s368
    %p370 = scmp.eq.s32.totalorder %s29, 0
    %p371 = por %p369, %p370
    %s373 = sadd.s32 %s372, 1
    %p376 = scmp.eq.s32.totalorder %s23, 1
    %p377 = scmp.ne.s32.totalorder %s372, %s374
    %p378 = scmp.eq.s32.totalorder %s23, 0
    %p379 = por %p377, %p378
    %p380 = scmp.ne.s32.totalorder %s372, %s374
    %p381 = scmp.eq.s32.totalorder %s28, 1
    %p382 = por %p380, %p381
    %p383 = scmp.ne.s32.totalorder %s374, %s375
    %p384 = scmp.eq.s32.totalorder %s28, 0
    %p385 = por %p383, %p384
    %p386 = scmp.ne.s32.totalorder %s374, %s375
    %p387 = scmp.eq.s32.totalorder %s29, 1
    %p388 = por %p386, %p387
    %p390 = scmp.ne.s32.totalorder %s375, %s389
    %p391 = scmp.eq.s32.totalorder %s29, 0
    %p392 = por %p390, %p391
    %s393 = ssub.s32 %s23, %s30
    %p394 = scmp.eq.s32.totalorder %s393, 0
    %s396 = sadd.s32 %s395, 1
    %s397 = scalar_select %p394, %s395, %s396
    %p400 = pneg %p394
    %p401 = scmp.eq.s32.totalorder %s23, 1
    %p402 = por %p400, %p401
    %p403 = scmp.ne.s32.totalorder %s395, %s398
    %p404 = scmp.eq.s32.totalorder %s23, 0
    %p405 = por %p403, %p404
    %p406 = scmp.ne.s32.totalorder %s395, %s398
    %p407 = scmp.eq.s32.totalorder %s28, 1
    %p408 = por %p406, %p407
    %p409 = scmp.ne.s32.totalorder %s398, %s399
    %p410 = scmp.eq.s32.totalorder %s28, 0
    %p411 = por %p409, %p410
    %p412 = scmp.ne.s32.totalorder %s398, %s399
    %p413 = scmp.eq.s32.totalorder %s29, 1
    %p414 = por %p412, %p413
    %p416 = scmp.ne.s32.totalorder %s399, %s415
    %p417 = scmp.eq.s32.totalorder %s29, 0
    %p418 = por %p416, %p417
    %p419 = scmp.le.s32.totalorder 1, %s23
    %p420 = scmp.lt.s32.totalorder %s23, 3
    %p421 = pnand %p419, %p420
    %p422 = pneg %p421
    // Predicated region
    $region9: #{_lambda_.10} parent=5 // pred_check
      _
    $region10: #{_lambda_.10} parent=5 // pred_check_branch
      %424 = sbr.rel (%p421) target = $region12
    $region11: #{_lambda_.10} parent=5 // pred_region
      %s425 = ssub.s32 %s23, 1
      // Predicated region
      $region13: #{_lambda_.10} parent=11 // pred_check
        %p426 = pneg %p70
      $region14: #{_lambda_.10} parent=11 // pred_check_branch
        %428 = sbr.rel (%p426) target = $region16
      $region15: #{_lambda_.10} parent=11 // pred_region
        _
      $region16: #{_lambda_.10} parent=11 // pred_fallthru
        _
      // Predicated region
      $region17: #{_lambda_.10} parent=11 // pred_check
        %p429 = pneg %p91
      $region18: #{_lambda_.10} parent=11 // pred_check_branch
        %431 = sbr.rel (%p429) target = $region20
      $region19: #{_lambda_.10} parent=11 // pred_region
        _
      $region20: #{_lambda_.10} parent=11 // pred_fallthru
        _
      // Predicated region
      $region21: #{_lambda_.10} parent=11 // pred_check
        %p432 = pneg %p112
      $region22: #{_lambda_.10} parent=11 // pred_check_branch
        %434 = sbr.rel (%p432) target = $region24
      $region23: #{_lambda_.10} parent=11 // pred_region
        _
      $region24: #{_lambda_.10} parent=11 // pred_fallthru
        _
      // Predicated region
      $region25: #{_lambda_.10} parent=11 // pred_check
        %p435 = pneg %p133
      $region26: #{_lambda_.10} parent=11 // pred_check_branch
        %437 = sbr.rel (%p435) target = $region28
      $region27: #{_lambda_.10} parent=11 // pred_region
        _
      $region28: #{_lambda_.10} parent=11 // pred_fallthru
        _
      // Predicated region
      $region29: #{_lambda_.10} parent=11 // pred_check
        %p438 = pneg %p154
      $region30: #{_lambda_.10} parent=11 // pred_check_branch
        %440 = sbr.rel (%p438) target = $region32
      $region31: #{_lambda_.10} parent=11 // pred_region
        _
      $region32: #{_lambda_.10} parent=11 // pred_fallthru
        _
      // Predicated region
      $region33: #{_lambda_.10} parent=11 // pred_check
        %p441 = pneg %p175
      $region34: #{_lambda_.10} parent=11 // pred_check_branch
        %443 = sbr.rel (%p441) target = $region36
      $region35: #{_lambda_.10} parent=11 // pred_region
        _
      $region36: #{_lambda_.10} parent=11 // pred_fallthru
        _
      // Predicated region
      $region37: #{_lambda_.10} parent=11 // pred_check
        %p444 = pneg %p196
      $region38: #{_lambda_.10} parent=11 // pred_check_branch
        %446 = sbr.rel (%p444) target = $region40
      $region39: #{_lambda_.10} parent=11 // pred_region
        _
      $region40: #{_lambda_.10} parent=11 // pred_fallthru
        _
      // Predicated region
      $region41: #{_lambda_.10} parent=11 // pred_check
        %p447 = pneg %p217
      $region42: #{_lambda_.10} parent=11 // pred_check_branch
        %449 = sbr.rel (%p447) target = $region44
      $region43: #{_lambda_.10} parent=11 // pred_region
        _
      $region44: #{_lambda_.10} parent=11 // pred_fallthru
        _
      // Predicated region
      $region45: #{_lambda_.10} parent=11 // pred_check
        %p450 = pneg %p238
      $region46: #{_lambda_.10} parent=11 // pred_check_branch
        %452 = sbr.rel (%p450) target = $region48
      $region47: #{_lambda_.10} parent=11 // pred_region
        _
      $region48: #{_lambda_.10} parent=11 // pred_fallthru
        _
      // Predicated region
      $region49: #{_lambda_.10} parent=11 // pred_check
        %p453 = pneg %p259
      $region50: #{_lambda_.10} parent=11 // pred_check_branch
        %455 = sbr.rel (%p453) target = $region52
      $region51: #{_lambda_.10} parent=11 // pred_region
        _
      $region52: #{_lambda_.10} parent=11 // pred_fallthru
        _
      // Predicated region
      $region53: #{_lambda_.10} parent=11 // pred_check
        %p456 = pneg %p280
      $region54: #{_lambda_.10} parent=11 // pred_check_branch
        %458 = sbr.rel (%p456) target = $region56
      $region55: #{_lambda_.10} parent=11 // pred_region
        _
      $region56: #{_lambda_.10} parent=11 // pred_fallthru
        _
      // Predicated region
      $region57: #{_lambda_.10} parent=11 // pred_check
        %p459 = pneg %p301
      $region58: #{_lambda_.10} parent=11 // pred_check_branch
        %461 = sbr.rel (%p459) target = $region60
      $region59: #{_lambda_.10} parent=11 // pred_region
        _
      $region60: #{_lambda_.10} parent=11 // pred_fallthru
        _
      // Predicated region
      $region61: #{_lambda_.10} parent=11 // pred_check
        %p462 = pneg %p322
      $region62: #{_lambda_.10} parent=11 // pred_check_branch
        %464 = sbr.rel (%p462) target = $region64
      $region63: #{_lambda_.10} parent=11 // pred_region
        _
      $region64: #{_lambda_.10} parent=11 // pred_fallthru
        _
      // Predicated region
      $region65: #{_lambda_.10} parent=11 // pred_check
        %p465 = pneg %p343
      $region66: #{_lambda_.10} parent=11 // pred_check_branch
        %467 = sbr.rel (%p465) target = $region68
      $region67: #{_lambda_.10} parent=11 // pred_region
        _
      $region68: #{_lambda_.10} parent=11 // pred_fallthru
        _
      // Predicated region
      $region69: #{_lambda_.10} parent=11 // pred_check
        %p468 = pneg %p364
      $region70: #{_lambda_.10} parent=11 // pred_check_branch
        %470 = sbr.rel (%p468) target = $region72
      $region71: #{_lambda_.10} parent=11 // pred_region
        _
      $region72: #{_lambda_.10} parent=11 // pred_fallthru
        _
      // Predicated region
      $region73: #{_lambda_.10} parent=11 // pred_check
        %p471 = pneg %p385
      $region74: #{_lambda_.10} parent=11 // pred_check_branch
        %473 = sbr.rel (%p471) target = $region76
      $region75: #{_lambda_.10} parent=11 // pred_region
        _
      $region76: #{_lambda_.10} parent=11 // pred_fallthru
        _
    $region12: #{_lambda_.10} parent=5 // pred_fallthru
      _
    %p474 = scmp.lt.s32.totalorder %s23, 2
    // Predicated region
    $region77: #{_lambda_.10} parent=5 // pred_check
      %p475 = pneg %p474
    $region78: #{_lambda_.10} parent=5 // pred_check_branch
      %477 = sbr.rel (%p475) target = $region80
    $region79: #{_lambda_.10} parent=5 // pred_region
      // Predicated region
      $region81: #{_lambda_.10} parent=79 // pred_check
        %p478 = pneg %p43
      $region82: #{_lambda_.10} parent=79 // pred_check_branch
        %480 = sbr.rel (%p478) target = $region84
      $region83: #{_lambda_.10} parent=79 // pred_region
        %p481 = scmp.lt.s32.totalorder %s23, 1
        %s482 = scalar_select %p481, %s23, 1
        %s483 = smul.addr %s482, 2
        %s484 = smul.addr %s483, 8
        %s485 = scalar_lea.vmem %s0, %s484
      $region84: #{_lambda_.10} parent=79 // pred_fallthru
        _
    $region80: #{_lambda_.10} parent=5 // pred_fallthru
      _
    %p486 = scmp.le.s32.totalorder 1, %s23
    %p487 = scmp.lt.s32.totalorder %s23, 3
    %p488 = pnand %p486, %p487
    %p489 = pneg %p488
    // Predicated region
    $region85: #{_lambda_.10} parent=5 // pred_check
      _
    $region86: #{_lambda_.10} parent=5 // pred_check_branch
      %491 = sbr.rel (%p488) target = $region88
    $region87: #{_lambda_.10} parent=5 // pred_region
      %s492 = ssub.s32 %s23, 1
      %p493 = scmp.lt.s32.totalorder %s28, 1
      %s494 = scalar_select %p493, %s28, 1
      %s495 = smul.addr %s494, 2
      %s496 = smul.addr %s495, 8
      %s497 = scalar_lea.vmem %s0, %s496
      %p498 = pneg %p49
      %p499 = pneg %p46
      %p500 = pneg %p70
      %p501 = pneg %p67
      %p502 = pneg %p91
      %p503 = pneg %p88
      %p504 = pneg %p112
      %p505 = pneg %p109
      %p506 = pneg %p133
      %p507 = pneg %p130
      %p508 = pneg %p154
      %p509 = pneg %p151
      %p510 = pneg %p175
      %p511 = pneg %p172
      %p512 = pneg %p196
      %p513 = pneg %p193
      %p514 = pneg %p217
      %p515 = pneg %p214
      %p516 = pneg %p238
      %p517 = pneg %p235
      %p518 = pneg %p259
      %p519 = pneg %p256
      %p520 = pneg %p280
      %p521 = pneg %p277
      %p522 = pneg %p301
      %p523 = pneg %p298
      %p524 = pneg %p322
      %p525 = pneg %p319
      %p526 = pneg %p343
      %p527 = pneg %p340
      %p528 = pneg %p364
      %p529 = pneg %p361
      %p530 = pneg %p385
      %p531 = pneg %p382
      %p532 = pneg %p411
      %p533 = pneg %p408
      %p534 = scmp.lt.s32.totalorder %s28, 1
      %s535 = scalar_select %p534, %s28, 1
      %s536 = smul.addr %s535, 2
      %s537 = smul.addr %s536, 8
      %s538 = scalar_lea.vmem %s17, %s537
      %p539 = scmp.lt.s32.totalorder %s28, 1
      %s540 = scalar_select %p539, %s28, 1
      %s541 = smul.addr %s540, 2
      %s542 = smul.addr %s541, 8
      %s543 = scalar_lea.vmem %s0, %s542
      %p544 = scmp.lt.s32.totalorder %s28, 1
      %s545 = scalar_select %p544, %s28, 1
      %s546 = smul.addr %s545, 2
      %s547 = smul.addr %s546, 8
      %s548 = scalar_lea.vmem %s17, %s547
      %v550 = vld [vmem:[%s543] sm:$0xff]
      %v551 = vld [vmem:[%s543 + $0x8] sm:$0xff]
      %v552 = vld [vmem:[%s2] sm:$0x1]
      %v553 = vld [vmem:[%s3] sm:$0x1]
      %v554 = vld [vmem:[%s1] sm:$0xff]
      %v555 = vld [vmem:[%s1 + $0x8] sm:$0xff]
      %v556 = vld [vmem:[%s1 + $0x10] sm:$0xff]
      %v557 = vld [vmem:[%s1 + $0x18] sm:$0xff]
      %vm558 = vcmask 261120
      %v559 = vsel %vm558, %v550, 0.0
      %v560 = vsel %vm558, %v551, 0.0
      %v561 = vadd.f32 %v559, %v560
      %v562 = vrot.slane %v561, 4
      %v563 = vadd.f32 %v561, %v562
      %v564 = vrot.slane %v563, 2
      %v565 = vadd.f32 %v563, %v564
      %v566 = vrot.slane %v565, 1
      %v567 = vadd.f32 %v565, %v566
      %v568 = vrcp.pop 16.0
      %v569 = vmul.f32 %v567, %v568
      %v571 = vsel %vm558, %v569, 0
      %573 = vmatprep.subr.mxu0 0.0
      %574 = vmatpush1.msra.mxu0 0.0
      %575 = vmatprep.subr.mxu0 0.0
      %576 = vmatpush1.msra.mxu0 0.0
      %577 = vmatprep.subr.mxu0 0.0
      %578 = vmatpush1.msra.mxu0 0.0
      %579 = vmatprep.subr.mxu0 0.0
      %580 = vmatpush1.msra.mxu0 0.0
      %581 = vmatprep.subr.mxu0 0.0
      %582 = vmatpush1.msra.mxu0 0.0
      %583 = vmatprep.subr.mxu0 0.0
      %584 = vmatpush1.msra.mxu0 0.0
      %585 = vmatprep.subr.mxu0 0.0
      %586 = vmatpush1.msra.mxu0 0.0
      %587 = vmatprep.subr.mxu0 0.0
      %588 = vmatpush1.msra.mxu0 0.0
      %589 = vmatprep.subr.mxu0 0.0
      %590 = vmatpush1.msra.mxu0 0.0
      %591 = vmatprep.subr.mxu0 0.0
      %592 = vmatpush1.msra.mxu0 0.0
      %593 = vmatprep.subr.mxu0 0.0
      %594 = vmatpush1.msra.mxu0 0.0
      %595 = vmatprep.subr.mxu0 0.0
      %596 = vmatpush1.msra.mxu0 0.0
      %597 = vmatprep.subr.mxu0 0.0
      %598 = vmatpush1.msra.mxu0 %v557
      %599 = vmatprep.subr.mxu0 0.0
      %600 = vmatpush1.msra.mxu0 %v556
      %601 = vmatprep.subr.mxu0 0.0
      %602 = vmatpush1.msra.mxu0 %v555
      %603 = vmatprep.subr.mxu0 0.0
      %604 = vmatpush1.msra.mxu0 %v554
      %605 = vmatprep.subr.mxu0 0.0
      %606 = vmatpush2.msra.mxu0 0.0
      %607 = vmatprep.subr.mxu0 0.0
      %608 = vmatpush2.msra.mxu0 0.0
      %609 = vmatprep.subr.mxu0 0.0
      %610 = vmatpush2.msra.mxu0 0.0
      %611 = vmatprep.subr.mxu0 0.0
      %612 = vmatpush2.msra.mxu0 0.0
      %613 = vmatprep.subr.mxu0 0.0
      %614 = vmatpush2.msra.mxu0 0.0
      %615 = vmatprep.subr.mxu0 0.0
      %616 = vmatpush2.msra.mxu0 0.0
      %617 = vmatprep.subr.mxu0 0.0
      %618 = vmatpush2.msra.mxu0 0.0
      %619 = vmatprep.subr.mxu0 0.0
      %620 = vmatpush2.msra.mxu0 0.0
      %621 = vmatprep.subr.mxu0 0.0
      %622 = vmatpush2.msra.mxu0 0.0
      %623 = vmatprep.subr.mxu0 0.0
      %624 = vmatpush2.msra.mxu0 0.0
      %625 = vmatprep.subr.mxu0 0.0
      %626 = vmatpush2.msra.mxu0 0.0
      %627 = vmatprep.subr.mxu0 0.0
      %628 = vmatpush2.msra.mxu0 0.0
      %629 = vmatprep.subr.mxu0 0.0
      %630 = vmatpush2.msra.mxu0 0.0
      %631 = vmatprep.subr.mxu0 0.0
      %632 = vmatpush2.msra.mxu0 0.0
      %633 = vmatprep.subr.mxu0 0.0
      %634 = vmatpush2.msra.mxu0 0.0
      %635 = vmatprep.subr.mxu0 0.0
      %636 = vmatpush2.msra.mxu0 0.0
      %637 = vmatprep.mubr.f32.mxu0 0.0
      %638 = vmatmul.mubr.f32.gmra.mxu0 %v571
      %v639 = vpop.f32.mrf.mxu0
      %v640 = vadd.f32 0.0, %v639
      %v641 = vpop.f32.mrf.mxu0
      %642 = vdwg.mxu0
      %v643 = vlaneseq
      %v644 = vshrl.u32 %v643, 7
      %v645 = vsub.s32 0, %v644
      %v646 = vrot.slane %v640, %v645
      %v647 = vsub.f32 %v550, %v646
      %v648 = vsub.f32 %v551, %v646
      %v649 = vmul.f32 %v647, %v647
      %v650 = vmul.f32 %v648, %v648
      %v651 = vsel %vm558, %v649, 0.0
      %v652 = vsel %vm558, %v650, 0.0
      %v653 = vadd.f32 %v651, %v652
      %v654 = vrot.slane %v653, 4
      %v655 = vadd.f32 %v653, %v654
      %v656 = vrot.slane %v655, 2
      %v657 = vadd.f32 %v655, %v656
      %v658 = vrot.slane %v657, 1
      %v659 = vadd.f32 %v657, %v658
      %v660 = vmul.f32 %v659, %v568
      %v662 = vsel %vm558, %v660, 0
      %664 = vmatprep.subr.mxu0 0.0
      %665 = vmatpush1.msra.mxu0 0.0
      %666 = vmatprep.subr.mxu0 0.0
      %667 = vmatpush1.msra.mxu0 0.0
      %668 = vmatprep.subr.mxu0 0.0
      %669 = vmatpush1.msra.mxu0 0.0
      %670 = vmatprep.subr.mxu0 0.0
      %671 = vmatpush1.msra.mxu0 0.0
      %672 = vmatprep.subr.mxu0 0.0
      %673 = vmatpush1.msra.mxu0 0.0
      %674 = vmatprep.subr.mxu0 0.0
      %675 = vmatpush1.msra.mxu0 0.0
      %676 = vmatprep.subr.mxu0 0.0
      %677 = vmatpush1.msra.mxu0 0.0
      %678 = vmatprep.subr.mxu0 0.0
      %679 = vmatpush1.msra.mxu0 0.0
      %680 = vmatprep.subr.mxu0 0.0
      %681 = vmatpush1.msra.mxu0 0.0
      %682 = vmatprep.subr.mxu0 0.0
      %683 = vmatpush1.msra.mxu0 0.0
      %684 = vmatprep.subr.mxu0 0.0
      %685 = vmatpush1.msra.mxu0 0.0
      %686 = vmatprep.subr.mxu0 0.0
      %687 = vmatpush1.msra.mxu0 0.0
      %688 = vmatprep.subr.mxu0 0.0
      %689 = vmatpush1.msra.mxu0 %v557
      %690 = vmatprep.subr.mxu0 0.0
      %691 = vmatpush1.msra.mxu0 %v556
      %692 = vmatprep.subr.mxu0 0.0
      %693 = vmatpush1.msra.mxu0 %v555
      %694 = vmatprep.subr.mxu0 0.0
      %695 = vmatpush1.msra.mxu0 %v554
      %696 = vmatprep.subr.mxu0 0.0
      %697 = vmatpush2.msra.mxu0 0.0
      %698 = vmatprep.subr.mxu0 0.0
      %699 = vmatpush2.msra.mxu0 0.0
      %700 = vmatprep.subr.mxu0 0.0
      %701 = vmatpush2.msra.mxu0 0.0
      %702 = vmatprep.subr.mxu0 0.0
      %703 = vmatpush2.msra.mxu0 0.0
      %704 = vmatprep.subr.mxu0 0.0
      %705 = vmatpush2.msra.mxu0 0.0
      %706 = vmatprep.subr.mxu0 0.0
      %707 = vmatpush2.msra.mxu0 0.0
      %708 = vmatprep.subr.mxu0 0.0
      %709 = vmatpush2.msra.mxu0 0.0
      %710 = vmatprep.subr.mxu0 0.0
      %711 = vmatpush2.msra.mxu0 0.0
      %712 = vmatprep.subr.mxu0 0.0
      %713 = vmatpush2.msra.mxu0 0.0
      %714 = vmatprep.subr.mxu0 0.0
      %715 = vmatpush2.msra.mxu0 0.0
      %716 = vmatprep.subr.mxu0 0.0
      %717 = vmatpush2.msra.mxu0 0.0
      %718 = vmatprep.subr.mxu0 0.0
      %719 = vmatpush2.msra.mxu0 0.0
      %720 = vmatprep.subr.mxu0 0.0
      %721 = vmatpush2.msra.mxu0 0.0
      %722 = vmatprep.subr.mxu0 0.0
      %723 = vmatpush2.msra.mxu0 0.0
      %724 = vmatprep.subr.mxu0 0.0
      %725 = vmatpush2.msra.mxu0 0.0
      %726 = vmatprep.subr.mxu0 0.0
      %727 = vmatpush2.msra.mxu0 0.0
      %728 = vmatprep.mubr.f32.mxu0 0.0
      %729 = vmatmul.mubr.f32.gmra.mxu0 %v662
      %v730 = vpop.f32.mrf.mxu0
      %v731 = vadd.f32 1e-05, %v730
      %v732 = vpop.f32.mrf.mxu0
      %733 = vdwg.mxu0
      %v734 = vrsqrt.pop %v731
      %v735 = vlaneseq
      %v736 = vshrl.u32 %v735, 7
      %v737 = vsub.s32 0, %v736
      %v738 = vrot.slane %v734, %v737
      %v739 = vmul.f32 %v647, %v738
      %v740 = vmul.f32 %v648, %v738
      %v742 = vlaneseq
      %v743 = vshrl.u32 %v742, 7
      %v744 = vsub.s32 0, %v743
      %v745 = vrot.slane %v552, %v744
      %v747 = vmul.f32 %v739, %v745
      %v748 = vmul.f32 %v740, %v745
      %v750 = vlaneseq
      %v751 = vshrl.u32 %v750, 7
      %v752 = vsub.s32 0, %v751
      %v753 = vrot.slane %v553, %v752
      %v755 = vadd.f32 %v747, %v753
      %v756 = vadd.f32 %v748, %v753
      %v757 = vld [vmem:[%s4] sm:$0xf]
      %v758 = vld [vmem:[%s4 + $0x4] sm:$0xf]
      %v759 = vld [vmem:[%s4 + $0x8] sm:$0xf]
      %v760 = vld [vmem:[%s4 + $0xc] sm:$0xf]
      %v761 = vpack.c.bf16 %v756, %v755
      %v762 = vld [vmem:[%s5] sm:$0x1]
      %v764 = vlaneseq
      %v765 = vshrl.u32 %v764, 7
      %v766 = vsub.s32 0, %v765
      %v767 = vrot.slane %v762, %v766
      %v773 = vunpack.c.l.b16 %v757
      %v774 = vunpack.c.l.b16 %v758
      %v775 = vunpack.c.l.b16 %v759
      %v776 = vunpack.c.l.b16 %v760
      %v777 = vpack.c.b16 %v774, %v773
      %v778 = vpack.c.b16 %v776, %v775
      %v782 = vsel %vm558, %v761, 0
      %784 = vmatprep.subr.bf16.mxu0 0
      %785 = vmatpush1.bf16.msra.mxu0 0
      %786 = vmatprep.subr.bf16.mxu0 0
      %787 = vmatpush1.bf16.msra.mxu0 0
      %788 = vmatprep.subr.bf16.mxu0 0
      %789 = vmatpush1.bf16.msra.mxu0 0
      %790 = vmatprep.subr.bf16.mxu0 0
      %791 = vmatpush1.bf16.msra.mxu0 0
      %792 = vmatprep.subr.bf16.mxu0 0
      %793 = vmatpush1.bf16.msra.mxu0 0
      %794 = vmatprep.subr.bf16.mxu0 0
      %795 = vmatpush1.bf16.msra.mxu0 0
      %796 = vmatprep.subr.bf16.mxu0 0
      %797 = vmatpush1.bf16.msra.mxu0 %v778
      %798 = vmatprep.subr.bf16.mxu0 0
      %799 = vmatpush1.bf16.msra.mxu0 %v777
      %800 = vmatprep.subr.bf16.mxu0 0
      %801 = vmatpush2.bf16.msra.mxu0 0
      %802 = vmatprep.subr.bf16.mxu0 0
      %803 = vmatpush2.bf16.msra.mxu0 0
      %804 = vmatprep.subr.bf16.mxu0 0
      %805 = vmatpush2.bf16.msra.mxu0 0
      %806 = vmatprep.subr.bf16.mxu0 0
      %807 = vmatpush2.bf16.msra.mxu0 0
      %808 = vmatprep.subr.bf16.mxu0 0
      %809 = vmatpush2.bf16.msra.mxu0 0
      %810 = vmatprep.subr.bf16.mxu0 0
      %811 = vmatpush2.bf16.msra.mxu0 0
      %812 = vmatprep.subr.bf16.mxu0 0
      %813 = vmatpush2.bf16.msra.mxu0 0
      %814 = vmatprep.subr.bf16.mxu0 0
      %815 = vmatpush2.bf16.msra.mxu0 0
      %816 = vmatprep.mubr.bf16.mxu0 0
      %817 = vmatmul.mubr.bf16.gmra.mxu0 %v782
      %v818 = vpop.f32.mrf.mxu0
      %v819 = vadd.f32 %v767, %v818
      %v820 = vpop.f32.mrf.mxu0
      %v821 = vpop.f32.mrf.mxu0
      %v822 = vadd.f32 %v767, %v821
      %v823 = vpop.f32.mrf.mxu0
      %824 = vdwg.mxu0
      %v825 = vpack.c.bf16 %v822, %v819
      %827 = vrot.lane.b32.xlu0 %v825, 96
      %v828 = vpop.permute.xlu0 %827
      %vm829 = vcmask 130048
      %v831 = vsel %vm829, %v825, 0
      %v834 = vsel %vm829, %v828, 0
      %836 = vmatprep.subr.bf16.mxu0 0
      %837 = vmatpush1.bf16.xpose.msra.mxu0 0
      %838 = vmatprep.subr.bf16.mxu0 0
      %839 = vmatpush1.bf16.xpose.msra.mxu0 0
      %840 = vmatprep.subr.bf16.mxu0 0
      %841 = vmatpush1.bf16.xpose.msra.mxu0 0
      %842 = vmatprep.subr.bf16.mxu0 0
      %843 = vmatpush1.bf16.xpose.msra.mxu0 0
      %844 = vmatprep.subr.bf16.mxu0 0
      %845 = vmatpush1.bf16.xpose.msra.mxu0 0
      %846 = vmatprep.subr.bf16.mxu0 0
      %847 = vmatpush1.bf16.xpose.msra.mxu0 0
      %848 = vmatprep.subr.bf16.mxu0 0
      %849 = vmatpush1.bf16.xpose.msra.mxu0 0
      %850 = vmatprep.subr.bf16.mxu0 0
      %851 = vmatpush1.bf16.xpose.msra.mxu0 %v834
      %852 = vmatprep.subr.bf16.mxu0 0
      %853 = vmatpush2.bf16.xpose.msra.mxu0 0
      %854 = vmatprep.subr.bf16.mxu0 0
      %855 = vmatpush2.bf16.xpose.msra.mxu0 0
      %856 = vmatprep.subr.bf16.mxu0 0
      %857 = vmatpush2.bf16.xpose.msra.mxu0 0
      %858 = vmatprep.subr.bf16.mxu0 0
      %859 = vmatpush2.bf16.xpose.msra.mxu0 0
      %860 = vmatprep.subr.bf16.mxu0 0
      %861 = vmatpush2.bf16.xpose.msra.mxu0 0
      %862 = vmatprep.subr.bf16.mxu0 0
      %863 = vmatpush2.bf16.xpose.msra.mxu0 0
      %864 = vmatprep.subr.bf16.mxu0 0
      %865 = vmatpush2.bf16.xpose.msra.mxu0 0
      %866 = vmatprep.subr.bf16.mxu0 0
      %867 = vmatpush2.bf16.xpose.msra.mxu0 0
      %868 = vmatprep.mubr.bf16.mxu0 0
      %869 = vmatmul.mubr.bf16.gmra.mxu0 %v831
      %v870 = vpop.f32.mrf.mxu0
      %v871 = vadd.f32 0.0, %v870
      %v872 = vpop.f32.mrf.mxu0
      %v873 = vpop.f32.mrf.mxu0
      %v874 = vadd.f32 0.0, %v873
      %v875 = vpop.f32.mrf.mxu0
      %876 = vdwg.mxu0
      %v877 = vmul.f32 %v871, 0.25
      %v878 = vmul.f32 %v874, 0.25
      %v879 = vsel %vm829, %v877, -inf
      %880 = vmax.xlane.f32.xlu0 %v879
      %v881 = vpop.xlane.xlu0 %880
      %v882 = vsel %vm829, %v878, -inf
      %883 = vmax.xlane.f32.xlu0 %v882
      %v884 = vpop.xlane.xlu0 %883
      %v885 = vsub.f32 %v877, %v881
      %v886 = vsub.f32 %v878, %v884
      %v887 = vmul.f32 %v885, 1.442695
      %v888 = vpow.pop %v887
      %v889 = vmul.f32 %v886, 1.442695
      %v890 = vpow.pop %v889
      %v891 = vsel %vm829, %v888, 0.0
      %892 = vadd.xlane.f32.xlu0 %v891
      %v893 = vpop.xlane.xlu0 %892
      %v894 = vsel %vm829, %v890, 0.0
      %895 = vadd.xlane.f32.xlu0 %v894
      %v896 = vpop.xlane.xlu0 %895
      %v897 = vrcp.pop %v893
      %v898 = vrcp.pop %v896
      %v899 = vmul.f32 %v888, %v897
      %v900 = vmul.f32 %v890, %v898
      %v901 = vpack.c.bf16 %v900, %v899
      %902 = vrot.lane.b32.xlu0 %v825, 64
      %v903 = vpop.permute.xlu0 %902
      %v906 = vsel %vm829, %v901, 0
      %908 = vmatprep.subr.bf16.mxu0 0
      %909 = vmatpush1.bf16.msra.mxu0 0
      %910 = vmatprep.subr.bf16.mxu0 0
      %911 = vmatpush1.bf16.msra.mxu0 0
      %912 = vmatprep.subr.bf16.mxu0 0
      %913 = vmatpush1.bf16.msra.mxu0 0
      %914 = vmatprep.subr.bf16.mxu0 0
      %915 = vmatpush1.bf16.msra.mxu0 0
      %916 = vmatprep.subr.bf16.mxu0 0
      %917 = vmatpush1.bf16.msra.mxu0 0
      %918 = vmatprep.subr.bf16.mxu0 0
      %919 = vmatpush1.bf16.msra.mxu0 0
      %920 = vmatprep.subr.bf16.mxu0 0
      %921 = vmatpush1.bf16.msra.mxu0 0
      %922 = vmatprep.subr.bf16.mxu0 0
      %923 = vmatpush1.bf16.msra.mxu0 %v903
      %924 = vmatprep.subr.bf16.mxu0 0
      %925 = vmatpush2.bf16.msra.mxu0 0
      %926 = vmatprep.subr.bf16.mxu0 0
      %927 = vmatpush2.bf16.msra.mxu0 0
      %928 = vmatprep.subr.bf16.mxu0 0
      %929 = vmatpush2.bf16.msra.mxu0 0
      %930 = vmatprep.subr.bf16.mxu0 0
      %931 = vmatpush2.bf16.msra.mxu0 0
      %932 = vmatprep.subr.bf16.mxu0 0
      %933 = vmatpush2.bf16.msra.mxu0 0
      %934 = vmatprep.subr.bf16.mxu0 0
      %935 = vmatpush2.bf16.msra.mxu0 0
      %936 = vmatprep.subr.bf16.mxu0 0
      %937 = vmatpush2.bf16.msra.mxu0 0
      %938 = vmatprep.subr.bf16.mxu0 0
      %939 = vmatpush2.bf16.msra.mxu0 0
      %940 = vmatprep.mubr.bf16.mxu0 0
      %941 = vmatmul.mubr.bf16.gmra.mxu0 %v906
      %v942 = vpop.f32.mrf.mxu0
      %v943 = vadd.f32 0.0, %v942
      %v944 = vpop.f32.mrf.mxu0
      %v945 = vpop.f32.mrf.mxu0
      %v946 = vadd.f32 0.0, %v945
      %v947 = vpop.f32.mrf.mxu0
      %948 = vdwg.mxu0
      %949 = vrot.lane.b32.xlu0 %v825, 112
      %v950 = vpop.permute.xlu0 %949
      %951 = vrot.lane.b32.xlu0 %v825, 80
      %v952 = vpop.permute.xlu0 %951
      %v954 = vsel %vm829, %v950, 0
      %v957 = vsel %vm829, %v952, 0
      %959 = vmatprep.subr.bf16.mxu0 0
      %960 = vmatpush1.bf16.xpose.msra.mxu0 0
      %961 = vmatprep.subr.bf16.mxu0 0
      %962 = vmatpush1.bf16.xpose.msra.mxu0 0
      %963 = vmatprep.subr.bf16.mxu0 0
      %964 = vmatpush1.bf16.xpose.msra.mxu0 0
      %965 = vmatprep.subr.bf16.mxu0 0
      %966 = vmatpush1.bf16.xpose.msra.mxu0 0
      %967 = vmatprep.subr.bf16.mxu0 0
      %968 = vmatpush1.bf16.xpose.msra.mxu0 0
      %969 = vmatprep.subr.bf16.mxu0 0
      %970 = vmatpush1.bf16.xpose.msra.mxu0 0
      %971 = vmatprep.subr.bf16.mxu0 0
      %972 = vmatpush1.bf16.xpose.msra.mxu0 0
      %973 = vmatprep.subr.bf16.mxu0 0
      %974 = vmatpush1.bf16.xpose.msra.mxu0 %v957
      %975 = vmatprep.subr.bf16.mxu0 0
      %976 = vmatpush2.bf16.xpose.msra.mxu0 0
      %977 = vmatprep.subr.bf16.mxu0 0
      %978 = vmatpush2.bf16.xpose.msra.mxu0 0
      %979 = vmatprep.subr.bf16.mxu0 0
      %980 = vmatpush2.bf16.xpose.msra.mxu0 0
      %981 = vmatprep.subr.bf16.mxu0 0
      %982 = vmatpush2.bf16.xpose.msra.mxu0 0
      %983 = vmatprep.subr.bf16.mxu0 0
      %984 = vmatpush2.bf16.xpose.msra.mxu0 0
      %985 = vmatprep.subr.bf16.mxu0 0
      %986 = vmatpush2.bf16.xpose.msra.mxu0 0
      %987 = vmatprep.subr.bf16.mxu0 0
      %988 = vmatpush2.bf16.xpose.msra.mxu0 0
      %989 = vmatprep.subr.bf16.mxu0 0
      %990 = vmatpush2.bf16.xpose.msra.mxu0 0
      %991 = vmatprep.mubr.bf16.mxu0 0
      %992 = vmatmul.mubr.bf16.gmra.mxu0 %v954
      %v993 = vpop.f32.mrf.mxu0
      %v994 = vadd.f32 0.0, %v993
      %v995 = vpop.f32.mrf.mxu0
      %v996 = vpop.f32.mrf.mxu0
      %v997 = vadd.f32 0.0, %v996
      %v998 = vpop.f32.mrf.mxu0
      %999 = vdwg.mxu0
      %v1000 = vmul.f32 %v994, 0.25
      %v1001 = vmul.f32 %v997, 0.25
      %v1002 = vsel %vm829, %v1000, -inf
      %1003 = vmax.xlane.f32.xlu0 %v1002
      %v1004 = vpop.xlane.xlu0 %1003
      %v1005 = vsel %vm829, %v1001, -inf
      %1006 = vmax.xlane.f32.xlu0 %v1005
      %v1007 = vpop.xlane.xlu0 %1006
      %v1008 = vsub.f32 %v1000, %v1004
      %v1009 = vsub.f32 %v1001, %v1007
      %v1010 = vmul.f32 %v1008, 1.442695
      %v1011 = vpow.pop %v1010
      %v1012 = vmul.f32 %v1009, 1.442695
      %v1013 = vpow.pop %v1012
      %v1014 = vsel %vm829, %v1011, 0.0
      %1015 = vadd.xlane.f32.xlu0 %v1014
      %v1016 = vpop.xlane.xlu0 %1015
      %v1017 = vsel %vm829, %v1013, 0.0
      %1018 = vadd.xlane.f32.xlu0 %v1017
      %v1019 = vpop.xlane.xlu0 %1018
      %v1020 = vrcp.pop %v1016
      %v1021 = vrcp.pop %v1019
      %v1022 = vmul.f32 %v1011, %v1020
      %v1023 = vmul.f32 %v1013, %v1021
      %v1024 = vpack.c.bf16 %v1023, %v1022
      %1025 = vrot.lane.b32.xlu0 %v825, 48
      %v1026 = vpop.permute.xlu0 %1025
      %v1029 = vsel %vm829, %v1024, 0
      %1031 = vmatprep.subr.bf16.mxu0 0
      %1032 = vmatpush1.bf16.msra.mxu0 0
      %1033 = vmatprep.subr.bf16.mxu0 0
      %1034 = vmatpush1.bf16.msra.mxu0 0
      %1035 = vmatprep.subr.bf16.mxu0 0
      %1036 = vmatpush1.bf16.msra.mxu0 0
      %1037 = vmatprep.subr.bf16.mxu0 0
      %1038 = vmatpush1.bf16.msra.mxu0 0
      %1039 = vmatprep.subr.bf16.mxu0 0
      %1040 = vmatpush1.bf16.msra.mxu0 0
      %1041 = vmatprep.subr.bf16.mxu0 0
      %1042 = vmatpush1.bf16.msra.mxu0 0
      %1043 = vmatprep.subr.bf16.mxu0 0
      %1044 = vmatpush1.bf16.msra.mxu0 0
      %1045 = vmatprep.subr.bf16.mxu0 0
      %1046 = vmatpush1.bf16.msra.mxu0 %v1026
      %1047 = vmatprep.subr.bf16.mxu0 0
      %1048 = vmatpush2.bf16.msra.mxu0 0
      %1049 = vmatprep.subr.bf16.mxu0 0
      %1050 = vmatpush2.bf16.msra.mxu0 0
      %1051 = vmatprep.subr.bf16.mxu0 0
      %1052 = vmatpush2.bf16.msra.mxu0 0
      %1053 = vmatprep.subr.bf16.mxu0 0
      %1054 = vmatpush2.bf16.msra.mxu0 0
      %1055 = vmatprep.subr.bf16.mxu0 0
      %1056 = vmatpush2.bf16.msra.mxu0 0
      %1057 = vmatprep.subr.bf16.mxu0 0
      %1058 = vmatpush2.bf16.msra.mxu0 0
      %1059 = vmatprep.subr.bf16.mxu0 0
      %1060 = vmatpush2.bf16.msra.mxu0 0
      %1061 = vmatprep.subr.bf16.mxu0 0
      %1062 = vmatpush2.bf16.msra.mxu0 0
      %1063 = vmatprep.mubr.bf16.mxu0 0
      %1064 = vmatmul.mubr.bf16.gmra.mxu0 %v1029
      %v1065 = vpop.f32.mrf.mxu0
      %v1066 = vadd.f32 0.0, %v1065
      %v1067 = vpop.f32.mrf.mxu0
      %v1068 = vpop.f32.mrf.mxu0
      %v1069 = vadd.f32 0.0, %v1068
      %v1070 = vpop.f32.mrf.mxu0
      %1071 = vdwg.mxu0
      %1074 = vrot.lane.b32.xlu0 %v1066, 16
      %v1075 = vpop.permute.xlu0 %1074
      %1076 = vrot.lane.b32.xlu0 %v1069, 16
      %v1077 = vpop.permute.xlu0 %1076
      %v1080 = vsel %vm829, %v943, %v1075
      %v1081 = vsel %vm829, %v946, %v1077
      %v1082 = vld [vmem:[%s6] sm:$0xf]
      %v1083 = vld [vmem:[%s6 + $0x4] sm:$0xf]
      %v1084 = vld [vmem:[%s6 + $0x8] sm:$0xf]
      %v1085 = vld [vmem:[%s6 + $0xc] sm:$0xf]
      %v1086 = vpack.c.bf16 %v1081, %v1080
      %v1087 = vld [vmem:[%s7] sm:$0x1]
      %v1089 = vlaneseq
      %v1090 = vshrl.u32 %v1089, 7
      %v1091 = vsub.s32 0, %v1090
      %v1092 = vrot.slane %v1087, %v1091
      %v1098 = vunpack.c.l.b16 %v1082
      %v1099 = vunpack.c.l.b16 %v1083
      %v1100 = vunpack.c.l.b16 %v1084
      %v1101 = vunpack.c.l.b16 %v1085
      %v1102 = vpack.c.b16 %v1099, %v1098
      %v1103 = vpack.c.b16 %v1101, %v1100
      %v1107 = vsel %vm558, %v1086, 0
      %1109 = vmatprep.subr.bf16.mxu0 0
      %1110 = vmatpush1.bf16.msra.mxu0 0
      %1111 = vmatprep.subr.bf16.mxu0 0
      %1112 = vmatpush1.bf16.msra.mxu0 0
      %1113 = vmatprep.subr.bf16.mxu0 0
      %1114 = vmatpush1.bf16.msra.mxu0 0
      %1115 = vmatprep.subr.bf16.mxu0 0
      %1116 = vmatpush1.bf16.msra.mxu0 0
      %1117 = vmatprep.subr.bf16.mxu0 0
      %1118 = vmatpush1.bf16.msra.mxu0 0
      %1119 = vmatprep.subr.bf16.mxu0 0
      %1120 = vmatpush1.bf16.msra.mxu0 0
      %1121 = vmatprep.subr.bf16.mxu0 0
      %1122 = vmatpush1.bf16.msra.mxu0 %v1103
      %1123 = vmatprep.subr.bf16.mxu0 0
      %1124 = vmatpush1.bf16.msra.mxu0 %v1102
      %1125 = vmatprep.subr.bf16.mxu0 0
      %1126 = vmatpush2.bf16.msra.mxu0 0
      %1127 = vmatprep.subr.bf16.mxu0 0
      %1128 = vmatpush2.bf16.msra.mxu0 0
      %1129 = vmatprep.subr.bf16.mxu0 0
      %1130 = vmatpush2.bf16.msra.mxu0 0
      %1131 = vmatprep.subr.bf16.mxu0 0
      %1132 = vmatpush2.bf16.msra.mxu0 0
      %1133 = vmatprep.subr.bf16.mxu0 0
      %1134 = vmatpush2.bf16.msra.mxu0 0
      %1135 = vmatprep.subr.bf16.mxu0 0
      %1136 = vmatpush2.bf16.msra.mxu0 0
      %1137 = vmatprep.subr.bf16.mxu0 0
      %1138 = vmatpush2.bf16.msra.mxu0 0
      %1139 = vmatprep.subr.bf16.mxu0 0
      %1140 = vmatpush2.bf16.msra.mxu0 0
      %1141 = vmatprep.mubr.bf16.mxu0 0
      %1142 = vmatmul.mubr.bf16.gmra.mxu0 %v1107
      %v1143 = vpop.f32.mrf.mxu0
      %v1144 = vadd.f32 %v1092, %v1143
      %v1145 = vpop.f32.mrf.mxu0
      %v1146 = vpop.f32.mrf.mxu0
      %v1147 = vadd.f32 %v1092, %v1146
      %v1148 = vpop.f32.mrf.mxu0
      %1149 = vdwg.mxu0
      %v1150 = vadd.f32 %v550, %v1144
      %v1151 = vadd.f32 %v551, %v1147
      %v1152 = vld [vmem:[%s8] sm:$0xf]
      %v1153 = vld [vmem:[%s8 + $0x4] sm:$0xf]
      %v1154 = vld [vmem:[%s8 + $0x8] sm:$0xf]
      %v1155 = vld [vmem:[%s8 + $0xc] sm:$0xf]
      %v1156 = vpack.c.bf16 %v1151, %v1150
      %v1157 = vld [vmem:[%s9] sm:$0x1]
      %v1159 = vlaneseq
      %v1160 = vshrl.u32 %v1159, 7
      %v1161 = vsub.s32 0, %v1160
      %v1162 = vrot.slane %v1157, %v1161
      %v1168 = vunpack.c.l.b16 %v1152
      %v1169 = vunpack.c.l.b16 %v1153
      %v1170 = vunpack.c.l.b16 %v1154
      %v1171 = vunpack.c.l.b16 %v1155
      %v1172 = vpack.c.b16 %v1169, %v1168
      %v1173 = vpack.c.b16 %v1171, %v1170
      %v1177 = vsel %vm558, %v1156, 0
      %1179 = vmatprep.subr.bf16.mxu0 0
      %1180 = vmatpush1.bf16.msra.mxu0 0
      %1181 = vmatprep.subr.bf16.mxu0 0
      %1182 = vmatpush1.bf16.msra.mxu0 0
      %1183 = vmatprep.subr.bf16.mxu0 0
      %1184 = vmatpush1.bf16.msra.mxu0 0
      %1185 = vmatprep.subr.bf16.mxu0 0
      %1186 = vmatpush1.bf16.msra.mxu0 0
      %1187 = vmatprep.subr.bf16.mxu0 0
      %1188 = vmatpush1.bf16.msra.mxu0 0
      %1189 = vmatprep.subr.bf16.mxu0 0
      %1190 = vmatpush1.bf16.msra.mxu0 0
      %1191 = vmatprep.subr.bf16.mxu0 0
      %1192 = vmatpush1.bf16.msra.mxu0 %v1173
      %1193 = vmatprep.subr.bf16.mxu0 0
      %1194 = vmatpush1.bf16.msra.mxu0 %v1172
      %1195 = vmatprep.subr.bf16.mxu0 0
      %1196 = vmatpush2.bf16.msra.mxu0 0
      %1197 = vmatprep.subr.bf16.mxu0 0
      %1198 = vmatpush2.bf16.msra.mxu0 0
      %1199 = vmatprep.subr.bf16.mxu0 0
      %1200 = vmatpush2.bf16.msra.mxu0 0
      %1201 = vmatprep.subr.bf16.mxu0 0
      %1202 = vmatpush2.bf16.msra.mxu0 0
      %1203 = vmatprep.subr.bf16.mxu0 0
      %1204 = vmatpush2.bf16.msra.mxu0 0
      %1205 = vmatprep.subr.bf16.mxu0 0
      %1206 = vmatpush2.bf16.msra.mxu0 0
      %1207 = vmatprep.subr.bf16.mxu0 0
      %1208 = vmatpush2.bf16.msra.mxu0 0
      %1209 = vmatprep.subr.bf16.mxu0 0
      %1210 = vmatpush2.bf16.msra.mxu0 0
      %1211 = vmatprep.mubr.bf16.mxu0 0
      %1212 = vmatmul.mubr.bf16.gmra.mxu0 %v1177
      %v1213 = vpop.f32.mrf.mxu0
      %v1214 = vadd.f32 %v1162, %v1213
      %v1215 = vpop.f32.mrf.mxu0
      %v1216 = vpop.f32.mrf.mxu0
      %v1217 = vadd.f32 %v1162, %v1216
      %v1218 = vpop.f32.mrf.mxu0
      %1219 = vdwg.mxu0
      %v1220 = vld [vmem:[%s11] sm:$0x1]
      %v1221 = vld [vmem:[%s12] sm:$0x1]
      %v1222 = vld [vmem:[%s10] sm:$0xff]
      %v1223 = vld [vmem:[%s10 + $0x8] sm:$0xff]
      %v1224 = vsel %vm829, %v1214, 0.0
      %v1225 = vsel %vm829, %v1217, 0.0
      %v1226 = vadd.f32 %v1224, %v1225
      %v1227 = vrot.slane %v1226, 4
      %v1228 = vadd.f32 %v1226, %v1227
      %v1229 = vrot.slane %v1228, 2
      %v1230 = vadd.f32 %v1228, %v1229
      %v1231 = vrot.slane %v1230, 1
      %v1232 = vadd.f32 %v1230, %v1231
      %v1233 = vmul.f32 %v1232, %v568
      %v1235 = vsel %vm829, %v1233, 0
      %1237 = vmatprep.subr.mxu0 0.0
      %1238 = vmatpush1.msra.mxu0 0.0
      %1239 = vmatprep.subr.mxu0 0.0
      %1240 = vmatpush1.msra.mxu0 0.0
      %1241 = vmatprep.subr.mxu0 0.0
      %1242 = vmatpush1.msra.mxu0 0.0
      %1243 = vmatprep.subr.mxu0 0.0
      %1244 = vmatpush1.msra.mxu0 0.0
      %1245 = vmatprep.subr.mxu0 0.0
      %1246 = vmatpush1.msra.mxu0 0.0
      %1247 = vmatprep.subr.mxu0 0.0
      %1248 = vmatpush1.msra.mxu0 0.0
      %1249 = vmatprep.subr.mxu0 0.0
      %1250 = vmatpush1.msra.mxu0 0.0
      %1251 = vmatprep.subr.mxu0 0.0
      %1252 = vmatpush1.msra.mxu0 0.0
      %1253 = vmatprep.subr.mxu0 0.0
      %1254 = vmatpush1.msra.mxu0 0.0
      %1255 = vmatprep.subr.mxu0 0.0
      %1256 = vmatpush1.msra.mxu0 0.0
      %1257 = vmatprep.subr.mxu0 0.0
      %1258 = vmatpush1.msra.mxu0 0.0
      %1259 = vmatprep.subr.mxu0 0.0
      %1260 = vmatpush1.msra.mxu0 0.0
      %1261 = vmatprep.subr.mxu0 0.0
      %1262 = vmatpush1.msra.mxu0 0.0
      %1263 = vmatprep.subr.mxu0 0.0
      %1264 = vmatpush1.msra.mxu0 0.0
      %1265 = vmatprep.subr.mxu0 0.0
      %1266 = vmatpush1.msra.mxu0 %v1223
      %1267 = vmatprep.subr.mxu0 0.0
      %1268 = vmatpush1.msra.mxu0 %v1222
      %1269 = vmatprep.subr.mxu0 0.0
      %1270 = vmatpush2.msra.mxu0 0.0
      %1271 = vmatprep.subr.mxu0 0.0
      %1272 = vmatpush2.msra.mxu0 0.0
      %1273 = vmatprep.subr.mxu0 0.0
      %1274 = vmatpush2.msra.mxu0 0.0
      %1275 = vmatprep.subr.mxu0 0.0
      %1276 = vmatpush2.msra.mxu0 0.0
      %1277 = vmatprep.subr.mxu0 0.0
      %1278 = vmatpush2.msra.mxu0 0.0
      %1279 = vmatprep.subr.mxu0 0.0
      %1280 = vmatpush2.msra.mxu0 0.0
      %1281 = vmatprep.subr.mxu0 0.0
      %1282 = vmatpush2.msra.mxu0 0.0
      %1283 = vmatprep.subr.mxu0 0.0
      %1284 = vmatpush2.msra.mxu0 0.0
      %1285 = vmatprep.subr.mxu0 0.0
      %1286 = vmatpush2.msra.mxu0 0.0
      %1287 = vmatprep.subr.mxu0 0.0
      %1288 = vmatpush2.msra.mxu0 0.0
      %1289 = vmatprep.subr.mxu0 0.0
      %1290 = vmatpush2.msra.mxu0 0.0
      %1291 = vmatprep.subr.mxu0 0.0
      %1292 = vmatpush2.msra.mxu0 0.0
      %1293 = vmatprep.subr.mxu0 0.0
      %1294 = vmatpush2.msra.mxu0 0.0
      %1295 = vmatprep.subr.mxu0 0.0
      %1296 = vmatpush2.msra.mxu0 0.0
      %1297 = vmatprep.subr.mxu0 0.0
      %1298 = vmatpush2.msra.mxu0 0.0
      %1299 = vmatprep.subr.mxu0 0.0
      %1300 = vmatpush2.msra.mxu0 0.0
      %1301 = vmatprep.mubr.f32.mxu0 0.0
      %1302 = vmatmul.mubr.f32.gmra.mxu0 %v1235
      %v1303 = vpop.f32.mrf.mxu0
      %v1304 = vadd.f32 0.0, %v1303
      %v1305 = vpop.f32.mrf.mxu0
      %1306 = vdwg.mxu0
      %v1307 = vlaneseq
      %v1308 = vshrl.u32 %v1307, 7
      %v1309 = vsub.s32 0, %v1308
      %v1310 = vrot.slane %v1304, %v1309
      %v1311 = vsub.f32 %v1214, %v1310
      %v1312 = vsub.f32 %v1217, %v1310
      %v1313 = vmul.f32 %v1311, %v1311
      %v1314 = vmul.f32 %v1312, %v1312
      %v1315 = vsel %vm829, %v1313, 0.0
      %v1316 = vsel %vm829, %v1314, 0.0
      %v1317 = vadd.f32 %v1315, %v1316
      %v1318 = vrot.slane %v1317, 4
      %v1319 = vadd.f32 %v1317, %v1318
      %v1320 = vrot.slane %v1319, 2
      %v1321 = vadd.f32 %v1319, %v1320
      %v1322 = vrot.slane %v1321, 1
      %v1323 = vadd.f32 %v1321, %v1322
      %v1324 = vmul.f32 %v1323, %v568
      %v1326 = vsel %vm829, %v1324, 0
      %1328 = vmatprep.subr.mxu0 0.0
      %1329 = vmatpush1.msra.mxu0 0.0
      %1330 = vmatprep.subr.mxu0 0.0
      %1331 = vmatpush1.msra.mxu0 0.0
      %1332 = vmatprep.subr.mxu0 0.0
      %1333 = vmatpush1.msra.mxu0 0.0
      %1334 = vmatprep.subr.mxu0 0.0
      %1335 = vmatpush1.msra.mxu0 0.0
      %1336 = vmatprep.subr.mxu0 0.0
      %1337 = vmatpush1.msra.mxu0 0.0
      %1338 = vmatprep.subr.mxu0 0.0
      %1339 = vmatpush1.msra.mxu0 0.0
      %1340 = vmatprep.subr.mxu0 0.0
      %1341 = vmatpush1.msra.mxu0 0.0
      %1342 = vmatprep.subr.mxu0 0.0
      %1343 = vmatpush1.msra.mxu0 0.0
      %1344 = vmatprep.subr.mxu0 0.0
      %1345 = vmatpush1.msra.mxu0 0.0
      %1346 = vmatprep.subr.mxu0 0.0
      %1347 = vmatpush1.msra.mxu0 0.0
      %1348 = vmatprep.subr.mxu0 0.0
      %1349 = vmatpush1.msra.mxu0 0.0
      %1350 = vmatprep.subr.mxu0 0.0
      %1351 = vmatpush1.msra.mxu0 0.0
      %1352 = vmatprep.subr.mxu0 0.0
      %1353 = vmatpush1.msra.mxu0 0.0
      %1354 = vmatprep.subr.mxu0 0.0
      %1355 = vmatpush1.msra.mxu0 0.0
      %1356 = vmatprep.subr.mxu0 0.0
      %1357 = vmatpush1.msra.mxu0 %v1223
      %1358 = vmatprep.subr.mxu0 0.0
      %1359 = vmatpush1.msra.mxu0 %v1222
      %1360 = vmatprep.subr.mxu0 0.0
      %1361 = vmatpush2.msra.mxu0 0.0
      %1362 = vmatprep.subr.mxu0 0.0
      %1363 = vmatpush2.msra.mxu0 0.0
      %1364 = vmatprep.subr.mxu0 0.0
      %1365 = vmatpush2.msra.mxu0 0.0
      %1366 = vmatprep.subr.mxu0 0.0
      %1367 = vmatpush2.msra.mxu0 0.0
      %1368 = vmatprep.subr.mxu0 0.0
      %1369 = vmatpush2.msra.mxu0 0.0
      %1370 = vmatprep.subr.mxu0 0.0
      %1371 = vmatpush2.msra.mxu0 0.0
      %1372 = vmatprep.subr.mxu0 0.0
      %1373 = vmatpush2.msra.mxu0 0.0
      %1374 = vmatprep.subr.mxu0 0.0
      %1375 = vmatpush2.msra.mxu0 0.0
      %1376 = vmatprep.subr.mxu0 0.0
      %1377 = vmatpush2.msra.mxu0 0.0
      %1378 = vmatprep.subr.mxu0 0.0
      %1379 = vmatpush2.msra.mxu0 0.0
      %1380 = vmatprep.subr.mxu0 0.0
      %1381 = vmatpush2.msra.mxu0 0.0
      %1382 = vmatprep.subr.mxu0 0.0
      %1383 = vmatpush2.msra.mxu0 0.0
      %1384 = vmatprep.subr.mxu0 0.0
      %1385 = vmatpush2.msra.mxu0 0.0
      %1386 = vmatprep.subr.mxu0 0.0
      %1387 = vmatpush2.msra.mxu0 0.0
      %1388 = vmatprep.subr.mxu0 0.0
      %1389 = vmatpush2.msra.mxu0 0.0
      %1390 = vmatprep.subr.mxu0 0.0
      %1391 = vmatpush2.msra.mxu0 0.0
      %1392 = vmatprep.mubr.f32.mxu0 0.0
      %1393 = vmatmul.mubr.f32.gmra.mxu0 %v1326
      %v1394 = vpop.f32.mrf.mxu0
      %v1395 = vadd.f32 1e-05, %v1394
      %v1396 = vpop.f32.mrf.mxu0
      %1397 = vdwg.mxu0
      %v1398 = vrsqrt.pop %v1395
      %v1399 = vlaneseq
      %v1400 = vshrl.u32 %v1399, 7
      %v1401 = vsub.s32 0, %v1400
      %v1402 = vrot.slane %v1398, %v1401
      %v1403 = vmul.f32 %v1311, %v1402
      %v1404 = vmul.f32 %v1312, %v1402
      %v1406 = vlaneseq
      %v1407 = vshrl.u32 %v1406, 7
      %v1408 = vsub.s32 0, %v1407
      %v1409 = vrot.slane %v1220, %v1408
      %v1411 = vmul.f32 %v1403, %v1409
      %v1412 = vmul.f32 %v1404, %v1409
      %v1414 = vlaneseq
      %v1415 = vshrl.u32 %v1414, 7
      %v1416 = vsub.s32 0, %v1415
      %v1417 = vrot.slane %v1221, %v1416
      %v1419 = vadd.f32 %v1411, %v1417
      %v1420 = vadd.f32 %v1412, %v1417
      %v1421 = vld [vmem:[%s13] sm:$0xf]
      %v1422 = vld [vmem:[%s13 + $0x4] sm:$0xf]
      %v1423 = vpack.c.bf16 %v1420, %v1419
      %v1424 = vld [vmem:[%s14] sm:$0x1]
      %v1426 = vlaneseq
      %v1427 = vshrl.u32 %v1426, 7
      %v1428 = vsub.s32 0, %v1427
      %v1429 = vrot.slane %v1424, %v1428
      %v1433 = vunpack.c.l.b16 %v1421
      %v1434 = vunpack.c.l.b16 %v1422
      %v1435 = vpack.c.b16 %v1434, %v1433
      %v1438 = vsel %vm829, %v1423, 0
      %1440 = vmatprep.subr.bf16.mxu0 0
      %1441 = vmatpush1.bf16.msra.mxu0 0
      %1442 = vmatprep.subr.bf16.mxu0 0
      %1443 = vmatpush1.bf16.msra.mxu0 0
      %1444 = vmatprep.subr.bf16.mxu0 0
      %1445 = vmatpush1.bf16.msra.mxu0 0
      %1446 = vmatprep.subr.bf16.mxu0 0
      %1447 = vmatpush1.bf16.msra.mxu0 0
      %1448 = vmatprep.subr.bf16.mxu0 0
      %1449 = vmatpush1.bf16.msra.mxu0 0
      %1450 = vmatprep.subr.bf16.mxu0 0
      %1451 = vmatpush1.bf16.msra.mxu0 0
      %1452 = vmatprep.subr.bf16.mxu0 0
      %1453 = vmatpush1.bf16.msra.mxu0 0
      %1454 = vmatprep.subr.bf16.mxu0 0
      %1455 = vmatpush1.bf16.msra.mxu0 %v1435
      %1456 = vmatprep.subr.bf16.mxu0 0
      %1457 = vmatpush2.bf16.msra.mxu0 0
      %1458 = vmatprep.subr.bf16.mxu0 0
      %1459 = vmatpush2.bf16.msra.mxu0 0
      %1460 = vmatprep.subr.bf16.mxu0 0
      %1461 = vmatpush2.bf16.msra.mxu0 0
      %1462 = vmatprep.subr.bf16.mxu0 0
      %1463 = vmatpush2.bf16.msra.mxu0 0
      %1464 = vmatprep.subr.bf16.mxu0 0
      %1465 = vmatpush2.bf16.msra.mxu0 0
      %1466 = vmatprep.subr.bf16.mxu0 0
      %1467 = vmatpush2.bf16.msra.mxu0 0
      %1468 = vmatprep.subr.bf16.mxu0 0
      %1469 = vmatpush2.bf16.msra.mxu0 0
      %1470 = vmatprep.subr.bf16.mxu0 0
      %1471 = vmatpush2.bf16.msra.mxu0 0
      %1472 = vmatprep.mubr.bf16.mxu0 0
      %1473 = vmatmul.mubr.bf16.gmra.mxu0 %v1438
      %v1474 = vpop.f32.mrf.mxu0
      %v1475 = vadd.f32 %v1429, %v1474
      %v1476 = vpop.f32.mrf.mxu0
      %v1477 = vpop.f32.mrf.mxu0
      %v1478 = vadd.f32 %v1429, %v1477
      %v1479 = vpop.f32.mrf.mxu0
      %1480 = vdwg.mxu0
      %v1481 = vxor.u32 %v1475, 2147483648
      %v1482 = vxor.u32 %v1478, 2147483648
      %v1483 = vmul.f32 %v1481, 1.442695
      %v1484 = vpow.pop %v1483
      %v1485 = vmul.f32 %v1482, 1.442695
      %v1486 = vpow.pop %v1485
      %v1487 = vadd.f32 %v1484, 1.0
      %v1488 = vadd.f32 %v1486, 1.0
      %v1489 = vrcp.pop %v1487
      %v1490 = vmul.f32 1.0, %v1489
      %v1491 = vrcp.pop %v1488
      %v1492 = vmul.f32 1.0, %v1491
      %v1493 = vmul.f32 %v1475, %v1490
      %v1494 = vmul.f32 %v1478, %v1492
      %v1495 = vld [vmem:[%s15] sm:$0xf]
      %v1496 = vld [vmem:[%s15 + $0x4] sm:$0xf]
      %v1497 = vld [vmem:[%s15 + $0x8] sm:$0xf]
      %v1498 = vld [vmem:[%s15 + $0xc] sm:$0xf]
      %v1499 = vpack.c.bf16 %v1494, %v1493
      %v1500 = vld [vmem:[%s16] sm:$0x1]
      %v1502 = vlaneseq
      %v1503 = vshrl.u32 %v1502, 7
      %v1504 = vsub.s32 0, %v1503
      %v1505 = vrot.slane %v1500, %v1504
      %v1511 = vunpack.c.l.b16 %v1495
      %v1512 = vunpack.c.l.b16 %v1496
      %v1513 = vunpack.c.l.b16 %v1497
      %v1514 = vunpack.c.l.b16 %v1498
      %v1515 = vpack.c.b16 %v1512, %v1511
      %v1516 = vpack.c.b16 %v1514, %v1513
      %v1520 = vsel %vm558, %v1499, 0
      %1522 = vmatprep.subr.bf16.mxu0 0
      %1523 = vmatpush1.bf16.msra.mxu0 0
      %1524 = vmatprep.subr.bf16.mxu0 0
      %1525 = vmatpush1.bf16.msra.mxu0 0
      %1526 = vmatprep.subr.bf16.mxu0 0
      %1527 = vmatpush1.bf16.msra.mxu0 0
      %1528 = vmatprep.subr.bf16.mxu0 0
      %1529 = vmatpush1.bf16.msra.mxu0 0
      %1530 = vmatprep.subr.bf16.mxu0 0
      %1531 = vmatpush1.bf16.msra.mxu0 0
      %1532 = vmatprep.subr.bf16.mxu0 0
      %1533 = vmatpush1.bf16.msra.mxu0 0
      %1534 = vmatprep.subr.bf16.mxu0 0
      %1535 = vmatpush1.bf16.msra.mxu0 %v1516
      %1536 = vmatprep.subr.bf16.mxu0 0
      %1537 = vmatpush1.bf16.msra.mxu0 %v1515
      %1538 = vmatprep.subr.bf16.mxu0 0
      %1539 = vmatpush2.bf16.msra.mxu0 0
      %1540 = vmatprep.subr.bf16.mxu0 0
      %1541 = vmatpush2.bf16.msra.mxu0 0
      %1542 = vmatprep.subr.bf16.mxu0 0
      %1543 = vmatpush2.bf16.msra.mxu0 0
      %1544 = vmatprep.subr.bf16.mxu0 0
      %1545 = vmatpush2.bf16.msra.mxu0 0
      %1546 = vmatprep.subr.bf16.mxu0 0
      %1547 = vmatpush2.bf16.msra.mxu0 0
      %1548 = vmatprep.subr.bf16.mxu0 0
      %1549 = vmatpush2.bf16.msra.mxu0 0
      %1550 = vmatprep.subr.bf16.mxu0 0
      %1551 = vmatpush2.bf16.msra.mxu0 0
      %1552 = vmatprep.subr.bf16.mxu0 0
      %1553 = vmatpush2.bf16.msra.mxu0 0
      %1554 = vmatprep.mubr.bf16.mxu0 0
      %1555 = vmatmul.mubr.bf16.gmra.mxu0 %v1520
      %v1556 = vpop.f32.mrf.mxu0
      %v1557 = vadd.f32 %v1505, %v1556
      %v1558 = vpop.f32.mrf.mxu0
      %v1559 = vpop.f32.mrf.mxu0
      %v1560 = vadd.f32 %v1505, %v1559
      %v1561 = vpop.f32.mrf.mxu0
      %1562 = vdwg.mxu0
      %v1563 = vadd.f32 %v1214, %v1557
      %v1564 = vadd.f32 %v1217, %v1560
      %1565 = vst.msk [vmem:[%s548] sm:$0xff] %vm829, %v1563
      %1566 = vst.msk [vmem:[%s548 + $0x8] sm:$0xff] %vm829, %v1564
      %p1567 = scmp.lt.s32.totalorder %s28, 1
      %s1568 = scalar_select %p1567, %s28, 1
      %s1569 = smul.addr %s1568, 2
      %s1570 = smul.addr %s1569, 8
      %s1571 = scalar_lea.vmem %s17, %s1570
      // Predicated region
      $region89: #{_lambda_.10} parent=87 // pred_check
        %p1572 = pneg %p408
      $region90: #{_lambda_.10} parent=87 // pred_check_branch
        %1574 = sbr.rel (%p1572) target = $region92
      $region91: #{_lambda_.10} parent=87 // pred_region
        _
      $region92: #{_lambda_.10} parent=87 // pred_fallthru
        _
    $region88: #{_lambda_.10} parent=5 // pred_fallthru
      _
    %p1575 = scmp.le.s32.totalorder 2, %s23
    // Predicated region
    $region93: #{_lambda_.10} parent=5 // pred_check
      %p1576 = pneg %p1575
    $region94: #{_lambda_.10} parent=5 // pred_check_branch
      %1578 = sbr.rel (%p1576) target = $region96
    $region95: #{_lambda_.10} parent=5 // pred_region
      %s1579 = ssub.s32 %s23, 2
      // Predicated region
      $region97: #{_lambda_.10} parent=95 // pred_check
        %p1580 = pneg %p414
      $region98: #{_lambda_.10} parent=95 // pred_check_branch
        %1582 = sbr.rel (%p1580) target = $region100
      $region99: #{_lambda_.10} parent=95 // pred_region
        %p1583 = scmp.lt.s32.totalorder %s29, 1
        %s1584 = scalar_select %p1583, %s29, 1
        %s1585 = smul.addr %s1584, 2
        %s1586 = smul.addr %s1585, 8
        %s1587 = scalar_lea.vmem %s17, %s1586
      $region100: #{_lambda_.10} parent=95 // pred_fallthru
        _
    $region96: #{_lambda_.10} parent=5 // pred_fallthru
      _
  $region6: #{_lambda_.10} parent=0 // loop_footer
    %s27 = sadd.s32 1, %s23
  $region7: #{_lambda_.10} parent=0 // loop_footer_branch
    %22 = sbr.rel target = $region3
  $region8: #{_lambda_.10} parent=0 // loop_exit
    _

// kernel: _lambda_.15
$region0: #{_lambda_.15}
  #allocation0 [shape = 'u32[]', space=smem, size = 0x4, offset = 0x4, fixed_abs, tag = 'smem constant byte address 0x4 - core index']
  #allocation1 [shape = 'u32[144,128]{1,0:T(1,128)}', space=vmem, size = 0x12000, scoped, tag = 'internal scratch']
  %s0 = inlined_call_operand.vmem [shape: f32[128,16], index: 0, kind: input, shape index: {}]
  %s1 = inlined_call_operand.vmem [shape: bf16[16,12], index: 1, kind: input, shape index: {}]
  %s2 = inlined_call_operand.vmem [shape: f32[1,12], index: 2, kind: input, shape index: {}]
  %s3 = inlined_call_operand.vmem [shape: f32[128,12], index: 3, kind: output, shape index: {}]
  %s4 = sld [smem:[#allocation0]]
  $region22: #{_lambda_.15} parent=0
    _
  %s6 = ssub.s32 1, %s4
  %s7 = scalar_select 0, %s6, %s4
  // Predicated region
  $region2: #{_lambda_.15} parent=0 // pred_check
    _
  $region3: #{_lambda_.15} parent=0 // pred_check_branch
    %9 = sbr.rel (0) target = $region5
  $region4: #{_lambda_.15} parent=0 // pred_region
    _
  $region5: #{_lambda_.15} parent=0 // pred_fallthru
    _
  // Predicated region
  $region6: #{_lambda_.15} parent=0 // pred_check
    _
  $region7: #{_lambda_.15} parent=0 // pred_check_branch
    %11 = sbr.rel (0) target = $region9
  $region8: #{_lambda_.15} parent=0 // pred_region
    _
  $region9: #{_lambda_.15} parent=0 // pred_fallthru
    _
  // Predicated region
  $region10: #{_lambda_.15} parent=0 // pred_check
    _
  $region11: #{_lambda_.15} parent=0 // pred_check_branch
    %13 = sbr.rel (0) target = $region13
  $region12: #{_lambda_.15} parent=0 // pred_region
    _
  $region13: #{_lambda_.15} parent=0 // pred_fallthru
    _
  %v15 = vld [vmem:[%s0] sm:$0xff]
  %v16 = vld [vmem:[%s0 + $0x8] sm:$0xff]
  %v17 = vld [vmem:[%s0 + $0x10] sm:$0xff]
  %v18 = vld [vmem:[%s0 + $0x18] sm:$0xff]
  %v19 = vld [vmem:[%s0 + $0x20] sm:$0xff]
  %v20 = vld [vmem:[%s0 + $0x28] sm:$0xff]
  %v21 = vld [vmem:[%s0 + $0x30] sm:$0xff]
  %v22 = vld [vmem:[%s0 + $0x38] sm:$0xff]
  %v23 = vld [vmem:[%s0 + $0x40] sm:$0xff]
  %v24 = vld [vmem:[%s0 + $0x48] sm:$0xff]
  %v25 = vld [vmem:[%s0 + $0x50] sm:$0xff]
  %v26 = vld [vmem:[%s0 + $0x58] sm:$0xff]
  %v27 = vld [vmem:[%s0 + $0x60] sm:$0xff]
  %v28 = vld [vmem:[%s0 + $0x68] sm:$0xff]
  %v29 = vld [vmem:[%s0 + $0x70] sm:$0xff]
  %v30 = vld [vmem:[%s0 + $0x78] sm:$0xff]
  %v31 = vld [vmem:[%s1] sm:$0xf]
  %v32 = vld [vmem:[%s1 + $0x4] sm:$0xf]
  %v33 = vpack.c.bf16 %v16, %v15
  %v34 = vpack.c.bf16 %v18, %v17
  %v35 = vpack.c.bf16 %v20, %v19
  %v36 = vpack.c.bf16 %v22, %v21
  %v37 = vpack.c.bf16 %v24, %v23
  %v38 = vpack.c.bf16 %v26, %v25
  %v39 = vpack.c.bf16 %v28, %v27
  %v40 = vpack.c.bf16 %v30, %v29
  %v41 = vld [vmem:[%s2] sm:$0x1]
  %v43 = vlaneseq
  %v44 = vshrl.u32 %v43, 7
  %v45 = vsub.s32 0, %v44
  %v46 = vrot.slane %v41, %v45
  %v50 = vunpack.c.l.b16 %v31
  %v51 = vunpack.c.l.b16 %v32
  %v52 = vpack.c.b16 %v51, %v50
  %vm54 = vcmask 130048
  %v56 = vsel %vm54, %v33, 0
  %v59 = vsel %vm54, %v34, 0
  %v62 = vsel %vm54, %v35, 0
  %v65 = vsel %vm54, %v36, 0
  %v68 = vsel %vm54, %v37, 0
  %v71 = vsel %vm54, %v38, 0
  %v74 = vsel %vm54, %v39, 0
  %v77 = vsel %vm54, %v40, 0
  %79 = vmatprep.subr.bf16.mxu0 0
  %80 = vmatpush1.bf16.msra.mxu0 0
  %81 = vmatprep.subr.bf16.mxu0 0
  %82 = vmatpush1.bf16.msra.mxu0 0
  %83 = vmatprep.subr.bf16.mxu0 0
  %84 = vmatpush1.bf16.msra.mxu0 0
  %85 = vmatprep.subr.bf16.mxu0 0
  %86 = vmatpush1.bf16.msra.mxu0 0
  %87 = vmatprep.subr.bf16.mxu0 0
  %88 = vmatpush1.bf16.msra.mxu0 0
  %89 = vmatprep.subr.bf16.mxu0 0
  %90 = vmatpush1.bf16.msra.mxu0 0
  %91 = vmatprep.subr.bf16.mxu0 0
  %92 = vmatpush1.bf16.msra.mxu0 0
  %93 = vmatprep.subr.bf16.mxu0 0
  %94 = vmatpush1.bf16.msra.mxu0 %v52
  %95 = vmatprep.subr.bf16.mxu0 0
  %96 = vmatpush2.bf16.msra.mxu0 0
  %97 = vmatprep.subr.bf16.mxu0 0
  %98 = vmatpush2.bf16.msra.mxu0 0
  %99 = vmatprep.subr.bf16.mxu0 0
  %100 = vmatpush2.bf16.msra.mxu0 0
  %101 = vmatprep.subr.bf16.mxu0 0
  %102 = vmatpush2.bf16.msra.mxu0 0
  %103 = vmatprep.subr.bf16.mxu0 0
  %104 = vmatpush2.bf16.msra.mxu0 0
  %105 = vmatprep.subr.bf16.mxu0 0
  %106 = vmatpush2.bf16.msra.mxu0 0
  %107 = vmatprep.subr.bf16.mxu0 0
  %108 = vmatpush2.bf16.msra.mxu0 0
  %109 = vmatprep.subr.bf16.mxu0 0
  %110 = vmatpush2.bf16.msra.mxu0 0
  %111 = vmatprep.mubr.bf16.mxu0 0
  %112 = vmatmul.mubr.bf16.gmra.mxu0 %v56
  %v113 = vpop.f32.mrf.mxu0
  %v114 = vadd.f32 %v46, %v113
  %v115 = vpop.f32.mrf.mxu0
  %v116 = vpop.f32.mrf.mxu0
  %v117 = vadd.f32 %v46, %v116
  %v118 = vpop.f32.mrf.mxu0
  %119 = vmatprep.mubr.bf16.mxu0 0
  %120 = vmatmul.mubr.bf16.gmra.mxu0 %v59
  %v121 = vpop.f32.mrf.mxu0
  %v122 = vadd.f32 %v46, %v121
  %v123 = vpop.f32.mrf.mxu0
  %v124 = vpop.f32.mrf.mxu0
  %v125 = vadd.f32 %v46, %v124
  %v126 = vpop.f32.mrf.mxu0
  %127 = vmatprep.mubr.bf16.mxu0 0
  %128 = vmatmul.mubr.bf16.gmra.mxu0 %v62
  %v129 = vpop.f32.mrf.mxu0
  %v130 = vadd.f32 %v46, %v129
  %v131 = vpop.f32.mrf.mxu0
  %v132 = vpop.f32.mrf.mxu0
  %v133 = vadd.f32 %v46, %v132
  %v134 = vpop.f32.mrf.mxu0
  %135 = vmatprep.mubr.bf16.mxu0 0
  %136 = vmatmul.mubr.bf16.gmra.mxu0 %v65
  %v137 = vpop.f32.mrf.mxu0
  %v138 = vadd.f32 %v46, %v137
  %v139 = vpop.f32.mrf.mxu0
  %v140 = vpop.f32.mrf.mxu0
  %v141 = vadd.f32 %v46, %v140
  %v142 = vpop.f32.mrf.mxu0
  %143 = vmatprep.mubr.bf16.mxu0 0
  %144 = vmatmul.mubr.bf16.gmra.mxu0 %v68
  %v145 = vpop.f32.mrf.mxu0
  %v146 = vadd.f32 %v46, %v145
  %v147 = vpop.f32.mrf.mxu0
  %v148 = vpop.f32.mrf.mxu0
  %v149 = vadd.f32 %v46, %v148
  %v150 = vpop.f32.mrf.mxu0
  %151 = vmatprep.mubr.bf16.mxu0 0
  %152 = vmatmul.mubr.bf16.gmra.mxu0 %v71
  %v153 = vpop.f32.mrf.mxu0
  %v154 = vadd.f32 %v46, %v153
  %v155 = vpop.f32.mrf.mxu0
  %v156 = vpop.f32.mrf.mxu0
  %v157 = vadd.f32 %v46, %v156
  %v158 = vpop.f32.mrf.mxu0
  %159 = vmatprep.mubr.bf16.mxu0 0
  %160 = vmatmul.mubr.bf16.gmra.mxu0 %v74
  %v161 = vpop.f32.mrf.mxu0
  %v162 = vadd.f32 %v46, %v161
  %v163 = vpop.f32.mrf.mxu0
  %v164 = vpop.f32.mrf.mxu0
  %v165 = vadd.f32 %v46, %v164
  %v166 = vpop.f32.mrf.mxu0
  %167 = vmatprep.mubr.bf16.mxu0 0
  %168 = vmatmul.mubr.bf16.gmra.mxu0 %v77
  %v169 = vpop.f32.mrf.mxu0
  %v170 = vadd.f32 %v46, %v169
  %v171 = vpop.f32.mrf.mxu0
  %v172 = vpop.f32.mrf.mxu0
  %v173 = vadd.f32 %v46, %v172
  %v174 = vpop.f32.mrf.mxu0
  %175 = vdwg.mxu0
  %vm176 = vcmask 97280
  %177 = vst.msk [vmem:[%s3] sm:$0xff] %vm176, %v114
  %178 = vst.msk [vmem:[%s3 + $0x8] sm:$0xff] %vm176, %v117
  %179 = vst.msk [vmem:[%s3 + $0x10] sm:$0xff] %vm176, %v122
  %180 = vst.msk [vmem:[%s3 + $0x18] sm:$0xff] %vm176, %v125
  %181 = vst.msk [vmem:[%s3 + $0x20] sm:$0xff] %vm176, %v130
  %182 = vst.msk [vmem:[%s3 + $0x28] sm:$0xff] %vm176, %v133
  %183 = vst.msk [vmem:[%s3 + $0x30] sm:$0xff] %vm176, %v138
  %184 = vst.msk [vmem:[%s3 + $0x38] sm:$0xff] %vm176, %v141
  %185 = vst.msk [vmem:[%s3 + $0x40] sm:$0xff] %vm176, %v146
  %186 = vst.msk [vmem:[%s3 + $0x48] sm:$0xff] %vm176, %v149
  %187 = vst.msk [vmem:[%s3 + $0x50] sm:$0xff] %vm176, %v154
  %188 = vst.msk [vmem:[%s3 + $0x58] sm:$0xff] %vm176, %v157
  %189 = vst.msk [vmem:[%s3 + $0x60] sm:$0xff] %vm176, %v162
  %190 = vst.msk [vmem:[%s3 + $0x68] sm:$0xff] %vm176, %v165
  %191 = vst.msk [vmem:[%s3 + $0x70] sm:$0xff] %vm176, %v170
  %192 = vst.msk [vmem:[%s3 + $0x78] sm:$0xff] %vm176, %v173
  // Predicated region
  $region14: #{_lambda_.15} parent=0 // pred_check
    _
  $region15: #{_lambda_.15} parent=0 // pred_check_branch
    %194 = sbr.rel (0) target = $region17
  $region16: #{_lambda_.15} parent=0 // pred_region
    _
  $region17: #{_lambda_.15} parent=0 // pred_fallthru
    _
  // Predicated region
  $region18: #{_lambda_.15} parent=0 // pred_check
    _
  $region19: #{_lambda_.15} parent=0 // pred_check_branch
    %196 = sbr.rel (0) target = $region21
  $region20: #{_lambda_.15} parent=0 // pred_region
    _
  $region21: #{_lambda_.15} parent=0 // pred_fallthru
    _

// kernel: _lambda_.12
$region0: #{_lambda_.12}
  #allocation0 [shape = 'u32[]', space=smem, size = 0x4, offset = 0x4, fixed_abs, tag = 'smem constant byte address 0x4 - core index']
  #allocation1 [shape = 'u32[144,128]{1,0:T(1,128)}', space=vmem, size = 0x12000, scoped, tag = 'internal scratch']
  %s0 = inlined_call_operand.vmem [shape: f32[2,64,16], index: 0, kind: input, shape index: {}]
  %s1 = inlined_call_operand.vmem [shape: f32[16,16], index: 1, kind: input, shape index: {}, may-alias: {1,8}]
  %s2 = inlined_call_operand.vmem [shape: f32[1,16], index: 2, kind: input, shape index: {}]
  %s3 = inlined_call_operand.vmem [shape: f32[1,16], index: 3, kind: input, shape index: {}]
  %s4 = inlined_call_operand.vmem [shape: bf16[16,48], index: 4, kind: input, shape index: {}]
  %s5 = inlined_call_operand.vmem [shape: f32[1,48], index: 5, kind: input, shape index: {}]
  %s6 = inlined_call_operand.vmem [shape: bf16[16,16], index: 6, kind: input, shape index: {}]
  %s7 = inlined_call_operand.vmem [shape: f32[1,16], index: 7, kind: input, shape index: {}]
  %s8 = inlined_call_operand.vmem [shape: f32[16,16], index: 8, kind: input, shape index: {}, may-alias: {1,8}]
  %s9 = inlined_call_operand.vmem [shape: f32[1,16], index: 9, kind: input, shape index: {}]
  %s10 = inlined_call_operand.vmem [shape: f32[1,16], index: 10, kind: input, shape index: {}]
  %s11 = inlined_call_operand.vmem [shape: bf16[16,32], index: 11, kind: input, shape index: {}]
  %s12 = inlined_call_operand.vmem [shape: f32[1,32], index: 12, kind: input, shape index: {}]
  %s13 = inlined_call_operand.vmem [shape: bf16[32,16], index: 13, kind: input, shape index: {}]
  %s14 = inlined_call_operand.vmem [shape: f32[1,16], index: 14, kind: input, shape index: {}]
  %s15 = inlined_call_operand.vmem [shape: f32[2,64,16], index: 15, kind: output, shape index: {}]
  %s16 = sld [smem:[#allocation0]]
  $region93: #{_lambda_.12} parent=0
    _
  %s18 = ssub.s32 1, %s16
  %s19 = scalar_select 0, %s18, %s16
  loop: start=0, step=1, limit=4
  $region2: #{_lambda_.12} parent=0 // loop_pre_header
    _
  $region3: #{_lambda_.12} parent=0 // loop_header
    %s21 = sphi 0, %s25
    %p22 = scmp.ge.s32.totalorder %s21, 4
    %s31 = sphi 0, %s33
    %s34 = sphi 0, %s31
    %s35 = sphi 0, %s34
    %s51 = sphi 0, %s35
    %s55 = sphi 0, %s55
    %s57 = sphi 0, %s55
    %s58 = sphi 0, %s57
    %s72 = sphi 0, %s58
    %s76 = sphi 0, %s76
    %s78 = sphi 0, %s76
    %s79 = sphi 0, %s78
    %s93 = sphi 0, %s79
    %s97 = sphi 0, %s97
    %s99 = sphi 0, %s97
    %s100 = sphi 0, %s99
    %s114 = sphi 0, %s100
    %s118 = sphi 0, %s118
    %s120 = sphi 0, %s118
    %s121 = sphi 0, %s120
    %s135 = sphi 0, %s121
    %s139 = sphi 0, %s139
    %s141 = sphi 0, %s139
    %s142 = sphi 0, %s141
    %s156 = sphi 0, %s142
    %s160 = sphi 0, %s160
    %s162 = sphi 0, %s160
    %s163 = sphi 0, %s162
    %s177 = sphi 0, %s163
    %s181 = sphi 0, %s181
    %s183 = sphi 0, %s181
    %s184 = sphi 0, %s183
    %s198 = sphi 0, %s184
    %s202 = sphi 0, %s202
    %s204 = sphi 0, %s202
    %s205 = sphi 0, %s204
    %s219 = sphi 0, %s205
    %s223 = sphi 0, %s223
    %s225 = sphi 0, %s223
    %s226 = sphi 0, %s225
    %s240 = sphi 0, %s226
    %s244 = sphi 0, %s244
    %s246 = sphi 0, %s244
    %s247 = sphi 0, %s246
    %s261 = sphi 0, %s247
    %s265 = sphi 0, %s265
    %s267 = sphi 0, %s265
    %s268 = sphi 0, %s267
    %s282 = sphi 0, %s268
    %s286 = sphi 0, %s286
    %s288 = sphi 0, %s286
    %s289 = sphi 0, %s288
    %s303 = sphi 0, %s289
    %s307 = sphi 0, %s307
    %s309 = sphi 0, %s307
    %s310 = sphi 0, %s309
    %s324 = sphi 0, %s310
    %s328 = sphi 0, %s328
    %s330 = sphi 0, %s328
    %s331 = sphi 0, %s330
    %s345 = sphi 0, %s331
    %s351 = sphi 0, %s353
    %s354 = sphi 0, %s351
    %s355 = sphi 0, %s354
    %s371 = sphi 0, %s355
  $region4: #{_lambda_.12} parent=0 // loop_header_branch
    %24 = sbr.rel (%p22) target = $region8
  $region5: #{_lambda_.12} parent=0 // loop_body
    %s26 = ssub.s32 %s21, 1
    %s27 = ssub.s32 %s21, 2
    %s28 = sadd.s32 %s21, 1
    %s29 = ssub.s32 %s21, %s28
    %p30 = scmp.eq.s32.totalorder %s29, 0
    %s32 = sadd.s32 %s31, 1
    %s33 = scalar_select %p30, %s31, %s32
    %p36 = pneg %p30
    %p37 = scmp.eq.s32.totalorder %s21, 1
    %p38 = por %p36, %p37
    %p39 = scmp.ne.s32.totalorder %s31, %s34
    %p40 = scmp.eq.s32.totalorder %s21, 0
    %p41 = por %p39, %p40
    %p42 = scmp.ne.s32.totalorder %s31, %s34
    %p43 = scmp.eq.s32.totalorder %s26, 1
    %p44 = por %p42, %p43
    %p45 = scmp.ne.s32.totalorder %s34, %s35
    %p46 = scmp.eq.s32.totalorder %s26, 0
    %p47 = por %p45, %p46
    %p48 = scmp.ne.s32.totalorder %s34, %s35
    %p49 = scmp.eq.s32.totalorder %s27, 1
    %p50 = por %p48, %p49
    %p52 = scmp.ne.s32.totalorder %s35, %s51
    %p53 = scmp.eq.s32.totalorder %s27, 0
    %p54 = por %p52, %p53
    %s56 = sadd.s32 %s55, 1
    %p59 = scmp.eq.s32.totalorder %s21, 1
    %p60 = scmp.ne.s32.totalorder %s55, %s57
    %p61 = scmp.eq.s32.totalorder %s21, 0
    %p62 = por %p60, %p61
    %p63 = scmp.ne.s32.totalorder %s55, %s57
    %p64 = scmp.eq.s32.totalorder %s26, 1
    %p65 = por %p63, %p64
    %p66 = scmp.ne.s32.totalorder %s57, %s58
    %p67 = scmp.eq.s32.totalorder %s26, 0
    %p68 = por %p66, %p67
    %p69 = scmp.ne.s32.totalorder %s57, %s58
    %p70 = scmp.eq.s32.totalorder %s27, 1
    %p71 = por %p69, %p70
    %p73 = scmp.ne.s32.totalorder %s58, %s72
    %p74 = scmp.eq.s32.totalorder %s27, 0
    %p75 = por %p73, %p74
    %s77 = sadd.s32 %s76, 1
    %p80 = scmp.eq.s32.totalorder %s21, 1
    %p81 = scmp.ne.s32.totalorder %s76, %s78
    %p82 = scmp.eq.s32.totalorder %s21, 0
    %p83 = por %p81, %p82
    %p84 = scmp.ne.s32.totalorder %s76, %s78
    %p85 = scmp.eq.s32.totalorder %s26, 1
    %p86 = por %p84, %p85
    %p87 = scmp.ne.s32.totalorder %s78, %s79
    %p88 = scmp.eq.s32.totalorder %s26, 0
    %p89 = por %p87, %p88
    %p90 = scmp.ne.s32.totalorder %s78, %s79
    %p91 = scmp.eq.s32.totalorder %s27, 1
    %p92 = por %p90, %p91
    %p94 = scmp.ne.s32.totalorder %s79, %s93
    %p95 = scmp.eq.s32.totalorder %s27, 0
    %p96 = por %p94, %p95
    %s98 = sadd.s32 %s97, 1
    %p101 = scmp.eq.s32.totalorder %s21, 1
    %p102 = scmp.ne.s32.totalorder %s97, %s99
    %p103 = scmp.eq.s32.totalorder %s21, 0
    %p104 = por %p102, %p103
    %p105 = scmp.ne.s32.totalorder %s97, %s99
    %p106 = scmp.eq.s32.totalorder %s26, 1
    %p107 = por %p105, %p106
    %p108 = scmp.ne.s32.totalorder %s99, %s100
    %p109 = scmp.eq.s32.totalorder %s26, 0
    %p110 = por %p108, %p109
    %p111 = scmp.ne.s32.totalorder %s99, %s100
    %p112 = scmp.eq.s32.totalorder %s27, 1
    %p113 = por %p111, %p112
    %p115 = scmp.ne.s32.totalorder %s100, %s114
    %p116 = scmp.eq.s32.totalorder %s27, 0
    %p117 = por %p115, %p116
    %s119 = sadd.s32 %s118, 1
    %p122 = scmp.eq.s32.totalorder %s21, 1
    %p123 = scmp.ne.s32.totalorder %s118, %s120
    %p124 = scmp.eq.s32.totalorder %s21, 0
    %p125 = por %p123, %p124
    %p126 = scmp.ne.s32.totalorder %s118, %s120
    %p127 = scmp.eq.s32.totalorder %s26, 1
    %p128 = por %p126, %p127
    %p129 = scmp.ne.s32.totalorder %s120, %s121
    %p130 = scmp.eq.s32.totalorder %s26, 0
    %p131 = por %p129, %p130
    %p132 = scmp.ne.s32.totalorder %s120, %s121
    %p133 = scmp.eq.s32.totalorder %s27, 1
    %p134 = por %p132, %p133
    %p136 = scmp.ne.s32.totalorder %s121, %s135
    %p137 = scmp.eq.s32.totalorder %s27, 0
    %p138 = por %p136, %p137
    %s140 = sadd.s32 %s139, 1
    %p143 = scmp.eq.s32.totalorder %s21, 1
    %p144 = scmp.ne.s32.totalorder %s139, %s141
    %p145 = scmp.eq.s32.totalorder %s21, 0
    %p146 = por %p144, %p145
    %p147 = scmp.ne.s32.totalorder %s139, %s141
    %p148 = scmp.eq.s32.totalorder %s26, 1
    %p149 = por %p147, %p148
    %p150 = scmp.ne.s32.totalorder %s141, %s142
    %p151 = scmp.eq.s32.totalorder %s26, 0
    %p152 = por %p150, %p151
    %p153 = scmp.ne.s32.totalorder %s141, %s142
    %p154 = scmp.eq.s32.totalorder %s27, 1
    %p155 = por %p153, %p154
    %p157 = scmp.ne.s32.totalorder %s142, %s156
    %p158 = scmp.eq.s32.totalorder %s27, 0
    %p159 = por %p157, %p158
    %s161 = sadd.s32 %s160, 1
    %p164 = scmp.eq.s32.totalorder %s21, 1
    %p165 = scmp.ne.s32.totalorder %s160, %s162
    %p166 = scmp.eq.s32.totalorder %s21, 0
    %p167 = por %p165, %p166
    %p168 = scmp.ne.s32.totalorder %s160, %s162
    %p169 = scmp.eq.s32.totalorder %s26, 1
    %p170 = por %p168, %p169
    %p171 = scmp.ne.s32.totalorder %s162, %s163
    %p172 = scmp.eq.s32.totalorder %s26, 0
    %p173 = por %p171, %p172
    %p174 = scmp.ne.s32.totalorder %s162, %s163
    %p175 = scmp.eq.s32.totalorder %s27, 1
    %p176 = por %p174, %p175
    %p178 = scmp.ne.s32.totalorder %s163, %s177
    %p179 = scmp.eq.s32.totalorder %s27, 0
    %p180 = por %p178, %p179
    %s182 = sadd.s32 %s181, 1
    %p185 = scmp.eq.s32.totalorder %s21, 1
    %p186 = scmp.ne.s32.totalorder %s181, %s183
    %p187 = scmp.eq.s32.totalorder %s21, 0
    %p188 = por %p186, %p187
    %p189 = scmp.ne.s32.totalorder %s181, %s183
    %p190 = scmp.eq.s32.totalorder %s26, 1
    %p191 = por %p189, %p190
    %p192 = scmp.ne.s32.totalorder %s183, %s184
    %p193 = scmp.eq.s32.totalorder %s26, 0
    %p194 = por %p192, %p193
    %p195 = scmp.ne.s32.totalorder %s183, %s184
    %p196 = scmp.eq.s32.totalorder %s27, 1
    %p197 = por %p195, %p196
    %p199 = scmp.ne.s32.totalorder %s184, %s198
    %p200 = scmp.eq.s32.totalorder %s27, 0
    %p201 = por %p199, %p200
    %s203 = sadd.s32 %s202, 1
    %p206 = scmp.eq.s32.totalorder %s21, 1
    %p207 = scmp.ne.s32.totalorder %s202, %s204
    %p208 = scmp.eq.s32.totalorder %s21, 0
    %p209 = por %p207, %p208
    %p210 = scmp.ne.s32.totalorder %s202, %s204
    %p211 = scmp.eq.s32.totalorder %s26, 1
    %p212 = por %p210, %p211
    %p213 = scmp.ne.s32.totalorder %s204, %s205
    %p214 = scmp.eq.s32.totalorder %s26, 0
    %p215 = por %p213, %p214
    %p216 = scmp.ne.s32.totalorder %s204, %s205
    %p217 = scmp.eq.s32.totalorder %s27, 1
    %p218 = por %p216, %p217
    %p220 = scmp.ne.s32.totalorder %s205, %s219
    %p221 = scmp.eq.s32.totalorder %s27, 0
    %p222 = por %p220, %p221
    %s224 = sadd.s32 %s223, 1
    %p227 = scmp.eq.s32.totalorder %s21, 1
    %p228 = scmp.ne.s32.totalorder %s223, %s225
    %p229 = scmp.eq.s32.totalorder %s21, 0
    %p230 = por %p228, %p229
    %p231 = scmp.ne.s32.totalorder %s223, %s225
    %p232 = scmp.eq.s32.totalorder %s26, 1
    %p233 = por %p231, %p232
    %p234 = scmp.ne.s32.totalorder %s225, %s226
    %p235 = scmp.eq.s32.totalorder %s26, 0
    %p236 = por %p234, %p235
    %p237 = scmp.ne.s32.totalorder %s225, %s226
    %p238 = scmp.eq.s32.totalorder %s27, 1
    %p239 = por %p237, %p238
    %p241 = scmp.ne.s32.totalorder %s226, %s240
    %p242 = scmp.eq.s32.totalorder %s27, 0
    %p243 = por %p241, %p242
    %s245 = sadd.s32 %s244, 1
    %p248 = scmp.eq.s32.totalorder %s21, 1
    %p249 = scmp.ne.s32.totalorder %s244, %s246
    %p250 = scmp.eq.s32.totalorder %s21, 0
    %p251 = por %p249, %p250
    %p252 = scmp.ne.s32.totalorder %s244, %s246
    %p253 = scmp.eq.s32.totalorder %s26, 1
    %p254 = por %p252, %p253
    %p255 = scmp.ne.s32.totalorder %s246, %s247
    %p256 = scmp.eq.s32.totalorder %s26, 0
    %p257 = por %p255, %p256
    %p258 = scmp.ne.s32.totalorder %s246, %s247
    %p259 = scmp.eq.s32.totalorder %s27, 1
    %p260 = por %p258, %p259
    %p262 = scmp.ne.s32.totalorder %s247, %s261
    %p263 = scmp.eq.s32.totalorder %s27, 0
    %p264 = por %p262, %p263
    %s266 = sadd.s32 %s265, 1
    %p269 = scmp.eq.s32.totalorder %s21, 1
    %p270 = scmp.ne.s32.totalorder %s265, %s267
    %p271 = scmp.eq.s32.totalorder %s21, 0
    %p272 = por %p270, %p271
    %p273 = scmp.ne.s32.totalorder %s265, %s267
    %p274 = scmp.eq.s32.totalorder %s26, 1
    %p275 = por %p273, %p274
    %p276 = scmp.ne.s32.totalorder %s267, %s268
    %p277 = scmp.eq.s32.totalorder %s26, 0
    %p278 = por %p276, %p277
    %p279 = scmp.ne.s32.totalorder %s267, %s268
    %p280 = scmp.eq.s32.totalorder %s27, 1
    %p281 = por %p279, %p280
    %p283 = scmp.ne.s32.totalorder %s268, %s282
    %p284 = scmp.eq.s32.totalorder %s27, 0
    %p285 = por %p283, %p284
    %s287 = sadd.s32 %s286, 1
    %p290 = scmp.eq.s32.totalorder %s21, 1
    %p291 = scmp.ne.s32.totalorder %s286, %s288
    %p292 = scmp.eq.s32.totalorder %s21, 0
    %p293 = por %p291, %p292
    %p294 = scmp.ne.s32.totalorder %s286, %s288
    %p295 = scmp.eq.s32.totalorder %s26, 1
    %p296 = por %p294, %p295
    %p297 = scmp.ne.s32.totalorder %s288, %s289
    %p298 = scmp.eq.s32.totalorder %s26, 0
    %p299 = por %p297, %p298
    %p300 = scmp.ne.s32.totalorder %s288, %s289
    %p301 = scmp.eq.s32.totalorder %s27, 1
    %p302 = por %p300, %p301
    %p304 = scmp.ne.s32.totalorder %s289, %s303
    %p305 = scmp.eq.s32.totalorder %s27, 0
    %p306 = por %p304, %p305
    %s308 = sadd.s32 %s307, 1
    %p311 = scmp.eq.s32.totalorder %s21, 1
    %p312 = scmp.ne.s32.totalorder %s307, %s309
    %p313 = scmp.eq.s32.totalorder %s21, 0
    %p314 = por %p312, %p313
    %p315 = scmp.ne.s32.totalorder %s307, %s309
    %p316 = scmp.eq.s32.totalorder %s26, 1
    %p317 = por %p315, %p316
    %p318 = scmp.ne.s32.totalorder %s309, %s310
    %p319 = scmp.eq.s32.totalorder %s26, 0
    %p320 = por %p318, %p319
    %p321 = scmp.ne.s32.totalorder %s309, %s310
    %p322 = scmp.eq.s32.totalorder %s27, 1
    %p323 = por %p321, %p322
    %p325 = scmp.ne.s32.totalorder %s310, %s324
    %p326 = scmp.eq.s32.totalorder %s27, 0
    %p327 = por %p325, %p326
    %s329 = sadd.s32 %s328, 1
    %p332 = scmp.eq.s32.totalorder %s21, 1
    %p333 = scmp.ne.s32.totalorder %s328, %s330
    %p334 = scmp.eq.s32.totalorder %s21, 0
    %p335 = por %p333, %p334
    %p336 = scmp.ne.s32.totalorder %s328, %s330
    %p337 = scmp.eq.s32.totalorder %s26, 1
    %p338 = por %p336, %p337
    %p339 = scmp.ne.s32.totalorder %s330, %s331
    %p340 = scmp.eq.s32.totalorder %s26, 0
    %p341 = por %p339, %p340
    %p342 = scmp.ne.s32.totalorder %s330, %s331
    %p343 = scmp.eq.s32.totalorder %s27, 1
    %p344 = por %p342, %p343
    %p346 = scmp.ne.s32.totalorder %s331, %s345
    %p347 = scmp.eq.s32.totalorder %s27, 0
    %p348 = por %p346, %p347
    %s349 = ssub.s32 %s21, %s28
    %p350 = scmp.eq.s32.totalorder %s349, 0
    %s352 = sadd.s32 %s351, 1
    %s353 = scalar_select %p350, %s351, %s352
    %p356 = pneg %p350
    %p357 = scmp.eq.s32.totalorder %s21, 1
    %p358 = por %p356, %p357
    %p359 = scmp.ne.s32.totalorder %s351, %s354
    %p360 = scmp.eq.s32.totalorder %s21, 0
    %p361 = por %p359, %p360
    %p362 = scmp.ne.s32.totalorder %s351, %s354
    %p363 = scmp.eq.s32.totalorder %s26, 1
    %p364 = por %p362, %p363
    %p365 = scmp.ne.s32.totalorder %s354, %s355
    %p366 = scmp.eq.s32.totalorder %s26, 0
    %p367 = por %p365, %p366
    %p368 = scmp.ne.s32.totalorder %s354, %s355
    %p369 = scmp.eq.s32.totalorder %s27, 1
    %p370 = por %p368, %p369
    %p372 = scmp.ne.s32.totalorder %s355, %s371
    %p373 = scmp.eq.s32.totalorder %s27, 0
    %p374 = por %p372, %p373
    %p375 = scmp.le.s32.totalorder 1, %s21
    %p376 = scmp.lt.s32.totalorder %s21, 3
    %p377 = pnand %p375, %p376
    %p378 = pneg %p377
    // Predicated region
    $region9: #{_lambda_.12} parent=5 // pred_check
      _
    $region10: #{_lambda_.12} parent=5 // pred_check_branch
      %380 = sbr.rel (%p377) target = $region12
    $region11: #{_lambda_.12} parent=5 // pred_region
      %s381 = ssub.s32 %s21, 1
      // Predicated region
      $region13: #{_lambda_.12} parent=11 // pred_check
        %p382 = pneg %p68
      $region14: #{_lambda_.12} parent=11 // pred_check_branch
        %384 = sbr.rel (%p382) target = $region16
      $region15: #{_lambda_.12} parent=11 // pred_region
        _
      $region16: #{_lambda_.12} parent=11 // pred_fallthru
        _
      // Predicated region
      $region17: #{_lambda_.12} parent=11 // pred_check
        %p385 = pneg %p89
      $region18: #{_lambda_.12} parent=11 // pred_check_branch
        %387 = sbr.rel (%p385) target = $region20
      $region19: #{_lambda_.12} parent=11 // pred_region
        _
      $region20: #{_lambda_.12} parent=11 // pred_fallthru
        _
      // Predicated region
      $region21: #{_lambda_.12} parent=11 // pred_check
        %p388 = pneg %p110
      $region22: #{_lambda_.12} parent=11 // pred_check_branch
        %390 = sbr.rel (%p388) target = $region24
      $region23: #{_lambda_.12} parent=11 // pred_region
        _
      $region24: #{_lambda_.12} parent=11 // pred_fallthru
        _
      // Predicated region
      $region25: #{_lambda_.12} parent=11 // pred_check
        %p391 = pneg %p131
      $region26: #{_lambda_.12} parent=11 // pred_check_branch
        %393 = sbr.rel (%p391) target = $region28
      $region27: #{_lambda_.12} parent=11 // pred_region
        _
      $region28: #{_lambda_.12} parent=11 // pred_fallthru
        _
      // Predicated region
      $region29: #{_lambda_.12} parent=11 // pred_check
        %p394 = pneg %p152
      $region30: #{_lambda_.12} parent=11 // pred_check_branch
        %396 = sbr.rel (%p394) target = $region32
      $region31: #{_lambda_.12} parent=11 // pred_region
        _
      $region32: #{_lambda_.12} parent=11 // pred_fallthru
        _
      // Predicated region
      $region33: #{_lambda_.12} parent=11 // pred_check
        %p397 = pneg %p173
      $region34: #{_lambda_.12} parent=11 // pred_check_branch
        %399 = sbr.rel (%p397) target = $region36
      $region35: #{_lambda_.12} parent=11 // pred_region
        _
      $region36: #{_lambda_.12} parent=11 // pred_fallthru
        _
      // Predicated region
      $region37: #{_lambda_.12} parent=11 // pred_check
        %p400 = pneg %p194
      $region38: #{_lambda_.12} parent=11 // pred_check_branch
        %402 = sbr.rel (%p400) target = $region40
      $region39: #{_lambda_.12} parent=11 // pred_region
        _
      $region40: #{_lambda_.12} parent=11 // pred_fallthru
        _
      // Predicated region
      $region41: #{_lambda_.12} parent=11 // pred_check
        %p403 = pneg %p215
      $region42: #{_lambda_.12} parent=11 // pred_check_branch
        %405 = sbr.rel (%p403) target = $region44
      $region43: #{_lambda_.12} parent=11 // pred_region
        _
      $region44: #{_lambda_.12} parent=11 // pred_fallthru
        _
      // Predicated region
      $region45: #{_lambda_.12} parent=11 // pred_check
        %p406 = pneg %p236
      $region46: #{_lambda_.12} parent=11 // pred_check_branch
        %408 = sbr.rel (%p406) target = $region48
      $region47: #{_lambda_.12} parent=11 // pred_region
        _
      $region48: #{_lambda_.12} parent=11 // pred_fallthru
        _
      // Predicated region
      $region49: #{_lambda_.12} parent=11 // pred_check
        %p409 = pneg %p257
      $region50: #{_lambda_.12} parent=11 // pred_check_branch
        %411 = sbr.rel (%p409) target = $region52
      $region51: #{_lambda_.12} parent=11 // pred_region
        _
      $region52: #{_lambda_.12} parent=11 // pred_fallthru
        _
      // Predicated region
      $region53: #{_lambda_.12} parent=11 // pred_check
        %p412 = pneg %p278
      $region54: #{_lambda_.12} parent=11 // pred_check_branch
        %414 = sbr.rel (%p412) target = $region56
      $region55: #{_lambda_.12} parent=11 // pred_region
        _
      $region56: #{_lambda_.12} parent=11 // pred_fallthru
        _
      // Predicated region
      $region57: #{_lambda_.12} parent=11 // pred_check
        %p415 = pneg %p299
      $region58: #{_lambda_.12} parent=11 // pred_check_branch
        %417 = sbr.rel (%p415) target = $region60
      $region59: #{_lambda_.12} parent=11 // pred_region
        _
      $region60: #{_lambda_.12} parent=11 // pred_fallthru
        _
      // Predicated region
      $region61: #{_lambda_.12} parent=11 // pred_check
        %p418 = pneg %p320
      $region62: #{_lambda_.12} parent=11 // pred_check_branch
        %420 = sbr.rel (%p418) target = $region64
      $region63: #{_lambda_.12} parent=11 // pred_region
        _
      $region64: #{_lambda_.12} parent=11 // pred_fallthru
        _
      // Predicated region
      $region65: #{_lambda_.12} parent=11 // pred_check
        %p421 = pneg %p341
      $region66: #{_lambda_.12} parent=11 // pred_check_branch
        %423 = sbr.rel (%p421) target = $region68
      $region67: #{_lambda_.12} parent=11 // pred_region
        _
      $region68: #{_lambda_.12} parent=11 // pred_fallthru
        _
    $region12: #{_lambda_.12} parent=5 // pred_fallthru
      _
    %p424 = scmp.lt.s32.totalorder %s21, 2
    // Predicated region
    $region69: #{_lambda_.12} parent=5 // pred_check
      %p425 = pneg %p424
    $region70: #{_lambda_.12} parent=5 // pred_check_branch
      %427 = sbr.rel (%p425) target = $region72
    $region71: #{_lambda_.12} parent=5 // pred_region
      // Predicated region
      $region73: #{_lambda_.12} parent=71 // pred_check
        %p428 = pneg %p41
      $region74: #{_lambda_.12} parent=71 // pred_check_branch
        %430 = sbr.rel (%p428) target = $region76
      $region75: #{_lambda_.12} parent=71 // pred_region
        %p431 = scmp.lt.s32.totalorder %s21, 1
        %s432 = scalar_select %p431, %s21, 1
        %s433 = smul.addr %s432, 8
        %s434 = smul.addr %s433, 8
        %s435 = scalar_lea.vmem %s0, %s434
      $region76: #{_lambda_.12} parent=71 // pred_fallthru
        _
    $region72: #{_lambda_.12} parent=5 // pred_fallthru
      _
    %p436 = scmp.le.s32.totalorder 1, %s21
    %p437 = scmp.lt.s32.totalorder %s21, 3
    %p438 = pnand %p436, %p437
    %p439 = pneg %p438
    // Predicated region
    $region77: #{_lambda_.12} parent=5 // pred_check
      _
    $region78: #{_lambda_.12} parent=5 // pred_check_branch
      %441 = sbr.rel (%p438) target = $region80
    $region79: #{_lambda_.12} parent=5 // pred_region
      %s442 = ssub.s32 %s21, 1
      %p443 = scmp.lt.s32.totalorder %s26, 1
      %s444 = scalar_select %p443, %s26, 1
      %s445 = smul.addr %s444, 8
      %s446 = smul.addr %s445, 8
      %s447 = scalar_lea.vmem %s0, %s446
      %p448 = pneg %p47
      %p449 = pneg %p44
      %p450 = pneg %p68
      %p451 = pneg %p65
      %p452 = pneg %p89
      %p453 = pneg %p86
      %p454 = pneg %p110
      %p455 = pneg %p107
      %p456 = pneg %p131
      %p457 = pneg %p128
      %p458 = pneg %p152
      %p459 = pneg %p149
      %p460 = pneg %p173
      %p461 = pneg %p170
      %p462 = pneg %p194
      %p463 = pneg %p191
      %p464 = pneg %p215
      %p465 = pneg %p212
      %p466 = pneg %p236
      %p467 = pneg %p233
      %p468 = pneg %p257
      %p469 = pneg %p254
      %p470 = pneg %p278
      %p471 = pneg %p275
      %p472 = pneg %p299
      %p473 = pneg %p296
      %p474 = pneg %p320
      %p475 = pneg %p317
      %p476 = pneg %p341
      %p477 = pneg %p338
      %p478 = pneg %p367
      %p479 = pneg %p364
      %p480 = scmp.lt.s32.totalorder %s26, 1
      %s481 = scalar_select %p480, %s26, 1
      %s482 = smul.addr %s481, 8
      %s483 = smul.addr %s482, 8
      %s484 = scalar_lea.vmem %s15, %s483
      %p485 = scmp.lt.s32.totalorder %s26, 1
      %s486 = scalar_select %p485, %s26, 1
      %s487 = smul.addr %s486, 8
      %s488 = smul.addr %s487, 8
      %s489 = scalar_lea.vmem %s0, %s488
      %p490 = scmp.lt.s32.totalorder %s26, 1
      %s491 = scalar_select %p490, %s26, 1
      %s492 = smul.addr %s491, 8
      %s493 = smul.addr %s492, 8
      %s494 = scalar_lea.vmem %s15, %s493
      %v496 = vld [vmem:[%s489] sm:$0xff]
      %v497 = vld [vmem:[%s489 + $0x8] sm:$0xff]
      %v498 = vld [vmem:[%s489 + $0x10] sm:$0xff]
      %v499 = vld [vmem:[%s489 + $0x18] sm:$0xff]
      %v500 = vld [vmem:[%s489 + $0x20] sm:$0xff]
      %v501 = vld [vmem:[%s489 + $0x28] sm:$0xff]
      %v502 = vld [vmem:[%s489 + $0x30] sm:$0xff]
      %v503 = vld [vmem:[%s489 + $0x38] sm:$0xff]
      %v504 = vld [vmem:[%s2] sm:$0x1]
      %v505 = vld [vmem:[%s3] sm:$0x1]
      %v506 = vld [vmem:[%s1] sm:$0xff]
      %v507 = vld [vmem:[%s1 + $0x8] sm:$0xff]
      %vm508 = vcmask 130048
      %v509 = vsel %vm508, %v496, 0.0
      %v510 = vsel %vm508, %v497, 0.0
      %v511 = vadd.f32 %v509, %v510
      %v512 = vsel %vm508, %v498, 0.0
      %v513 = vadd.f32 %v511, %v512
      %v514 = vsel %vm508, %v499, 0.0
      %v515 = vadd.f32 %v513, %v514
      %v516 = vsel %vm508, %v500, 0.0
      %v517 = vadd.f32 %v515, %v516
      %v518 = vsel %vm508, %v501, 0.0
      %v519 = vadd.f32 %v517, %v518
      %v520 = vsel %vm508, %v502, 0.0
      %v521 = vadd.f32 %v519, %v520
      %v522 = vsel %vm508, %v503, 0.0
      %v523 = vadd.f32 %v521, %v522
      %v524 = vrot.slane %v523, 4
      %v525 = vadd.f32 %v523, %v524
      %v526 = vrot.slane %v525, 2
      %v527 = vadd.f32 %v525, %v526
      %v528 = vrot.slane %v527, 1
      %v529 = vadd.f32 %v527, %v528
      %v530 = vrcp.pop 64.0
      %v531 = vmul.f32 %v529, %v530
      %v533 = vsel %vm508, %v531, 0
      %535 = vmatprep.subr.mxu0 0.0
      %536 = vmatpush1.msra.mxu0 0.0
      %537 = vmatprep.subr.mxu0 0.0
      %538 = vmatpush1.msra.mxu0 0.0
      %539 = vmatprep.subr.mxu0 0.0
      %540 = vmatpush1.msra.mxu0 0.0
      %541 = vmatprep.subr.mxu0 0.0
      %542 = vmatpush1.msra.mxu0 0.0
      %543 = vmatprep.subr.mxu0 0.0
      %544 = vmatpush1.msra.mxu0 0.0
      %545 = vmatprep.subr.mxu0 0.0
      %546 = vmatpush1.msra.mxu0 0.0
      %547 = vmatprep.subr.mxu0 0.0
      %548 = vmatpush1.msra.mxu0 0.0
      %549 = vmatprep.subr.mxu0 0.0
      %550 = vmatpush1.msra.mxu0 0.0
      %551 = vmatprep.subr.mxu0 0.0
      %552 = vmatpush1.msra.mxu0 0.0
      %553 = vmatprep.subr.mxu0 0.0
      %554 = vmatpush1.msra.mxu0 0.0
      %555 = vmatprep.subr.mxu0 0.0
      %556 = vmatpush1.msra.mxu0 0.0
      %557 = vmatprep.subr.mxu0 0.0
      %558 = vmatpush1.msra.mxu0 0.0
      %559 = vmatprep.subr.mxu0 0.0
      %560 = vmatpush1.msra.mxu0 0.0
      %561 = vmatprep.subr.mxu0 0.0
      %562 = vmatpush1.msra.mxu0 0.0
      %563 = vmatprep.subr.mxu0 0.0
      %564 = vmatpush1.msra.mxu0 %v507
      %565 = vmatprep.subr.mxu0 0.0
      %566 = vmatpush1.msra.mxu0 %v506
      %567 = vmatprep.subr.mxu0 0.0
      %568 = vmatpush2.msra.mxu0 0.0
      %569 = vmatprep.subr.mxu0 0.0
      %570 = vmatpush2.msra.mxu0 0.0
      %571 = vmatprep.subr.mxu0 0.0
      %572 = vmatpush2.msra.mxu0 0.0
      %573 = vmatprep.subr.mxu0 0.0
      %574 = vmatpush2.msra.mxu0 0.0
      %575 = vmatprep.subr.mxu0 0.0
      %576 = vmatpush2.msra.mxu0 0.0
      %577 = vmatprep.subr.mxu0 0.0
      %578 = vmatpush2.msra.mxu0 0.0
      %579 = vmatprep.subr.mxu0 0.0
      %580 = vmatpush2.msra.mxu0 0.0
      %581 = vmatprep.subr.mxu0 0.0
      %582 = vmatpush2.msra.mxu0 0.0
      %583 = vmatprep.subr.mxu0 0.0
      %584 = vmatpush2.msra.mxu0 0.0
      %585 = vmatprep.subr.mxu0 0.0
      %586 = vmatpush2.msra.mxu0 0.0
      %587 = vmatprep.subr.mxu0 0.0
      %588 = vmatpush2.msra.mxu0 0.0
      %589 = vmatprep.subr.mxu0 0.0
      %590 = vmatpush2.msra.mxu0 0.0
      %591 = vmatprep.subr.mxu0 0.0
      %592 = vmatpush2.msra.mxu0 0.0
      %593 = vmatprep.subr.mxu0 0.0
      %594 = vmatpush2.msra.mxu0 0.0
      %595 = vmatprep.subr.mxu0 0.0
      %596 = vmatpush2.msra.mxu0 0.0
      %597 = vmatprep.subr.mxu0 0.0
      %598 = vmatpush2.msra.mxu0 0.0
      %599 = vmatprep.mubr.f32.mxu0 0.0
      %600 = vmatmul.mubr.f32.gmra.mxu0 %v533
      %v601 = vpop.f32.mrf.mxu0
      %v602 = vadd.f32 0.0, %v601
      %v603 = vpop.f32.mrf.mxu0
      %604 = vdwg.mxu0
      %v605 = vlaneseq
      %v606 = vshrl.u32 %v605, 7
      %v607 = vsub.s32 0, %v606
      %v608 = vrot.slane %v602, %v607
      %v609 = vsub.f32 %v496, %v608
      %v610 = vsub.f32 %v497, %v608
      %v611 = vsub.f32 %v498, %v608
      %v612 = vsub.f32 %v499, %v608
      %v613 = vsub.f32 %v500, %v608
      %v614 = vsub.f32 %v501, %v608
      %v615 = vsub.f32 %v502, %v608
      %v616 = vsub.f32 %v503, %v608
      %v617 = vmul.f32 %v609, %v609
      %v618 = vmul.f32 %v610, %v610
      %v619 = vmul.f32 %v611, %v611
      %v620 = vmul.f32 %v612, %v612
      %v621 = vmul.f32 %v613, %v613
      %v622 = vmul.f32 %v614, %v614
      %v623 = vmul.f32 %v615, %v615
      %v624 = vmul.f32 %v616, %v616
      %v625 = vsel %vm508, %v617, 0.0
      %v626 = vsel %vm508, %v618, 0.0
      %v627 = vadd.f32 %v625, %v626
      %v628 = vsel %vm508, %v619, 0.0
      %v629 = vadd.f32 %v627, %v628
      %v630 = vsel %vm508, %v620, 0.0
      %v631 = vadd.f32 %v629, %v630
      %v632 = vsel %vm508, %v621, 0.0
      %v633 = vadd.f32 %v631, %v632
      %v634 = vsel %vm508, %v622, 0.0
      %v635 = vadd.f32 %v633, %v634
      %v636 = vsel %vm508, %v623, 0.0
      %v637 = vadd.f32 %v635, %v636
      %v638 = vsel %vm508, %v624, 0.0
      %v639 = vadd.f32 %v637, %v638
      %v640 = vrot.slane %v639, 4
      %v641 = vadd.f32 %v639, %v640
      %v642 = vrot.slane %v641, 2
      %v643 = vadd.f32 %v641, %v642
      %v644 = vrot.slane %v643, 1
      %v645 = vadd.f32 %v643, %v644
      %v646 = vmul.f32 %v645, %v530
      %v648 = vsel %vm508, %v646, 0
      %650 = vmatprep.subr.mxu0 0.0
      %651 = vmatpush1.msra.mxu0 0.0
      %652 = vmatprep.subr.mxu0 0.0
      %653 = vmatpush1.msra.mxu0 0.0
      %654 = vmatprep.subr.mxu0 0.0
      %655 = vmatpush1.msra.mxu0 0.0
      %656 = vmatprep.subr.mxu0 0.0
      %657 = vmatpush1.msra.mxu0 0.0
      %658 = vmatprep.subr.mxu0 0.0
      %659 = vmatpush1.msra.mxu0 0.0
      %660 = vmatprep.subr.mxu0 0.0
      %661 = vmatpush1.msra.mxu0 0.0
      %662 = vmatprep.subr.mxu0 0.0
      %663 = vmatpush1.msra.mxu0 0.0
      %664 = vmatprep.subr.mxu0 0.0
      %665 = vmatpush1.msra.mxu0 0.0
      %666 = vmatprep.subr.mxu0 0.0
      %667 = vmatpush1.msra.mxu0 0.0
      %668 = vmatprep.subr.mxu0 0.0
      %669 = vmatpush1.msra.mxu0 0.0
      %670 = vmatprep.subr.mxu0 0.0
      %671 = vmatpush1.msra.mxu0 0.0
      %672 = vmatprep.subr.mxu0 0.0
      %673 = vmatpush1.msra.mxu0 0.0
      %674 = vmatprep.subr.mxu0 0.0
      %675 = vmatpush1.msra.mxu0 0.0
      %676 = vmatprep.subr.mxu0 0.0
      %677 = vmatpush1.msra.mxu0 0.0
      %678 = vmatprep.subr.mxu0 0.0
      %679 = vmatpush1.msra.mxu0 %v507
      %680 = vmatprep.subr.mxu0 0.0
      %681 = vmatpush1.msra.mxu0 %v506
      %682 = vmatprep.subr.mxu0 0.0
      %683 = vmatpush2.msra.mxu0 0.0
      %684 = vmatprep.subr.mxu0 0.0
      %685 = vmatpush2.msra.mxu0 0.0
      %686 = vmatprep.subr.mxu0 0.0
      %687 = vmatpush2.msra.mxu0 0.0
      %688 = vmatprep.subr.mxu0 0.0
      %689 = vmatpush2.msra.mxu0 0.0
      %690 = vmatprep.subr.mxu0 0.0
      %691 = vmatpush2.msra.mxu0 0.0
      %692 = vmatprep.subr.mxu0 0.0
      %693 = vmatpush2.msra.mxu0 0.0
      %694 = vmatprep.subr.mxu0 0.0
      %695 = vmatpush2.msra.mxu0 0.0
      %696 = vmatprep.subr.mxu0 0.0
      %697 = vmatpush2.msra.mxu0 0.0
      %698 = vmatprep.subr.mxu0 0.0
      %699 = vmatpush2.msra.mxu0 0.0
      %700 = vmatprep.subr.mxu0 0.0
      %701 = vmatpush2.msra.mxu0 0.0
      %702 = vmatprep.subr.mxu0 0.0
      %703 = vmatpush2.msra.mxu0 0.0
      %704 = vmatprep.subr.mxu0 0.0
      %705 = vmatpush2.msra.mxu0 0.0
      %706 = vmatprep.subr.mxu0 0.0
      %707 = vmatpush2.msra.mxu0 0.0
      %708 = vmatprep.subr.mxu0 0.0
      %709 = vmatpush2.msra.mxu0 0.0
      %710 = vmatprep.subr.mxu0 0.0
      %711 = vmatpush2.msra.mxu0 0.0
      %712 = vmatprep.subr.mxu0 0.0
      %713 = vmatpush2.msra.mxu0 0.0
      %714 = vmatprep.mubr.f32.mxu0 0.0
      %715 = vmatmul.mubr.f32.gmra.mxu0 %v648
      %v716 = vpop.f32.mrf.mxu0
      %v717 = vadd.f32 1e-05, %v716
      %v718 = vpop.f32.mrf.mxu0
      %719 = vdwg.mxu0
      %v720 = vrsqrt.pop %v717
      %v721 = vlaneseq
      %v722 = vshrl.u32 %v721, 7
      %v723 = vsub.s32 0, %v722
      %v724 = vrot.slane %v720, %v723
      %v725 = vmul.f32 %v609, %v724
      %v726 = vmul.f32 %v610, %v724
      %v727 = vmul.f32 %v611, %v724
      %v728 = vmul.f32 %v612, %v724
      %v729 = vmul.f32 %v613, %v724
      %v730 = vmul.f32 %v614, %v724
      %v731 = vmul.f32 %v615, %v724
      %v732 = vmul.f32 %v616, %v724
      %v734 = vlaneseq
      %v735 = vshrl.u32 %v734, 7
      %v736 = vsub.s32 0, %v735
      %v737 = vrot.slane %v504, %v736
      %v739 = vmul.f32 %v725, %v737
      %v740 = vmul.f32 %v726, %v737
      %v741 = vmul.f32 %v727, %v737
      %v742 = vmul.f32 %v728, %v737
      %v743 = vmul.f32 %v729, %v737
      %v744 = vmul.f32 %v730, %v737
      %v745 = vmul.f32 %v731, %v737
      %v746 = vmul.f32 %v732, %v737
      %v748 = vlaneseq
      %v749 = vshrl.u32 %v748, 7
      %v750 = vsub.s32 0, %v749
      %v751 = vrot.slane %v505, %v750
      %v753 = vadd.f32 %v739, %v751
      %v754 = vadd.f32 %v740, %v751
      %v755 = vadd.f32 %v741, %v751
      %v756 = vadd.f32 %v742, %v751
      %v757 = vadd.f32 %v743, %v751
      %v758 = vadd.f32 %v744, %v751
      %v759 = vadd.f32 %v745, %v751
      %v760 = vadd.f32 %v746, %v751
      %v761 = vld [vmem:[%s4] sm:$0xf]
      %v762 = vld [vmem:[%s4 + $0x4] sm:$0xf]
      %v763 = vpack.c.bf16 %v754, %v753
      %v764 = vpack.c.bf16 %v756, %v755
      %v765 = vpack.c.bf16 %v758, %v757
      %v766 = vpack.c.bf16 %v760, %v759
      %v767 = vld [vmem:[%s5] sm:$0x1]
      %v769 = vlaneseq
      %v770 = vshrl.u32 %v769, 7
      %v771 = vsub.s32 0, %v770
      %v772 = vrot.slane %v767, %v771
      %v776 = vunpack.c.l.b16 %v761
      %v777 = vunpack.c.l.b16 %v762
      %v778 = vpack.c.b16 %v777, %v776
      %v781 = vsel %vm508, %v763, 0
      %v784 = vsel %vm508, %v764, 0
      %v787 = vsel %vm508, %v765, 0
      %v790 = vsel %vm508, %v766, 0
      %792 = vmatprep.subr.bf16.mxu0 0
      %793 = vmatpush1.bf16.msra.mxu0 0
      %794 = vmatprep.subr.bf16.mxu0 0
      %795 = vmatpush1.bf16.msra.mxu0 0
      %796 = vmatprep.subr.bf16.mxu0 0
      %797 = vmatpush1.bf16.msra.mxu0 0
      %798 = vmatprep.subr.bf16.mxu0 0
      %799 = vmatpush1.bf16.msra.mxu0 0
      %800 = vmatprep.subr.bf16.mxu0 0
      %801 = vmatpush1.bf16.msra.mxu0 0
      %802 = vmatprep.subr.bf16.mxu0 0
      %803 = vmatpush1.bf16.msra.mxu0 0
      %804 = vmatprep.subr.bf16.mxu0 0
      %805 = vmatpush1.bf16.msra.mxu0 0
      %806 = vmatprep.subr.bf16.mxu0 0
      %807 = vmatpush1.bf16.msra.mxu0 %v778
      %808 = vmatprep.subr.bf16.mxu0 0
      %809 = vmatpush2.bf16.msra.mxu0 0
      %810 = vmatprep.subr.bf16.mxu0 0
      %811 = vmatpush2.bf16.msra.mxu0 0
      %812 = vmatprep.subr.bf16.mxu0 0
      %813 = vmatpush2.bf16.msra.mxu0 0
      %814 = vmatprep.subr.bf16.mxu0 0
      %815 = vmatpush2.bf16.msra.mxu0 0
      %816 = vmatprep.subr.bf16.mxu0 0
      %817 = vmatpush2.bf16.msra.mxu0 0
      %818 = vmatprep.subr.bf16.mxu0 0
      %819 = vmatpush2.bf16.msra.mxu0 0
      %820 = vmatprep.subr.bf16.mxu0 0
      %821 = vmatpush2.bf16.msra.mxu0 0
      %822 = vmatprep.subr.bf16.mxu0 0
      %823 = vmatpush2.bf16.msra.mxu0 0
      %824 = vmatprep.mubr.bf16.mxu0 0
      %825 = vmatmul.mubr.bf16.gmra.mxu0 %v781
      %v826 = vpop.f32.mrf.mxu0
      %v827 = vadd.f32 %v772, %v826
      %v828 = vpop.f32.mrf.mxu0
      %v829 = vpop.f32.mrf.mxu0
      %v830 = vadd.f32 %v772, %v829
      %v831 = vpop.f32.mrf.mxu0
      %832 = vmatprep.mubr.bf16.mxu0 0
      %833 = vmatmul.mubr.bf16.gmra.mxu0 %v784
      %v834 = vpop.f32.mrf.mxu0
      %v835 = vadd.f32 %v772, %v834
      %v836 = vpop.f32.mrf.mxu0
      %v837 = vpop.f32.mrf.mxu0
      %v838 = vadd.f32 %v772, %v837
      %v839 = vpop.f32.mrf.mxu0
      %840 = vmatprep.mubr.bf16.mxu0 0
      %841 = vmatmul.mubr.bf16.gmra.mxu0 %v787
      %v842 = vpop.f32.mrf.mxu0
      %v843 = vadd.f32 %v772, %v842
      %v844 = vpop.f32.mrf.mxu0
      %v845 = vpop.f32.mrf.mxu0
      %v846 = vadd.f32 %v772, %v845
      %v847 = vpop.f32.mrf.mxu0
      %848 = vmatprep.mubr.bf16.mxu0 0
      %849 = vmatmul.mubr.bf16.gmra.mxu0 %v790
      %v850 = vpop.f32.mrf.mxu0
      %v851 = vadd.f32 %v772, %v850
      %v852 = vpop.f32.mrf.mxu0
      %v853 = vpop.f32.mrf.mxu0
      %v854 = vadd.f32 %v772, %v853
      %v855 = vpop.f32.mrf.mxu0
      %856 = vdwg.mxu0
      %v857 = vpack.c.bf16 %v830, %v827
      %v858 = vpack.c.bf16 %v838, %v835
      %v859 = vpack.c.bf16 %v846, %v843
      %v860 = vpack.c.bf16 %v854, %v851
      %865 = vrot.lane.b32.xlu0 %v857, 112
      %v866 = vpop.permute.xlu0 %865
      %867 = vrot.lane.b32.xlu0 %v858, 112
      %v868 = vpop.permute.xlu0 %867
      %869 = vrot.lane.b32.xlu0 %v859, 112
      %v870 = vpop.permute.xlu0 %869
      %871 = vrot.lane.b32.xlu0 %v860, 112
      %v872 = vpop.permute.xlu0 %871
      %vm873 = vcmask 64512
      %v875 = vsel %vm873, %v857, 0
      %v878 = vsel %vm873, %v858, 0
      %v881 = vsel %vm873, %v859, 0
      %v884 = vsel %vm873, %v860, 0
      %v887 = vsel %vm873, %v866, 0
      %v890 = vsel %vm873, %v868, 0
      %v893 = vsel %vm873, %v870, 0
      %v896 = vsel %vm873, %v872, 0
      %898 = vmatprep.subr.bf16.mxu0 0
      %899 = vmatpush1.bf16.xpose.msra.mxu0 0
      %900 = vmatprep.subr.bf16.mxu0 0
      %901 = vmatpush1.bf16.xpose.msra.mxu0 0
      %902 = vmatprep.subr.bf16.mxu0 0
      %903 = vmatpush1.bf16.xpose.msra.mxu0 0
      %904 = vmatprep.subr.bf16.mxu0 0
      %905 = vmatpush1.bf16.xpose.msra.mxu0 0
      %906 = vmatprep.subr.bf16.mxu0 0
      %907 = vmatpush1.bf16.xpose.msra.mxu0 %v896
      %908 = vmatprep.subr.bf16.mxu0 0
      %909 = vmatpush1.bf16.xpose.msra.mxu0 %v893
      %910 = vmatprep.subr.bf16.mxu0 0
      %911 = vmatpush1.bf16.xpose.msra.mxu0 %v890
      %912 = vmatprep.subr.bf16.mxu0 0
      %913 = vmatpush1.bf16.xpose.msra.mxu0 %v887
      %914 = vmatprep.subr.bf16.mxu0 0
      %915 = vmatpush2.bf16.xpose.msra.mxu0 0
      %916 = vmatprep.subr.bf16.mxu0 0
      %917 = vmatpush2.bf16.xpose.msra.mxu0 0
      %918 = vmatprep.subr.bf16.mxu0 0
      %919 = vmatpush2.bf16.xpose.msra.mxu0 0
      %920 = vmatprep.subr.bf16.mxu0 0
      %921 = vmatpush2.bf16.xpose.msra.mxu0 0
      %922 = vmatprep.subr.bf16.mxu0 0
      %923 = vmatpush2.bf16.xpose.msra.mxu0 0
      %924 = vmatprep.subr.bf16.mxu0 0
      %925 = vmatpush2.bf16.xpose.msra.mxu0 0
      %926 = vmatprep.subr.bf16.mxu0 0
      %927 = vmatpush2.bf16.xpose.msra.mxu0 0
      %928 = vmatprep.subr.bf16.mxu0 0
      %929 = vmatpush2.bf16.xpose.msra.mxu0 0
      %930 = vmatprep.mubr.bf16.mxu0 0
      %931 = vmatmul.mubr.bf16.gmra.mxu0 %v875
      %v932 = vpop.f32.mrf.mxu0
      %v933 = vadd.f32 0.0, %v932
      %v934 = vpop.f32.mrf.mxu0
      %v935 = vpop.f32.mrf.mxu0
      %v936 = vadd.f32 0.0, %v935
      %v937 = vpop.f32.mrf.mxu0
      %938 = vmatprep.mubr.bf16.mxu0 0
      %939 = vmatmul.mubr.bf16.gmra.mxu0 %v878
      %v940 = vpop.f32.mrf.mxu0
      %v941 = vadd.f32 0.0, %v940
      %v942 = vpop.f32.mrf.mxu0
      %v943 = vpop.f32.mrf.mxu0
      %v944 = vadd.f32 0.0, %v943
      %v945 = vpop.f32.mrf.mxu0
      %946 = vmatprep.mubr.bf16.mxu0 0
      %947 = vmatmul.mubr.bf16.gmra.mxu0 %v881
      %v948 = vpop.f32.mrf.mxu0
      %v949 = vadd.f32 0.0, %v948
      %v950 = vpop.f32.mrf.mxu0
      %v951 = vpop.f32.mrf.mxu0
      %v952 = vadd.f32 0.0, %v951
      %v953 = vpop.f32.mrf.mxu0
      %954 = vmatprep.mubr.bf16.mxu0 0
      %955 = vmatmul.mubr.bf16.gmra.mxu0 %v884
      %v956 = vpop.f32.mrf.mxu0
      %v957 = vadd.f32 0.0, %v956
      %v958 = vpop.f32.mrf.mxu0
      %v959 = vpop.f32.mrf.mxu0
      %v960 = vadd.f32 0.0, %v959
      %v961 = vpop.f32.mrf.mxu0
      %962 = vdwg.mxu0
      %v963 = vmul.f32 %v933, 0.35355338
      %v964 = vmul.f32 %v936, 0.35355338
      %v965 = vmul.f32 %v941, 0.35355338
      %v966 = vmul.f32 %v944, 0.35355338
      %v967 = vmul.f32 %v949, 0.35355338
      %v968 = vmul.f32 %v952, 0.35355338
      %v969 = vmul.f32 %v957, 0.35355338
      %v970 = vmul.f32 %v960, 0.35355338
      %vm971 = vcmask 523264
      %v972 = vsel %vm971, %v963, -inf
      %973 = vmax.xlane.f32.xlu0 %v972
      %v974 = vpop.xlane.xlu0 %973
      %v975 = vsel %vm971, %v964, -inf
      %976 = vmax.xlane.f32.xlu0 %v975
      %v977 = vpop.xlane.xlu0 %976
      %v978 = vsel %vm971, %v965, -inf
      %979 = vmax.xlane.f32.xlu0 %v978
      %v980 = vpop.xlane.xlu0 %979
      %v981 = vsel %vm971, %v966, -inf
      %982 = vmax.xlane.f32.xlu0 %v981
      %v983 = vpop.xlane.xlu0 %982
      %v984 = vsel %vm971, %v967, -inf
      %985 = vmax.xlane.f32.xlu0 %v984
      %v986 = vpop.xlane.xlu0 %985
      %v987 = vsel %vm971, %v968, -inf
      %988 = vmax.xlane.f32.xlu0 %v987
      %v989 = vpop.xlane.xlu0 %988
      %v990 = vsel %vm971, %v969, -inf
      %991 = vmax.xlane.f32.xlu0 %v990
      %v992 = vpop.xlane.xlu0 %991
      %v993 = vsel %vm971, %v970, -inf
      %994 = vmax.xlane.f32.xlu0 %v993
      %v995 = vpop.xlane.xlu0 %994
      %v996 = vsub.f32 %v963, %v974
      %v997 = vsub.f32 %v964, %v977
      %v998 = vsub.f32 %v965, %v980
      %v999 = vsub.f32 %v966, %v983
      %v1000 = vsub.f32 %v967, %v986
      %v1001 = vsub.f32 %v968, %v989
      %v1002 = vsub.f32 %v969, %v992
      %v1003 = vsub.f32 %v970, %v995
      %v1004 = vmul.f32 %v996, 1.442695
      %v1005 = vpow.pop %v1004
      %v1006 = vmul.f32 %v997, 1.442695
      %v1007 = vpow.pop %v1006
      %v1008 = vmul.f32 %v998, 1.442695
      %v1009 = vpow.pop %v1008
      %v1010 = vmul.f32 %v999, 1.442695
      %v1011 = vpow.pop %v1010
      %v1012 = vmul.f32 %v1000, 1.442695
      %v1013 = vpow.pop %v1012
      %v1014 = vmul.f32 %v1001, 1.442695
      %v1015 = vpow.pop %v1014
      %v1016 = vmul.f32 %v1002, 1.442695
      %v1017 = vpow.pop %v1016
      %v1018 = vmul.f32 %v1003, 1.442695
      %v1019 = vpow.pop %v1018
      %v1020 = vsel %vm971, %v1005, 0.0
      %1021 = vadd.xlane.f32.xlu0 %v1020
      %v1022 = vpop.xlane.xlu0 %1021
      %v1023 = vsel %vm971, %v1007, 0.0
      %1024 = vadd.xlane.f32.xlu0 %v1023
      %v1025 = vpop.xlane.xlu0 %1024
      %v1026 = vsel %vm971, %v1009, 0.0
      %1027 = vadd.xlane.f32.xlu0 %v1026
      %v1028 = vpop.xlane.xlu0 %1027
      %v1029 = vsel %vm971, %v1011, 0.0
      %1030 = vadd.xlane.f32.xlu0 %v1029
      %v1031 = vpop.xlane.xlu0 %1030
      %v1032 = vsel %vm971, %v1013, 0.0
      %1033 = vadd.xlane.f32.xlu0 %v1032
      %v1034 = vpop.xlane.xlu0 %1033
      %v1035 = vsel %vm971, %v1015, 0.0
      %1036 = vadd.xlane.f32.xlu0 %v1035
      %v1037 = vpop.xlane.xlu0 %1036
      %v1038 = vsel %vm971, %v1017, 0.0
      %1039 = vadd.xlane.f32.xlu0 %v1038
      %v1040 = vpop.xlane.xlu0 %1039
      %v1041 = vsel %vm971, %v1019, 0.0
      %1042 = vadd.xlane.f32.xlu0 %v1041
      %v1043 = vpop.xlane.xlu0 %1042
      %v1044 = vrcp.pop %v1022
      %v1045 = vrcp.pop %v1025
      %v1046 = vrcp.pop %v1028
      %v1047 = vrcp.pop %v1031
      %v1048 = vrcp.pop %v1034
      %v1049 = vrcp.pop %v1037
      %v1050 = vrcp.pop %v1040
      %v1051 = vrcp.pop %v1043
      %v1052 = vmul.f32 %v1005, %v1044
      %v1053 = vmul.f32 %v1007, %v1045
      %v1054 = vmul.f32 %v1009, %v1046
      %v1055 = vmul.f32 %v1011, %v1047
      %v1056 = vmul.f32 %v1013, %v1048
      %v1057 = vmul.f32 %v1015, %v1049
      %v1058 = vmul.f32 %v1017, %v1050
      %v1059 = vmul.f32 %v1019, %v1051
      %v1060 = vpack.c.bf16 %v1053, %v1052
      %v1061 = vpack.c.bf16 %v1055, %v1054
      %v1062 = vpack.c.bf16 %v1057, %v1056
      %v1063 = vpack.c.bf16 %v1059, %v1058
      %1064 = vrot.lane.b32.xlu0 %v857, 96
      %v1065 = vpop.permute.xlu0 %1064
      %1066 = vrot.lane.b32.xlu0 %v858, 96
      %v1067 = vpop.permute.xlu0 %1066
      %1068 = vrot.lane.b32.xlu0 %v859, 96
      %v1069 = vpop.permute.xlu0 %1068
      %1070 = vrot.lane.b32.xlu0 %v860, 96
      %v1071 = vpop.permute.xlu0 %1070
      %v1077 = vsel %vm971, %v1060, 0
      %v1080 = vsel %vm971, %v1061, 0
      %v1083 = vsel %vm971, %v1062, 0
      %v1086 = vsel %vm971, %v1063, 0
      %1088 = vmatprep.subr.bf16.mxu0 0
      %1089 = vmatpush1.bf16.msra.mxu0 0
      %1090 = vmatprep.subr.bf16.mxu0 0
      %1091 = vmatpush1.bf16.msra.mxu0 0
      %1092 = vmatprep.subr.bf16.mxu0 0
      %1093 = vmatpush1.bf16.msra.mxu0 0
      %1094 = vmatprep.subr.bf16.mxu0 0
      %1095 = vmatpush1.bf16.msra.mxu0 0
      %1096 = vmatprep.subr.bf16.mxu0 0
      %1097 = vmatpush1.bf16.msra.mxu0 %v1071
      %1098 = vmatprep.subr.bf16.mxu0 0
      %1099 = vmatpush1.bf16.msra.mxu0 %v1069
      %1100 = vmatprep.subr.bf16.mxu0 0
      %1101 = vmatpush1.bf16.msra.mxu0 %v1067
      %1102 = vmatprep.subr.bf16.mxu0 0
      %1103 = vmatpush1.bf16.msra.mxu0 %v1065
      %1104 = vmatprep.subr.bf16.mxu0 0
      %1105 = vmatpush2.bf16.msra.mxu0 0
      %1106 = vmatprep.subr.bf16.mxu0 0
      %1107 = vmatpush2.bf16.msra.mxu0 0
      %1108 = vmatprep.subr.bf16.mxu0 0
      %1109 = vmatpush2.bf16.msra.mxu0 0
      %1110 = vmatprep.subr.bf16.mxu0 0
      %1111 = vmatpush2.bf16.msra.mxu0 0
      %1112 = vmatprep.subr.bf16.mxu0 0
      %1113 = vmatpush2.bf16.msra.mxu0 0
      %1114 = vmatprep.subr.bf16.mxu0 0
      %1115 = vmatpush2.bf16.msra.mxu0 0
      %1116 = vmatprep.subr.bf16.mxu0 0
      %1117 = vmatpush2.bf16.msra.mxu0 0
      %1118 = vmatprep.subr.bf16.mxu0 0
      %1119 = vmatpush2.bf16.msra.mxu0 0
      %1120 = vmatprep.mubr.bf16.mxu0 0
      %1121 = vmatmul.mubr.bf16.gmra.mxu0 %v1077
      %v1122 = vpop.f32.mrf.mxu0
      %v1123 = vadd.f32 0.0, %v1122
      %v1124 = vpop.f32.mrf.mxu0
      %v1125 = vpop.f32.mrf.mxu0
      %v1126 = vadd.f32 0.0, %v1125
      %v1127 = vpop.f32.mrf.mxu0
      %1128 = vmatprep.mubr.bf16.mxu0 0
      %1129 = vmatmul.mubr.bf16.gmra.mxu0 %v1080
      %v1130 = vpop.f32.mrf.mxu0
      %v1131 = vadd.f32 0.0, %v1130
      %v1132 = vpop.f32.mrf.mxu0
      %v1133 = vpop.f32.mrf.mxu0
      %v1134 = vadd.f32 0.0, %v1133
      %v1135 = vpop.f32.mrf.mxu0
      %1136 = vmatprep.mubr.bf16.mxu0 0
      %1137 = vmatmul.mubr.bf16.gmra.mxu0 %v1083
      %v1138 = vpop.f32.mrf.mxu0
      %v1139 = vadd.f32 0.0, %v1138
      %v1140 = vpop.f32.mrf.mxu0
      %v1141 = vpop.f32.mrf.mxu0
      %v1142 = vadd.f32 0.0, %v1141
      %v1143 = vpop.f32.mrf.mxu0
      %1144 = vmatprep.mubr.bf16.mxu0 0
      %1145 = vmatmul.mubr.bf16.gmra.mxu0 %v1086
      %v1146 = vpop.f32.mrf.mxu0
      %v1147 = vadd.f32 0.0, %v1146
      %v1148 = vpop.f32.mrf.mxu0
      %v1149 = vpop.f32.mrf.mxu0
      %v1150 = vadd.f32 0.0, %v1149
      %v1151 = vpop.f32.mrf.mxu0
      %1152 = vdwg.mxu0
      %1153 = vrot.lane.b32.xlu0 %v857, 120
      %v1154 = vpop.permute.xlu0 %1153
      %1155 = vrot.lane.b32.xlu0 %v858, 120
      %v1156 = vpop.permute.xlu0 %1155
      %1157 = vrot.lane.b32.xlu0 %v859, 120
      %v1158 = vpop.permute.xlu0 %1157
      %1159 = vrot.lane.b32.xlu0 %v860, 120
      %v1160 = vpop.permute.xlu0 %1159
      %1161 = vrot.lane.b32.xlu0 %v857, 104
      %v1162 = vpop.permute.xlu0 %1161
      %1163 = vrot.lane.b32.xlu0 %v858, 104
      %v1164 = vpop.permute.xlu0 %1163
      %1165 = vrot.lane.b32.xlu0 %v859, 104
      %v1166 = vpop.permute.xlu0 %1165
      %1167 = vrot.lane.b32.xlu0 %v860, 104
      %v1168 = vpop.permute.xlu0 %1167
      %v1170 = vsel %vm873, %v1154, 0
      %v1173 = vsel %vm873, %v1156, 0
      %v1176 = vsel %vm873, %v1158, 0
      %v1179 = vsel %vm873, %v1160, 0
      %v1182 = vsel %vm873, %v1162, 0
      %v1185 = vsel %vm873, %v1164, 0
      %v1188 = vsel %vm873, %v1166, 0
      %v1191 = vsel %vm873, %v1168, 0
      %1193 = vmatprep.subr.bf16.mxu0 0
      %1194 = vmatpush1.bf16.xpose.msra.mxu0 0
      %1195 = vmatprep.subr.bf16.mxu0 0
      %1196 = vmatpush1.bf16.xpose.msra.mxu0 0
      %1197 = vmatprep.subr.bf16.mxu0 0
      %1198 = vmatpush1.bf16.xpose.msra.mxu0 0
      %1199 = vmatprep.subr.bf16.mxu0 0
      %1200 = vmatpush1.bf16.xpose.msra.mxu0 0
      %1201 = vmatprep.subr.bf16.mxu0 0
      %1202 = vmatpush1.bf16.xpose.msra.mxu0 %v1191
      %1203 = vmatprep.subr.bf16.mxu0 0
      %1204 = vmatpush1.bf16.xpose.msra.mxu0 %v1188
      %1205 = vmatprep.subr.bf16.mxu0 0
      %1206 = vmatpush1.bf16.xpose.msra.mxu0 %v1185
      %1207 = vmatprep.subr.bf16.mxu0 0
      %1208 = vmatpush1.bf16.xpose.msra.mxu0 %v1182
      %1209 = vmatprep.subr.bf16.mxu0 0
      %1210 = vmatpush2.bf16.xpose.msra.mxu0 0
      %1211 = vmatprep.subr.bf16.mxu0 0
      %1212 = vmatpush2.bf16.xpose.msra.mxu0 0
      %1213 = vmatprep.subr.bf16.mxu0 0
      %1214 = vmatpush2.bf16.xpose.msra.mxu0 0
      %1215 = vmatprep.subr.bf16.mxu0 0
      %1216 = vmatpush2.bf16.xpose.msra.mxu0 0
      %1217 = vmatprep.subr.bf16.mxu0 0
      %1218 = vmatpush2.bf16.xpose.msra.mxu0 0
      %1219 = vmatprep.subr.bf16.mxu0 0
      %1220 = vmatpush2.bf16.xpose.msra.mxu0 0
      %1221 = vmatprep.subr.bf16.mxu0 0
      %1222 = vmatpush2.bf16.xpose.msra.mxu0 0
      %1223 = vmatprep.subr.bf16.mxu0 0
      %1224 = vmatpush2.bf16.xpose.msra.mxu0 0
      %1225 = vmatprep.mubr.bf16.mxu0 0
      %1226 = vmatmul.mubr.bf16.gmra.mxu0 %v1170
      %v1227 = vpop.f32.mrf.mxu0
      %v1228 = vadd.f32 0.0, %v1227
      %v1229 = vpop.f32.mrf.mxu0
      %v1230 = vpop.f32.mrf.mxu0
      %v1231 = vadd.f32 0.0, %v1230
      %v1232 = vpop.f32.mrf.mxu0
      %1233 = vmatprep.mubr.bf16.mxu0 0
      %1234 = vmatmul.mubr.bf16.gmra.mxu0 %v1173
      %v1235 = vpop.f32.mrf.mxu0
      %v1236 = vadd.f32 0.0, %v1235
      %v1237 = vpop.f32.mrf.mxu0
      %v1238 = vpop.f32.mrf.mxu0
      %v1239 = vadd.f32 0.0, %v1238
      %v1240 = vpop.f32.mrf.mxu0
      %1241 = vmatprep.mubr.bf16.mxu0 0
      %1242 = vmatmul.mubr.bf16.gmra.mxu0 %v1176
      %v1243 = vpop.f32.mrf.mxu0
      %v1244 = vadd.f32 0.0, %v1243
      %v1245 = vpop.f32.mrf.mxu0
      %v1246 = vpop.f32.mrf.mxu0
      %v1247 = vadd.f32 0.0, %v1246
      %v1248 = vpop.f32.mrf.mxu0
      %1249 = vmatprep.mubr.bf16.mxu0 0
      %1250 = vmatmul.mubr.bf16.gmra.mxu0 %v1179
      %v1251 = vpop.f32.mrf.mxu0
      %v1252 = vadd.f32 0.0, %v1251
      %v1253 = vpop.f32.mrf.mxu0
      %v1254 = vpop.f32.mrf.mxu0
      %v1255 = vadd.f32 0.0, %v1254
      %v1256 = vpop.f32.mrf.mxu0
      %1257 = vdwg.mxu0
      %v1258 = vmul.f32 %v1228, 0.35355338
      %v1259 = vmul.f32 %v1231, 0.35355338
      %v1260 = vmul.f32 %v1236, 0.35355338
      %v1261 = vmul.f32 %v1239, 0.35355338
      %v1262 = vmul.f32 %v1244, 0.35355338
      %v1263 = vmul.f32 %v1247, 0.35355338
      %v1264 = vmul.f32 %v1252, 0.35355338
      %v1265 = vmul.f32 %v1255, 0.35355338
      %v1266 = vsel %vm971, %v1258, -inf
      %1267 = vmax.xlane.f32.xlu0 %v1266
      %v1268 = vpop.xlane.xlu0 %1267
      %v1269 = vsel %vm971, %v1259, -inf
      %1270 = vmax.xlane.f32.xlu0 %v1269
      %v1271 = vpop.xlane.xlu0 %1270
      %v1272 = vsel %vm971, %v1260, -inf
      %1273 = vmax.xlane.f32.xlu0 %v1272
      %v1274 = vpop.xlane.xlu0 %1273
      %v1275 = vsel %vm971, %v1261, -inf
      %1276 = vmax.xlane.f32.xlu0 %v1275
      %v1277 = vpop.xlane.xlu0 %1276
      %v1278 = vsel %vm971, %v1262, -inf
      %1279 = vmax.xlane.f32.xlu0 %v1278
      %v1280 = vpop.xlane.xlu0 %1279
      %v1281 = vsel %vm971, %v1263, -inf
      %1282 = vmax.xlane.f32.xlu0 %v1281
      %v1283 = vpop.xlane.xlu0 %1282
      %v1284 = vsel %vm971, %v1264, -inf
      %1285 = vmax.xlane.f32.xlu0 %v1284
      %v1286 = vpop.xlane.xlu0 %1285
      %v1287 = vsel %vm971, %v1265, -inf
      %1288 = vmax.xlane.f32.xlu0 %v1287
      %v1289 = vpop.xlane.xlu0 %1288
      %v1290 = vsub.f32 %v1258, %v1268
      %v1291 = vsub.f32 %v1259, %v1271
      %v1292 = vsub.f32 %v1260, %v1274
      %v1293 = vsub.f32 %v1261, %v1277
      %v1294 = vsub.f32 %v1262, %v1280
      %v1295 = vsub.f32 %v1263, %v1283
      %v1296 = vsub.f32 %v1264, %v1286
      %v1297 = vsub.f32 %v1265, %v1289
      %v1298 = vmul.f32 %v1290, 1.442695
      %v1299 = vpow.pop %v1298
      %v1300 = vmul.f32 %v1291, 1.442695
      %v1301 = vpow.pop %v1300
      %v1302 = vmul.f32 %v1292, 1.442695
      %v1303 = vpow.pop %v1302
      %v1304 = vmul.f32 %v1293, 1.442695
      %v1305 = vpow.pop %v1304
      %v1306 = vmul.f32 %v1294, 1.442695
      %v1307 = vpow.pop %v1306
      %v1308 = vmul.f32 %v1295, 1.442695
      %v1309 = vpow.pop %v1308
      %v1310 = vmul.f32 %v1296, 1.442695
      %v1311 = vpow.pop %v1310
      %v1312 = vmul.f32 %v1297, 1.442695
      %v1313 = vpow.pop %v1312
      %v1314 = vsel %vm971, %v1299, 0.0
      %1315 = vadd.xlane.f32.xlu0 %v1314
      %v1316 = vpop.xlane.xlu0 %1315
      %v1317 = vsel %vm971, %v1301, 0.0
      %1318 = vadd.xlane.f32.xlu0 %v1317
      %v1319 = vpop.xlane.xlu0 %1318
      %v1320 = vsel %vm971, %v1303, 0.0
      %1321 = vadd.xlane.f32.xlu0 %v1320
      %v1322 = vpop.xlane.xlu0 %1321
      %v1323 = vsel %vm971, %v1305, 0.0
      %1324 = vadd.xlane.f32.xlu0 %v1323
      %v1325 = vpop.xlane.xlu0 %1324
      %v1326 = vsel %vm971, %v1307, 0.0
      %1327 = vadd.xlane.f32.xlu0 %v1326
      %v1328 = vpop.xlane.xlu0 %1327
      %v1329 = vsel %vm971, %v1309, 0.0
      %1330 = vadd.xlane.f32.xlu0 %v1329
      %v1331 = vpop.xlane.xlu0 %1330
      %v1332 = vsel %vm971, %v1311, 0.0
      %1333 = vadd.xlane.f32.xlu0 %v1332
      %v1334 = vpop.xlane.xlu0 %1333
      %v1335 = vsel %vm971, %v1313, 0.0
      %1336 = vadd.xlane.f32.xlu0 %v1335
      %v1337 = vpop.xlane.xlu0 %1336
      %v1338 = vrcp.pop %v1316
      %v1339 = vrcp.pop %v1319
      %v1340 = vrcp.pop %v1322
      %v1341 = vrcp.pop %v1325
      %v1342 = vrcp.pop %v1328
      %v1343 = vrcp.pop %v1331
      %v1344 = vrcp.pop %v1334
      %v1345 = vrcp.pop %v1337
      %v1346 = vmul.f32 %v1299, %v1338
      %v1347 = vmul.f32 %v1301, %v1339
      %v1348 = vmul.f32 %v1303, %v1340
      %v1349 = vmul.f32 %v1305, %v1341
      %v1350 = vmul.f32 %v1307, %v1342
      %v1351 = vmul.f32 %v1309, %v1343
      %v1352 = vmul.f32 %v1311, %v1344
      %v1353 = vmul.f32 %v1313, %v1345
      %v1354 = vpack.c.bf16 %v1347, %v1346
      %v1355 = vpack.c.bf16 %v1349, %v1348
      %v1356 = vpack.c.bf16 %v1351, %v1350
      %v1357 = vpack.c.bf16 %v1353, %v1352
      %1358 = vrot.lane.b32.xlu0 %v857, 88
      %v1359 = vpop.permute.xlu0 %1358
      %1360 = vrot.lane.b32.xlu0 %v858, 88
      %v1361 = vpop.permute.xlu0 %1360
      %1362 = vrot.lane.b32.xlu0 %v859, 88
      %v1363 = vpop.permute.xlu0 %1362
      %1364 = vrot.lane.b32.xlu0 %v860, 88
      %v1365 = vpop.permute.xlu0 %1364
      %v1371 = vsel %vm971, %v1354, 0
      %v1374 = vsel %vm971, %v1355, 0
      %v1377 = vsel %vm971, %v1356, 0
      %v1380 = vsel %vm971, %v1357, 0
      %1382 = vmatprep.subr.bf16.mxu0 0
      %1383 = vmatpush1.bf16.msra.mxu0 0
      %1384 = vmatprep.subr.bf16.mxu0 0
      %1385 = vmatpush1.bf16.msra.mxu0 0
      %1386 = vmatprep.subr.bf16.mxu0 0
      %1387 = vmatpush1.bf16.msra.mxu0 0
      %1388 = vmatprep.subr.bf16.mxu0 0
      %1389 = vmatpush1.bf16.msra.mxu0 0
      %1390 = vmatprep.subr.bf16.mxu0 0
      %1391 = vmatpush1.bf16.msra.mxu0 %v1365
      %1392 = vmatprep.subr.bf16.mxu0 0
      %1393 = vmatpush1.bf16.msra.mxu0 %v1363
      %1394 = vmatprep.subr.bf16.mxu0 0
      %1395 = vmatpush1.bf16.msra.mxu0 %v1361
      %1396 = vmatprep.subr.bf16.mxu0 0
      %1397 = vmatpush1.bf16.msra.mxu0 %v1359
      %1398 = vmatprep.subr.bf16.mxu0 0
      %1399 = vmatpush2.bf16.msra.mxu0 0
      %1400 = vmatprep.subr.bf16.mxu0 0
      %1401 = vmatpush2.bf16.msra.mxu0 0
      %1402 = vmatprep.subr.bf16.mxu0 0
      %1403 = vmatpush2.bf16.msra.mxu0 0
      %1404 = vmatprep.subr.bf16.mxu0 0
      %1405 = vmatpush2.bf16.msra.mxu0 0
      %1406 = vmatprep.subr.bf16.mxu0 0
      %1407 = vmatpush2.bf16.msra.mxu0 0
      %1408 = vmatprep.subr.bf16.mxu0 0
      %1409 = vmatpush2.bf16.msra.mxu0 0
      %1410 = vmatprep.subr.bf16.mxu0 0
      %1411 = vmatpush2.bf16.msra.mxu0 0
      %1412 = vmatprep.subr.bf16.mxu0 0
      %1413 = vmatpush2.bf16.msra.mxu0 0
      %1414 = vmatprep.mubr.bf16.mxu0 0
      %1415 = vmatmul.mubr.bf16.gmra.mxu0 %v1371
      %v1416 = vpop.f32.mrf.mxu0
      %v1417 = vadd.f32 0.0, %v1416
      %v1418 = vpop.f32.mrf.mxu0
      %v1419 = vpop.f32.mrf.mxu0
      %v1420 = vadd.f32 0.0, %v1419
      %v1421 = vpop.f32.mrf.mxu0
      %1422 = vmatprep.mubr.bf16.mxu0 0
      %1423 = vmatmul.mubr.bf16.gmra.mxu0 %v1374
      %v1424 = vpop.f32.mrf.mxu0
      %v1425 = vadd.f32 0.0, %v1424
      %v1426 = vpop.f32.mrf.mxu0
      %v1427 = vpop.f32.mrf.mxu0
      %v1428 = vadd.f32 0.0, %v1427
      %v1429 = vpop.f32.mrf.mxu0
      %1430 = vmatprep.mubr.bf16.mxu0 0
      %1431 = vmatmul.mubr.bf16.gmra.mxu0 %v1377
      %v1432 = vpop.f32.mrf.mxu0
      %v1433 = vadd.f32 0.0, %v1432
      %v1434 = vpop.f32.mrf.mxu0
      %v1435 = vpop.f32.mrf.mxu0
      %v1436 = vadd.f32 0.0, %v1435
      %v1437 = vpop.f32.mrf.mxu0
      %1438 = vmatprep.mubr.bf16.mxu0 0
      %1439 = vmatmul.mubr.bf16.gmra.mxu0 %v1380
      %v1440 = vpop.f32.mrf.mxu0
      %v1441 = vadd.f32 0.0, %v1440
      %v1442 = vpop.f32.mrf.mxu0
      %v1443 = vpop.f32.mrf.mxu0
      %v1444 = vadd.f32 0.0, %v1443
      %v1445 = vpop.f32.mrf.mxu0
      %1446 = vdwg.mxu0
      %1455 = vrot.lane.b32.xlu0 %v1417, 8
      %v1456 = vpop.permute.xlu0 %1455
      %1457 = vrot.lane.b32.xlu0 %v1420, 8
      %v1458 = vpop.permute.xlu0 %1457
      %1459 = vrot.lane.b32.xlu0 %v1425, 8
      %v1460 = vpop.permute.xlu0 %1459
      %1461 = vrot.lane.b32.xlu0 %v1428, 8
      %v1462 = vpop.permute.xlu0 %1461
      %1463 = vrot.lane.b32.xlu0 %v1433, 8
      %v1464 = vpop.permute.xlu0 %1463
      %1465 = vrot.lane.b32.xlu0 %v1436, 8
      %v1466 = vpop.permute.xlu0 %1465
      %1467 = vrot.lane.b32.xlu0 %v1441, 8
      %v1468 = vpop.permute.xlu0 %1467
      %1469 = vrot.lane.b32.xlu0 %v1444, 8
      %v1470 = vpop.permute.xlu0 %1469
      %v1479 = vsel %vm873, %v1123, %v1456
      %v1480 = vsel %vm873, %v1126, %v1458
      %v1481 = vsel %vm873, %v1131, %v1460
      %v1482 = vsel %vm873, %v1134, %v1462
      %v1483 = vsel %vm873, %v1139, %v1464
      %v1484 = vsel %vm873, %v1142, %v1466
      %v1485 = vsel %vm873, %v1147, %v1468
      %v1486 = vsel %vm873, %v1150, %v1470
      %v1487 = vld [vmem:[%s6] sm:$0xf]
      %v1488 = vld [vmem:[%s6 + $0x4] sm:$0xf]
      %v1489 = vpack.c.bf16 %v1480, %v1479
      %v1490 = vpack.c.bf16 %v1482, %v1481
      %v1491 = vpack.c.bf16 %v1484, %v1483
      %v1492 = vpack.c.bf16 %v1486, %v1485
      %v1493 = vld [vmem:[%s7] sm:$0x1]
      %v1495 = vlaneseq
      %v1496 = vshrl.u32 %v1495, 7
      %v1497 = vsub.s32 0, %v1496
      %v1498 = vrot.slane %v1493, %v1497
      %v1502 = vunpack.c.l.b16 %v1487
      %v1503 = vunpack.c.l.b16 %v1488
      %v1504 = vpack.c.b16 %v1503, %v1502
      %v1507 = vsel %vm508, %v1489, 0
      %v1510 = vsel %vm508, %v1490, 0
      %v1513 = vsel %vm508, %v1491, 0
      %v1516 = vsel %vm508, %v1492, 0
      %1518 = vmatprep.subr.bf16.mxu0 0
      %1519 = vmatpush1.bf16.msra.mxu0 0
      %1520 = vmatprep.subr.bf16.mxu0 0
      %1521 = vmatpush1.bf16.msra.mxu0 0
      %1522 = vmatprep.subr.bf16.mxu0 0
      %1523 = vmatpush1.bf16.msra.mxu0 0
      %1524 = vmatprep.subr.bf16.mxu0 0
      %1525 = vmatpush1.bf16.msra.mxu0 0
      %1526 = vmatprep.subr.bf16.mxu0 0
      %1527 = vmatpush1.bf16.msra.mxu0 0
      %1528 = vmatprep.subr.bf16.mxu0 0
      %1529 = vmatpush1.bf16.msra.mxu0 0
      %1530 = vmatprep.subr.bf16.mxu0 0
      %1531 = vmatpush1.bf16.msra.mxu0 0
      %1532 = vmatprep.subr.bf16.mxu0 0
      %1533 = vmatpush1.bf16.msra.mxu0 %v1504
      %1534 = vmatprep.subr.bf16.mxu0 0
      %1535 = vmatpush2.bf16.msra.mxu0 0
      %1536 = vmatprep.subr.bf16.mxu0 0
      %1537 = vmatpush2.bf16.msra.mxu0 0
      %1538 = vmatprep.subr.bf16.mxu0 0
      %1539 = vmatpush2.bf16.msra.mxu0 0
      %1540 = vmatprep.subr.bf16.mxu0 0
      %1541 = vmatpush2.bf16.msra.mxu0 0
      %1542 = vmatprep.subr.bf16.mxu0 0
      %1543 = vmatpush2.bf16.msra.mxu0 0
      %1544 = vmatprep.subr.bf16.mxu0 0
      %1545 = vmatpush2.bf16.msra.mxu0 0
      %1546 = vmatprep.subr.bf16.mxu0 0
      %1547 = vmatpush2.bf16.msra.mxu0 0
      %1548 = vmatprep.subr.bf16.mxu0 0
      %1549 = vmatpush2.bf16.msra.mxu0 0
      %1550 = vmatprep.mubr.bf16.mxu0 0
      %1551 = vmatmul.mubr.bf16.gmra.mxu0 %v1507
      %v1552 = vpop.f32.mrf.mxu0
      %v1553 = vadd.f32 %v1498, %v1552
      %v1554 = vpop.f32.mrf.mxu0
      %v1555 = vpop.f32.mrf.mxu0
      %v1556 = vadd.f32 %v1498, %v1555
      %v1557 = vpop.f32.mrf.mxu0
      %1558 = vmatprep.mubr.bf16.mxu0 0
      %1559 = vmatmul.mubr.bf16.gmra.mxu0 %v1510
      %v1560 = vpop.f32.mrf.mxu0
      %v1561 = vadd.f32 %v1498, %v1560
      %v1562 = vpop.f32.mrf.mxu0
      %v1563 = vpop.f32.mrf.mxu0
      %v1564 = vadd.f32 %v1498, %v1563
      %v1565 = vpop.f32.mrf.mxu0
      %1566 = vmatprep.mubr.bf16.mxu0 0
      %1567 = vmatmul.mubr.bf16.gmra.mxu0 %v1513
      %v1568 = vpop.f32.mrf.mxu0
      %v1569 = vadd.f32 %v1498, %v1568
      %v1570 = vpop.f32.mrf.mxu0
      %v1571 = vpop.f32.mrf.mxu0
      %v1572 = vadd.f32 %v1498, %v1571
      %v1573 = vpop.f32.mrf.mxu0
      %1574 = vmatprep.mubr.bf16.mxu0 0
      %1575 = vmatmul.mubr.bf16.gmra.mxu0 %v1516
      %v1576 = vpop.f32.mrf.mxu0
      %v1577 = vadd.f32 %v1498, %v1576
      %v1578 = vpop.f32.mrf.mxu0
      %v1579 = vpop.f32.mrf.mxu0
      %v1580 = vadd.f32 %v1498, %v1579
      %v1581 = vpop.f32.mrf.mxu0
      %1582 = vdwg.mxu0
      %v1583 = vadd.f32 %v496, %v1553
      %v1584 = vadd.f32 %v497, %v1556
      %v1585 = vadd.f32 %v498, %v1561
      %v1586 = vadd.f32 %v499, %v1564
      %v1587 = vadd.f32 %v500, %v1569
      %v1588 = vadd.f32 %v501, %v1572
      %v1589 = vadd.f32 %v502, %v1577
      %v1590 = vadd.f32 %v503, %v1580
      %v1591 = vld [vmem:[%s9] sm:$0x1]
      %v1592 = vld [vmem:[%s10] sm:$0x1]
      %v1593 = vld [vmem:[%s8] sm:$0xff]
      %v1594 = vld [vmem:[%s8 + $0x8] sm:$0xff]
      %v1595 = vsel %vm508, %v1583, 0.0
      %v1596 = vsel %vm508, %v1584, 0.0
      %v1597 = vadd.f32 %v1595, %v1596
      %v1598 = vsel %vm508, %v1585, 0.0
      %v1599 = vadd.f32 %v1597, %v1598
      %v1600 = vsel %vm508, %v1586, 0.0
      %v1601 = vadd.f32 %v1599, %v1600
      %v1602 = vsel %vm508, %v1587, 0.0
      %v1603 = vadd.f32 %v1601, %v1602
      %v1604 = vsel %vm508, %v1588, 0.0
      %v1605 = vadd.f32 %v1603, %v1604
      %v1606 = vsel %vm508, %v1589, 0.0
      %v1607 = vadd.f32 %v1605, %v1606
      %v1608 = vsel %vm508, %v1590, 0.0
      %v1609 = vadd.f32 %v1607, %v1608
      %v1610 = vrot.slane %v1609, 4
      %v1611 = vadd.f32 %v1609, %v1610
      %v1612 = vrot.slane %v1611, 2
      %v1613 = vadd.f32 %v1611, %v1612
      %v1614 = vrot.slane %v1613, 1
      %v1615 = vadd.f32 %v1613, %v1614
      %v1616 = vmul.f32 %v1615, %v530
      %v1618 = vsel %vm508, %v1616, 0
      %1620 = vmatprep.subr.mxu0 0.0
      %1621 = vmatpush1.msra.mxu0 0.0
      %1622 = vmatprep.subr.mxu0 0.0
      %1623 = vmatpush1.msra.mxu0 0.0
      %1624 = vmatprep.subr.mxu0 0.0
      %1625 = vmatpush1.msra.mxu0 0.0
      %1626 = vmatprep.subr.mxu0 0.0
      %1627 = vmatpush1.msra.mxu0 0.0
      %1628 = vmatprep.subr.mxu0 0.0
      %1629 = vmatpush1.msra.mxu0 0.0
      %1630 = vmatprep.subr.mxu0 0.0
      %1631 = vmatpush1.msra.mxu0 0.0
      %1632 = vmatprep.subr.mxu0 0.0
      %1633 = vmatpush1.msra.mxu0 0.0
      %1634 = vmatprep.subr.mxu0 0.0
      %1635 = vmatpush1.msra.mxu0 0.0
      %1636 = vmatprep.subr.mxu0 0.0
      %1637 = vmatpush1.msra.mxu0 0.0
      %1638 = vmatprep.subr.mxu0 0.0
      %1639 = vmatpush1.msra.mxu0 0.0
      %1640 = vmatprep.subr.mxu0 0.0
      %1641 = vmatpush1.msra.mxu0 0.0
      %1642 = vmatprep.subr.mxu0 0.0
      %1643 = vmatpush1.msra.mxu0 0.0
      %1644 = vmatprep.subr.mxu0 0.0
      %1645 = vmatpush1.msra.mxu0 0.0
      %1646 = vmatprep.subr.mxu0 0.0
      %1647 = vmatpush1.msra.mxu0 0.0
      %1648 = vmatprep.subr.mxu0 0.0
      %1649 = vmatpush1.msra.mxu0 %v1594
      %1650 = vmatprep.subr.mxu0 0.0
      %1651 = vmatpush1.msra.mxu0 %v1593
      %1652 = vmatprep.subr.mxu0 0.0
      %1653 = vmatpush2.msra.mxu0 0.0
      %1654 = vmatprep.subr.mxu0 0.0
      %1655 = vmatpush2.msra.mxu0 0.0
      %1656 = vmatprep.subr.mxu0 0.0
      %1657 = vmatpush2.msra.mxu0 0.0
      %1658 = vmatprep.subr.mxu0 0.0
      %1659 = vmatpush2.msra.mxu0 0.0
      %1660 = vmatprep.subr.mxu0 0.0
      %1661 = vmatpush2.msra.mxu0 0.0
      %1662 = vmatprep.subr.mxu0 0.0
      %1663 = vmatpush2.msra.mxu0 0.0
      %1664 = vmatprep.subr.mxu0 0.0
      %1665 = vmatpush2.msra.mxu0 0.0
      %1666 = vmatprep.subr.mxu0 0.0
      %1667 = vmatpush2.msra.mxu0 0.0
      %1668 = vmatprep.subr.mxu0 0.0
      %1669 = vmatpush2.msra.mxu0 0.0
      %1670 = vmatprep.subr.mxu0 0.0
      %1671 = vmatpush2.msra.mxu0 0.0
      %1672 = vmatprep.subr.mxu0 0.0
      %1673 = vmatpush2.msra.mxu0 0.0
      %1674 = vmatprep.subr.mxu0 0.0
      %1675 = vmatpush2.msra.mxu0 0.0
      %1676 = vmatprep.subr.mxu0 0.0
      %1677 = vmatpush2.msra.mxu0 0.0
      %1678 = vmatprep.subr.mxu0 0.0
      %1679 = vmatpush2.msra.mxu0 0.0
      %1680 = vmatprep.subr.mxu0 0.0
      %1681 = vmatpush2.msra.mxu0 0.0
      %1682 = vmatprep.subr.mxu0 0.0
      %1683 = vmatpush2.msra.mxu0 0.0
      %1684 = vmatprep.mubr.f32.mxu0 0.0
      %1685 = vmatmul.mubr.f32.gmra.mxu0 %v1618
      %v1686 = vpop.f32.mrf.mxu0
      %v1687 = vadd.f32 0.0, %v1686
      %v1688 = vpop.f32.mrf.mxu0
      %1689 = vdwg.mxu0
      %v1690 = vlaneseq
      %v1691 = vshrl.u32 %v1690, 7
      %v1692 = vsub.s32 0, %v1691
      %v1693 = vrot.slane %v1687, %v1692
      %v1694 = vsub.f32 %v1583, %v1693
      %v1695 = vsub.f32 %v1584, %v1693
      %v1696 = vsub.f32 %v1585, %v1693
      %v1697 = vsub.f32 %v1586, %v1693
      %v1698 = vsub.f32 %v1587, %v1693
      %v1699 = vsub.f32 %v1588, %v1693
      %v1700 = vsub.f32 %v1589, %v1693
      %v1701 = vsub.f32 %v1590, %v1693
      %v1702 = vmul.f32 %v1694, %v1694
      %v1703 = vmul.f32 %v1695, %v1695
      %v1704 = vmul.f32 %v1696, %v1696
      %v1705 = vmul.f32 %v1697, %v1697
      %v1706 = vmul.f32 %v1698, %v1698
      %v1707 = vmul.f32 %v1699, %v1699
      %v1708 = vmul.f32 %v1700, %v1700
      %v1709 = vmul.f32 %v1701, %v1701
      %v1710 = vsel %vm508, %v1702, 0.0
      %v1711 = vsel %vm508, %v1703, 0.0
      %v1712 = vadd.f32 %v1710, %v1711
      %v1713 = vsel %vm508, %v1704, 0.0
      %v1714 = vadd.f32 %v1712, %v1713
      %v1715 = vsel %vm508, %v1705, 0.0
      %v1716 = vadd.f32 %v1714, %v1715
      %v1717 = vsel %vm508, %v1706, 0.0
      %v1718 = vadd.f32 %v1716, %v1717
      %v1719 = vsel %vm508, %v1707, 0.0
      %v1720 = vadd.f32 %v1718, %v1719
      %v1721 = vsel %vm508, %v1708, 0.0
      %v1722 = vadd.f32 %v1720, %v1721
      %v1723 = vsel %vm508, %v1709, 0.0
      %v1724 = vadd.f32 %v1722, %v1723
      %v1725 = vrot.slane %v1724, 4
      %v1726 = vadd.f32 %v1724, %v1725
      %v1727 = vrot.slane %v1726, 2
      %v1728 = vadd.f32 %v1726, %v1727
      %v1729 = vrot.slane %v1728, 1
      %v1730 = vadd.f32 %v1728, %v1729
      %v1731 = vmul.f32 %v1730, %v530
      %v1733 = vsel %vm508, %v1731, 0
      %1735 = vmatprep.subr.mxu0 0.0
      %1736 = vmatpush1.msra.mxu0 0.0
      %1737 = vmatprep.subr.mxu0 0.0
      %1738 = vmatpush1.msra.mxu0 0.0
      %1739 = vmatprep.subr.mxu0 0.0
      %1740 = vmatpush1.msra.mxu0 0.0
      %1741 = vmatprep.subr.mxu0 0.0
      %1742 = vmatpush1.msra.mxu0 0.0
      %1743 = vmatprep.subr.mxu0 0.0
      %1744 = vmatpush1.msra.mxu0 0.0
      %1745 = vmatprep.subr.mxu0 0.0
      %1746 = vmatpush1.msra.mxu0 0.0
      %1747 = vmatprep.subr.mxu0 0.0
      %1748 = vmatpush1.msra.mxu0 0.0
      %1749 = vmatprep.subr.mxu0 0.0
      %1750 = vmatpush1.msra.mxu0 0.0
      %1751 = vmatprep.subr.mxu0 0.0
      %1752 = vmatpush1.msra.mxu0 0.0
      %1753 = vmatprep.subr.mxu0 0.0
      %1754 = vmatpush1.msra.mxu0 0.0
      %1755 = vmatprep.subr.mxu0 0.0
      %1756 = vmatpush1.msra.mxu0 0.0
      %1757 = vmatprep.subr.mxu0 0.0
      %1758 = vmatpush1.msra.mxu0 0.0
      %1759 = vmatprep.subr.mxu0 0.0
      %1760 = vmatpush1.msra.mxu0 0.0
      %1761 = vmatprep.subr.mxu0 0.0
      %1762 = vmatpush1.msra.mxu0 0.0
      %1763 = vmatprep.subr.mxu0 0.0
      %1764 = vmatpush1.msra.mxu0 %v1594
      %1765 = vmatprep.subr.mxu0 0.0
      %1766 = vmatpush1.msra.mxu0 %v1593
      %1767 = vmatprep.subr.mxu0 0.0
      %1768 = vmatpush2.msra.mxu0 0.0
      %1769 = vmatprep.subr.mxu0 0.0
      %1770 = vmatpush2.msra.mxu0 0.0
      %1771 = vmatprep.subr.mxu0 0.0
      %1772 = vmatpush2.msra.mxu0 0.0
      %1773 = vmatprep.subr.mxu0 0.0
      %1774 = vmatpush2.msra.mxu0 0.0
      %1775 = vmatprep.subr.mxu0 0.0
      %1776 = vmatpush2.msra.mxu0 0.0
      %1777 = vmatprep.subr.mxu0 0.0
      %1778 = vmatpush2.msra.mxu0 0.0
      %1779 = vmatprep.subr.mxu0 0.0
      %1780 = vmatpush2.msra.mxu0 0.0
      %1781 = vmatprep.subr.mxu0 0.0
      %1782 = vmatpush2.msra.mxu0 0.0
      %1783 = vmatprep.subr.mxu0 0.0
      %1784 = vmatpush2.msra.mxu0 0.0
      %1785 = vmatprep.subr.mxu0 0.0
      %1786 = vmatpush2.msra.mxu0 0.0
      %1787 = vmatprep.subr.mxu0 0.0
      %1788 = vmatpush2.msra.mxu0 0.0
      %1789 = vmatprep.subr.mxu0 0.0
      %1790 = vmatpush2.msra.mxu0 0.0
      %1791 = vmatprep.subr.mxu0 0.0
      %1792 = vmatpush2.msra.mxu0 0.0
      %1793 = vmatprep.subr.mxu0 0.0
      %1794 = vmatpush2.msra.mxu0 0.0
      %1795 = vmatprep.subr.mxu0 0.0
      %1796 = vmatpush2.msra.mxu0 0.0
      %1797 = vmatprep.subr.mxu0 0.0
      %1798 = vmatpush2.msra.mxu0 0.0
      %1799 = vmatprep.mubr.f32.mxu0 0.0
      %1800 = vmatmul.mubr.f32.gmra.mxu0 %v1733
      %v1801 = vpop.f32.mrf.mxu0
      %v1802 = vadd.f32 1e-05, %v1801
      %v1803 = vpop.f32.mrf.mxu0
      %1804 = vdwg.mxu0
      %v1805 = vrsqrt.pop %v1802
      %v1806 = vlaneseq
      %v1807 = vshrl.u32 %v1806, 7
      %v1808 = vsub.s32 0, %v1807
      %v1809 = vrot.slane %v1805, %v1808
      %v1810 = vmul.f32 %v1694, %v1809
      %v1811 = vmul.f32 %v1695, %v1809
      %v1812 = vmul.f32 %v1696, %v1809
      %v1813 = vmul.f32 %v1697, %v1809
      %v1814 = vmul.f32 %v1698, %v1809
      %v1815 = vmul.f32 %v1699, %v1809
      %v1816 = vmul.f32 %v1700, %v1809
      %v1817 = vmul.f32 %v1701, %v1809
      %v1819 = vlaneseq
      %v1820 = vshrl.u32 %v1819, 7
      %v1821 = vsub.s32 0, %v1820
      %v1822 = vrot.slane %v1591, %v1821
      %v1824 = vmul.f32 %v1810, %v1822
      %v1825 = vmul.f32 %v1811, %v1822
      %v1826 = vmul.f32 %v1812, %v1822
      %v1827 = vmul.f32 %v1813, %v1822
      %v1828 = vmul.f32 %v1814, %v1822
      %v1829 = vmul.f32 %v1815, %v1822
      %v1830 = vmul.f32 %v1816, %v1822
      %v1831 = vmul.f32 %v1817, %v1822
      %v1833 = vlaneseq
      %v1834 = vshrl.u32 %v1833, 7
      %v1835 = vsub.s32 0, %v1834
      %v1836 = vrot.slane %v1592, %v1835
      %v1838 = vadd.f32 %v1824, %v1836
      %v1839 = vadd.f32 %v1825, %v1836
      %v1840 = vadd.f32 %v1826, %v1836
      %v1841 = vadd.f32 %v1827, %v1836
      %v1842 = vadd.f32 %v1828, %v1836
      %v1843 = vadd.f32 %v1829, %v1836
      %v1844 = vadd.f32 %v1830, %v1836
      %v1845 = vadd.f32 %v1831, %v1836
      %v1846 = vld [vmem:[%s11] sm:$0xf]
      %v1847 = vld [vmem:[%s11 + $0x4] sm:$0xf]
      %v1848 = vpack.c.bf16 %v1839, %v1838
      %v1849 = vpack.c.bf16 %v1841, %v1840
      %v1850 = vpack.c.bf16 %v1843, %v1842
      %v1851 = vpack.c.bf16 %v1845, %v1844
      %v1852 = vld [vmem:[%s12] sm:$0x1]
      %v1854 = vlaneseq
      %v1855 = vshrl.u32 %v1854, 7
      %v1856 = vsub.s32 0, %v1855
      %v1857 = vrot.slane %v1852, %v1856
      %v1861 = vunpack.c.l.b16 %v1846
      %v1862 = vunpack.c.l.b16 %v1847
      %v1863 = vpack.c.b16 %v1862, %v1861
      %v1866 = vsel %vm508, %v1848, 0
      %v1869 = vsel %vm508, %v1849, 0
      %v1872 = vsel %vm508, %v1850, 0
      %v1875 = vsel %vm508, %v1851, 0
      %1877 = vmatprep.subr.bf16.mxu0 0
      %1878 = vmatpush1.bf16.msra.mxu0 0
      %1879 = vmatprep.subr.bf16.mxu0 0
      %1880 = vmatpush1.bf16.msra.mxu0 0
      %1881 = vmatprep.subr.bf16.mxu0 0
      %1882 = vmatpush1.bf16.msra.mxu0 0
      %1883 = vmatprep.subr.bf16.mxu0 0
      %1884 = vmatpush1.bf16.msra.mxu0 0
      %1885 = vmatprep.subr.bf16.mxu0 0
      %1886 = vmatpush1.bf16.msra.mxu0 0
      %1887 = vmatprep.subr.bf16.mxu0 0
      %1888 = vmatpush1.bf16.msra.mxu0 0
      %1889 = vmatprep.subr.bf16.mxu0 0
      %1890 = vmatpush1.bf16.msra.mxu0 0
      %1891 = vmatprep.subr.bf16.mxu0 0
      %1892 = vmatpush1.bf16.msra.mxu0 %v1863
      %1893 = vmatprep.subr.bf16.mxu0 0
      %1894 = vmatpush2.bf16.msra.mxu0 0
      %1895 = vmatprep.subr.bf16.mxu0 0
      %1896 = vmatpush2.bf16.msra.mxu0 0
      %1897 = vmatprep.subr.bf16.mxu0 0
      %1898 = vmatpush2.bf16.msra.mxu0 0
      %1899 = vmatprep.subr.bf16.mxu0 0
      %1900 = vmatpush2.bf16.msra.mxu0 0
      %1901 = vmatprep.subr.bf16.mxu0 0
      %1902 = vmatpush2.bf16.msra.mxu0 0
      %1903 = vmatprep.subr.bf16.mxu0 0
      %1904 = vmatpush2.bf16.msra.mxu0 0
      %1905 = vmatprep.subr.bf16.mxu0 0
      %1906 = vmatpush2.bf16.msra.mxu0 0
      %1907 = vmatprep.subr.bf16.mxu0 0
      %1908 = vmatpush2.bf16.msra.mxu0 0
      %1909 = vmatprep.mubr.bf16.mxu0 0
      %1910 = vmatmul.mubr.bf16.gmra.mxu0 %v1866
      %v1911 = vpop.f32.mrf.mxu0
      %v1912 = vadd.f32 %v1857, %v1911
      %v1913 = vpop.f32.mrf.mxu0
      %v1914 = vpop.f32.mrf.mxu0
      %v1915 = vadd.f32 %v1857, %v1914
      %v1916 = vpop.f32.mrf.mxu0
      %1917 = vmatprep.mubr.bf16.mxu0 0
      %1918 = vmatmul.mubr.bf16.gmra.mxu0 %v1869
      %v1919 = vpop.f32.mrf.mxu0
      %v1920 = vadd.f32 %v1857, %v1919
      %v1921 = vpop.f32.mrf.mxu0
      %v1922 = vpop.f32.mrf.mxu0
      %v1923 = vadd.f32 %v1857, %v1922
      %v1924 = vpop.f32.mrf.mxu0
      %1925 = vmatprep.mubr.bf16.mxu0 0
      %1926 = vmatmul.mubr.bf16.gmra.mxu0 %v1872
      %v1927 = vpop.f32.mrf.mxu0
      %v1928 = vadd.f32 %v1857, %v1927
      %v1929 = vpop.f32.mrf.mxu0
      %v1930 = vpop.f32.mrf.mxu0
      %v1931 = vadd.f32 %v1857, %v1930
      %v1932 = vpop.f32.mrf.mxu0
      %1933 = vmatprep.mubr.bf16.mxu0 0
      %1934 = vmatmul.mubr.bf16.gmra.mxu0 %v1875
      %v1935 = vpop.f32.mrf.mxu0
      %v1936 = vadd.f32 %v1857, %v1935
      %v1937 = vpop.f32.mrf.mxu0
      %v1938 = vpop.f32.mrf.mxu0
      %v1939 = vadd.f32 %v1857, %v1938
      %v1940 = vpop.f32.mrf.mxu0
      %1941 = vdwg.mxu0
      %v1942 = vxor.u32 %v1912, 2147483648
      %v1943 = vxor.u32 %v1915, 2147483648
      %v1944 = vxor.u32 %v1920, 2147483648
      %v1945 = vxor.u32 %v1923, 2147483648
      %v1946 = vxor.u32 %v1928, 2147483648
      %v1947 = vxor.u32 %v1931, 2147483648
      %v1948 = vxor.u32 %v1936, 2147483648
      %v1949 = vxor.u32 %v1939, 2147483648
      %v1950 = vmul.f32 %v1942, 1.442695
      %v1951 = vpow.pop %v1950
      %v1952 = vmul.f32 %v1943, 1.442695
      %v1953 = vpow.pop %v1952
      %v1954 = vmul.f32 %v1944, 1.442695
      %v1955 = vpow.pop %v1954
      %v1956 = vmul.f32 %v1945, 1.442695
      %v1957 = vpow.pop %v1956
      %v1958 = vmul.f32 %v1946, 1.442695
      %v1959 = vpow.pop %v1958
      %v1960 = vmul.f32 %v1947, 1.442695
      %v1961 = vpow.pop %v1960
      %v1962 = vmul.f32 %v1948, 1.442695
      %v1963 = vpow.pop %v1962
      %v1964 = vmul.f32 %v1949, 1.442695
      %v1965 = vpow.pop %v1964
      %v1966 = vadd.f32 %v1951, 1.0
      %v1967 = vadd.f32 %v1953, 1.0
      %v1968 = vadd.f32 %v1955, 1.0
      %v1969 = vadd.f32 %v1957, 1.0
      %v1970 = vadd.f32 %v1959, 1.0
      %v1971 = vadd.f32 %v1961, 1.0
      %v1972 = vadd.f32 %v1963, 1.0
      %v1973 = vadd.f32 %v1965, 1.0
      %v1974 = vrcp.pop %v1966
      %v1975 = vmul.f32 1.0, %v1974
      %v1976 = vrcp.pop %v1967
      %v1977 = vmul.f32 1.0, %v1976
      %v1978 = vrcp.pop %v1968
      %v1979 = vmul.f32 1.0, %v1978
      %v1980 = vrcp.pop %v1969
      %v1981 = vmul.f32 1.0, %v1980
      %v1982 = vrcp.pop %v1970
      %v1983 = vmul.f32 1.0, %v1982
      %v1984 = vrcp.pop %v1971
      %v1985 = vmul.f32 1.0, %v1984
      %v1986 = vrcp.pop %v1972
      %v1987 = vmul.f32 1.0, %v1986
      %v1988 = vrcp.pop %v1973
      %v1989 = vmul.f32 1.0, %v1988
      %v1990 = vmul.f32 %v1912, %v1975
      %v1991 = vmul.f32 %v1915, %v1977
      %v1992 = vmul.f32 %v1920, %v1979
      %v1993 = vmul.f32 %v1923, %v1981
      %v1994 = vmul.f32 %v1928, %v1983
      %v1995 = vmul.f32 %v1931, %v1985
      %v1996 = vmul.f32 %v1936, %v1987
      %v1997 = vmul.f32 %v1939, %v1989
      %v1998 = vld [vmem:[%s13] sm:$0xf]
      %v1999 = vld [vmem:[%s13 + $0x4] sm:$0xf]
      %v2000 = vld [vmem:[%s13 + $0x8] sm:$0xf]
      %v2001 = vld [vmem:[%s13 + $0xc] sm:$0xf]
      %v2002 = vpack.c.bf16 %v1991, %v1990
      %v2003 = vpack.c.bf16 %v1993, %v1992
      %v2004 = vpack.c.bf16 %v1995, %v1994
      %v2005 = vpack.c.bf16 %v1997, %v1996
      %v2006 = vld [vmem:[%s14] sm:$0x1]
      %v2008 = vlaneseq
      %v2009 = vshrl.u32 %v2008, 7
      %v2010 = vsub.s32 0, %v2009
      %v2011 = vrot.slane %v2006, %v2010
      %v2017 = vunpack.c.l.b16 %v1998
      %v2018 = vunpack.c.l.b16 %v1999
      %v2019 = vunpack.c.l.b16 %v2000
      %v2020 = vunpack.c.l.b16 %v2001
      %v2021 = vpack.c.b16 %v2018, %v2017
      %v2022 = vpack.c.b16 %v2020, %v2019
      %vm2025 = vcmask 261120
      %v2027 = vsel %vm2025, %v2002, 0
      %v2030 = vsel %vm2025, %v2003, 0
      %v2033 = vsel %vm2025, %v2004, 0
      %v2036 = vsel %vm2025, %v2005, 0
      %2038 = vmatprep.subr.bf16.mxu0 0
      %2039 = vmatpush1.bf16.msra.mxu0 0
      %2040 = vmatprep.subr.bf16.mxu0 0
      %2041 = vmatpush1.bf16.msra.mxu0 0
      %2042 = vmatprep.subr.bf16.mxu0 0
      %2043 = vmatpush1.bf16.msra.mxu0 0
      %2044 = vmatprep.subr.bf16.mxu0 0
      %2045 = vmatpush1.bf16.msra.mxu0 0
      %2046 = vmatprep.subr.bf16.mxu0 0
      %2047 = vmatpush1.bf16.msra.mxu0 0
      %2048 = vmatprep.subr.bf16.mxu0 0
      %2049 = vmatpush1.bf16.msra.mxu0 0
      %2050 = vmatprep.subr.bf16.mxu0 0
      %2051 = vmatpush1.bf16.msra.mxu0 %v2022
      %2052 = vmatprep.subr.bf16.mxu0 0
      %2053 = vmatpush1.bf16.msra.mxu0 %v2021
      %2054 = vmatprep.subr.bf16.mxu0 0
      %2055 = vmatpush2.bf16.msra.mxu0 0
      %2056 = vmatprep.subr.bf16.mxu0 0
      %2057 = vmatpush2.bf16.msra.mxu0 0
      %2058 = vmatprep.subr.bf16.mxu0 0
      %2059 = vmatpush2.bf16.msra.mxu0 0
      %2060 = vmatprep.subr.bf16.mxu0 0
      %2061 = vmatpush2.bf16.msra.mxu0 0
      %2062 = vmatprep.subr.bf16.mxu0 0
      %2063 = vmatpush2.bf16.msra.mxu0 0
      %2064 = vmatprep.subr.bf16.mxu0 0
      %2065 = vmatpush2.bf16.msra.mxu0 0
      %2066 = vmatprep.subr.bf16.mxu0 0
      %2067 = vmatpush2.bf16.msra.mxu0 0
      %2068 = vmatprep.subr.bf16.mxu0 0
      %2069 = vmatpush2.bf16.msra.mxu0 0
      %2070 = vmatprep.mubr.bf16.mxu0 0
      %2071 = vmatmul.mubr.bf16.gmra.mxu0 %v2027
      %v2072 = vpop.f32.mrf.mxu0
      %v2073 = vadd.f32 %v2011, %v2072
      %v2074 = vpop.f32.mrf.mxu0
      %v2075 = vpop.f32.mrf.mxu0
      %v2076 = vadd.f32 %v2011, %v2075
      %v2077 = vpop.f32.mrf.mxu0
      %2078 = vmatprep.mubr.bf16.mxu0 0
      %2079 = vmatmul.mubr.bf16.gmra.mxu0 %v2030
      %v2080 = vpop.f32.mrf.mxu0
      %v2081 = vadd.f32 %v2011, %v2080
      %v2082 = vpop.f32.mrf.mxu0
      %v2083 = vpop.f32.mrf.mxu0
      %v2084 = vadd.f32 %v2011, %v2083
      %v2085 = vpop.f32.mrf.mxu0
      %2086 = vmatprep.mubr.bf16.mxu0 0
      %2087 = vmatmul.mubr.bf16.gmra.mxu0 %v2033
      %v2088 = vpop.f32.mrf.mxu0
      %v2089 = vadd.f32 %v2011, %v2088
      %v2090 = vpop.f32.mrf.mxu0
      %v2091 = vpop.f32.mrf.mxu0
      %v2092 = vadd.f32 %v2011, %v2091
      %v2093 = vpop.f32.mrf.mxu0
      %2094 = vmatprep.mubr.bf16.mxu0 0
      %2095 = vmatmul.mubr.bf16.gmra.mxu0 %v2036
      %v2096 = vpop.f32.mrf.mxu0
      %v2097 = vadd.f32 %v2011, %v2096
      %v2098 = vpop.f32.mrf.mxu0
      %v2099 = vpop.f32.mrf.mxu0
      %v2100 = vadd.f32 %v2011, %v2099
      %v2101 = vpop.f32.mrf.mxu0
      %2102 = vdwg.mxu0
      %v2103 = vadd.f32 %v1583, %v2073
      %v2104 = vadd.f32 %v1584, %v2076
      %v2105 = vadd.f32 %v1585, %v2081
      %v2106 = vadd.f32 %v1586, %v2084
      %v2107 = vadd.f32 %v1587, %v2089
      %v2108 = vadd.f32 %v1588, %v2092
      %v2109 = vadd.f32 %v1589, %v2097
      %v2110 = vadd.f32 %v1590, %v2100
      %2111 = vst.msk [vmem:[%s494] sm:$0xff] %vm508, %v2103
      %2112 = vst.msk [vmem:[%s494 + $0x8] sm:$0xff] %vm508, %v2104
      %2113 = vst.msk [vmem:[%s494 + $0x10] sm:$0xff] %vm508, %v2105
      %2114 = vst.msk [vmem:[%s494 + $0x18] sm:$0xff] %vm508, %v2106
      %2115 = vst.msk [vmem:[%s494 + $0x20] sm:$0xff] %vm508, %v2107
      %2116 = vst.msk [vmem:[%s494 + $0x28] sm:$0xff] %vm508, %v2108
      %2117 = vst.msk [vmem:[%s494 + $0x30] sm:$0xff] %vm508, %v2109
      %2118 = vst.msk [vmem:[%s494 + $0x38] sm:$0xff] %vm508, %v2110
      %p2119 = scmp.lt.s32.totalorder %s26, 1
      %s2120 = scalar_select %p2119, %s26, 1
      %s2121 = smul.addr %s2120, 8
      %s2122 = smul.addr %s2121, 8
      %s2123 = scalar_lea.vmem %s15, %s2122
      // Predicated region
      $region81: #{_lambda_.12} parent=79 // pred_check
        %p2124 = pneg %p364
      $region82: #{_lambda_.12} parent=79 // pred_check_branch
        %2126 = sbr.rel (%p2124) target = $region84
      $region83: #{_lambda_.12} parent=79 // pred_region
        _
      $region84: #{_lambda_.12} parent=79 // pred_fallthru
        _
    $region80: #{_lambda_.12} parent=5 // pred_fallthru
      _
    %p2127 = scmp.le.s32.totalorder 2, %s21
    // Predicated region
    $region85: #{_lambda_.12} parent=5 // pred_check
      %p2128 = pneg %p2127
    $region86: #{_lambda_.12} parent=5 // pred_check_branch
      %2130 = sbr.rel (%p2128) target = $region88
    $region87: #{_lambda_.12} parent=5 // pred_region
      %s2131 = ssub.s32 %s21, 2
      // Predicated region
      $region89: #{_lambda_.12} parent=87 // pred_check
        %p2132 = pneg %p370
      $region90: #{_lambda_.12} parent=87 // pred_check_branch
        %2134 = sbr.rel (%p2132) target = $region92
      $region91: #{_lambda_.12} parent=87 // pred_region
        %p2135 = scmp.lt.s32.totalorder %s27, 1
        %s2136 = scalar_select %p2135, %s27, 1
        %s2137 = smul.addr %s2136, 8
        %s2138 = smul.addr %s2137, 8
        %s2139 = scalar_lea.vmem %s15, %s2138
      $region92: #{_lambda_.12} parent=87 // pred_fallthru
        _
    $region88: #{_lambda_.12} parent=5 // pred_fallthru
      _
  $region6: #{_lambda_.12} parent=0 // loop_footer
    %s25 = sadd.s32 1, %s21
  $region7: #{_lambda_.12} parent=0 // loop_footer_branch
    %20 = sbr.rel target = $region3
  $region8: #{_lambda_.12} parent=0 // loop_exit
    _

</llo_original>
